<compile_context>
chip_gen: v5e
topology: v5e:2x2
jax: 0.10.0
libtpu: 0.0.40
codegen_flags: <defaults>
</compile_context>

<pallas_src>
import math

import jax
import jax.numpy as jnp
from jax import lax
from jax.experimental import pallas as pl
from jax.experimental.pallas import tpu as pltpu

PAD = 0.0            # Constants.PAD
NUM_TYPES = 4
EMB_DIM = 16
D_MODEL = 2 * EMB_DIM
DIM_FF = 2 * EMB_DIM           # == D_MODEL (dim_feedforward = 2*emb_dim)
NHEAD = 4
HEAD_DIM = D_MODEL // NHEAD
NUM_LAYERS = 2
LN_EPS = 1e-5
_VROWS = 7                     # packed (1, D) rows per layer: b_o, ln1w, ln1b, b1, b2, ln2w, ln2b
NEG_BIG = -1e9


def _layer_norm(y, w, b):
    mu = jnp.mean(y, axis=-1, keepdims=True)
    var = jnp.mean((y - mu) ** 2, axis=-1, keepdims=True)
    return (y - mu) * lax.rsqrt(var + LN_EPS) * w + b


def _rep_rows(x, n):
    # replicate x n times along sublanes: (M, D) -> (n*M, D); M is a multiple of 8 so the
    # reshape is a pure tile relabel (no lane movement).
    m, d = x.shape
    return jnp.broadcast_to(x[None], (n, m, d)).reshape(n * m, d)


def lanet_encoder_kernel(etr_ref, te_ref, cat_ref, tri_ref, hm_ref, hm2_ref,
                         bias_ref, wqkv_ref, wmisc_ref, bqkv_ref, vrows_ref,
                         out_ref):
    m, s = etr_ref.shape                   # m = BB*S*T token rows handled this step
    t = NUM_TYPES
    d = D_MODEL
    st = s * t
    bb_rows = m // st                      # batch rows per step

    # ---- causal history reduction (hoisted tri mask, tiny per-batch-row matmuls) ----
    # a[r, j] = [j <= i(r)] * event_type[bb, j, k(r)]   (r = bb*S*T + i*T + k)
    a = tri_ref[...] * etr_ref[...]                         # (M, S)
    te2d = te_ref[...]                                      # (BB*S, EMB)
    blocks = [
        jnp.dot(a[i * st:(i + 1) * st], te2d[i * s:(i + 1) * s],
                preferred_element_type=jnp.float32)
        for i in range(bb_rows)
    ]
    x_right = blocks[0] if bb_rows == 1 else jnp.concatenate(blocks, axis=0)
    x = jnp.concatenate([cat_ref[...], x_right], axis=1)    # (M, D) f32

    hm = hm_ref[...]                       # (NH*M, D)  bf16 per-head lane selector
    hm2 = hm2_ref[...]                     # (NH*M, 2D) bf16 [selector | selector]
    bias = bias_ref[...]                   # (M, NH*M)  f32 additive 0 / -1e9 group mask
    ones_b = jnp.ones((m, d), jnp.bfloat16)

    # dropout layers are identities (eval-mode semantics)
    for l in range(NUM_LAYERS):
        base = l * _VROWS
        b_o = vrows_ref[base + 0:base + 1]
        ln1w = vrows_ref[base + 1:base + 2]
        ln1b = vrows_ref[base + 2:base + 3]
        b_1 = vrows_ref[base + 3:base + 4]
        b_2 = vrows_ref[base + 4:base + 5]
        ln2w = vrows_ref[base + 5:base + 6]
        ln2b = vrows_ref[base + 6:base + 7]

        # fused Q|K|V projection (bf16 operands, f32 accumulate); 1/sqrt(hd) folded into Wq/bq
        qkv = jnp.dot(x.astype(jnp.bfloat16), wqkv_ref[l],
                      preferred_element_type=jnp.float32) + bqkv_ref[l:l + 1]   # (M, 3D)
        qb = qkv[:, :d].astype(jnp.bfloat16)
        kb = qkv[:, d:2 * d].astype(jnp.bfloat16)
        vb = qkv[:, 2 * d:].astype(jnp.bfloat16)

        # keys / [values | head-selector] replicated once per head along sublanes
        k_exp = _rep_rows(kb, NHEAD) * hm                                       # (NH*M, D)
        vm = _rep_rows(jnp.concatenate([vb, ones_b], axis=1), NHEAD) * hm2      # (NH*M, 2D)

        # all heads x all queries in one matmul; additive group mask, per-row max shift
        sc = lax.dot_general(qb, k_exp, (((1,), (1,)), ((), ())),
                             preferred_element_type=jnp.float32) + bias         # (M, NH*M)
        sc = sc - jnp.max(sc, axis=-1, keepdims=True)
        p = jnp.exp(sc).astype(jnp.bfloat16)

        # fused weighted-V + softmax-denominator matmul; approx reciprocal on the EUP
        av = jnp.dot(p, vm, preferred_element_type=jnp.float32)                 # (M, 2D)
        attn = av[:, :d] * pl.reciprocal(av[:, d:], approx=True)

        attn = jnp.dot(attn.astype(jnp.bfloat16), wmisc_ref[l, 0],
                       preferred_element_type=jnp.float32) + b_o
        x = _layer_norm(x + attn, ln1w, ln1b)                                   # post-norm
        ff = jnp.maximum(jnp.dot(x.astype(jnp.bfloat16), wmisc_ref[l, 1],
                                 preferred_element_type=jnp.float32) + b_1, 0.0)
        ff = jnp.dot(ff.astype(jnp.bfloat16), wmisc_ref[l, 2],
                     preferred_element_type=jnp.float32) + b_2
        x = _layer_norm(x + ff, ln2w, ln2b)

    # encoder_history: Linear(D -> 1) + sigmoid, emitted as a lane-dense (1, M) row
    hw = vrows_ref[NUM_LAYERS * _VROWS:NUM_LAYERS * _VROWS + 1]                  # (1, D)
    hb = vrows_ref[NUM_LAYERS * _VROWS + 1:NUM_LAYERS * _VROWS + 2, 0:1]         # (1, 1)
    logits = lax.dot_general(hw, x, (((1,), (1,)), ((), ())),
                             preferred_element_type=jnp.float32) + hb            # (1, M)
    out_ref[0] = jax.nn.sigmoid(logits)


def _temporal_enc(time, position_vec):
    result = time[..., None] / position_vec                       # (B, S, EMB)
    sin_part = jnp.sin(result[..., 0::2])
    cos_part = jnp.cos(result[..., 1::2])
    return jnp.stack([sin_part, cos_part], axis=-1).reshape(result.shape)


def init_params(key):
    ks = jax.random.split(key, 11)

    def nrm(k, shape, scale=0.1):
        return jax.random.normal(k, shape, dtype=jnp.float32) * scale

    d, ff, L = D_MODEL, DIM_FF, NUM_LAYERS
    return dict(
        position_vec=jnp.asarray(
            [math.pow(10000.0, 2.0 * (i // 2) / EMB_DIM) for i in range(EMB_DIM)],
            dtype=jnp.float32),
        cat_emb=nrm(ks[0], (NUM_TYPES, EMB_DIM), 1.0),
        win=nrm(ks[1], (L, 3 * d, d)),
        bin=nrm(ks[2], (L, 1, 3 * d)),
        wout=nrm(ks[3], (L, d, d)),
        bout=nrm(ks[4], (L, 1, d)),
        ln1w=jnp.ones((L, 1, d), jnp.float32),
        ln1b=jnp.zeros((L, 1, d), jnp.float32),
        w1=nrm(ks[5], (L, ff, d)),
        b1=nrm(ks[6], (L, 1, ff)),
        w2=nrm(ks[7], (L, d, ff)),
        b2=nrm(ks[8], (L, 1, d)),
        ln2w=jnp.ones((L, 1, d), jnp.float32),
        ln2b=jnp.zeros((L, 1, d), jnp.float32),
        histw=nrm(ks[9], (1, d)),
        histb=nrm(ks[10], (1, 1)),
    )


def _pack_params(params):
    """Pack the small parameter arrays into 4 kernel inputs (weights pre-transposed, bf16)."""
    d, L = D_MODEL, NUM_LAYERS
    assert DIM_FF == D_MODEL
    scale = 1.0 / math.sqrt(HEAD_DIM)
    win = params['win']                                        # (L, 3D, D), torch in_proj layout
    wq_t = jnp.swapaxes(win[:, :d], 1, 2) * scale              # fold attention scale into Wq
    wk_t = jnp.swapaxes(win[:, d:2 * d], 1, 2)
    wv_t = jnp.swapaxes(win[:, 2 * d:], 1, 2)
    wqkv_t = jnp.concatenate([wq_t, wk_t, wv_t], axis=2).astype(jnp.bfloat16)   # (L, D, 3D)
    wmisc_t = jnp.stack([jnp.swapaxes(params['wout'], 1, 2),
                         jnp.swapaxes(params['w1'], 1, 2),
                         jnp.swapaxes(params['w2'], 1, 2)],
                        axis=1).astype(jnp.bfloat16)                            # (L, 3, D, D)
    bin_ = params['bin'][:, 0]                                                  # (L, 3D)
    bqkv = jnp.concatenate([bin_[:, :d] * scale, bin_[:, d:]], axis=1)          # (L, 3D) f32
    rows = []
    for l in range(L):
        rows += [params['bout'][l, 0], params['ln1w'][l, 0], params['ln1b'][l, 0],
                 params['b1'][l, 0], params['b2'][l, 0],
                 params['ln2w'][l, 0], params['ln2b'][l, 0]]
    rows += [params['histw'][0],
             jnp.concatenate([params['histb'][0], jnp.zeros((d - 1,), jnp.float32)])]
    vrows = jnp.stack(rows, axis=0)                                             # (7L + 2, D) f32
    return wqkv_t, wmisc_t, bqkv, vrows


def _make_consts(cat_emb, bb, s):
    """Constant masks / replicated tables, hoisted out of the kernel (DMA'd once)."""
    t, d, nh, hd = NUM_TYPES, D_MODEL, NHEAD, HEAD_DIM
    st, m = s * t, bb * s * t
    nhm = nh * m
    i_of_r = (jnp.arange(m) % st) // t
    tri_sel = (jnp.arange(s)[None, :] <= i_of_r[:, None]).astype(jnp.float32)    # (M, S)
    cat_rep = jnp.tile(cat_emb, (bb * s, 1)).astype(jnp.float32)                 # (M, EMB)
    head_of_row = jnp.arange(nhm)[:, None] // m
    head_of_lane = jnp.arange(d)[None, :] // hd
    hm = (head_of_row == head_of_lane).astype(jnp.bfloat16)                      # (NH*M, D)
    hm2 = jnp.tile(hm, (1, 2))                                                   # (NH*M, 2D)
    grp_r = jnp.arange(m) // t                                                   # (bb, position) group id
    grp_c = (jnp.arange(nhm) % m) // t
    blk_bias = jnp.where(grp_r[:, None] == grp_c[None, :], 0.0, NEG_BIG).astype(jnp.float32)
    return cat_rep, tri_sel, hm, hm2, blk_bias


def _choose_rows_per_step(b, st, max_rows=512):
    # prefer: lane-dense output (bb*st multiple of 128) > keep >=2 grid steps (v7x) > bigger block
    cands = [x for x in range(1, b + 1) if b % x == 0 and x * st <= max_rows] or [1]
    return max(cands, key=lambda x: ((x * st) % 128 == 0, (b // x) >= 2 or b == 1, x))


def transformer_encoder_forward(event_type, event_time, params, rows_per_step=None):
    # label_ind is None in this synthetic forward (branch skipped, as in the module default)
    b, s = event_time.shape
    t, emb, d, L = NUM_TYPES, EMB_DIM, D_MODEL, NUM_LAYERS
    st = s * t
    bb = rows_per_step if rows_per_step is not None else _choose_rows_per_step(b, st)
    assert b % bb == 0, "batch must be divisible by rows_per_step"
    m = bb * st
    steps = b // bb

    non_pad_mask = (event_time != PAD).astype(jnp.float32)[..., None]            # (B, S, 1)
    temp_enc = _temporal_enc(event_time, params['position_vec']) * non_pad_mask
    te2d = temp_enc.reshape(b * s, emb)                                           # (B*S, EMB)
    etT = jnp.transpose(event_type, (0, 2, 1))                                    # (B, T, S)
    et_rep = jnp.tile(etT, (1, s, 1)).reshape(b * st, s)                          # (B*S*T, S)

    wqkv_t, wmisc_t, bqkv, vrows = _pack_params(params)
    cat_rep, tri_sel, hm, hm2, blk_bias = _make_consts(params['cat_emb'], bb, s)

    out = pl.pallas_call(
        lanet_encoder_kernel,
        out_shape=jax.ShapeDtypeStruct((steps, 1, m), jnp.float32),
        grid=(steps,),
        in_specs=[
            pl.BlockSpec((m, s), lambda g: (g, 0)),                     # event types (replicated rows)
            pl.BlockSpec((bb * s, emb), lambda g: (g, 0)),              # temporal encodings
            pl.BlockSpec((m, emb), lambda g: (0, 0)),                   # cat embedding rows (const)
            pl.BlockSpec((m, s), lambda g: (0, 0)),                     # causal tri selector (const)
            pl.BlockSpec((NHEAD * m, d), lambda g: (0, 0)),             # per-head lane mask (const)
            pl.BlockSpec((NHEAD * m, 2 * d), lambda g: (0, 0)),         # per-head lane mask x2 (const)
            pl.BlockSpec((m, NHEAD * m), lambda g: (0, 0)),             # additive group mask (const)
            pl.BlockSpec((L, d, 3 * d), lambda g: (0, 0, 0)),           # fused Wqkv^T (bf16)
            pl.BlockSpec((L, 3, d, d), lambda g: (0, 0, 0, 0)),         # Wout^T, W1^T, W2^T (bf16)
            pl.BlockSpec((L, 3 * d), lambda g: (0, 0)),                 # fused qkv bias
            pl.BlockSpec((_VROWS * L + 2, d), lambda g: (0, 0)),        # packed bias/LN/history rows
        ],
        out_specs=pl.BlockSpec((1, 1, m), lambda g: (g, 0, 0)),
        compiler_params=pltpu.CompilerParams(
            dimension_semantics=("parallel",)),
    )(et_rep, te2d, cat_rep, tri_sel, hm, hm2, blk_bias,
      wqkv_t, wmisc_t, bqkv, vrows)

    x_hist = out.reshape(b, s, t)                                                 # (B, S, T)
    return x_hist, non_pad_mask


def reference_forward(event_type, event_time, params):
    # pure-JAX f32 mirror of the PyTorch eval-mode forward, for correctness check
    b, s = event_time.shape
    non_pad = (event_time != PAD).astype(jnp.float32)[..., None]
    te = _temporal_enc(event_time, params['position_vec']) * non_pad
    tri = (jnp.arange(s)[None, :] <= jnp.arange(s)[:, None]).astype(jnp.float32)
    x_t_emb = jnp.einsum('ij,bjk,bje->bike', tri, event_type, te)
    cat = jnp.broadcast_to(params['cat_emb'], (b, s, NUM_TYPES, EMB_DIM))
    x = jnp.concatenate([cat, x_t_emb], axis=-1).reshape(b * s, NUM_TYPES, D_MODEL)

    def ln(y, w, b_):
        mu = jnp.mean(y, axis=-1, keepdims=True)
        var = jnp.mean((y - mu) ** 2, axis=-1, keepdims=True)
        return (y - mu) / jnp.sqrt(var + LN_EPS) * w + b_

    d = D_MODEL
    for l in range(NUM_LAYERS):
        qkv = jnp.einsum('bnd,ed->bne', x, params['win'][l]) + params['bin'][l]
        q, k, v = qkv[..., :d], qkv[..., d:2 * d], qkv[..., 2 * d:]
        heads = []
        for h in range(NHEAD):
            lo, hi = h * HEAD_DIM, (h + 1) * HEAD_DIM
            sc = jnp.einsum('bqe,bke->bqk', q[..., lo:hi], k[..., lo:hi]) / math.sqrt(HEAD_DIM)
            p = jax.nn.softmax(sc, axis=-1)
            heads.append(jnp.einsum('bqk,bke->bqe', p, v[..., lo:hi]))
        attn = jnp.concatenate(heads, axis=-1)
        attn = jnp.einsum('bnd,ed->bne', attn, params['wout'][l]) + params['bout'][l]
        x = ln(x + attn, params['ln1w'][l], params['ln1b'][l])
        ffn = jax.nn.relu(jnp.einsum('bnd,fd->bnf', x, params['w1'][l]) + params['b1'][l])
        ffn = jnp.einsum('bnf,df->bnd', ffn, params['w2'][l]) + params['b2'][l]
        x = ln(x + ffn, params['ln2w'][l], params['ln2b'][l])

    logit = jnp.einsum('bnd,od->bno', x, params['histw']) + params['histb'][0]
    x_hist = jax.nn.sigmoid(logit[..., 0]).reshape(b, s, NUM_TYPES)
    return x_hist, non_pad


if __name__ == "__main__":
    B, S = 8, 8            # BB=4 rows/step -> 128-row token matrix, 128-lane output, 2 grid steps
    key = jax.random.PRNGKey(0)
    k_et, k_tm = jax.random.split(key)
    types = jax.random.randint(k_et, (B, S), 0, NUM_TYPES)
    event_type = jax.nn.one_hot(types, NUM_TYPES, dtype=jnp.float32)       # (B, S, T)
    event_time = jnp.cumsum(
        jax.random.uniform(k_tm, (B, S), minval=0.1, maxval=1.0), axis=1).astype(jnp.float32)
    event_time = event_time.at[1, -2:].set(PAD)                            # some padded positions
    event_time = event_time.at[5, -3:].set(PAD)

    params = init_params(jax.random.PRNGKey(42))

    x_hist, non_pad_mask = transformer_encoder_forward(event_type, event_time, params)
    x_hist = jax.block_until_ready(x_hist)

    ref_hist, ref_mask = reference_forward(event_type, event_time, params)
    assert x_hist.shape == (B, S, NUM_TYPES)
    assert non_pad_mask.shape == (B, S, 1)
    # tolerance covers bf16 MXU operands (f32 accumulate) + approx EUP reciprocal vs f32 reference
    assert jnp.allclose(x_hist, ref_hist, rtol=1e-2, atol=1e-2)
    assert jnp.allclose(non_pad_mask, ref_mask)
    print("KERNEL_OK")
</pallas_src>

<mosaic_0001>
module attributes {stable_mosaic.version = 11 : i64} {
  func.func @lanet_encoder_kernel(%arg0: i32, %arg1: memref<128x8xf32, #tpu.memory_space<vmem>>, %arg2: memref<32x16xf32, #tpu.memory_space<vmem>>, %arg3: memref<128x16xf32, #tpu.memory_space<vmem>>, %arg4: memref<128x8xf32, #tpu.memory_space<vmem>>, %arg5: memref<512x32xbf16, #tpu.memory_space<vmem>>, %arg6: memref<512x64xbf16, #tpu.memory_space<vmem>>, %arg7: memref<128x512xf32, #tpu.memory_space<vmem>>, %arg8: memref<2x32x96xbf16, #tpu.memory_space<vmem>>, %arg9: memref<2x3x32x32xbf16, #tpu.memory_space<vmem>>, %arg10: memref<2x96xf32, #tpu.memory_space<vmem>>, %arg11: memref<16x32xf32, #tpu.memory_space<vmem>>, %arg12: memref<1x1x128xf32, #tpu.memory_space<vmem>>) attributes {dimension_semantics = [#tpu.dimension_semantics<parallel>], iteration_bounds = array<i64: 2>, scalar_prefetch = 0 : i64, scratch_operands = 0 : i64, tpu.core_type = #tpu.core_type<tc>, window_params = [{transform_indices = @transform_0, window_bounds = array<i64: 128, 8>}, {transform_indices = @transform_1, window_bounds = array<i64: 32, 16>}, {pipeline_mode = #tpu.pipeline_mode<synchronous>, transform_indices = @transform_2, window_bounds = array<i64: 128, 16>}, {pipeline_mode = #tpu.pipeline_mode<synchronous>, transform_indices = @transform_3, window_bounds = array<i64: 128, 8>}, {pipeline_mode = #tpu.pipeline_mode<synchronous>, transform_indices = @transform_4, window_bounds = array<i64: 512, 32>}, {pipeline_mode = #tpu.pipeline_mode<synchronous>, transform_indices = @transform_5, window_bounds = array<i64: 512, 64>}, {pipeline_mode = #tpu.pipeline_mode<synchronous>, transform_indices = @transform_6, window_bounds = array<i64: 128, 512>}, {pipeline_mode = #tpu.pipeline_mode<synchronous>, transform_indices = @transform_7, window_bounds = array<i64: 2, 32, 96>}, {pipeline_mode = #tpu.pipeline_mode<synchronous>, transform_indices = @transform_8, window_bounds = array<i64: 2, 3, 32, 32>}, {pipeline_mode = #tpu.pipeline_mode<synchronous>, transform_indices = @transform_9, window_bounds = array<i64: 2, 96>}, {pipeline_mode = #tpu.pipeline_mode<synchronous>, transform_indices = @transform_10, window_bounds = array<i64: 16, 32>}, {transform_indices = @transform_11, window_bounds = array<i64: 1, 1, 128>}]} {
    %c0 = arith.constant 0 : index
    %c0_0 = arith.constant 0 : index
    %0 = vector.load %arg4[%c0, %c0_0] : memref<128x8xf32, #tpu.memory_space<vmem>>, vector<128x8xf32>
    %c0_1 = arith.constant 0 : index
    %c0_2 = arith.constant 0 : index
    %1 = vector.load %arg1[%c0_1, %c0_2] : memref<128x8xf32, #tpu.memory_space<vmem>>, vector<128x8xf32>
    %2 = arith.mulf %0, %1 : vector<128x8xf32>
    %c0_3 = arith.constant 0 : index
    %c0_4 = arith.constant 0 : index
    %3 = vector.load %arg2[%c0_3, %c0_4] : memref<32x16xf32, #tpu.memory_space<vmem>>, vector<32x16xf32>
    %4 = vector.extract_strided_slice %2 {offsets = [0, 0], sizes = [32, 8], strides = [1, 1]} : vector<128x8xf32> to vector<32x8xf32>
    %5 = vector.extract_strided_slice %3 {offsets = [0, 0], sizes = [8, 16], strides = [1, 1]} : vector<32x16xf32> to vector<8x16xf32>
    %cst = arith.constant dense<0.000000e+00> : vector<32x16xf32>
    %6 = tpu.matmul %4, %5, %cst {dimension_numbers = #tpu.dot_dimension_numbers<[1], [0], [0], [1], [0, 0, 1, 1], [], []>} : vector<32x8xf32>, vector<8x16xf32>, vector<32x16xf32> -> vector<32x16xf32>
    %7 = vector.extract_strided_slice %2 {offsets = [32, 0], sizes = [32, 8], strides = [1, 1]} : vector<128x8xf32> to vector<32x8xf32>
    %8 = vector.extract_strided_slice %3 {offsets = [8, 0], sizes = [8, 16], strides = [1, 1]} : vector<32x16xf32> to vector<8x16xf32>
    %cst_5 = arith.constant dense<0.000000e+00> : vector<32x16xf32>
    %9 = tpu.matmul %7, %8, %cst_5 {dimension_numbers = #tpu.dot_dimension_numbers<[1], [0], [0], [1], [0, 0, 1, 1], [], []>} : vector<32x8xf32>, vector<8x16xf32>, vector<32x16xf32> -> vector<32x16xf32>
    %10 = vector.extract_strided_slice %2 {offsets = [64, 0], sizes = [32, 8], strides = [1, 1]} : vector<128x8xf32> to vector<32x8xf32>
    %11 = vector.extract_strided_slice %3 {offsets = [16, 0], sizes = [8, 16], strides = [1, 1]} : vector<32x16xf32> to vector<8x16xf32>
    %cst_6 = arith.constant dense<0.000000e+00> : vector<32x16xf32>
    %12 = tpu.matmul %10, %11, %cst_6 {dimension_numbers = #tpu.dot_dimension_numbers<[1], [0], [0], [1], [0, 0, 1, 1], [], []>} : vector<32x8xf32>, vector<8x16xf32>, vector<32x16xf32> -> vector<32x16xf32>
    %13 = vector.extract_strided_slice %2 {offsets = [96, 0], sizes = [32, 8], strides = [1, 1]} : vector<128x8xf32> to vector<32x8xf32>
    %14 = vector.extract_strided_slice %3 {offsets = [24, 0], sizes = [8, 16], strides = [1, 1]} : vector<32x16xf32> to vector<8x16xf32>
    %cst_7 = arith.constant dense<0.000000e+00> : vector<32x16xf32>
    %15 = tpu.matmul %13, %14, %cst_7 {dimension_numbers = #tpu.dot_dimension_numbers<[1], [0], [0], [1], [0, 0, 1, 1], [], []>} : vector<32x8xf32>, vector<8x16xf32>, vector<32x16xf32> -> vector<32x16xf32>
    %16 = tpu.concatenate %6, %9, %12, %15 in 0 : vector<32x16xf32>, vector<32x16xf32>, vector<32x16xf32>, vector<32x16xf32> -> vector<128x16xf32>
    %c0_8 = arith.constant 0 : index
    %c0_9 = arith.constant 0 : index
    %17 = vector.load %arg3[%c0_8, %c0_9] : memref<128x16xf32, #tpu.memory_space<vmem>>, vector<128x16xf32>
    %18 = tpu.concatenate %17, %16 in 1 : vector<128x16xf32>, vector<128x16xf32> -> vector<128x32xf32>
    %c0_10 = arith.constant 0 : index
    %c0_11 = arith.constant 0 : index
    %19 = vector.load %arg5[%c0_10, %c0_11] : memref<512x32xbf16, #tpu.memory_space<vmem>>, vector<512x32xbf16>
    %c0_12 = arith.constant 0 : index
    %c0_13 = arith.constant 0 : index
    %20 = vector.load %arg6[%c0_12, %c0_13] : memref<512x64xbf16, #tpu.memory_space<vmem>>, vector<512x64xbf16>
    %c0_14 = arith.constant 0 : index
    %c0_15 = arith.constant 0 : index
    %21 = vector.load %arg7[%c0_14, %c0_15] : memref<128x512xf32, #tpu.memory_space<vmem>>, vector<128x512xf32>
    %cst_16 = arith.constant 1.000000e+00 : bf16
    %22 = vector.broadcast %cst_16 : bf16 to vector<128x32xbf16>
    %c0_17 = arith.constant 0 : index
    %c0_18 = arith.constant 0 : index
    %23 = vector.load %arg11[%c0_17, %c0_18] : memref<16x32xf32, #tpu.memory_space<vmem>>, vector<1x32xf32>
    %c1 = arith.constant 1 : index
    %c0_19 = arith.constant 0 : index
    %24 = vector.load %arg11[%c1, %c0_19] : memref<16x32xf32, #tpu.memory_space<vmem>>, vector<1x32xf32>
    %c2 = arith.constant 2 : index
    %c0_20 = arith.constant 0 : index
    %25 = vector.load %arg11[%c2, %c0_20] : memref<16x32xf32, #tpu.memory_space<vmem>>, vector<1x32xf32>
    %c3 = arith.constant 3 : index
    %c0_21 = arith.constant 0 : index
    %26 = vector.load %arg11[%c3, %c0_21] : memref<16x32xf32, #tpu.memory_space<vmem>>, vector<1x32xf32>
    %c4 = arith.constant 4 : index
    %c0_22 = arith.constant 0 : index
    %27 = vector.load %arg11[%c4, %c0_22] : memref<16x32xf32, #tpu.memory_space<vmem>>, vector<1x32xf32>
    %c5 = arith.constant 5 : index
    %c0_23 = arith.constant 0 : index
    %28 = vector.load %arg11[%c5, %c0_23] : memref<16x32xf32, #tpu.memory_space<vmem>>, vector<1x32xf32>
    %c6 = arith.constant 6 : index
    %c0_24 = arith.constant 0 : index
    %29 = vector.load %arg11[%c6, %c0_24] : memref<16x32xf32, #tpu.memory_space<vmem>>, vector<1x32xf32>
    %30 = arith.truncf %18 : vector<128x32xf32> to vector<128x32xbf16>
    %c0_25 = arith.constant 0 : index
    %c0_26 = arith.constant 0 : index
    %c0_27 = arith.constant 0 : index
    %31 = vector.load %arg8[%c0_25, %c0_26, %c0_27] : memref<2x32x96xbf16, #tpu.memory_space<vmem>>, vector<1x32x96xbf16>
    %32 = vector.shape_cast %31 : vector<1x32x96xbf16> to vector<32x96xbf16>
    %cst_28 = arith.constant dense<0.000000e+00> : vector<128x96xf32>
    %33 = tpu.matmul %30, %32, %cst_28 {dimension_numbers = #tpu.dot_dimension_numbers<[1], [0], [0], [1], [0, 0, 1, 1], [], []>} : vector<128x32xbf16>, vector<32x96xbf16>, vector<128x96xf32> -> vector<128x96xf32>
    %c0_29 = arith.constant 0 : index
    %c0_30 = arith.constant 0 : index
    %34 = vector.load %arg10[%c0_29, %c0_30] : memref<2x96xf32, #tpu.memory_space<vmem>>, vector<1x96xf32>
    %35 = vector.broadcast %34 : vector<1x96xf32> to vector<128x96xf32>
    %36 = arith.addf %33, %35 : vector<128x96xf32>
    %37 = vector.extract_strided_slice %36 {offsets = [0, 0], sizes = [128, 32], strides = [1, 1]} : vector<128x96xf32> to vector<128x32xf32>
    %38 = arith.truncf %37 : vector<128x32xf32> to vector<128x32xbf16>
    %39 = vector.extract_strided_slice %36 {offsets = [0, 32], sizes = [128, 32], strides = [1, 1]} : vector<128x96xf32> to vector<128x32xf32>
    %40 = arith.truncf %39 : vector<128x32xf32> to vector<128x32xbf16>
    %41 = vector.extract_strided_slice %36 {offsets = [0, 64], sizes = [128, 32], strides = [1, 1]} : vector<128x96xf32> to vector<128x32xf32>
    %42 = arith.truncf %41 : vector<128x32xf32> to vector<128x32xbf16>
    %43 = vector.shape_cast %40 : vector<128x32xbf16> to vector<1x128x32xbf16>
    %44 = vector.shape_cast %43 : vector<1x128x32xbf16> to vector<1x128x32xbf16>
    %45 = vector.broadcast %44 : vector<1x128x32xbf16> to vector<4x128x32xbf16>
    %46 = vector.shape_cast %45 : vector<4x128x32xbf16> to vector<512x32xbf16>
    %47 = arith.mulf %46, %19 : vector<512x32xbf16>
    %48 = tpu.concatenate %42, %22 in 1 : vector<128x32xbf16>, vector<128x32xbf16> -> vector<128x64xbf16>
    %49 = vector.shape_cast %48 : vector<128x64xbf16> to vector<1x128x64xbf16>
    %50 = vector.shape_cast %49 : vector<1x128x64xbf16> to vector<1x128x64xbf16>
    %51 = vector.broadcast %50 : vector<1x128x64xbf16> to vector<4x128x64xbf16>
    %52 = vector.shape_cast %51 : vector<4x128x64xbf16> to vector<512x64xbf16>
    %53 = arith.mulf %52, %20 : vector<512x64xbf16>
    %cst_31 = arith.constant dense<0.000000e+00> : vector<128x512xf32>
    %54 = tpu.matmul %38, %47, %cst_31 {dimension_numbers = #tpu.dot_dimension_numbers<[1], [1], [0], [0], [0, 0, 1, 0], [], []>} : vector<128x32xbf16>, vector<512x32xbf16>, vector<128x512xf32> -> vector<128x512xf32>
    %55 = arith.addf %54, %21 : vector<128x512xf32>
    %cst_32 = arith.constant dense<0xFF800000> : vector<128xf32>
    %56 = vector.multi_reduction <maximumf>, %55, %cst_32 [1] : vector<128x512xf32> to vector<128xf32>
    %57 = vector.shape_cast %56 : vector<128xf32> to vector<128x1xf32>
    %58 = vector.broadcast %57 : vector<128x1xf32> to vector<128x512xf32>
    %59 = arith.subf %55, %58 : vector<128x512xf32>
    %60 = math.exp %59 : vector<128x512xf32>
    %61 = arith.truncf %60 : vector<128x512xf32> to vector<128x512xbf16>
    %cst_33 = arith.constant dense<0.000000e+00> : vector<128x64xf32>
    %62 = tpu.matmul %61, %53, %cst_33 {dimension_numbers = #tpu.dot_dimension_numbers<[1], [0], [0], [1], [0, 0, 1, 1], [], []>} : vector<128x512xbf16>, vector<512x64xbf16>, vector<128x64xf32> -> vector<128x64xf32>
    %63 = vector.extract_strided_slice %62 {offsets = [0, 0], sizes = [128, 32], strides = [1, 1]} : vector<128x64xf32> to vector<128x32xf32>
    %64 = vector.extract_strided_slice %62 {offsets = [0, 32], sizes = [128, 32], strides = [1, 1]} : vector<128x64xf32> to vector<128x32xf32>
    %65 = tpu.reciprocal %64 {approx = true} : vector<128x32xf32> -> vector<128x32xf32>
    %66 = arith.mulf %63, %65 : vector<128x32xf32>
    %67 = arith.truncf %66 : vector<128x32xf32> to vector<128x32xbf16>
    %c0_34 = arith.constant 0 : index
    %c0_35 = arith.constant 0 : index
    %c0_36 = arith.constant 0 : index
    %c0_37 = arith.constant 0 : index
    %68 = vector.load %arg9[%c0_34, %c0_35, %c0_36, %c0_37] : memref<2x3x32x32xbf16, #tpu.memory_space<vmem>>, vector<1x1x32x32xbf16>
    %69 = vector.shape_cast %68 : vector<1x1x32x32xbf16> to vector<32x32xbf16>
    %cst_38 = arith.constant dense<0.000000e+00> : vector<128x32xf32>
    %70 = tpu.matmul %67, %69, %cst_38 {dimension_numbers = #tpu.dot_dimension_numbers<[1], [0], [0], [1], [0, 0, 1, 1], [], []>} : vector<128x32xbf16>, vector<32x32xbf16>, vector<128x32xf32> -> vector<128x32xf32>
    %71 = vector.broadcast %23 : vector<1x32xf32> to vector<128x32xf32>
    %72 = arith.addf %70, %71 : vector<128x32xf32>
    %73 = arith.addf %18, %72 : vector<128x32xf32>
    %cst_39 = arith.constant dense<0.000000e+00> : vector<128xf32>
    %74 = vector.multi_reduction <add>, %73, %cst_39 [1] : vector<128x32xf32> to vector<128xf32>
    %75 = vector.shape_cast %74 : vector<128xf32> to vector<128x1xf32>
    %cst_40 = arith.constant 3.200000e+01 : f32
    %76 = vector.broadcast %cst_40 : f32 to vector<128x1xf32>
    %77 = arith.divf %75, %76 : vector<128x1xf32>
    %78 = vector.broadcast %77 : vector<128x1xf32> to vector<128x32xf32>
    %79 = arith.subf %73, %78 : vector<128x32xf32>
    %80 = arith.mulf %79, %79 : vector<128x32xf32>
    %cst_41 = arith.constant dense<0.000000e+00> : vector<128xf32>
    %81 = vector.multi_reduction <add>, %80, %cst_41 [1] : vector<128x32xf32> to vector<128xf32>
    %82 = vector.shape_cast %81 : vector<128xf32> to vector<128x1xf32>
    %cst_42 = arith.constant 3.200000e+01 : f32
    %83 = vector.broadcast %cst_42 : f32 to vector<128x1xf32>
    %84 = arith.divf %82, %83 : vector<128x1xf32>
    %85 = vector.broadcast %77 : vector<128x1xf32> to vector<128x32xf32>
    %86 = arith.subf %73, %85 : vector<128x32xf32>
    %cst_43 = arith.constant 9.99999974E-6 : f32
    %87 = vector.broadcast %cst_43 : f32 to vector<128x1xf32>
    %88 = arith.addf %84, %87 : vector<128x1xf32>
    %89 = math.rsqrt %88 : vector<128x1xf32>
    %90 = vector.broadcast %89 : vector<128x1xf32> to vector<128x32xf32>
    %91 = arith.mulf %86, %90 : vector<128x32xf32>
    %92 = vector.broadcast %24 : vector<1x32xf32> to vector<128x32xf32>
    %93 = arith.mulf %91, %92 : vector<128x32xf32>
    %94 = vector.broadcast %25 : vector<1x32xf32> to vector<128x32xf32>
    %95 = arith.addf %93, %94 : vector<128x32xf32>
    %96 = arith.truncf %95 : vector<128x32xf32> to vector<128x32xbf16>
    %c0_44 = arith.constant 0 : index
    %c1_45 = arith.constant 1 : index
    %c0_46 = arith.constant 0 : index
    %c0_47 = arith.constant 0 : index
    %97 = vector.load %arg9[%c0_44, %c1_45, %c0_46, %c0_47] : memref<2x3x32x32xbf16, #tpu.memory_space<vmem>>, vector<1x1x32x32xbf16>
    %98 = vector.shape_cast %97 : vector<1x1x32x32xbf16> to vector<32x32xbf16>
    %cst_48 = arith.constant dense<0.000000e+00> : vector<128x32xf32>
    %99 = tpu.matmul %96, %98, %cst_48 {dimension_numbers = #tpu.dot_dimension_numbers<[1], [0], [0], [1], [0, 0, 1, 1], [], []>} : vector<128x32xbf16>, vector<32x32xbf16>, vector<128x32xf32> -> vector<128x32xf32>
    %100 = vector.broadcast %26 : vector<1x32xf32> to vector<128x32xf32>
    %101 = arith.addf %99, %100 : vector<128x32xf32>
    %cst_49 = arith.constant 0.000000e+00 : f32
    %102 = vector.broadcast %cst_49 : f32 to vector<128x32xf32>
    %103 = arith.maximumf %101, %102 : vector<128x32xf32>
    %104 = arith.truncf %103 : vector<128x32xf32> to vector<128x32xbf16>
    %c0_50 = arith.constant 0 : index
    %c2_51 = arith.constant 2 : index
    %c0_52 = arith.constant 0 : index
    %c0_53 = arith.constant 0 : index
    %105 = vector.load %arg9[%c0_50, %c2_51, %c0_52, %c0_53] : memref<2x3x32x32xbf16, #tpu.memory_space<vmem>>, vector<1x1x32x32xbf16>
    %106 = vector.shape_cast %105 : vector<1x1x32x32xbf16> to vector<32x32xbf16>
    %cst_54 = arith.constant dense<0.000000e+00> : vector<128x32xf32>
    %107 = tpu.matmul %104, %106, %cst_54 {dimension_numbers = #tpu.dot_dimension_numbers<[1], [0], [0], [1], [0, 0, 1, 1], [], []>} : vector<128x32xbf16>, vector<32x32xbf16>, vector<128x32xf32> -> vector<128x32xf32>
    %108 = vector.broadcast %27 : vector<1x32xf32> to vector<128x32xf32>
    %109 = arith.addf %107, %108 : vector<128x32xf32>
    %110 = arith.addf %95, %109 : vector<128x32xf32>
    %cst_55 = arith.constant dense<0.000000e+00> : vector<128xf32>
    %111 = vector.multi_reduction <add>, %110, %cst_55 [1] : vector<128x32xf32> to vector<128xf32>
    %112 = vector.shape_cast %111 : vector<128xf32> to vector<128x1xf32>
    %cst_56 = arith.constant 3.200000e+01 : f32
    %113 = vector.broadcast %cst_56 : f32 to vector<128x1xf32>
    %114 = arith.divf %112, %113 : vector<128x1xf32>
    %115 = vector.broadcast %114 : vector<128x1xf32> to vector<128x32xf32>
    %116 = arith.subf %110, %115 : vector<128x32xf32>
    %117 = arith.mulf %116, %116 : vector<128x32xf32>
    %cst_57 = arith.constant dense<0.000000e+00> : vector<128xf32>
    %118 = vector.multi_reduction <add>, %117, %cst_57 [1] : vector<128x32xf32> to vector<128xf32>
    %119 = vector.shape_cast %118 : vector<128xf32> to vector<128x1xf32>
    %cst_58 = arith.constant 3.200000e+01 : f32
    %120 = vector.broadcast %cst_58 : f32 to vector<128x1xf32>
    %121 = arith.divf %119, %120 : vector<128x1xf32>
    %122 = vector.broadcast %114 : vector<128x1xf32> to vector<128x32xf32>
    %123 = arith.subf %110, %122 : vector<128x32xf32>
    %cst_59 = arith.constant 9.99999974E-6 : f32
    %124 = vector.broadcast %cst_59 : f32 to vector<128x1xf32>
    %125 = arith.addf %121, %124 : vector<128x1xf32>
    %126 = math.rsqrt %125 : vector<128x1xf32>
    %127 = vector.broadcast %126 : vector<128x1xf32> to vector<128x32xf32>
    %128 = arith.mulf %123, %127 : vector<128x32xf32>
    %129 = vector.broadcast %28 : vector<1x32xf32> to vector<128x32xf32>
    %130 = arith.mulf %128, %129 : vector<128x32xf32>
    %131 = vector.broadcast %29 : vector<1x32xf32> to vector<128x32xf32>
    %132 = arith.addf %130, %131 : vector<128x32xf32>
    %c7 = arith.constant 7 : index
    %c0_60 = arith.constant 0 : index
    %133 = vector.load %arg11[%c7, %c0_60] : memref<16x32xf32, #tpu.memory_space<vmem>>, vector<1x32xf32>
    %c8 = arith.constant 8 : index
    %c0_61 = arith.constant 0 : index
    %134 = vector.load %arg11[%c8, %c0_61] : memref<16x32xf32, #tpu.memory_space<vmem>>, vector<1x32xf32>
    %c9 = arith.constant 9 : index
    %c0_62 = arith.constant 0 : index
    %135 = vector.load %arg11[%c9, %c0_62] : memref<16x32xf32, #tpu.memory_space<vmem>>, vector<1x32xf32>
    %c10 = arith.constant 10 : index
    %c0_63 = arith.constant 0 : index
    %136 = vector.load %arg11[%c10, %c0_63] : memref<16x32xf32, #tpu.memory_space<vmem>>, vector<1x32xf32>
    %c11 = arith.constant 11 : index
    %c0_64 = arith.constant 0 : index
    %137 = vector.load %arg11[%c11, %c0_64] : memref<16x32xf32, #tpu.memory_space<vmem>>, vector<1x32xf32>
    %c12 = arith.constant 12 : index
    %c0_65 = arith.constant 0 : index
    %138 = vector.load %arg11[%c12, %c0_65] : memref<16x32xf32, #tpu.memory_space<vmem>>, vector<1x32xf32>
    %c13 = arith.constant 13 : index
    %c0_66 = arith.constant 0 : index
    %139 = vector.load %arg11[%c13, %c0_66] : memref<16x32xf32, #tpu.memory_space<vmem>>, vector<1x32xf32>
    %140 = arith.truncf %132 : vector<128x32xf32> to vector<128x32xbf16>
    %c1_67 = arith.constant 1 : index
    %c0_68 = arith.constant 0 : index
    %c0_69 = arith.constant 0 : index
    %141 = vector.load %arg8[%c1_67, %c0_68, %c0_69] : memref<2x32x96xbf16, #tpu.memory_space<vmem>>, vector<1x32x96xbf16>
    %142 = vector.shape_cast %141 : vector<1x32x96xbf16> to vector<32x96xbf16>
    %cst_70 = arith.constant dense<0.000000e+00> : vector<128x96xf32>
    %143 = tpu.matmul %140, %142, %cst_70 {dimension_numbers = #tpu.dot_dimension_numbers<[1], [0], [0], [1], [0, 0, 1, 1], [], []>} : vector<128x32xbf16>, vector<32x96xbf16>, vector<128x96xf32> -> vector<128x96xf32>
    %c1_71 = arith.constant 1 : index
    %c0_72 = arith.constant 0 : index
    %144 = vector.load %arg10[%c1_71, %c0_72] : memref<2x96xf32, #tpu.memory_space<vmem>>, vector<1x96xf32>
    %145 = vector.broadcast %144 : vector<1x96xf32> to vector<128x96xf32>
    %146 = arith.addf %143, %145 : vector<128x96xf32>
    %147 = vector.extract_strided_slice %146 {offsets = [0, 0], sizes = [128, 32], strides = [1, 1]} : vector<128x96xf32> to vector<128x32xf32>
    %148 = arith.truncf %147 : vector<128x32xf32> to vector<128x32xbf16>
    %149 = vector.extract_strided_slice %146 {offsets = [0, 32], sizes = [128, 32], strides = [1, 1]} : vector<128x96xf32> to vector<128x32xf32>
    %150 = arith.truncf %149 : vector<128x32xf32> to vector<128x32xbf16>
    %151 = vector.extract_strided_slice %146 {offsets = [0, 64], sizes = [128, 32], strides = [1, 1]} : vector<128x96xf32> to vector<128x32xf32>
    %152 = arith.truncf %151 : vector<128x32xf32> to vector<128x32xbf16>
    %153 = vector.shape_cast %150 : vector<128x32xbf16> to vector<1x128x32xbf16>
    %154 = vector.shape_cast %153 : vector<1x128x32xbf16> to vector<1x128x32xbf16>
    %155 = vector.broadcast %154 : vector<1x128x32xbf16> to vector<4x128x32xbf16>
    %156 = vector.shape_cast %155 : vector<4x128x32xbf16> to vector<512x32xbf16>
    %157 = arith.mulf %156, %19 : vector<512x32xbf16>
    %158 = tpu.concatenate %152, %22 in 1 : vector<128x32xbf16>, vector<128x32xbf16> -> vector<128x64xbf16>
    %159 = vector.shape_cast %158 : vector<128x64xbf16> to vector<1x128x64xbf16>
    %160 = vector.shape_cast %159 : vector<1x128x64xbf16> to vector<1x128x64xbf16>
    %161 = vector.broadcast %160 : vector<1x128x64xbf16> to vector<4x128x64xbf16>
    %162 = vector.shape_cast %161 : vector<4x128x64xbf16> to vector<512x64xbf16>
    %163 = arith.mulf %162, %20 : vector<512x64xbf16>
    %cst_73 = arith.constant dense<0.000000e+00> : vector<128x512xf32>
    %164 = tpu.matmul %148, %157, %cst_73 {dimension_numbers = #tpu.dot_dimension_numbers<[1], [1], [0], [0], [0, 0, 1, 0], [], []>} : vector<128x32xbf16>, vector<512x32xbf16>, vector<128x512xf32> -> vector<128x512xf32>
    %165 = arith.addf %164, %21 : vector<128x512xf32>
    %cst_74 = arith.constant dense<0xFF800000> : vector<128xf32>
    %166 = vector.multi_reduction <maximumf>, %165, %cst_74 [1] : vector<128x512xf32> to vector<128xf32>
    %167 = vector.shape_cast %166 : vector<128xf32> to vector<128x1xf32>
    %168 = vector.broadcast %167 : vector<128x1xf32> to vector<128x512xf32>
    %169 = arith.subf %165, %168 : vector<128x512xf32>
    %170 = math.exp %169 : vector<128x512xf32>
    %171 = arith.truncf %170 : vector<128x512xf32> to vector<128x512xbf16>
    %cst_75 = arith.constant dense<0.000000e+00> : vector<128x64xf32>
    %172 = tpu.matmul %171, %163, %cst_75 {dimension_numbers = #tpu.dot_dimension_numbers<[1], [0], [0], [1], [0, 0, 1, 1], [], []>} : vector<128x512xbf16>, vector<512x64xbf16>, vector<128x64xf32> -> vector<128x64xf32>
    %173 = vector.extract_strided_slice %172 {offsets = [0, 0], sizes = [128, 32], strides = [1, 1]} : vector<128x64xf32> to vector<128x32xf32>
    %174 = vector.extract_strided_slice %172 {offsets = [0, 32], sizes = [128, 32], strides = [1, 1]} : vector<128x64xf32> to vector<128x32xf32>
    %175 = tpu.reciprocal %174 {approx = true} : vector<128x32xf32> -> vector<128x32xf32>
    %176 = arith.mulf %173, %175 : vector<128x32xf32>
    %177 = arith.truncf %176 : vector<128x32xf32> to vector<128x32xbf16>
    %c1_76 = arith.constant 1 : index
    %c0_77 = arith.constant 0 : index
    %c0_78 = arith.constant 0 : index
    %c0_79 = arith.constant 0 : index
    %178 = vector.load %arg9[%c1_76, %c0_77, %c0_78, %c0_79] : memref<2x3x32x32xbf16, #tpu.memory_space<vmem>>, vector<1x1x32x32xbf16>
    %179 = vector.shape_cast %178 : vector<1x1x32x32xbf16> to vector<32x32xbf16>
    %cst_80 = arith.constant dense<0.000000e+00> : vector<128x32xf32>
    %180 = tpu.matmul %177, %179, %cst_80 {dimension_numbers = #tpu.dot_dimension_numbers<[1], [0], [0], [1], [0, 0, 1, 1], [], []>} : vector<128x32xbf16>, vector<32x32xbf16>, vector<128x32xf32> -> vector<128x32xf32>
    %181 = vector.broadcast %133 : vector<1x32xf32> to vector<128x32xf32>
    %182 = arith.addf %180, %181 : vector<128x32xf32>
    %183 = arith.addf %132, %182 : vector<128x32xf32>
    %cst_81 = arith.constant dense<0.000000e+00> : vector<128xf32>
    %184 = vector.multi_reduction <add>, %183, %cst_81 [1] : vector<128x32xf32> to vector<128xf32>
    %185 = vector.shape_cast %184 : vector<128xf32> to vector<128x1xf32>
    %cst_82 = arith.constant 3.200000e+01 : f32
    %186 = vector.broadcast %cst_82 : f32 to vector<128x1xf32>
    %187 = arith.divf %185, %186 : vector<128x1xf32>
    %188 = vector.broadcast %187 : vector<128x1xf32> to vector<128x32xf32>
    %189 = arith.subf %183, %188 : vector<128x32xf32>
    %190 = arith.mulf %189, %189 : vector<128x32xf32>
    %cst_83 = arith.constant dense<0.000000e+00> : vector<128xf32>
    %191 = vector.multi_reduction <add>, %190, %cst_83 [1] : vector<128x32xf32> to vector<128xf32>
    %192 = vector.shape_cast %191 : vector<128xf32> to vector<128x1xf32>
    %cst_84 = arith.constant 3.200000e+01 : f32
    %193 = vector.broadcast %cst_84 : f32 to vector<128x1xf32>
    %194 = arith.divf %192, %193 : vector<128x1xf32>
    %195 = vector.broadcast %187 : vector<128x1xf32> to vector<128x32xf32>
    %196 = arith.subf %183, %195 : vector<128x32xf32>
    %cst_85 = arith.constant 9.99999974E-6 : f32
    %197 = vector.broadcast %cst_85 : f32 to vector<128x1xf32>
    %198 = arith.addf %194, %197 : vector<128x1xf32>
    %199 = math.rsqrt %198 : vector<128x1xf32>
    %200 = vector.broadcast %199 : vector<128x1xf32> to vector<128x32xf32>
    %201 = arith.mulf %196, %200 : vector<128x32xf32>
    %202 = vector.broadcast %134 : vector<1x32xf32> to vector<128x32xf32>
    %203 = arith.mulf %201, %202 : vector<128x32xf32>
    %204 = vector.broadcast %135 : vector<1x32xf32> to vector<128x32xf32>
    %205 = arith.addf %203, %204 : vector<128x32xf32>
    %206 = arith.truncf %205 : vector<128x32xf32> to vector<128x32xbf16>
    %c1_86 = arith.constant 1 : index
    %c1_87 = arith.constant 1 : index
    %c0_88 = arith.constant 0 : index
    %c0_89 = arith.constant 0 : index
    %207 = vector.load %arg9[%c1_86, %c1_87, %c0_88, %c0_89] : memref<2x3x32x32xbf16, #tpu.memory_space<vmem>>, vector<1x1x32x32xbf16>
    %208 = vector.shape_cast %207 : vector<1x1x32x32xbf16> to vector<32x32xbf16>
    %cst_90 = arith.constant dense<0.000000e+00> : vector<128x32xf32>
    %209 = tpu.matmul %206, %208, %cst_90 {dimension_numbers = #tpu.dot_dimension_numbers<[1], [0], [0], [1], [0, 0, 1, 1], [], []>} : vector<128x32xbf16>, vector<32x32xbf16>, vector<128x32xf32> -> vector<128x32xf32>
    %210 = vector.broadcast %136 : vector<1x32xf32> to vector<128x32xf32>
    %211 = arith.addf %209, %210 : vector<128x32xf32>
    %cst_91 = arith.constant 0.000000e+00 : f32
    %212 = vector.broadcast %cst_91 : f32 to vector<128x32xf32>
    %213 = arith.maximumf %211, %212 : vector<128x32xf32>
    %214 = arith.truncf %213 : vector<128x32xf32> to vector<128x32xbf16>
    %c1_92 = arith.constant 1 : index
    %c2_93 = arith.constant 2 : index
    %c0_94 = arith.constant 0 : index
    %c0_95 = arith.constant 0 : index
    %215 = vector.load %arg9[%c1_92, %c2_93, %c0_94, %c0_95] : memref<2x3x32x32xbf16, #tpu.memory_space<vmem>>, vector<1x1x32x32xbf16>
    %216 = vector.shape_cast %215 : vector<1x1x32x32xbf16> to vector<32x32xbf16>
    %cst_96 = arith.constant dense<0.000000e+00> : vector<128x32xf32>
    %217 = tpu.matmul %214, %216, %cst_96 {dimension_numbers = #tpu.dot_dimension_numbers<[1], [0], [0], [1], [0, 0, 1, 1], [], []>} : vector<128x32xbf16>, vector<32x32xbf16>, vector<128x32xf32> -> vector<128x32xf32>
    %218 = vector.broadcast %137 : vector<1x32xf32> to vector<128x32xf32>
    %219 = arith.addf %217, %218 : vector<128x32xf32>
    %220 = arith.addf %205, %219 : vector<128x32xf32>
    %cst_97 = arith.constant dense<0.000000e+00> : vector<128xf32>
    %221 = vector.multi_reduction <add>, %220, %cst_97 [1] : vector<128x32xf32> to vector<128xf32>
    %222 = vector.shape_cast %221 : vector<128xf32> to vector<128x1xf32>
    %cst_98 = arith.constant 3.200000e+01 : f32
    %223 = vector.broadcast %cst_98 : f32 to vector<128x1xf32>
    %224 = arith.divf %222, %223 : vector<128x1xf32>
    %225 = vector.broadcast %224 : vector<128x1xf32> to vector<128x32xf32>
    %226 = arith.subf %220, %225 : vector<128x32xf32>
    %227 = arith.mulf %226, %226 : vector<128x32xf32>
    %cst_99 = arith.constant dense<0.000000e+00> : vector<128xf32>
    %228 = vector.multi_reduction <add>, %227, %cst_99 [1] : vector<128x32xf32> to vector<128xf32>
    %229 = vector.shape_cast %228 : vector<128xf32> to vector<128x1xf32>
    %cst_100 = arith.constant 3.200000e+01 : f32
    %230 = vector.broadcast %cst_100 : f32 to vector<128x1xf32>
    %231 = arith.divf %229, %230 : vector<128x1xf32>
    %232 = vector.broadcast %224 : vector<128x1xf32> to vector<128x32xf32>
    %233 = arith.subf %220, %232 : vector<128x32xf32>
    %cst_101 = arith.constant 9.99999974E-6 : f32
    %234 = vector.broadcast %cst_101 : f32 to vector<128x1xf32>
    %235 = arith.addf %231, %234 : vector<128x1xf32>
    %236 = math.rsqrt %235 : vector<128x1xf32>
    %237 = vector.broadcast %236 : vector<128x1xf32> to vector<128x32xf32>
    %238 = arith.mulf %233, %237 : vector<128x32xf32>
    %239 = vector.broadcast %138 : vector<1x32xf32> to vector<128x32xf32>
    %240 = arith.mulf %238, %239 : vector<128x32xf32>
    %241 = vector.broadcast %139 : vector<1x32xf32> to vector<128x32xf32>
    %242 = arith.addf %240, %241 : vector<128x32xf32>
    %c14 = arith.constant 14 : index
    %c0_102 = arith.constant 0 : index
    %243 = vector.load %arg11[%c14, %c0_102] : memref<16x32xf32, #tpu.memory_space<vmem>>, vector<1x32xf32>
    %c15 = arith.constant 15 : index
    %c0_103 = arith.constant 0 : index
    %244 = vector.load %arg11[%c15, %c0_103] : memref<16x32xf32, #tpu.memory_space<vmem>>, vector<1x1xf32>
    %cst_104 = arith.constant dense<0.000000e+00> : vector<1x128xf32>
    %245 = tpu.matmul %243, %242, %cst_104 {dimension_numbers = #tpu.dot_dimension_numbers<[1], [1], [0], [0], [0, 0, 1, 0], [], []>} : vector<1x32xf32>, vector<128x32xf32>, vector<1x128xf32> -> vector<1x128xf32>
    %246 = vector.broadcast %244 : vector<1x1xf32> to vector<1x128xf32>
    %247 = arith.addf %245, %246 : vector<1x128xf32>
    %248 = arith.negf %247 : vector<1x128xf32>
    %249 = math.exp %248 : vector<1x128xf32>
    %cst_105 = arith.constant 1.000000e+00 : f32
    %250 = vector.broadcast %cst_105 : f32 to vector<1x128xf32>
    %251 = arith.addf %250, %249 : vector<1x128xf32>
    %252 = arith.divf %250, %251 : vector<1x128xf32>
    %c0_106 = arith.constant 0 : index
    %c0_107 = arith.constant 0 : index
    %c0_108 = arith.constant 0 : index
    %253 = vector.load %arg12[%c0_106, %c0_107, %c0_108] : memref<1x1x128xf32, #tpu.memory_space<vmem>>, vector<1x1x128xf32>
    %254 = vector.shape_cast %253 : vector<1x1x128xf32> to vector<1x128xf32>
    %255 = vector.shape_cast %252 : vector<1x128xf32> to vector<1x1x128xf32>
    tpu.vector_store %arg12[%c0_106, %c0_107, %c0_108], %255 {strides = array<i32>} : memref<1x1x128xf32, #tpu.memory_space<vmem>>, vector<1x1x128xf32>,
    return
  }
  func.func @transform_0(%arg0: i32) -> (i32, i32) {
    %c0_i32 = arith.constant 0 : i32
    %c0_i32_0 = arith.constant 0 : i32
    return %arg0, %c0_i32 : i32, i32
  }
  func.func @transform_1(%arg0: i32) -> (i32, i32) {
    %c0_i32 = arith.constant 0 : i32
    %c0_i32_0 = arith.constant 0 : i32
    return %arg0, %c0_i32 : i32, i32
  }
  func.func @transform_2(%arg0: i32) -> (i32, i32) {
    %c0_i32 = arith.constant 0 : i32
    %c0_i32_0 = arith.constant 0 : i32
    %c0_i32_1 = arith.constant 0 : i32
    return %c0_i32, %c0_i32_0 : i32, i32
  }
  func.func @transform_3(%arg0: i32) -> (i32, i32) {
    %c0_i32 = arith.constant 0 : i32
    %c0_i32_0 = arith.constant 0 : i32
    %c0_i32_1 = arith.constant 0 : i32
    return %c0_i32, %c0_i32_0 : i32, i32
  }
  func.func @transform_4(%arg0: i32) -> (i32, i32) {
    %c0_i32 = arith.constant 0 : i32
    %c0_i32_0 = arith.constant 0 : i32
    %c0_i32_1 = arith.constant 0 : i32
    return %c0_i32, %c0_i32_0 : i32, i32
  }
  func.func @transform_5(%arg0: i32) -> (i32, i32) {
    %c0_i32 = arith.constant 0 : i32
    %c0_i32_0 = arith.constant 0 : i32
    %c0_i32_1 = arith.constant 0 : i32
    return %c0_i32, %c0_i32_0 : i32, i32
  }
  func.func @transform_6(%arg0: i32) -> (i32, i32) {
    %c0_i32 = arith.constant 0 : i32
    %c0_i32_0 = arith.constant 0 : i32
    %c0_i32_1 = arith.constant 0 : i32
    return %c0_i32, %c0_i32_0 : i32, i32
  }
  func.func @transform_7(%arg0: i32) -> (i32, i32, i32) {
    %c0_i32 = arith.constant 0 : i32
    %c0_i32_0 = arith.constant 0 : i32
    %c0_i32_1 = arith.constant 0 : i32
    %c0_i32_2 = arith.constant 0 : i32
    return %c0_i32, %c0_i32_0, %c0_i32_1 : i32, i32, i32
  }
  func.func @transform_8(%arg0: i32) -> (i32, i32, i32, i32) {
    %c0_i32 = arith.constant 0 : i32
    %c0_i32_0 = arith.constant 0 : i32
    %c0_i32_1 = arith.constant 0 : i32
    %c0_i32_2 = arith.constant 0 : i32
    %c0_i32_3 = arith.constant 0 : i32
    return %c0_i32, %c0_i32_0, %c0_i32_1, %c0_i32_2 : i32, i32, i32, i32
  }
  func.func @transform_9(%arg0: i32) -> (i32, i32) {
    %c0_i32 = arith.constant 0 : i32
    %c0_i32_0 = arith.constant 0 : i32
    %c0_i32_1 = arith.constant 0 : i32
    return %c0_i32, %c0_i32_0 : i32, i32
  }
  func.func @transform_10(%arg0: i32) -> (i32, i32) {
    %c0_i32 = arith.constant 0 : i32
    %c0_i32_0 = arith.constant 0 : i32
    %c0_i32_1 = arith.constant 0 : i32
    return %c0_i32, %c0_i32_0 : i32, i32
  }
  func.func @transform_11(%arg0: i32) -> (i32, i32, i32) {
    %c0_i32 = arith.constant 0 : i32
    %c0_i32_0 = arith.constant 0 : i32
    %c0_i32_1 = arith.constant 0 : i32
    return %arg0, %c0_i32, %c0_i32_0 : i32, i32, i32
  }
}

</mosaic_0001>

<llo_original>
// kernel: tpu_custom_call.1
$region0: #{tpu_custom_call.1}
  #allocation0 [shape = 'u32[]', space=smem, size = 0x4, offset = 0x4, fixed_abs, tag = 'smem constant byte address 0x4 - core index']
  #allocation1 [shape = 'u32[72,128]{1,0:T(1,128)}', space=vmem, size = 0x9000, scoped, tag = 'internal scratch']
  %s0 = inlined_call_operand.vmem [shape: f32[256,8], index: 0, kind: input, shape index: {}]
  %s1 = inlined_call_operand.vmem [shape: f32[64,16], index: 1, kind: input, shape index: {}]
  %s2 = inlined_call_operand.vmem [shape: f32[128,16], index: 2, kind: input, shape index: {}]
  %s3 = inlined_call_operand.vmem [shape: f32[128,8], index: 3, kind: input, shape index: {}]
  %s4 = inlined_call_operand.vmem [shape: bf16[512,32], index: 4, kind: input, shape index: {}]
  %s5 = inlined_call_operand.vmem [shape: bf16[512,64], index: 5, kind: input, shape index: {}]
  %s6 = inlined_call_operand.vmem [shape: f32[128,512], index: 6, kind: input, shape index: {}]
  %s7 = inlined_call_operand.vmem [shape: bf16[2,32,96], index: 7, kind: input, shape index: {}]
  %s8 = inlined_call_operand.vmem [shape: bf16[2,3,32,32], index: 8, kind: input, shape index: {}]
  %s9 = inlined_call_operand.vmem [shape: f32[2,96], index: 9, kind: input, shape index: {}]
  %s10 = inlined_call_operand.vmem [shape: f32[16,32], index: 10, kind: input, shape index: {}]
  %s11 = inlined_call_operand.hbm [shape: f32[2,1,128], index: 11, kind: output, shape index: {}]
  %s12 = sld [smem:[#allocation0]]
  $region77: #{tpu_custom_call.1} parent=0
    _
  %s14 = ssub.s32 1, %s12
  %s15 = scalar_select 0, %s14, %s12
  $region1: #{tpu_custom_call.1} parent=0
    #allocation2 [shape = 'u8[1024]{0}', space=vmem, size = 0x400, scoped, tag = 'output window, operand 0']
    #allocation3 [shape = 's32[2]{0}', space=sflag, size = 0x8, scoped, tag = 'scoped memory for tpu_custom_call.1']
    %16 = vsyncpa [#allocation3], 0
    %s17 = scalar_lea.sflag [#allocation3], 1
    %18 = vsyncpa %s17, 0
    loop: start=0, step=1, limit=4
    $region2: #{tpu_custom_call.1} parent=1 // loop_pre_header
      _
    $region3: #{tpu_custom_call.1} parent=1 // loop_header
      %s20 = sphi 0, %s24
      %p21 = scmp.ge.s32.totalorder %s20, 4
      %s30 = sphi 0, %s32
      %s33 = sphi 0, %s30
      %s34 = sphi 0, %s33
      %s50 = sphi 0, %s34
      %s56 = sphi 0, %s58
      %s59 = sphi 0, %s56
      %s60 = sphi 0, %s59
      %s76 = sphi 0, %s60
      %s80 = sphi 0, %s80
      %s82 = sphi 0, %s80
      %s83 = sphi 0, %s82
      %s97 = sphi 0, %s83
      %s101 = sphi 0, %s101
      %s103 = sphi 0, %s101
      %s104 = sphi 0, %s103
      %s118 = sphi 0, %s104
      %s122 = sphi 0, %s122
      %s124 = sphi 0, %s122
      %s125 = sphi 0, %s124
      %s139 = sphi 0, %s125
      %s143 = sphi 0, %s143
      %s145 = sphi 0, %s143
      %s146 = sphi 0, %s145
      %s160 = sphi 0, %s146
      %s164 = sphi 0, %s164
      %s166 = sphi 0, %s164
      %s167 = sphi 0, %s166
      %s181 = sphi 0, %s167
      %s185 = sphi 0, %s185
      %s187 = sphi 0, %s185
      %s188 = sphi 0, %s187
      %s202 = sphi 0, %s188
      %s206 = sphi 0, %s206
      %s208 = sphi 0, %s206
      %s209 = sphi 0, %s208
      %s223 = sphi 0, %s209
      %s227 = sphi 0, %s227
      %s229 = sphi 0, %s227
      %s230 = sphi 0, %s229
      %s244 = sphi 0, %s230
      %s248 = sphi 0, %s248
      %s250 = sphi 0, %s248
      %s251 = sphi 0, %s250
      %s265 = sphi 0, %s251
      %s271 = sphi 0, %s273
      %s274 = sphi 0, %s271
      %s275 = sphi 0, %s274
      %s291 = sphi 0, %s275
    $region4: #{tpu_custom_call.1} parent=1 // loop_header_branch
      %23 = sbr.rel (%p21) target = $region8
    $region5: #{tpu_custom_call.1} parent=1 // loop_body
      %s25 = ssub.s32 %s20, 1
      %s26 = ssub.s32 %s20, 2
      %s27 = sadd.s32 %s20, 1
      %s28 = ssub.s32 %s20, %s27
      %p29 = scmp.eq.s32.totalorder %s28, 0
      %s31 = sadd.s32 %s30, 1
      %s32 = scalar_select %p29, %s30, %s31
      %p35 = pneg %p29
      %p36 = scmp.eq.s32.totalorder %s20, 1
      %p37 = por %p35, %p36
      %p38 = scmp.ne.s32.totalorder %s30, %s33
      %p39 = scmp.eq.s32.totalorder %s20, 0
      %p40 = por %p38, %p39
      %p41 = scmp.ne.s32.totalorder %s30, %s33
      %p42 = scmp.eq.s32.totalorder %s25, 1
      %p43 = por %p41, %p42
      %p44 = scmp.ne.s32.totalorder %s33, %s34
      %p45 = scmp.eq.s32.totalorder %s25, 0
      %p46 = por %p44, %p45
      %p47 = scmp.ne.s32.totalorder %s33, %s34
      %p48 = scmp.eq.s32.totalorder %s26, 1
      %p49 = por %p47, %p48
      %p51 = scmp.ne.s32.totalorder %s34, %s50
      %p52 = scmp.eq.s32.totalorder %s26, 0
      %p53 = por %p51, %p52
      %s54 = ssub.s32 %s20, %s27
      %p55 = scmp.eq.s32.totalorder %s54, 0
      %s57 = sadd.s32 %s56, 1
      %s58 = scalar_select %p55, %s56, %s57
      %p61 = pneg %p55
      %p62 = scmp.eq.s32.totalorder %s20, 1
      %p63 = por %p61, %p62
      %p64 = scmp.ne.s32.totalorder %s56, %s59
      %p65 = scmp.eq.s32.totalorder %s20, 0
      %p66 = por %p64, %p65
      %p67 = scmp.ne.s32.totalorder %s56, %s59
      %p68 = scmp.eq.s32.totalorder %s25, 1
      %p69 = por %p67, %p68
      %p70 = scmp.ne.s32.totalorder %s59, %s60
      %p71 = scmp.eq.s32.totalorder %s25, 0
      %p72 = por %p70, %p71
      %p73 = scmp.ne.s32.totalorder %s59, %s60
      %p74 = scmp.eq.s32.totalorder %s26, 1
      %p75 = por %p73, %p74
      %p77 = scmp.ne.s32.totalorder %s60, %s76
      %p78 = scmp.eq.s32.totalorder %s26, 0
      %p79 = por %p77, %p78
      %s81 = sadd.s32 %s80, 1
      %p84 = scmp.eq.s32.totalorder %s20, 1
      %p85 = scmp.ne.s32.totalorder %s80, %s82
      %p86 = scmp.eq.s32.totalorder %s20, 0
      %p87 = por %p85, %p86
      %p88 = scmp.ne.s32.totalorder %s80, %s82
      %p89 = scmp.eq.s32.totalorder %s25, 1
      %p90 = por %p88, %p89
      %p91 = scmp.ne.s32.totalorder %s82, %s83
      %p92 = scmp.eq.s32.totalorder %s25, 0
      %p93 = por %p91, %p92
      %p94 = scmp.ne.s32.totalorder %s82, %s83
      %p95 = scmp.eq.s32.totalorder %s26, 1
      %p96 = por %p94, %p95
      %p98 = scmp.ne.s32.totalorder %s83, %s97
      %p99 = scmp.eq.s32.totalorder %s26, 0
      %p100 = por %p98, %p99
      %s102 = sadd.s32 %s101, 1
      %p105 = scmp.eq.s32.totalorder %s20, 1
      %p106 = scmp.ne.s32.totalorder %s101, %s103
      %p107 = scmp.eq.s32.totalorder %s20, 0
      %p108 = por %p106, %p107
      %p109 = scmp.ne.s32.totalorder %s101, %s103
      %p110 = scmp.eq.s32.totalorder %s25, 1
      %p111 = por %p109, %p110
      %p112 = scmp.ne.s32.totalorder %s103, %s104
      %p113 = scmp.eq.s32.totalorder %s25, 0
      %p114 = por %p112, %p113
      %p115 = scmp.ne.s32.totalorder %s103, %s104
      %p116 = scmp.eq.s32.totalorder %s26, 1
      %p117 = por %p115, %p116
      %p119 = scmp.ne.s32.totalorder %s104, %s118
      %p120 = scmp.eq.s32.totalorder %s26, 0
      %p121 = por %p119, %p120
      %s123 = sadd.s32 %s122, 1
      %p126 = scmp.eq.s32.totalorder %s20, 1
      %p127 = scmp.ne.s32.totalorder %s122, %s124
      %p128 = scmp.eq.s32.totalorder %s20, 0
      %p129 = por %p127, %p128
      %p130 = scmp.ne.s32.totalorder %s122, %s124
      %p131 = scmp.eq.s32.totalorder %s25, 1
      %p132 = por %p130, %p131
      %p133 = scmp.ne.s32.totalorder %s124, %s125
      %p134 = scmp.eq.s32.totalorder %s25, 0
      %p135 = por %p133, %p134
      %p136 = scmp.ne.s32.totalorder %s124, %s125
      %p137 = scmp.eq.s32.totalorder %s26, 1
      %p138 = por %p136, %p137
      %p140 = scmp.ne.s32.totalorder %s125, %s139
      %p141 = scmp.eq.s32.totalorder %s26, 0
      %p142 = por %p140, %p141
      %s144 = sadd.s32 %s143, 1
      %p147 = scmp.eq.s32.totalorder %s20, 1
      %p148 = scmp.ne.s32.totalorder %s143, %s145
      %p149 = scmp.eq.s32.totalorder %s20, 0
      %p150 = por %p148, %p149
      %p151 = scmp.ne.s32.totalorder %s143, %s145
      %p152 = scmp.eq.s32.totalorder %s25, 1
      %p153 = por %p151, %p152
      %p154 = scmp.ne.s32.totalorder %s145, %s146
      %p155 = scmp.eq.s32.totalorder %s25, 0
      %p156 = por %p154, %p155
      %p157 = scmp.ne.s32.totalorder %s145, %s146
      %p158 = scmp.eq.s32.totalorder %s26, 1
      %p159 = por %p157, %p158
      %p161 = scmp.ne.s32.totalorder %s146, %s160
      %p162 = scmp.eq.s32.totalorder %s26, 0
      %p163 = por %p161, %p162
      %s165 = sadd.s32 %s164, 1
      %p168 = scmp.eq.s32.totalorder %s20, 1
      %p169 = scmp.ne.s32.totalorder %s164, %s166
      %p170 = scmp.eq.s32.totalorder %s20, 0
      %p171 = por %p169, %p170
      %p172 = scmp.ne.s32.totalorder %s164, %s166
      %p173 = scmp.eq.s32.totalorder %s25, 1
      %p174 = por %p172, %p173
      %p175 = scmp.ne.s32.totalorder %s166, %s167
      %p176 = scmp.eq.s32.totalorder %s25, 0
      %p177 = por %p175, %p176
      %p178 = scmp.ne.s32.totalorder %s166, %s167
      %p179 = scmp.eq.s32.totalorder %s26, 1
      %p180 = por %p178, %p179
      %p182 = scmp.ne.s32.totalorder %s167, %s181
      %p183 = scmp.eq.s32.totalorder %s26, 0
      %p184 = por %p182, %p183
      %s186 = sadd.s32 %s185, 1
      %p189 = scmp.eq.s32.totalorder %s20, 1
      %p190 = scmp.ne.s32.totalorder %s185, %s187
      %p191 = scmp.eq.s32.totalorder %s20, 0
      %p192 = por %p190, %p191
      %p193 = scmp.ne.s32.totalorder %s185, %s187
      %p194 = scmp.eq.s32.totalorder %s25, 1
      %p195 = por %p193, %p194
      %p196 = scmp.ne.s32.totalorder %s187, %s188
      %p197 = scmp.eq.s32.totalorder %s25, 0
      %p198 = por %p196, %p197
      %p199 = scmp.ne.s32.totalorder %s187, %s188
      %p200 = scmp.eq.s32.totalorder %s26, 1
      %p201 = por %p199, %p200
      %p203 = scmp.ne.s32.totalorder %s188, %s202
      %p204 = scmp.eq.s32.totalorder %s26, 0
      %p205 = por %p203, %p204
      %s207 = sadd.s32 %s206, 1
      %p210 = scmp.eq.s32.totalorder %s20, 1
      %p211 = scmp.ne.s32.totalorder %s206, %s208
      %p212 = scmp.eq.s32.totalorder %s20, 0
      %p213 = por %p211, %p212
      %p214 = scmp.ne.s32.totalorder %s206, %s208
      %p215 = scmp.eq.s32.totalorder %s25, 1
      %p216 = por %p214, %p215
      %p217 = scmp.ne.s32.totalorder %s208, %s209
      %p218 = scmp.eq.s32.totalorder %s25, 0
      %p219 = por %p217, %p218
      %p220 = scmp.ne.s32.totalorder %s208, %s209
      %p221 = scmp.eq.s32.totalorder %s26, 1
      %p222 = por %p220, %p221
      %p224 = scmp.ne.s32.totalorder %s209, %s223
      %p225 = scmp.eq.s32.totalorder %s26, 0
      %p226 = por %p224, %p225
      %s228 = sadd.s32 %s227, 1
      %p231 = scmp.eq.s32.totalorder %s20, 1
      %p232 = scmp.ne.s32.totalorder %s227, %s229
      %p233 = scmp.eq.s32.totalorder %s20, 0
      %p234 = por %p232, %p233
      %p235 = scmp.ne.s32.totalorder %s227, %s229
      %p236 = scmp.eq.s32.totalorder %s25, 1
      %p237 = por %p235, %p236
      %p238 = scmp.ne.s32.totalorder %s229, %s230
      %p239 = scmp.eq.s32.totalorder %s25, 0
      %p240 = por %p238, %p239
      %p241 = scmp.ne.s32.totalorder %s229, %s230
      %p242 = scmp.eq.s32.totalorder %s26, 1
      %p243 = por %p241, %p242
      %p245 = scmp.ne.s32.totalorder %s230, %s244
      %p246 = scmp.eq.s32.totalorder %s26, 0
      %p247 = por %p245, %p246
      %s249 = sadd.s32 %s248, 1
      %p252 = scmp.eq.s32.totalorder %s20, 1
      %p253 = scmp.ne.s32.totalorder %s248, %s250
      %p254 = scmp.eq.s32.totalorder %s20, 0
      %p255 = por %p253, %p254
      %p256 = scmp.ne.s32.totalorder %s248, %s250
      %p257 = scmp.eq.s32.totalorder %s25, 1
      %p258 = por %p256, %p257
      %p259 = scmp.ne.s32.totalorder %s250, %s251
      %p260 = scmp.eq.s32.totalorder %s25, 0
      %p261 = por %p259, %p260
      %p262 = scmp.ne.s32.totalorder %s250, %s251
      %p263 = scmp.eq.s32.totalorder %s26, 1
      %p264 = por %p262, %p263
      %p266 = scmp.ne.s32.totalorder %s251, %s265
      %p267 = scmp.eq.s32.totalorder %s26, 0
      %p268 = por %p266, %p267
      %s269 = ssub.s32 %s20, %s27
      %p270 = scmp.eq.s32.totalorder %s269, 0
      %s272 = sadd.s32 %s271, 1
      %s273 = scalar_select %p270, %s271, %s272
      %p276 = pneg %p270
      %p277 = scmp.eq.s32.totalorder %s20, 1
      %p278 = por %p276, %p277
      %p279 = scmp.ne.s32.totalorder %s271, %s274
      %p280 = scmp.eq.s32.totalorder %s20, 0
      %p281 = por %p279, %p280
      %p282 = scmp.ne.s32.totalorder %s271, %s274
      %p283 = scmp.eq.s32.totalorder %s25, 1
      %p284 = por %p282, %p283
      %p285 = scmp.ne.s32.totalorder %s274, %s275
      %p286 = scmp.eq.s32.totalorder %s25, 0
      %p287 = por %p285, %p286
      %p288 = scmp.ne.s32.totalorder %s274, %s275
      %p289 = scmp.eq.s32.totalorder %s26, 1
      %p290 = por %p288, %p289
      %p292 = scmp.ne.s32.totalorder %s275, %s291
      %p293 = scmp.eq.s32.totalorder %s26, 0
      %p294 = por %p292, %p293
      %p295 = scmp.le.s32.totalorder 1, %s20
      %p296 = scmp.lt.s32.totalorder %s20, 3
      %p297 = pnand %p295, %p296
      %p298 = pneg %p297
      // Predicated region
      $region9: #{tpu_custom_call.1} parent=5 // pred_check
        _
      $region10: #{tpu_custom_call.1} parent=5 // pred_check_branch
        %300 = sbr.rel (%p297) target = $region12
      $region11: #{tpu_custom_call.1} parent=5 // pred_region
        %s301 = ssub.s32 %s20, 1
        // Predicated region
        $region13: #{tpu_custom_call.1} parent=11 // pred_check
          %p302 = pneg %p93
        $region14: #{tpu_custom_call.1} parent=11 // pred_check_branch
          %304 = sbr.rel (%p302) target = $region16
        $region15: #{tpu_custom_call.1} parent=11 // pred_region
          _
        $region16: #{tpu_custom_call.1} parent=11 // pred_fallthru
          _
        // Predicated region
        $region17: #{tpu_custom_call.1} parent=11 // pred_check
          %p305 = pneg %p114
        $region18: #{tpu_custom_call.1} parent=11 // pred_check_branch
          %307 = sbr.rel (%p305) target = $region20
        $region19: #{tpu_custom_call.1} parent=11 // pred_region
          _
        $region20: #{tpu_custom_call.1} parent=11 // pred_fallthru
          _
        // Predicated region
        $region21: #{tpu_custom_call.1} parent=11 // pred_check
          %p308 = pneg %p135
        $region22: #{tpu_custom_call.1} parent=11 // pred_check_branch
          %310 = sbr.rel (%p308) target = $region24
        $region23: #{tpu_custom_call.1} parent=11 // pred_region
          _
        $region24: #{tpu_custom_call.1} parent=11 // pred_fallthru
          _
        // Predicated region
        $region25: #{tpu_custom_call.1} parent=11 // pred_check
          %p311 = pneg %p156
        $region26: #{tpu_custom_call.1} parent=11 // pred_check_branch
          %313 = sbr.rel (%p311) target = $region28
        $region27: #{tpu_custom_call.1} parent=11 // pred_region
          _
        $region28: #{tpu_custom_call.1} parent=11 // pred_fallthru
          _
        // Predicated region
        $region29: #{tpu_custom_call.1} parent=11 // pred_check
          %p314 = pneg %p177
        $region30: #{tpu_custom_call.1} parent=11 // pred_check_branch
          %316 = sbr.rel (%p314) target = $region32
        $region31: #{tpu_custom_call.1} parent=11 // pred_region
          _
        $region32: #{tpu_custom_call.1} parent=11 // pred_fallthru
          _
        // Predicated region
        $region33: #{tpu_custom_call.1} parent=11 // pred_check
          %p317 = pneg %p198
        $region34: #{tpu_custom_call.1} parent=11 // pred_check_branch
          %319 = sbr.rel (%p317) target = $region36
        $region35: #{tpu_custom_call.1} parent=11 // pred_region
          _
        $region36: #{tpu_custom_call.1} parent=11 // pred_fallthru
          _
        // Predicated region
        $region37: #{tpu_custom_call.1} parent=11 // pred_check
          %p320 = pneg %p219
        $region38: #{tpu_custom_call.1} parent=11 // pred_check_branch
          %322 = sbr.rel (%p320) target = $region40
        $region39: #{tpu_custom_call.1} parent=11 // pred_region
          _
        $region40: #{tpu_custom_call.1} parent=11 // pred_fallthru
          _
        // Predicated region
        $region41: #{tpu_custom_call.1} parent=11 // pred_check
          %p323 = pneg %p240
        $region42: #{tpu_custom_call.1} parent=11 // pred_check_branch
          %325 = sbr.rel (%p323) target = $region44
        $region43: #{tpu_custom_call.1} parent=11 // pred_region
          _
        $region44: #{tpu_custom_call.1} parent=11 // pred_fallthru
          _
        // Predicated region
        $region45: #{tpu_custom_call.1} parent=11 // pred_check
          %p326 = pneg %p261
        $region46: #{tpu_custom_call.1} parent=11 // pred_check_branch
          %328 = sbr.rel (%p326) target = $region48
        $region47: #{tpu_custom_call.1} parent=11 // pred_region
          _
        $region48: #{tpu_custom_call.1} parent=11 // pred_fallthru
          _
      $region12: #{tpu_custom_call.1} parent=5 // pred_fallthru
        _
      %p329 = scmp.lt.s32.totalorder %s20, 2
      // Predicated region
      $region49: #{tpu_custom_call.1} parent=5 // pred_check
        %p330 = pneg %p329
      $region50: #{tpu_custom_call.1} parent=5 // pred_check_branch
        %332 = sbr.rel (%p330) target = $region52
      $region51: #{tpu_custom_call.1} parent=5 // pred_region
        // Predicated region
        $region53: #{tpu_custom_call.1} parent=51 // pred_check
          %p333 = pneg %p40
        $region54: #{tpu_custom_call.1} parent=51 // pred_check_branch
          %335 = sbr.rel (%p333) target = $region56
        $region55: #{tpu_custom_call.1} parent=51 // pred_region
          %s336 = smul.u32 16, %s20
          %p337 = scmp.lt.s32.totalorder %s336, 31
          %s338 = scalar_select %p337, %s336, 31
          %s339 = smul.addr %s338, 8
          %s340 = scalar_lea.vmem %s0, %s339
          %s341 = smul.u32 16, %s20
        $region56: #{tpu_custom_call.1} parent=51 // pred_fallthru
          _
        // Predicated region
        $region57: #{tpu_custom_call.1} parent=51 // pred_check
          %p342 = pneg %p66
        $region58: #{tpu_custom_call.1} parent=51 // pred_check_branch
          %344 = sbr.rel (%p342) target = $region60
        $region59: #{tpu_custom_call.1} parent=51 // pred_region
          %s345 = smul.u32 4, %s20
          %p346 = scmp.lt.s32.totalorder %s345, 7
          %s347 = scalar_select %p346, %s345, 7
          %s348 = smul.addr %s347, 8
          %s349 = scalar_lea.vmem %s1, %s348
          %s350 = smul.u32 4, %s20
        $region60: #{tpu_custom_call.1} parent=51 // pred_fallthru
          _
      $region52: #{tpu_custom_call.1} parent=5 // pred_fallthru
        _
      %p351 = scmp.le.s32.totalorder 1, %s20
      %p352 = scmp.lt.s32.totalorder %s20, 3
      %p353 = pnand %p351, %p352
      %p354 = pneg %p353
      // Predicated region
      $region61: #{tpu_custom_call.1} parent=5 // pred_check
        _
      $region62: #{tpu_custom_call.1} parent=5 // pred_check_branch
        %356 = sbr.rel (%p353) target = $region64
      $region63: #{tpu_custom_call.1} parent=5 // pred_region
        %s357 = ssub.s32 %s20, 1
        %s358 = smul.u32 16, %s25
        %p359 = scmp.lt.s32.totalorder %s358, 31
        %s360 = scalar_select %p359, %s358, 31
        %s361 = smul.addr %s360, 8
        %s362 = scalar_lea.vmem %s0, %s361
        %p363 = pneg %p46
        %p364 = pneg %p43
        %s365 = smul.u32 4, %s25
        %p366 = scmp.lt.s32.totalorder %s365, 7
        %s367 = scalar_select %p366, %s365, 7
        %s368 = smul.addr %s367, 8
        %s369 = scalar_lea.vmem %s1, %s368
        %p370 = pneg %p72
        %p371 = pneg %p69
        %p372 = pneg %p93
        %p373 = pneg %p90
        %p374 = pneg %p114
        %p375 = pneg %p111
        %p376 = pneg %p135
        %p377 = pneg %p132
        %p378 = pneg %p156
        %p379 = pneg %p153
        %p380 = pneg %p177
        %p381 = pneg %p174
        %p382 = pneg %p198
        %p383 = pneg %p195
        %p384 = pneg %p219
        %p385 = pneg %p216
        %p386 = pneg %p240
        %p387 = pneg %p237
        %p388 = pneg %p261
        %p389 = pneg %p258
        %p390 = pneg %p287
        %p391 = pneg %p284
        %s392 = sand.u32 %s274, 1
        %s393 = scalar_lea.sflag [#allocation3], %s392
        %s394 = sand.u32 %s274, 1
        %s395 = scalar_lea.vmem [#allocation2], %s394
        %s396 = smul.u32 16, %s25
        %p397 = scmp.lt.s32.totalorder %s396, 31
        %s398 = scalar_select %p397, %s396, 31
        %s399 = smul.addr %s398, 8
        %s400 = scalar_lea.vmem %s0, %s399
        %s401 = smul.u32 16, %s25
        %s402 = smul.u32 4, %s25
        %p403 = scmp.lt.s32.totalorder %s402, 7
        %s404 = scalar_select %p403, %s402, 7
        %s405 = smul.addr %s404, 8
        %s406 = scalar_lea.vmem %s1, %s405
        %s407 = smul.u32 4, %s25
        %v410 = vld [vmem:[%s3] sm:$0xff]
        %v411 = vld [vmem:[%s3 + $0x8] sm:$0xff]
        %v412 = vld [vmem:[%s3 + $0x10] sm:$0xff]
        %v413 = vld [vmem:[%s3 + $0x18] sm:$0xff]
        %v414 = vld [vmem:[%s3 + $0x20] sm:$0xff]
        %v415 = vld [vmem:[%s3 + $0x28] sm:$0xff]
        %v416 = vld [vmem:[%s3 + $0x30] sm:$0xff]
        %v417 = vld [vmem:[%s3 + $0x38] sm:$0xff]
        %v418 = vld [vmem:[%s3 + $0x40] sm:$0xff]
        %v419 = vld [vmem:[%s3 + $0x48] sm:$0xff]
        %v420 = vld [vmem:[%s3 + $0x50] sm:$0xff]
        %v421 = vld [vmem:[%s3 + $0x58] sm:$0xff]
        %v422 = vld [vmem:[%s3 + $0x60] sm:$0xff]
        %v423 = vld [vmem:[%s3 + $0x68] sm:$0xff]
        %v424 = vld [vmem:[%s3 + $0x70] sm:$0xff]
        %v425 = vld [vmem:[%s3 + $0x78] sm:$0xff]
        %v426 = vld [vmem:[%s400] sm:$0xff]
        %v427 = vld [vmem:[%s400 + $0x8] sm:$0xff]
        %v428 = vld [vmem:[%s400 + $0x10] sm:$0xff]
        %v429 = vld [vmem:[%s400 + $0x18] sm:$0xff]
        %v430 = vld [vmem:[%s400 + $0x20] sm:$0xff]
        %v431 = vld [vmem:[%s400 + $0x28] sm:$0xff]
        %v432 = vld [vmem:[%s400 + $0x30] sm:$0xff]
        %v433 = vld [vmem:[%s400 + $0x38] sm:$0xff]
        %v434 = vld [vmem:[%s400 + $0x40] sm:$0xff]
        %v435 = vld [vmem:[%s400 + $0x48] sm:$0xff]
        %v436 = vld [vmem:[%s400 + $0x50] sm:$0xff]
        %v437 = vld [vmem:[%s400 + $0x58] sm:$0xff]
        %v438 = vld [vmem:[%s400 + $0x60] sm:$0xff]
        %v439 = vld [vmem:[%s400 + $0x68] sm:$0xff]
        %v440 = vld [vmem:[%s400 + $0x70] sm:$0xff]
        %v441 = vld [vmem:[%s400 + $0x78] sm:$0xff]
        %v442 = vmul.f32 %v410, %v426
        %v443 = vmul.f32 %v411, %v427
        %v444 = vmul.f32 %v412, %v428
        %v445 = vmul.f32 %v413, %v429
        %v446 = vmul.f32 %v414, %v430
        %v447 = vmul.f32 %v415, %v431
        %v448 = vmul.f32 %v416, %v432
        %v449 = vmul.f32 %v417, %v433
        %v450 = vmul.f32 %v418, %v434
        %v451 = vmul.f32 %v419, %v435
        %v452 = vmul.f32 %v420, %v436
        %v453 = vmul.f32 %v421, %v437
        %v454 = vmul.f32 %v422, %v438
        %v455 = vmul.f32 %v423, %v439
        %v456 = vmul.f32 %v424, %v440
        %v457 = vmul.f32 %v425, %v441
        %v458 = vld [vmem:[%s406] sm:$0xff]
        %v459 = vld [vmem:[%s406 + $0x8] sm:$0xff]
        %v460 = vld [vmem:[%s406 + $0x10] sm:$0xff]
        %v461 = vld [vmem:[%s406 + $0x18] sm:$0xff]
        %vm462 = vcmask 64512
        %v464 = vsel %vm462, %v442, 0
        %v467 = vsel %vm462, %v443, 0
        %v470 = vsel %vm462, %v444, 0
        %v473 = vsel %vm462, %v445, 0
        %475 = vmatpush.msra.mxu0 0.0
        %476 = vmatpush.msra.mxu0 0.0
        %477 = vmatpush.msra.mxu0 0.0
        %478 = vmatpush.msra.mxu0 0.0
        %479 = vmatpush.msra.mxu0 0.0
        %480 = vmatpush.msra.mxu0 0.0
        %481 = vmatpush.msra.mxu0 0.0
        %482 = vmatpush.msra.mxu0 0.0
        %483 = vmatpush.msra.mxu0 0.0
        %484 = vmatpush.msra.mxu0 0.0
        %485 = vmatpush.msra.mxu0 0.0
        %486 = vmatpush.msra.mxu0 0.0
        %487 = vmatpush.msra.mxu0 0.0
        %488 = vmatpush.msra.mxu0 0.0
        %489 = vmatpush.msra.mxu0 0.0
        %490 = vmatpush.msra.mxu0 %v458
        %491 = vmatmul.f32.gmra.mxu0 %v464
        %v492 = vpop.f32.mrf.mxu0
        %v493 = vadd.f32 0.0, %v492
        %494 = vmatmul.f32.gmra.mxu0 %v467
        %v495 = vpop.f32.mrf.mxu0
        %v496 = vadd.f32 0.0, %v495
        %497 = vmatmul.f32.gmra.mxu0 %v470
        %v498 = vpop.f32.mrf.mxu0
        %v499 = vadd.f32 0.0, %v498
        %500 = vmatmul.f32.gmra.mxu0 %v473
        %v501 = vpop.f32.mrf.mxu0
        %v502 = vadd.f32 0.0, %v501
        %503 = vdwg.mxu0
        %v505 = vsel %vm462, %v446, 0
        %v508 = vsel %vm462, %v447, 0
        %v511 = vsel %vm462, %v448, 0
        %v514 = vsel %vm462, %v449, 0
        %516 = vmatpush.msra.mxu0 0.0
        %517 = vmatpush.msra.mxu0 0.0
        %518 = vmatpush.msra.mxu0 0.0
        %519 = vmatpush.msra.mxu0 0.0
        %520 = vmatpush.msra.mxu0 0.0
        %521 = vmatpush.msra.mxu0 0.0
        %522 = vmatpush.msra.mxu0 0.0
        %523 = vmatpush.msra.mxu0 0.0
        %524 = vmatpush.msra.mxu0 0.0
        %525 = vmatpush.msra.mxu0 0.0
        %526 = vmatpush.msra.mxu0 0.0
        %527 = vmatpush.msra.mxu0 0.0
        %528 = vmatpush.msra.mxu0 0.0
        %529 = vmatpush.msra.mxu0 0.0
        %530 = vmatpush.msra.mxu0 0.0
        %531 = vmatpush.msra.mxu0 %v459
        %532 = vmatmul.f32.gmra.mxu0 %v505
        %v533 = vpop.f32.mrf.mxu0
        %v534 = vadd.f32 0.0, %v533
        %535 = vmatmul.f32.gmra.mxu0 %v508
        %v536 = vpop.f32.mrf.mxu0
        %v537 = vadd.f32 0.0, %v536
        %538 = vmatmul.f32.gmra.mxu0 %v511
        %v539 = vpop.f32.mrf.mxu0
        %v540 = vadd.f32 0.0, %v539
        %541 = vmatmul.f32.gmra.mxu0 %v514
        %v542 = vpop.f32.mrf.mxu0
        %v543 = vadd.f32 0.0, %v542
        %544 = vdwg.mxu0
        %v546 = vsel %vm462, %v450, 0
        %v549 = vsel %vm462, %v451, 0
        %v552 = vsel %vm462, %v452, 0
        %v555 = vsel %vm462, %v453, 0
        %557 = vmatpush.msra.mxu0 0.0
        %558 = vmatpush.msra.mxu0 0.0
        %559 = vmatpush.msra.mxu0 0.0
        %560 = vmatpush.msra.mxu0 0.0
        %561 = vmatpush.msra.mxu0 0.0
        %562 = vmatpush.msra.mxu0 0.0
        %563 = vmatpush.msra.mxu0 0.0
        %564 = vmatpush.msra.mxu0 0.0
        %565 = vmatpush.msra.mxu0 0.0
        %566 = vmatpush.msra.mxu0 0.0
        %567 = vmatpush.msra.mxu0 0.0
        %568 = vmatpush.msra.mxu0 0.0
        %569 = vmatpush.msra.mxu0 0.0
        %570 = vmatpush.msra.mxu0 0.0
        %571 = vmatpush.msra.mxu0 0.0
        %572 = vmatpush.msra.mxu0 %v460
        %573 = vmatmul.f32.gmra.mxu0 %v546
        %v574 = vpop.f32.mrf.mxu0
        %v575 = vadd.f32 0.0, %v574
        %576 = vmatmul.f32.gmra.mxu0 %v549
        %v577 = vpop.f32.mrf.mxu0
        %v578 = vadd.f32 0.0, %v577
        %579 = vmatmul.f32.gmra.mxu0 %v552
        %v580 = vpop.f32.mrf.mxu0
        %v581 = vadd.f32 0.0, %v580
        %582 = vmatmul.f32.gmra.mxu0 %v555
        %v583 = vpop.f32.mrf.mxu0
        %v584 = vadd.f32 0.0, %v583
        %585 = vdwg.mxu0
        %v587 = vsel %vm462, %v454, 0
        %v590 = vsel %vm462, %v455, 0
        %v593 = vsel %vm462, %v456, 0
        %v596 = vsel %vm462, %v457, 0
        %598 = vmatpush.msra.mxu0 0.0
        %599 = vmatpush.msra.mxu0 0.0
        %600 = vmatpush.msra.mxu0 0.0
        %601 = vmatpush.msra.mxu0 0.0
        %602 = vmatpush.msra.mxu0 0.0
        %603 = vmatpush.msra.mxu0 0.0
        %604 = vmatpush.msra.mxu0 0.0
        %605 = vmatpush.msra.mxu0 0.0
        %606 = vmatpush.msra.mxu0 0.0
        %607 = vmatpush.msra.mxu0 0.0
        %608 = vmatpush.msra.mxu0 0.0
        %609 = vmatpush.msra.mxu0 0.0
        %610 = vmatpush.msra.mxu0 0.0
        %611 = vmatpush.msra.mxu0 0.0
        %612 = vmatpush.msra.mxu0 0.0
        %613 = vmatpush.msra.mxu0 %v461
        %614 = vmatmul.f32.gmra.mxu0 %v587
        %v615 = vpop.f32.mrf.mxu0
        %v616 = vadd.f32 0.0, %v615
        %617 = vmatmul.f32.gmra.mxu0 %v590
        %v618 = vpop.f32.mrf.mxu0
        %v619 = vadd.f32 0.0, %v618
        %620 = vmatmul.f32.gmra.mxu0 %v593
        %v621 = vpop.f32.mrf.mxu0
        %v622 = vadd.f32 0.0, %v621
        %623 = vmatmul.f32.gmra.mxu0 %v596
        %v624 = vpop.f32.mrf.mxu0
        %v625 = vadd.f32 0.0, %v624
        %626 = vdwg.mxu0
        %v627 = vld [vmem:[%s2] sm:$0xff]
        %v628 = vld [vmem:[%s2 + $0x8] sm:$0xff]
        %v629 = vld [vmem:[%s2 + $0x10] sm:$0xff]
        %v630 = vld [vmem:[%s2 + $0x18] sm:$0xff]
        %v631 = vld [vmem:[%s2 + $0x20] sm:$0xff]
        %v632 = vld [vmem:[%s2 + $0x28] sm:$0xff]
        %v633 = vld [vmem:[%s2 + $0x30] sm:$0xff]
        %v634 = vld [vmem:[%s2 + $0x38] sm:$0xff]
        %v635 = vld [vmem:[%s2 + $0x40] sm:$0xff]
        %v636 = vld [vmem:[%s2 + $0x48] sm:$0xff]
        %v637 = vld [vmem:[%s2 + $0x50] sm:$0xff]
        %v638 = vld [vmem:[%s2 + $0x58] sm:$0xff]
        %v639 = vld [vmem:[%s2 + $0x60] sm:$0xff]
        %v640 = vld [vmem:[%s2 + $0x68] sm:$0xff]
        %v641 = vld [vmem:[%s2 + $0x70] sm:$0xff]
        %v642 = vld [vmem:[%s2 + $0x78] sm:$0xff]
        %659 = vrot.lane.b32.xlu0 %v493, 16
        %v660 = vpop.permute.xlu0 %659
        %661 = vrot.lane.b32.xlu0 %v496, 16
        %v662 = vpop.permute.xlu0 %661
        %663 = vrot.lane.b32.xlu0 %v499, 16
        %v664 = vpop.permute.xlu0 %663
        %665 = vrot.lane.b32.xlu0 %v502, 16
        %v666 = vpop.permute.xlu0 %665
        %667 = vrot.lane.b32.xlu0 %v534, 16
        %v668 = vpop.permute.xlu0 %667
        %669 = vrot.lane.b32.xlu0 %v537, 16
        %v670 = vpop.permute.xlu0 %669
        %671 = vrot.lane.b32.xlu0 %v540, 16
        %v672 = vpop.permute.xlu0 %671
        %673 = vrot.lane.b32.xlu0 %v543, 16
        %v674 = vpop.permute.xlu0 %673
        %675 = vrot.lane.b32.xlu0 %v575, 16
        %v676 = vpop.permute.xlu0 %675
        %677 = vrot.lane.b32.xlu0 %v578, 16
        %v678 = vpop.permute.xlu0 %677
        %679 = vrot.lane.b32.xlu0 %v581, 16
        %v680 = vpop.permute.xlu0 %679
        %681 = vrot.lane.b32.xlu0 %v584, 16
        %v682 = vpop.permute.xlu0 %681
        %683 = vrot.lane.b32.xlu0 %v616, 16
        %v684 = vpop.permute.xlu0 %683
        %685 = vrot.lane.b32.xlu0 %v619, 16
        %v686 = vpop.permute.xlu0 %685
        %687 = vrot.lane.b32.xlu0 %v622, 16
        %v688 = vpop.permute.xlu0 %687
        %689 = vrot.lane.b32.xlu0 %v625, 16
        %v690 = vpop.permute.xlu0 %689
        %vm707 = vcmask 130048
        %v708 = vsel %vm707, %v627, %v660
        %v709 = vsel %vm707, %v628, %v662
        %v710 = vsel %vm707, %v629, %v664
        %v711 = vsel %vm707, %v630, %v666
        %v712 = vsel %vm707, %v631, %v668
        %v713 = vsel %vm707, %v632, %v670
        %v714 = vsel %vm707, %v633, %v672
        %v715 = vsel %vm707, %v634, %v674
        %v716 = vsel %vm707, %v635, %v676
        %v717 = vsel %vm707, %v636, %v678
        %v718 = vsel %vm707, %v637, %v680
        %v719 = vsel %vm707, %v638, %v682
        %v720 = vsel %vm707, %v639, %v684
        %v721 = vsel %vm707, %v640, %v686
        %v722 = vsel %vm707, %v641, %v688
        %v723 = vsel %vm707, %v642, %v690
        %v724 = vld [vmem:[%s4] sm:$0xf]
        %v725 = vld [vmem:[%s4 + $0x4] sm:$0xf]
        %v726 = vld [vmem:[%s4 + $0x8] sm:$0xf]
        %v727 = vld [vmem:[%s4 + $0xc] sm:$0xf]
        %v728 = vld [vmem:[%s4 + $0x10] sm:$0xf]
        %v729 = vld [vmem:[%s4 + $0x14] sm:$0xf]
        %v730 = vld [vmem:[%s4 + $0x18] sm:$0xf]
        %v731 = vld [vmem:[%s4 + $0x1c] sm:$0xf]
        %v732 = vld [vmem:[%s4 + $0x20] sm:$0xf]
        %v733 = vld [vmem:[%s4 + $0x24] sm:$0xf]
        %v734 = vld [vmem:[%s4 + $0x28] sm:$0xf]
        %v735 = vld [vmem:[%s4 + $0x2c] sm:$0xf]
        %v736 = vld [vmem:[%s4 + $0x30] sm:$0xf]
        %v737 = vld [vmem:[%s4 + $0x34] sm:$0xf]
        %v738 = vld [vmem:[%s4 + $0x38] sm:$0xf]
        %v739 = vld [vmem:[%s4 + $0x3c] sm:$0xf]
        %v740 = vld [vmem:[%s4 + $0x40] sm:$0xf]
        %v741 = vld [vmem:[%s4 + $0x44] sm:$0xf]
        %v742 = vld [vmem:[%s4 + $0x48] sm:$0xf]
        %v743 = vld [vmem:[%s4 + $0x4c] sm:$0xf]
        %v744 = vld [vmem:[%s4 + $0x50] sm:$0xf]
        %v745 = vld [vmem:[%s4 + $0x54] sm:$0xf]
        %v746 = vld [vmem:[%s4 + $0x58] sm:$0xf]
        %v747 = vld [vmem:[%s4 + $0x5c] sm:$0xf]
        %v748 = vld [vmem:[%s4 + $0x60] sm:$0xf]
        %v749 = vld [vmem:[%s4 + $0x64] sm:$0xf]
        %v750 = vld [vmem:[%s4 + $0x68] sm:$0xf]
        %v751 = vld [vmem:[%s4 + $0x6c] sm:$0xf]
        %v752 = vld [vmem:[%s4 + $0x70] sm:$0xf]
        %v753 = vld [vmem:[%s4 + $0x74] sm:$0xf]
        %v754 = vld [vmem:[%s4 + $0x78] sm:$0xf]
        %v755 = vld [vmem:[%s4 + $0x7c] sm:$0xf]
        %v756 = vld [vmem:[%s4 + $0x80] sm:$0xf]
        %v757 = vld [vmem:[%s4 + $0x84] sm:$0xf]
        %v758 = vld [vmem:[%s4 + $0x88] sm:$0xf]
        %v759 = vld [vmem:[%s4 + $0x8c] sm:$0xf]
        %v760 = vld [vmem:[%s4 + $0x90] sm:$0xf]
        %v761 = vld [vmem:[%s4 + $0x94] sm:$0xf]
        %v762 = vld [vmem:[%s4 + $0x98] sm:$0xf]
        %v763 = vld [vmem:[%s4 + $0x9c] sm:$0xf]
        %v764 = vld [vmem:[%s4 + $0xa0] sm:$0xf]
        %v765 = vld [vmem:[%s4 + $0xa4] sm:$0xf]
        %v766 = vld [vmem:[%s4 + $0xa8] sm:$0xf]
        %v767 = vld [vmem:[%s4 + $0xac] sm:$0xf]
        %v768 = vld [vmem:[%s4 + $0xb0] sm:$0xf]
        %v769 = vld [vmem:[%s4 + $0xb4] sm:$0xf]
        %v770 = vld [vmem:[%s4 + $0xb8] sm:$0xf]
        %v771 = vld [vmem:[%s4 + $0xbc] sm:$0xf]
        %v772 = vld [vmem:[%s4 + $0xc0] sm:$0xf]
        %v773 = vld [vmem:[%s4 + $0xc4] sm:$0xf]
        %v774 = vld [vmem:[%s4 + $0xc8] sm:$0xf]
        %v775 = vld [vmem:[%s4 + $0xcc] sm:$0xf]
        %v776 = vld [vmem:[%s4 + $0xd0] sm:$0xf]
        %v777 = vld [vmem:[%s4 + $0xd4] sm:$0xf]
        %v778 = vld [vmem:[%s4 + $0xd8] sm:$0xf]
        %v779 = vld [vmem:[%s4 + $0xdc] sm:$0xf]
        %v780 = vld [vmem:[%s4 + $0xe0] sm:$0xf]
        %v781 = vld [vmem:[%s4 + $0xe4] sm:$0xf]
        %v782 = vld [vmem:[%s4 + $0xe8] sm:$0xf]
        %v783 = vld [vmem:[%s4 + $0xec] sm:$0xf]
        %v784 = vld [vmem:[%s4 + $0xf0] sm:$0xf]
        %v785 = vld [vmem:[%s4 + $0xf4] sm:$0xf]
        %v786 = vld [vmem:[%s4 + $0xf8] sm:$0xf]
        %v787 = vld [vmem:[%s4 + $0xfc] sm:$0xf]
        %v788 = vld [vmem:[%s5] sm:$0xf]
        %v789 = vld [vmem:[%s5 + $0x4] sm:$0xf]
        %v790 = vld [vmem:[%s5 + $0x8] sm:$0xf]
        %v791 = vld [vmem:[%s5 + $0xc] sm:$0xf]
        %v792 = vld [vmem:[%s5 + $0x10] sm:$0xf]
        %v793 = vld [vmem:[%s5 + $0x14] sm:$0xf]
        %v794 = vld [vmem:[%s5 + $0x18] sm:$0xf]
        %v795 = vld [vmem:[%s5 + $0x1c] sm:$0xf]
        %v796 = vld [vmem:[%s5 + $0x20] sm:$0xf]
        %v797 = vld [vmem:[%s5 + $0x24] sm:$0xf]
        %v798 = vld [vmem:[%s5 + $0x28] sm:$0xf]
        %v799 = vld [vmem:[%s5 + $0x2c] sm:$0xf]
        %v800 = vld [vmem:[%s5 + $0x30] sm:$0xf]
        %v801 = vld [vmem:[%s5 + $0x34] sm:$0xf]
        %v802 = vld [vmem:[%s5 + $0x38] sm:$0xf]
        %v803 = vld [vmem:[%s5 + $0x3c] sm:$0xf]
        %v804 = vld [vmem:[%s5 + $0x40] sm:$0xf]
        %v805 = vld [vmem:[%s5 + $0x44] sm:$0xf]
        %v806 = vld [vmem:[%s5 + $0x48] sm:$0xf]
        %v807 = vld [vmem:[%s5 + $0x4c] sm:$0xf]
        %v808 = vld [vmem:[%s5 + $0x50] sm:$0xf]
        %v809 = vld [vmem:[%s5 + $0x54] sm:$0xf]
        %v810 = vld [vmem:[%s5 + $0x58] sm:$0xf]
        %v811 = vld [vmem:[%s5 + $0x5c] sm:$0xf]
        %v812 = vld [vmem:[%s5 + $0x60] sm:$0xf]
        %v813 = vld [vmem:[%s5 + $0x64] sm:$0xf]
        %v814 = vld [vmem:[%s5 + $0x68] sm:$0xf]
        %v815 = vld [vmem:[%s5 + $0x6c] sm:$0xf]
        %v816 = vld [vmem:[%s5 + $0x70] sm:$0xf]
        %v817 = vld [vmem:[%s5 + $0x74] sm:$0xf]
        %v818 = vld [vmem:[%s5 + $0x78] sm:$0xf]
        %v819 = vld [vmem:[%s5 + $0x7c] sm:$0xf]
        %v820 = vld [vmem:[%s5 + $0x80] sm:$0xf]
        %v821 = vld [vmem:[%s5 + $0x84] sm:$0xf]
        %v822 = vld [vmem:[%s5 + $0x88] sm:$0xf]
        %v823 = vld [vmem:[%s5 + $0x8c] sm:$0xf]
        %v824 = vld [vmem:[%s5 + $0x90] sm:$0xf]
        %v825 = vld [vmem:[%s5 + $0x94] sm:$0xf]
        %v826 = vld [vmem:[%s5 + $0x98] sm:$0xf]
        %v827 = vld [vmem:[%s5 + $0x9c] sm:$0xf]
        %v828 = vld [vmem:[%s5 + $0xa0] sm:$0xf]
        %v829 = vld [vmem:[%s5 + $0xa4] sm:$0xf]
        %v830 = vld [vmem:[%s5 + $0xa8] sm:$0xf]
        %v831 = vld [vmem:[%s5 + $0xac] sm:$0xf]
        %v832 = vld [vmem:[%s5 + $0xb0] sm:$0xf]
        %v833 = vld [vmem:[%s5 + $0xb4] sm:$0xf]
        %v834 = vld [vmem:[%s5 + $0xb8] sm:$0xf]
        %v835 = vld [vmem:[%s5 + $0xbc] sm:$0xf]
        %v836 = vld [vmem:[%s5 + $0xc0] sm:$0xf]
        %v837 = vld [vmem:[%s5 + $0xc4] sm:$0xf]
        %v838 = vld [vmem:[%s5 + $0xc8] sm:$0xf]
        %v839 = vld [vmem:[%s5 + $0xcc] sm:$0xf]
        %v840 = vld [vmem:[%s5 + $0xd0] sm:$0xf]
        %v841 = vld [vmem:[%s5 + $0xd4] sm:$0xf]
        %v842 = vld [vmem:[%s5 + $0xd8] sm:$0xf]
        %v843 = vld [vmem:[%s5 + $0xdc] sm:$0xf]
        %v844 = vld [vmem:[%s5 + $0xe0] sm:$0xf]
        %v845 = vld [vmem:[%s5 + $0xe4] sm:$0xf]
        %v846 = vld [vmem:[%s5 + $0xe8] sm:$0xf]
        %v847 = vld [vmem:[%s5 + $0xec] sm:$0xf]
        %v848 = vld [vmem:[%s5 + $0xf0] sm:$0xf]
        %v849 = vld [vmem:[%s5 + $0xf4] sm:$0xf]
        %v850 = vld [vmem:[%s5 + $0xf8] sm:$0xf]
        %v851 = vld [vmem:[%s5 + $0xfc] sm:$0xf]
        %v852 = vld [vmem:[%s6] sm:$0xff]
        %v853 = vld [vmem:[%s6 + $0x8] sm:$0xff]
        %v854 = vld [vmem:[%s6 + $0x10] sm:$0xff]
        %v855 = vld [vmem:[%s6 + $0x18] sm:$0xff]
        %v856 = vld [vmem:[%s6 + $0x20] sm:$0xff]
        %v857 = vld [vmem:[%s6 + $0x28] sm:$0xff]
        %v858 = vld [vmem:[%s6 + $0x30] sm:$0xff]
        %v859 = vld [vmem:[%s6 + $0x38] sm:$0xff]
        %v860 = vld [vmem:[%s6 + $0x40] sm:$0xff]
        %v861 = vld [vmem:[%s6 + $0x48] sm:$0xff]
        %v862 = vld [vmem:[%s6 + $0x50] sm:$0xff]
        %v863 = vld [vmem:[%s6 + $0x58] sm:$0xff]
        %v864 = vld [vmem:[%s6 + $0x60] sm:$0xff]
        %v865 = vld [vmem:[%s6 + $0x68] sm:$0xff]
        %v866 = vld [vmem:[%s6 + $0x70] sm:$0xff]
        %v867 = vld [vmem:[%s6 + $0x78] sm:$0xff]
        %v868 = vld [vmem:[%s6 + $0x80] sm:$0xff]
        %v869 = vld [vmem:[%s6 + $0x88] sm:$0xff]
        %v870 = vld [vmem:[%s6 + $0x90] sm:$0xff]
        %v871 = vld [vmem:[%s6 + $0x98] sm:$0xff]
        %v872 = vld [vmem:[%s6 + $0xa0] sm:$0xff]
        %v873 = vld [vmem:[%s6 + $0xa8] sm:$0xff]
        %v874 = vld [vmem:[%s6 + $0xb0] sm:$0xff]
        %v875 = vld [vmem:[%s6 + $0xb8] sm:$0xff]
        %v876 = vld [vmem:[%s6 + $0xc0] sm:$0xff]
        %v877 = vld [vmem:[%s6 + $0xc8] sm:$0xff]
        %v878 = vld [vmem:[%s6 + $0xd0] sm:$0xff]
        %v879 = vld [vmem:[%s6 + $0xd8] sm:$0xff]
        %v880 = vld [vmem:[%s6 + $0xe0] sm:$0xff]
        %v881 = vld [vmem:[%s6 + $0xe8] sm:$0xff]
        %v882 = vld [vmem:[%s6 + $0xf0] sm:$0xff]
        %v883 = vld [vmem:[%s6 + $0xf8] sm:$0xff]
        %v884 = vld [vmem:[%s6 + $0x100] sm:$0xff]
        %v885 = vld [vmem:[%s6 + $0x108] sm:$0xff]
        %v886 = vld [vmem:[%s6 + $0x110] sm:$0xff]
        %v887 = vld [vmem:[%s6 + $0x118] sm:$0xff]
        %v888 = vld [vmem:[%s6 + $0x120] sm:$0xff]
        %v889 = vld [vmem:[%s6 + $0x128] sm:$0xff]
        %v890 = vld [vmem:[%s6 + $0x130] sm:$0xff]
        %v891 = vld [vmem:[%s6 + $0x138] sm:$0xff]
        %v892 = vld [vmem:[%s6 + $0x140] sm:$0xff]
        %v893 = vld [vmem:[%s6 + $0x148] sm:$0xff]
        %v894 = vld [vmem:[%s6 + $0x150] sm:$0xff]
        %v895 = vld [vmem:[%s6 + $0x158] sm:$0xff]
        %v896 = vld [vmem:[%s6 + $0x160] sm:$0xff]
        %v897 = vld [vmem:[%s6 + $0x168] sm:$0xff]
        %v898 = vld [vmem:[%s6 + $0x170] sm:$0xff]
        %v899 = vld [vmem:[%s6 + $0x178] sm:$0xff]
        %v900 = vld [vmem:[%s6 + $0x180] sm:$0xff]
        %v901 = vld [vmem:[%s6 + $0x188] sm:$0xff]
        %v902 = vld [vmem:[%s6 + $0x190] sm:$0xff]
        %v903 = vld [vmem:[%s6 + $0x198] sm:$0xff]
        %v904 = vld [vmem:[%s6 + $0x1a0] sm:$0xff]
        %v905 = vld [vmem:[%s6 + $0x1a8] sm:$0xff]
        %v906 = vld [vmem:[%s6 + $0x1b0] sm:$0xff]
        %v907 = vld [vmem:[%s6 + $0x1b8] sm:$0xff]
        %v908 = vld [vmem:[%s6 + $0x1c0] sm:$0xff]
        %v909 = vld [vmem:[%s6 + $0x1c8] sm:$0xff]
        %v910 = vld [vmem:[%s6 + $0x1d0] sm:$0xff]
        %v911 = vld [vmem:[%s6 + $0x1d8] sm:$0xff]
        %v912 = vld [vmem:[%s6 + $0x1e0] sm:$0xff]
        %v913 = vld [vmem:[%s6 + $0x1e8] sm:$0xff]
        %v914 = vld [vmem:[%s6 + $0x1f0] sm:$0xff]
        %v915 = vld [vmem:[%s6 + $0x1f8] sm:$0xff]
        %v916 = vld [vmem:[%s10] sm:$0x1]
        %v917 = vld [vmem:[%s10 + $0x1] sm:$0x1]
        %v918 = vld [vmem:[%s10 + $0x2] sm:$0x1]
        %v919 = vld [vmem:[%s10 + $0x3] sm:$0x1]
        %v920 = vld [vmem:[%s10 + $0x4] sm:$0x1]
        %v921 = vld [vmem:[%s10 + $0x5] sm:$0x1]
        %v922 = vld [vmem:[%s10 + $0x6] sm:$0x1]
        %v923 = vpack.c.bf16 %v709, %v708
        %v924 = vpack.c.bf16 %v711, %v710
        %v925 = vpack.c.bf16 %v713, %v712
        %v926 = vpack.c.bf16 %v715, %v714
        %v927 = vpack.c.bf16 %v717, %v716
        %v928 = vpack.c.bf16 %v719, %v718
        %v929 = vpack.c.bf16 %v721, %v720
        %v930 = vpack.c.bf16 %v723, %v722
        %v931 = vld [vmem:[%s7] sm:$0xf]
        %v932 = vld [vmem:[%s7 + $0x4] sm:$0xf]
        %v933 = vld [vmem:[%s7 + $0x8] sm:$0xf]
        %v934 = vld [vmem:[%s7 + $0xc] sm:$0xf]
        %v935 = vld [vmem:[%s9] sm:$0x1]
        %v936 = vperm.slane %v935, 0
        %v941 = vunpack.c.l.b16 %v931
        %v942 = vunpack.c.l.b16 %v932
        %v943 = vunpack.c.l.b16 %v933
        %v944 = vunpack.c.l.b16 %v934
        %v945 = vpack.c.b16 %v942, %v941
        %v946 = vpack.c.b16 %v944, %v943
        %vm949 = vcmask 261120
        %v951 = vsel %vm949, %v923, 0
        %v954 = vsel %vm949, %v924, 0
        %v957 = vsel %vm949, %v925, 0
        %v960 = vsel %vm949, %v926, 0
        %v963 = vsel %vm949, %v927, 0
        %v966 = vsel %vm949, %v928, 0
        %v969 = vsel %vm949, %v929, 0
        %v972 = vsel %vm949, %v930, 0
        %974 = vmatpush.bf16.msra.mxu0 0
        %975 = vmatpush.bf16.msra.mxu0 0
        %976 = vmatpush.bf16.msra.mxu0 0
        %977 = vmatpush.bf16.msra.mxu0 0
        %978 = vmatpush.bf16.msra.mxu0 0
        %979 = vmatpush.bf16.msra.mxu0 0
        %980 = vmatpush.bf16.msra.mxu0 %v946
        %981 = vmatpush.bf16.msra.mxu0 %v945
        %982 = vmatmul.bf16.gmra.mxu0 %v951
        %v983 = vpop.f32.mrf.mxu0
        %v984 = vadd.f32 %v936, %v983
        %v985 = vpop.f32.mrf.mxu0
        %v986 = vadd.f32 %v936, %v985
        %987 = vmatmul.bf16.gmra.mxu0 %v954
        %v988 = vpop.f32.mrf.mxu0
        %v989 = vadd.f32 %v936, %v988
        %v990 = vpop.f32.mrf.mxu0
        %v991 = vadd.f32 %v936, %v990
        %992 = vmatmul.bf16.gmra.mxu0 %v957
        %v993 = vpop.f32.mrf.mxu0
        %v994 = vadd.f32 %v936, %v993
        %v995 = vpop.f32.mrf.mxu0
        %v996 = vadd.f32 %v936, %v995
        %997 = vmatmul.bf16.gmra.mxu0 %v960
        %v998 = vpop.f32.mrf.mxu0
        %v999 = vadd.f32 %v936, %v998
        %v1000 = vpop.f32.mrf.mxu0
        %v1001 = vadd.f32 %v936, %v1000
        %1002 = vmatmul.bf16.gmra.mxu0 %v963
        %v1003 = vpop.f32.mrf.mxu0
        %v1004 = vadd.f32 %v936, %v1003
        %v1005 = vpop.f32.mrf.mxu0
        %v1006 = vadd.f32 %v936, %v1005
        %1007 = vmatmul.bf16.gmra.mxu0 %v966
        %v1008 = vpop.f32.mrf.mxu0
        %v1009 = vadd.f32 %v936, %v1008
        %v1010 = vpop.f32.mrf.mxu0
        %v1011 = vadd.f32 %v936, %v1010
        %1012 = vmatmul.bf16.gmra.mxu0 %v969
        %v1013 = vpop.f32.mrf.mxu0
        %v1014 = vadd.f32 %v936, %v1013
        %v1015 = vpop.f32.mrf.mxu0
        %v1016 = vadd.f32 %v936, %v1015
        %1017 = vmatmul.bf16.gmra.mxu0 %v972
        %v1018 = vpop.f32.mrf.mxu0
        %v1019 = vadd.f32 %v936, %v1018
        %v1020 = vpop.f32.mrf.mxu0
        %v1021 = vadd.f32 %v936, %v1020
        %1022 = vdwg.mxu0
        %v1023 = vpack.c.bf16 %v986, %v984
        %v1024 = vpack.c.bf16 %v991, %v989
        %v1025 = vpack.c.bf16 %v996, %v994
        %v1026 = vpack.c.bf16 %v1001, %v999
        %v1027 = vpack.c.bf16 %v1006, %v1004
        %v1028 = vpack.c.bf16 %v1011, %v1009
        %v1029 = vpack.c.bf16 %v1016, %v1014
        %v1030 = vpack.c.bf16 %v1021, %v1019
        %v1031 = vpack.c.bf16 %v984, %v984
        %v1032 = vpack.c.bf16 %v986, %v986
        %v1033 = vpack.c.bf16 %v989, %v989
        %v1034 = vpack.c.bf16 %v991, %v991
        %v1035 = vpack.c.bf16 %v994, %v994
        %v1036 = vpack.c.bf16 %v996, %v996
        %v1037 = vpack.c.bf16 %v999, %v999
        %v1038 = vpack.c.bf16 %v1001, %v1001
        %v1039 = vpack.c.bf16 %v1004, %v1004
        %v1040 = vpack.c.bf16 %v1006, %v1006
        %v1041 = vpack.c.bf16 %v1009, %v1009
        %v1042 = vpack.c.bf16 %v1011, %v1011
        %v1043 = vpack.c.bf16 %v1014, %v1014
        %v1044 = vpack.c.bf16 %v1016, %v1016
        %v1045 = vpack.c.bf16 %v1019, %v1019
        %v1046 = vpack.c.bf16 %v1021, %v1021
        %v1047 = vunpack.c.l.bf16 %v1031
        %v1048 = vunpack.c.l.bf16 %v1032
        %v1049 = vunpack.c.l.bf16 %v1033
        %v1050 = vunpack.c.l.bf16 %v1034
        %v1051 = vunpack.c.l.bf16 %v1035
        %v1052 = vunpack.c.l.bf16 %v1036
        %v1053 = vunpack.c.l.bf16 %v1037
        %v1054 = vunpack.c.l.bf16 %v1038
        %v1055 = vunpack.c.l.bf16 %v1039
        %v1056 = vunpack.c.l.bf16 %v1040
        %v1057 = vunpack.c.l.bf16 %v1041
        %v1058 = vunpack.c.l.bf16 %v1042
        %v1059 = vunpack.c.l.bf16 %v1043
        %v1060 = vunpack.c.l.bf16 %v1044
        %v1061 = vunpack.c.l.bf16 %v1045
        %v1062 = vunpack.c.l.bf16 %v1046
        %v1063 = vunpack.c.l.bf16 %v724
        %v1064 = vunpack.c.l.bf16 %v725
        %v1065 = vunpack.c.l.bf16 %v726
        %v1066 = vunpack.c.l.bf16 %v727
        %v1067 = vunpack.c.l.bf16 %v728
        %v1068 = vunpack.c.l.bf16 %v729
        %v1069 = vunpack.c.l.bf16 %v730
        %v1070 = vunpack.c.l.bf16 %v731
        %v1071 = vunpack.c.l.bf16 %v732
        %v1072 = vunpack.c.l.bf16 %v733
        %v1073 = vunpack.c.l.bf16 %v734
        %v1074 = vunpack.c.l.bf16 %v735
        %v1075 = vunpack.c.l.bf16 %v736
        %v1076 = vunpack.c.l.bf16 %v737
        %v1077 = vunpack.c.l.bf16 %v738
        %v1078 = vunpack.c.l.bf16 %v739
        %v1079 = vunpack.c.l.bf16 %v740
        %v1080 = vunpack.c.l.bf16 %v741
        %v1081 = vunpack.c.l.bf16 %v742
        %v1082 = vunpack.c.l.bf16 %v743
        %v1083 = vunpack.c.l.bf16 %v744
        %v1084 = vunpack.c.l.bf16 %v745
        %v1085 = vunpack.c.l.bf16 %v746
        %v1086 = vunpack.c.l.bf16 %v747
        %v1087 = vunpack.c.l.bf16 %v748
        %v1088 = vunpack.c.l.bf16 %v749
        %v1089 = vunpack.c.l.bf16 %v750
        %v1090 = vunpack.c.l.bf16 %v751
        %v1091 = vunpack.c.l.bf16 %v752
        %v1092 = vunpack.c.l.bf16 %v753
        %v1093 = vunpack.c.l.bf16 %v754
        %v1094 = vunpack.c.l.bf16 %v755
        %v1095 = vunpack.c.l.bf16 %v756
        %v1096 = vunpack.c.l.bf16 %v757
        %v1097 = vunpack.c.l.bf16 %v758
        %v1098 = vunpack.c.l.bf16 %v759
        %v1099 = vunpack.c.l.bf16 %v760
        %v1100 = vunpack.c.l.bf16 %v761
        %v1101 = vunpack.c.l.bf16 %v762
        %v1102 = vunpack.c.l.bf16 %v763
        %v1103 = vunpack.c.l.bf16 %v764
        %v1104 = vunpack.c.l.bf16 %v765
        %v1105 = vunpack.c.l.bf16 %v766
        %v1106 = vunpack.c.l.bf16 %v767
        %v1107 = vunpack.c.l.bf16 %v768
        %v1108 = vunpack.c.l.bf16 %v769
        %v1109 = vunpack.c.l.bf16 %v770
        %v1110 = vunpack.c.l.bf16 %v771
        %v1111 = vunpack.c.l.bf16 %v772
        %v1112 = vunpack.c.l.bf16 %v773
        %v1113 = vunpack.c.l.bf16 %v774
        %v1114 = vunpack.c.l.bf16 %v775
        %v1115 = vunpack.c.l.bf16 %v776
        %v1116 = vunpack.c.l.bf16 %v777
        %v1117 = vunpack.c.l.bf16 %v778
        %v1118 = vunpack.c.l.bf16 %v779
        %v1119 = vunpack.c.l.bf16 %v780
        %v1120 = vunpack.c.l.bf16 %v781
        %v1121 = vunpack.c.l.bf16 %v782
        %v1122 = vunpack.c.l.bf16 %v783
        %v1123 = vunpack.c.l.bf16 %v784
        %v1124 = vunpack.c.l.bf16 %v785
        %v1125 = vunpack.c.l.bf16 %v786
        %v1126 = vunpack.c.l.bf16 %v787
        %1191 = vrot.lane.b32.xlu0 %v1063, 32
        %v1192 = vpop.permute.xlu0 %1191
        %1193 = vrot.lane.b32.xlu0 %v1064, 32
        %v1194 = vpop.permute.xlu0 %1193
        %1195 = vrot.lane.b32.xlu0 %v1065, 32
        %v1196 = vpop.permute.xlu0 %1195
        %1197 = vrot.lane.b32.xlu0 %v1066, 32
        %v1198 = vpop.permute.xlu0 %1197
        %1199 = vrot.lane.b32.xlu0 %v1067, 32
        %v1200 = vpop.permute.xlu0 %1199
        %1201 = vrot.lane.b32.xlu0 %v1068, 32
        %v1202 = vpop.permute.xlu0 %1201
        %1203 = vrot.lane.b32.xlu0 %v1069, 32
        %v1204 = vpop.permute.xlu0 %1203
        %1205 = vrot.lane.b32.xlu0 %v1070, 32
        %v1206 = vpop.permute.xlu0 %1205
        %1207 = vrot.lane.b32.xlu0 %v1071, 32
        %v1208 = vpop.permute.xlu0 %1207
        %1209 = vrot.lane.b32.xlu0 %v1072, 32
        %v1210 = vpop.permute.xlu0 %1209
        %1211 = vrot.lane.b32.xlu0 %v1073, 32
        %v1212 = vpop.permute.xlu0 %1211
        %1213 = vrot.lane.b32.xlu0 %v1074, 32
        %v1214 = vpop.permute.xlu0 %1213
        %1215 = vrot.lane.b32.xlu0 %v1075, 32
        %v1216 = vpop.permute.xlu0 %1215
        %1217 = vrot.lane.b32.xlu0 %v1076, 32
        %v1218 = vpop.permute.xlu0 %1217
        %1219 = vrot.lane.b32.xlu0 %v1077, 32
        %v1220 = vpop.permute.xlu0 %1219
        %1221 = vrot.lane.b32.xlu0 %v1078, 32
        %v1222 = vpop.permute.xlu0 %1221
        %1223 = vrot.lane.b32.xlu0 %v1079, 32
        %v1224 = vpop.permute.xlu0 %1223
        %1225 = vrot.lane.b32.xlu0 %v1080, 32
        %v1226 = vpop.permute.xlu0 %1225
        %1227 = vrot.lane.b32.xlu0 %v1081, 32
        %v1228 = vpop.permute.xlu0 %1227
        %1229 = vrot.lane.b32.xlu0 %v1082, 32
        %v1230 = vpop.permute.xlu0 %1229
        %1231 = vrot.lane.b32.xlu0 %v1083, 32
        %v1232 = vpop.permute.xlu0 %1231
        %1233 = vrot.lane.b32.xlu0 %v1084, 32
        %v1234 = vpop.permute.xlu0 %1233
        %1235 = vrot.lane.b32.xlu0 %v1085, 32
        %v1236 = vpop.permute.xlu0 %1235
        %1237 = vrot.lane.b32.xlu0 %v1086, 32
        %v1238 = vpop.permute.xlu0 %1237
        %1239 = vrot.lane.b32.xlu0 %v1087, 32
        %v1240 = vpop.permute.xlu0 %1239
        %1241 = vrot.lane.b32.xlu0 %v1088, 32
        %v1242 = vpop.permute.xlu0 %1241
        %1243 = vrot.lane.b32.xlu0 %v1089, 32
        %v1244 = vpop.permute.xlu0 %1243
        %1245 = vrot.lane.b32.xlu0 %v1090, 32
        %v1246 = vpop.permute.xlu0 %1245
        %1247 = vrot.lane.b32.xlu0 %v1091, 32
        %v1248 = vpop.permute.xlu0 %1247
        %1249 = vrot.lane.b32.xlu0 %v1092, 32
        %v1250 = vpop.permute.xlu0 %1249
        %1251 = vrot.lane.b32.xlu0 %v1093, 32
        %v1252 = vpop.permute.xlu0 %1251
        %1253 = vrot.lane.b32.xlu0 %v1094, 32
        %v1254 = vpop.permute.xlu0 %1253
        %1255 = vrot.lane.b32.xlu0 %v1095, 32
        %v1256 = vpop.permute.xlu0 %1255
        %1257 = vrot.lane.b32.xlu0 %v1096, 32
        %v1258 = vpop.permute.xlu0 %1257
        %1259 = vrot.lane.b32.xlu0 %v1097, 32
        %v1260 = vpop.permute.xlu0 %1259
        %1261 = vrot.lane.b32.xlu0 %v1098, 32
        %v1262 = vpop.permute.xlu0 %1261
        %1263 = vrot.lane.b32.xlu0 %v1099, 32
        %v1264 = vpop.permute.xlu0 %1263
        %1265 = vrot.lane.b32.xlu0 %v1100, 32
        %v1266 = vpop.permute.xlu0 %1265
        %1267 = vrot.lane.b32.xlu0 %v1101, 32
        %v1268 = vpop.permute.xlu0 %1267
        %1269 = vrot.lane.b32.xlu0 %v1102, 32
        %v1270 = vpop.permute.xlu0 %1269
        %1271 = vrot.lane.b32.xlu0 %v1103, 32
        %v1272 = vpop.permute.xlu0 %1271
        %1273 = vrot.lane.b32.xlu0 %v1104, 32
        %v1274 = vpop.permute.xlu0 %1273
        %1275 = vrot.lane.b32.xlu0 %v1105, 32
        %v1276 = vpop.permute.xlu0 %1275
        %1277 = vrot.lane.b32.xlu0 %v1106, 32
        %v1278 = vpop.permute.xlu0 %1277
        %1279 = vrot.lane.b32.xlu0 %v1107, 32
        %v1280 = vpop.permute.xlu0 %1279
        %1281 = vrot.lane.b32.xlu0 %v1108, 32
        %v1282 = vpop.permute.xlu0 %1281
        %1283 = vrot.lane.b32.xlu0 %v1109, 32
        %v1284 = vpop.permute.xlu0 %1283
        %1285 = vrot.lane.b32.xlu0 %v1110, 32
        %v1286 = vpop.permute.xlu0 %1285
        %1287 = vrot.lane.b32.xlu0 %v1111, 32
        %v1288 = vpop.permute.xlu0 %1287
        %1289 = vrot.lane.b32.xlu0 %v1112, 32
        %v1290 = vpop.permute.xlu0 %1289
        %1291 = vrot.lane.b32.xlu0 %v1113, 32
        %v1292 = vpop.permute.xlu0 %1291
        %1293 = vrot.lane.b32.xlu0 %v1114, 32
        %v1294 = vpop.permute.xlu0 %1293
        %1295 = vrot.lane.b32.xlu0 %v1115, 32
        %v1296 = vpop.permute.xlu0 %1295
        %1297 = vrot.lane.b32.xlu0 %v1116, 32
        %v1298 = vpop.permute.xlu0 %1297
        %1299 = vrot.lane.b32.xlu0 %v1117, 32
        %v1300 = vpop.permute.xlu0 %1299
        %1301 = vrot.lane.b32.xlu0 %v1118, 32
        %v1302 = vpop.permute.xlu0 %1301
        %1303 = vrot.lane.b32.xlu0 %v1119, 32
        %v1304 = vpop.permute.xlu0 %1303
        %1305 = vrot.lane.b32.xlu0 %v1120, 32
        %v1306 = vpop.permute.xlu0 %1305
        %1307 = vrot.lane.b32.xlu0 %v1121, 32
        %v1308 = vpop.permute.xlu0 %1307
        %1309 = vrot.lane.b32.xlu0 %v1122, 32
        %v1310 = vpop.permute.xlu0 %1309
        %1311 = vrot.lane.b32.xlu0 %v1123, 32
        %v1312 = vpop.permute.xlu0 %1311
        %1313 = vrot.lane.b32.xlu0 %v1124, 32
        %v1314 = vpop.permute.xlu0 %1313
        %1315 = vrot.lane.b32.xlu0 %v1125, 32
        %v1316 = vpop.permute.xlu0 %1315
        %1317 = vrot.lane.b32.xlu0 %v1126, 32
        %v1318 = vpop.permute.xlu0 %1317
        %v1383 = vmul.f32 %v1047, %v1192
        %v1384 = vmul.f32 %v1048, %v1194
        %v1385 = vmul.f32 %v1049, %v1196
        %v1386 = vmul.f32 %v1050, %v1198
        %v1387 = vmul.f32 %v1051, %v1200
        %v1388 = vmul.f32 %v1052, %v1202
        %v1389 = vmul.f32 %v1053, %v1204
        %v1390 = vmul.f32 %v1054, %v1206
        %v1391 = vmul.f32 %v1055, %v1208
        %v1392 = vmul.f32 %v1056, %v1210
        %v1393 = vmul.f32 %v1057, %v1212
        %v1394 = vmul.f32 %v1058, %v1214
        %v1395 = vmul.f32 %v1059, %v1216
        %v1396 = vmul.f32 %v1060, %v1218
        %v1397 = vmul.f32 %v1061, %v1220
        %v1398 = vmul.f32 %v1062, %v1222
        %v1399 = vmul.f32 %v1047, %v1224
        %v1400 = vmul.f32 %v1048, %v1226
        %v1401 = vmul.f32 %v1049, %v1228
        %v1402 = vmul.f32 %v1050, %v1230
        %v1403 = vmul.f32 %v1051, %v1232
        %v1404 = vmul.f32 %v1052, %v1234
        %v1405 = vmul.f32 %v1053, %v1236
        %v1406 = vmul.f32 %v1054, %v1238
        %v1407 = vmul.f32 %v1055, %v1240
        %v1408 = vmul.f32 %v1056, %v1242
        %v1409 = vmul.f32 %v1057, %v1244
        %v1410 = vmul.f32 %v1058, %v1246
        %v1411 = vmul.f32 %v1059, %v1248
        %v1412 = vmul.f32 %v1060, %v1250
        %v1413 = vmul.f32 %v1061, %v1252
        %v1414 = vmul.f32 %v1062, %v1254
        %v1415 = vmul.f32 %v1047, %v1256
        %v1416 = vmul.f32 %v1048, %v1258
        %v1417 = vmul.f32 %v1049, %v1260
        %v1418 = vmul.f32 %v1050, %v1262
        %v1419 = vmul.f32 %v1051, %v1264
        %v1420 = vmul.f32 %v1052, %v1266
        %v1421 = vmul.f32 %v1053, %v1268
        %v1422 = vmul.f32 %v1054, %v1270
        %v1423 = vmul.f32 %v1055, %v1272
        %v1424 = vmul.f32 %v1056, %v1274
        %v1425 = vmul.f32 %v1057, %v1276
        %v1426 = vmul.f32 %v1058, %v1278
        %v1427 = vmul.f32 %v1059, %v1280
        %v1428 = vmul.f32 %v1060, %v1282
        %v1429 = vmul.f32 %v1061, %v1284
        %v1430 = vmul.f32 %v1062, %v1286
        %v1431 = vmul.f32 %v1047, %v1288
        %v1432 = vmul.f32 %v1048, %v1290
        %v1433 = vmul.f32 %v1049, %v1292
        %v1434 = vmul.f32 %v1050, %v1294
        %v1435 = vmul.f32 %v1051, %v1296
        %v1436 = vmul.f32 %v1052, %v1298
        %v1437 = vmul.f32 %v1053, %v1300
        %v1438 = vmul.f32 %v1054, %v1302
        %v1439 = vmul.f32 %v1055, %v1304
        %v1440 = vmul.f32 %v1056, %v1306
        %v1441 = vmul.f32 %v1057, %v1308
        %v1442 = vmul.f32 %v1058, %v1310
        %v1443 = vmul.f32 %v1059, %v1312
        %v1444 = vmul.f32 %v1060, %v1314
        %v1445 = vmul.f32 %v1061, %v1316
        %v1446 = vmul.f32 %v1062, %v1318
        %v1447 = vpack.c.bf16 %v1384, %v1383
        %v1448 = vpack.c.bf16 %v1386, %v1385
        %v1449 = vpack.c.bf16 %v1388, %v1387
        %v1450 = vpack.c.bf16 %v1390, %v1389
        %v1451 = vpack.c.bf16 %v1392, %v1391
        %v1452 = vpack.c.bf16 %v1394, %v1393
        %v1453 = vpack.c.bf16 %v1396, %v1395
        %v1454 = vpack.c.bf16 %v1398, %v1397
        %v1455 = vpack.c.bf16 %v1400, %v1399
        %v1456 = vpack.c.bf16 %v1402, %v1401
        %v1457 = vpack.c.bf16 %v1404, %v1403
        %v1458 = vpack.c.bf16 %v1406, %v1405
        %v1459 = vpack.c.bf16 %v1408, %v1407
        %v1460 = vpack.c.bf16 %v1410, %v1409
        %v1461 = vpack.c.bf16 %v1412, %v1411
        %v1462 = vpack.c.bf16 %v1414, %v1413
        %v1463 = vpack.c.bf16 %v1416, %v1415
        %v1464 = vpack.c.bf16 %v1418, %v1417
        %v1465 = vpack.c.bf16 %v1420, %v1419
        %v1466 = vpack.c.bf16 %v1422, %v1421
        %v1467 = vpack.c.bf16 %v1424, %v1423
        %v1468 = vpack.c.bf16 %v1426, %v1425
        %v1469 = vpack.c.bf16 %v1428, %v1427
        %v1470 = vpack.c.bf16 %v1430, %v1429
        %v1471 = vpack.c.bf16 %v1432, %v1431
        %v1472 = vpack.c.bf16 %v1434, %v1433
        %v1473 = vpack.c.bf16 %v1436, %v1435
        %v1474 = vpack.c.bf16 %v1438, %v1437
        %v1475 = vpack.c.bf16 %v1440, %v1439
        %v1476 = vpack.c.bf16 %v1442, %v1441
        %v1477 = vpack.c.bf16 %v1444, %v1443
        %v1478 = vpack.c.bf16 %v1446, %v1445
        %v1495 = vunpack.c.l.b16 %v1031
        %v1496 = vunpack.c.l.b16 %v1032
        %v1497 = vunpack.c.l.b16 %v1033
        %v1498 = vunpack.c.l.b16 %v1034
        %v1499 = vunpack.c.l.b16 %v1035
        %v1500 = vunpack.c.l.b16 %v1036
        %v1501 = vunpack.c.l.b16 %v1037
        %v1502 = vunpack.c.l.b16 %v1038
        %v1503 = vunpack.c.l.b16 %v1039
        %v1504 = vunpack.c.l.b16 %v1040
        %v1505 = vunpack.c.l.b16 %v1041
        %v1506 = vunpack.c.l.b16 %v1042
        %v1507 = vunpack.c.l.b16 %v1043
        %v1508 = vunpack.c.l.b16 %v1044
        %v1509 = vunpack.c.l.b16 %v1045
        %v1510 = vunpack.c.l.b16 %v1046
        %v1511 = vpack.c.b16 %v1496, %v1495
        %v1512 = vpack.c.b16 %v1498, %v1497
        %v1513 = vpack.c.b16 %v1500, %v1499
        %v1514 = vpack.c.b16 %v1502, %v1501
        %v1515 = vpack.c.b16 %v1504, %v1503
        %v1516 = vpack.c.b16 %v1506, %v1505
        %v1517 = vpack.c.b16 %v1508, %v1507
        %v1518 = vpack.c.b16 %v1510, %v1509
        %1519 = vrot.lane.b32.xlu0 %v1511, 64
        %v1520 = vpop.permute.xlu0 %1519
        %1521 = vrot.lane.b32.xlu0 %v1512, 64
        %v1522 = vpop.permute.xlu0 %1521
        %1523 = vrot.lane.b32.xlu0 %v1513, 64
        %v1524 = vpop.permute.xlu0 %1523
        %1525 = vrot.lane.b32.xlu0 %v1514, 64
        %v1526 = vpop.permute.xlu0 %1525
        %1527 = vrot.lane.b32.xlu0 %v1515, 64
        %v1528 = vpop.permute.xlu0 %1527
        %1529 = vrot.lane.b32.xlu0 %v1516, 64
        %v1530 = vpop.permute.xlu0 %1529
        %1531 = vrot.lane.b32.xlu0 %v1517, 64
        %v1532 = vpop.permute.xlu0 %1531
        %1533 = vrot.lane.b32.xlu0 %v1518, 64
        %v1534 = vpop.permute.xlu0 %1533
        %v1537 = vsel %vm949, %v1520, 1065369472
        %v1540 = vsel %vm949, %v1522, 1065369472
        %v1543 = vsel %vm949, %v1524, 1065369472
        %v1546 = vsel %vm949, %v1526, 1065369472
        %v1549 = vsel %vm949, %v1528, 1065369472
        %v1552 = vsel %vm949, %v1530, 1065369472
        %v1555 = vsel %vm949, %v1532, 1065369472
        %v1558 = vsel %vm949, %v1534, 1065369472
        %v1560 = vunpack.c.l.bf16 %v1537
        %v1561 = vunpack.c.h.bf16 %v1537
        %v1562 = vunpack.c.l.bf16 %v1540
        %v1563 = vunpack.c.h.bf16 %v1540
        %v1564 = vunpack.c.l.bf16 %v1543
        %v1565 = vunpack.c.h.bf16 %v1543
        %v1566 = vunpack.c.l.bf16 %v1546
        %v1567 = vunpack.c.h.bf16 %v1546
        %v1568 = vunpack.c.l.bf16 %v1549
        %v1569 = vunpack.c.h.bf16 %v1549
        %v1570 = vunpack.c.l.bf16 %v1552
        %v1571 = vunpack.c.h.bf16 %v1552
        %v1572 = vunpack.c.l.bf16 %v1555
        %v1573 = vunpack.c.h.bf16 %v1555
        %v1574 = vunpack.c.l.bf16 %v1558
        %v1575 = vunpack.c.h.bf16 %v1558
        %v1576 = vunpack.c.l.bf16 %v788
        %v1577 = vunpack.c.l.bf16 %v789
        %v1578 = vunpack.c.l.bf16 %v790
        %v1579 = vunpack.c.l.bf16 %v791
        %v1580 = vunpack.c.l.bf16 %v792
        %v1581 = vunpack.c.l.bf16 %v793
        %v1582 = vunpack.c.l.bf16 %v794
        %v1583 = vunpack.c.l.bf16 %v795
        %v1584 = vunpack.c.l.bf16 %v796
        %v1585 = vunpack.c.l.bf16 %v797
        %v1586 = vunpack.c.l.bf16 %v798
        %v1587 = vunpack.c.l.bf16 %v799
        %v1588 = vunpack.c.l.bf16 %v800
        %v1589 = vunpack.c.l.bf16 %v801
        %v1590 = vunpack.c.l.bf16 %v802
        %v1591 = vunpack.c.l.bf16 %v803
        %v1592 = vunpack.c.l.bf16 %v804
        %v1593 = vunpack.c.l.bf16 %v805
        %v1594 = vunpack.c.l.bf16 %v806
        %v1595 = vunpack.c.l.bf16 %v807
        %v1596 = vunpack.c.l.bf16 %v808
        %v1597 = vunpack.c.l.bf16 %v809
        %v1598 = vunpack.c.l.bf16 %v810
        %v1599 = vunpack.c.l.bf16 %v811
        %v1600 = vunpack.c.l.bf16 %v812
        %v1601 = vunpack.c.l.bf16 %v813
        %v1602 = vunpack.c.l.bf16 %v814
        %v1603 = vunpack.c.l.bf16 %v815
        %v1604 = vunpack.c.l.bf16 %v816
        %v1605 = vunpack.c.l.bf16 %v817
        %v1606 = vunpack.c.l.bf16 %v818
        %v1607 = vunpack.c.l.bf16 %v819
        %v1608 = vunpack.c.l.bf16 %v820
        %v1609 = vunpack.c.l.bf16 %v821
        %v1610 = vunpack.c.l.bf16 %v822
        %v1611 = vunpack.c.l.bf16 %v823
        %v1612 = vunpack.c.l.bf16 %v824
        %v1613 = vunpack.c.l.bf16 %v825
        %v1614 = vunpack.c.l.bf16 %v826
        %v1615 = vunpack.c.l.bf16 %v827
        %v1616 = vunpack.c.l.bf16 %v828
        %v1617 = vunpack.c.l.bf16 %v829
        %v1618 = vunpack.c.l.bf16 %v830
        %v1619 = vunpack.c.l.bf16 %v831
        %v1620 = vunpack.c.l.bf16 %v832
        %v1621 = vunpack.c.l.bf16 %v833
        %v1622 = vunpack.c.l.bf16 %v834
        %v1623 = vunpack.c.l.bf16 %v835
        %v1624 = vunpack.c.l.bf16 %v836
        %v1625 = vunpack.c.l.bf16 %v837
        %v1626 = vunpack.c.l.bf16 %v838
        %v1627 = vunpack.c.l.bf16 %v839
        %v1628 = vunpack.c.l.bf16 %v840
        %v1629 = vunpack.c.l.bf16 %v841
        %v1630 = vunpack.c.l.bf16 %v842
        %v1631 = vunpack.c.l.bf16 %v843
        %v1632 = vunpack.c.l.bf16 %v844
        %v1633 = vunpack.c.l.bf16 %v845
        %v1634 = vunpack.c.l.bf16 %v846
        %v1635 = vunpack.c.l.bf16 %v847
        %v1636 = vunpack.c.l.bf16 %v848
        %v1637 = vunpack.c.l.bf16 %v849
        %v1638 = vunpack.c.l.bf16 %v850
        %v1639 = vunpack.c.l.bf16 %v851
        %v1640 = vmul.f32 %v1560, %v1576
        %v1641 = vmul.f32 %v1561, %v1577
        %v1642 = vmul.f32 %v1562, %v1578
        %v1643 = vmul.f32 %v1563, %v1579
        %v1644 = vmul.f32 %v1564, %v1580
        %v1645 = vmul.f32 %v1565, %v1581
        %v1646 = vmul.f32 %v1566, %v1582
        %v1647 = vmul.f32 %v1567, %v1583
        %v1648 = vmul.f32 %v1568, %v1584
        %v1649 = vmul.f32 %v1569, %v1585
        %v1650 = vmul.f32 %v1570, %v1586
        %v1651 = vmul.f32 %v1571, %v1587
        %v1652 = vmul.f32 %v1572, %v1588
        %v1653 = vmul.f32 %v1573, %v1589
        %v1654 = vmul.f32 %v1574, %v1590
        %v1655 = vmul.f32 %v1575, %v1591
        %v1656 = vmul.f32 %v1560, %v1592
        %v1657 = vmul.f32 %v1561, %v1593
        %v1658 = vmul.f32 %v1562, %v1594
        %v1659 = vmul.f32 %v1563, %v1595
        %v1660 = vmul.f32 %v1564, %v1596
        %v1661 = vmul.f32 %v1565, %v1597
        %v1662 = vmul.f32 %v1566, %v1598
        %v1663 = vmul.f32 %v1567, %v1599
        %v1664 = vmul.f32 %v1568, %v1600
        %v1665 = vmul.f32 %v1569, %v1601
        %v1666 = vmul.f32 %v1570, %v1602
        %v1667 = vmul.f32 %v1571, %v1603
        %v1668 = vmul.f32 %v1572, %v1604
        %v1669 = vmul.f32 %v1573, %v1605
        %v1670 = vmul.f32 %v1574, %v1606
        %v1671 = vmul.f32 %v1575, %v1607
        %v1672 = vmul.f32 %v1560, %v1608
        %v1673 = vmul.f32 %v1561, %v1609
        %v1674 = vmul.f32 %v1562, %v1610
        %v1675 = vmul.f32 %v1563, %v1611
        %v1676 = vmul.f32 %v1564, %v1612
        %v1677 = vmul.f32 %v1565, %v1613
        %v1678 = vmul.f32 %v1566, %v1614
        %v1679 = vmul.f32 %v1567, %v1615
        %v1680 = vmul.f32 %v1568, %v1616
        %v1681 = vmul.f32 %v1569, %v1617
        %v1682 = vmul.f32 %v1570, %v1618
        %v1683 = vmul.f32 %v1571, %v1619
        %v1684 = vmul.f32 %v1572, %v1620
        %v1685 = vmul.f32 %v1573, %v1621
        %v1686 = vmul.f32 %v1574, %v1622
        %v1687 = vmul.f32 %v1575, %v1623
        %v1688 = vmul.f32 %v1560, %v1624
        %v1689 = vmul.f32 %v1561, %v1625
        %v1690 = vmul.f32 %v1562, %v1626
        %v1691 = vmul.f32 %v1563, %v1627
        %v1692 = vmul.f32 %v1564, %v1628
        %v1693 = vmul.f32 %v1565, %v1629
        %v1694 = vmul.f32 %v1566, %v1630
        %v1695 = vmul.f32 %v1567, %v1631
        %v1696 = vmul.f32 %v1568, %v1632
        %v1697 = vmul.f32 %v1569, %v1633
        %v1698 = vmul.f32 %v1570, %v1634
        %v1699 = vmul.f32 %v1571, %v1635
        %v1700 = vmul.f32 %v1572, %v1636
        %v1701 = vmul.f32 %v1573, %v1637
        %v1702 = vmul.f32 %v1574, %v1638
        %v1703 = vmul.f32 %v1575, %v1639
        %v1704 = vpack.c.bf16 %v1641, %v1640
        %v1705 = vpack.c.bf16 %v1643, %v1642
        %v1706 = vpack.c.bf16 %v1645, %v1644
        %v1707 = vpack.c.bf16 %v1647, %v1646
        %v1708 = vpack.c.bf16 %v1649, %v1648
        %v1709 = vpack.c.bf16 %v1651, %v1650
        %v1710 = vpack.c.bf16 %v1653, %v1652
        %v1711 = vpack.c.bf16 %v1655, %v1654
        %v1712 = vpack.c.bf16 %v1657, %v1656
        %v1713 = vpack.c.bf16 %v1659, %v1658
        %v1714 = vpack.c.bf16 %v1661, %v1660
        %v1715 = vpack.c.bf16 %v1663, %v1662
        %v1716 = vpack.c.bf16 %v1665, %v1664
        %v1717 = vpack.c.bf16 %v1667, %v1666
        %v1718 = vpack.c.bf16 %v1669, %v1668
        %v1719 = vpack.c.bf16 %v1671, %v1670
        %v1720 = vpack.c.bf16 %v1673, %v1672
        %v1721 = vpack.c.bf16 %v1675, %v1674
        %v1722 = vpack.c.bf16 %v1677, %v1676
        %v1723 = vpack.c.bf16 %v1679, %v1678
        %v1724 = vpack.c.bf16 %v1681, %v1680
        %v1725 = vpack.c.bf16 %v1683, %v1682
        %v1726 = vpack.c.bf16 %v1685, %v1684
        %v1727 = vpack.c.bf16 %v1687, %v1686
        %v1728 = vpack.c.bf16 %v1689, %v1688
        %v1729 = vpack.c.bf16 %v1691, %v1690
        %v1730 = vpack.c.bf16 %v1693, %v1692
        %v1731 = vpack.c.bf16 %v1695, %v1694
        %v1732 = vpack.c.bf16 %v1697, %v1696
        %v1733 = vpack.c.bf16 %v1699, %v1698
        %v1734 = vpack.c.bf16 %v1701, %v1700
        %v1735 = vpack.c.bf16 %v1703, %v1702
        %1768 = vrot.lane.b32.xlu0 %v1447, 96
        %v1769 = vpop.permute.xlu0 %1768
        %1770 = vrot.lane.b32.xlu0 %v1448, 96
        %v1771 = vpop.permute.xlu0 %1770
        %1772 = vrot.lane.b32.xlu0 %v1449, 96
        %v1773 = vpop.permute.xlu0 %1772
        %1774 = vrot.lane.b32.xlu0 %v1450, 96
        %v1775 = vpop.permute.xlu0 %1774
        %1776 = vrot.lane.b32.xlu0 %v1451, 96
        %v1777 = vpop.permute.xlu0 %1776
        %1778 = vrot.lane.b32.xlu0 %v1452, 96
        %v1779 = vpop.permute.xlu0 %1778
        %1780 = vrot.lane.b32.xlu0 %v1453, 96
        %v1781 = vpop.permute.xlu0 %1780
        %1782 = vrot.lane.b32.xlu0 %v1454, 96
        %v1783 = vpop.permute.xlu0 %1782
        %1784 = vrot.lane.b32.xlu0 %v1455, 96
        %v1785 = vpop.permute.xlu0 %1784
        %1786 = vrot.lane.b32.xlu0 %v1456, 96
        %v1787 = vpop.permute.xlu0 %1786
        %1788 = vrot.lane.b32.xlu0 %v1457, 96
        %v1789 = vpop.permute.xlu0 %1788
        %1790 = vrot.lane.b32.xlu0 %v1458, 96
        %v1791 = vpop.permute.xlu0 %1790
        %1792 = vrot.lane.b32.xlu0 %v1459, 96
        %v1793 = vpop.permute.xlu0 %1792
        %1794 = vrot.lane.b32.xlu0 %v1460, 96
        %v1795 = vpop.permute.xlu0 %1794
        %1796 = vrot.lane.b32.xlu0 %v1461, 96
        %v1797 = vpop.permute.xlu0 %1796
        %1798 = vrot.lane.b32.xlu0 %v1462, 96
        %v1799 = vpop.permute.xlu0 %1798
        %1800 = vrot.lane.b32.xlu0 %v1463, 96
        %v1801 = vpop.permute.xlu0 %1800
        %1802 = vrot.lane.b32.xlu0 %v1464, 96
        %v1803 = vpop.permute.xlu0 %1802
        %1804 = vrot.lane.b32.xlu0 %v1465, 96
        %v1805 = vpop.permute.xlu0 %1804
        %1806 = vrot.lane.b32.xlu0 %v1466, 96
        %v1807 = vpop.permute.xlu0 %1806
        %1808 = vrot.lane.b32.xlu0 %v1467, 96
        %v1809 = vpop.permute.xlu0 %1808
        %1810 = vrot.lane.b32.xlu0 %v1468, 96
        %v1811 = vpop.permute.xlu0 %1810
        %1812 = vrot.lane.b32.xlu0 %v1469, 96
        %v1813 = vpop.permute.xlu0 %1812
        %1814 = vrot.lane.b32.xlu0 %v1470, 96
        %v1815 = vpop.permute.xlu0 %1814
        %1816 = vrot.lane.b32.xlu0 %v1471, 96
        %v1817 = vpop.permute.xlu0 %1816
        %1818 = vrot.lane.b32.xlu0 %v1472, 96
        %v1819 = vpop.permute.xlu0 %1818
        %1820 = vrot.lane.b32.xlu0 %v1473, 96
        %v1821 = vpop.permute.xlu0 %1820
        %1822 = vrot.lane.b32.xlu0 %v1474, 96
        %v1823 = vpop.permute.xlu0 %1822
        %1824 = vrot.lane.b32.xlu0 %v1475, 96
        %v1825 = vpop.permute.xlu0 %1824
        %1826 = vrot.lane.b32.xlu0 %v1476, 96
        %v1827 = vpop.permute.xlu0 %1826
        %1828 = vrot.lane.b32.xlu0 %v1477, 96
        %v1829 = vpop.permute.xlu0 %1828
        %1830 = vrot.lane.b32.xlu0 %v1478, 96
        %v1831 = vpop.permute.xlu0 %1830
        %v1833 = vsel %vm949, %v1023, 0
        %v1836 = vsel %vm949, %v1024, 0
        %v1839 = vsel %vm949, %v1025, 0
        %v1842 = vsel %vm949, %v1026, 0
        %v1845 = vsel %vm949, %v1027, 0
        %v1848 = vsel %vm949, %v1028, 0
        %v1851 = vsel %vm949, %v1029, 0
        %v1854 = vsel %vm949, %v1030, 0
        %v1857 = vsel %vm949, %v1769, 0
        %v1860 = vsel %vm949, %v1771, 0
        %v1863 = vsel %vm949, %v1773, 0
        %v1866 = vsel %vm949, %v1775, 0
        %v1869 = vsel %vm949, %v1777, 0
        %v1872 = vsel %vm949, %v1779, 0
        %v1875 = vsel %vm949, %v1781, 0
        %v1878 = vsel %vm949, %v1783, 0
        %v1881 = vsel %vm949, %v1785, 0
        %v1884 = vsel %vm949, %v1787, 0
        %v1887 = vsel %vm949, %v1789, 0
        %v1890 = vsel %vm949, %v1791, 0
        %v1893 = vsel %vm949, %v1793, 0
        %v1896 = vsel %vm949, %v1795, 0
        %v1899 = vsel %vm949, %v1797, 0
        %v1902 = vsel %vm949, %v1799, 0
        %v1905 = vsel %vm949, %v1801, 0
        %v1908 = vsel %vm949, %v1803, 0
        %v1911 = vsel %vm949, %v1805, 0
        %v1914 = vsel %vm949, %v1807, 0
        %v1917 = vsel %vm949, %v1809, 0
        %v1920 = vsel %vm949, %v1811, 0
        %v1923 = vsel %vm949, %v1813, 0
        %v1926 = vsel %vm949, %v1815, 0
        %v1929 = vsel %vm949, %v1817, 0
        %v1932 = vsel %vm949, %v1819, 0
        %v1935 = vsel %vm949, %v1821, 0
        %v1938 = vsel %vm949, %v1823, 0
        %v1941 = vsel %vm949, %v1825, 0
        %v1944 = vsel %vm949, %v1827, 0
        %v1947 = vsel %vm949, %v1829, 0
        %v1950 = vsel %vm949, %v1831, 0
        %1952 = vmatpush.bf16.xpose.msra.mxu0 %v1878
        %1953 = vmatpush.bf16.xpose.msra.mxu0 %v1875
        %1954 = vmatpush.bf16.xpose.msra.mxu0 %v1872
        %1955 = vmatpush.bf16.xpose.msra.mxu0 %v1869
        %1956 = vmatpush.bf16.xpose.msra.mxu0 %v1866
        %1957 = vmatpush.bf16.xpose.msra.mxu0 %v1863
        %1958 = vmatpush.bf16.xpose.msra.mxu0 %v1860
        %1959 = vmatpush.bf16.xpose.msra.mxu0 %v1857
        %1960 = vmatmul.bf16.gmra.mxu0 %v1833
        %v1961 = vpop.f32.mrf.mxu0
        %v1962 = vadd.f32 %v852, %v1961
        %v1963 = vpop.f32.mrf.mxu0
        %v1964 = vadd.f32 %v856, %v1963
        %1965 = vmatmul.bf16.gmra.mxu0 %v1836
        %v1966 = vpop.f32.mrf.mxu0
        %v1967 = vadd.f32 %v860, %v1966
        %v1968 = vpop.f32.mrf.mxu0
        %v1969 = vadd.f32 %v864, %v1968
        %1970 = vmatmul.bf16.gmra.mxu0 %v1839
        %v1971 = vpop.f32.mrf.mxu0
        %v1972 = vadd.f32 %v868, %v1971
        %v1973 = vpop.f32.mrf.mxu0
        %v1974 = vadd.f32 %v872, %v1973
        %1975 = vmatmul.bf16.gmra.mxu0 %v1842
        %v1976 = vpop.f32.mrf.mxu0
        %v1977 = vadd.f32 %v876, %v1976
        %v1978 = vpop.f32.mrf.mxu0
        %v1979 = vadd.f32 %v880, %v1978
        %1980 = vmatmul.bf16.gmra.mxu0 %v1845
        %v1981 = vpop.f32.mrf.mxu0
        %v1982 = vadd.f32 %v884, %v1981
        %v1983 = vpop.f32.mrf.mxu0
        %v1984 = vadd.f32 %v888, %v1983
        %1985 = vmatmul.bf16.gmra.mxu0 %v1848
        %v1986 = vpop.f32.mrf.mxu0
        %v1987 = vadd.f32 %v892, %v1986
        %v1988 = vpop.f32.mrf.mxu0
        %v1989 = vadd.f32 %v896, %v1988
        %1990 = vmatmul.bf16.gmra.mxu0 %v1851
        %v1991 = vpop.f32.mrf.mxu0
        %v1992 = vadd.f32 %v900, %v1991
        %v1993 = vpop.f32.mrf.mxu0
        %v1994 = vadd.f32 %v904, %v1993
        %1995 = vmatmul.bf16.gmra.mxu0 %v1854
        %v1996 = vpop.f32.mrf.mxu0
        %v1997 = vadd.f32 %v908, %v1996
        %v1998 = vpop.f32.mrf.mxu0
        %v1999 = vadd.f32 %v912, %v1998
        %2000 = vdwg.mxu0
        %2001 = vmatpush.bf16.xpose.msra.mxu0 %v1902
        %2002 = vmatpush.bf16.xpose.msra.mxu0 %v1899
        %2003 = vmatpush.bf16.xpose.msra.mxu0 %v1896
        %2004 = vmatpush.bf16.xpose.msra.mxu0 %v1893
        %2005 = vmatpush.bf16.xpose.msra.mxu0 %v1890
        %2006 = vmatpush.bf16.xpose.msra.mxu0 %v1887
        %2007 = vmatpush.bf16.xpose.msra.mxu0 %v1884
        %2008 = vmatpush.bf16.xpose.msra.mxu0 %v1881
        %2009 = vmatmul.bf16.gmra.mxu0 %v1833
        %v2010 = vpop.f32.mrf.mxu0
        %v2011 = vadd.f32 %v853, %v2010
        %v2012 = vpop.f32.mrf.mxu0
        %v2013 = vadd.f32 %v857, %v2012
        %2014 = vmatmul.bf16.gmra.mxu0 %v1836
        %v2015 = vpop.f32.mrf.mxu0
        %v2016 = vadd.f32 %v861, %v2015
        %v2017 = vpop.f32.mrf.mxu0
        %v2018 = vadd.f32 %v865, %v2017
        %2019 = vmatmul.bf16.gmra.mxu0 %v1839
        %v2020 = vpop.f32.mrf.mxu0
        %v2021 = vadd.f32 %v869, %v2020
        %v2022 = vpop.f32.mrf.mxu0
        %v2023 = vadd.f32 %v873, %v2022
        %2024 = vmatmul.bf16.gmra.mxu0 %v1842
        %v2025 = vpop.f32.mrf.mxu0
        %v2026 = vadd.f32 %v877, %v2025
        %v2027 = vpop.f32.mrf.mxu0
        %v2028 = vadd.f32 %v881, %v2027
        %2029 = vmatmul.bf16.gmra.mxu0 %v1845
        %v2030 = vpop.f32.mrf.mxu0
        %v2031 = vadd.f32 %v885, %v2030
        %v2032 = vpop.f32.mrf.mxu0
        %v2033 = vadd.f32 %v889, %v2032
        %2034 = vmatmul.bf16.gmra.mxu0 %v1848
        %v2035 = vpop.f32.mrf.mxu0
        %v2036 = vadd.f32 %v893, %v2035
        %v2037 = vpop.f32.mrf.mxu0
        %v2038 = vadd.f32 %v897, %v2037
        %2039 = vmatmul.bf16.gmra.mxu0 %v1851
        %v2040 = vpop.f32.mrf.mxu0
        %v2041 = vadd.f32 %v901, %v2040
        %v2042 = vpop.f32.mrf.mxu0
        %v2043 = vadd.f32 %v905, %v2042
        %2044 = vmatmul.bf16.gmra.mxu0 %v1854
        %v2045 = vpop.f32.mrf.mxu0
        %v2046 = vadd.f32 %v909, %v2045
        %v2047 = vpop.f32.mrf.mxu0
        %v2048 = vadd.f32 %v913, %v2047
        %2049 = vdwg.mxu0
        %2050 = vmatpush.bf16.xpose.msra.mxu0 %v1926
        %2051 = vmatpush.bf16.xpose.msra.mxu0 %v1923
        %2052 = vmatpush.bf16.xpose.msra.mxu0 %v1920
        %2053 = vmatpush.bf16.xpose.msra.mxu0 %v1917
        %2054 = vmatpush.bf16.xpose.msra.mxu0 %v1914
        %2055 = vmatpush.bf16.xpose.msra.mxu0 %v1911
        %2056 = vmatpush.bf16.xpose.msra.mxu0 %v1908
        %2057 = vmatpush.bf16.xpose.msra.mxu0 %v1905
        %2058 = vmatmul.bf16.gmra.mxu0 %v1833
        %v2059 = vpop.f32.mrf.mxu0
        %v2060 = vadd.f32 %v854, %v2059
        %v2061 = vpop.f32.mrf.mxu0
        %v2062 = vadd.f32 %v858, %v2061
        %2063 = vmatmul.bf16.gmra.mxu0 %v1836
        %v2064 = vpop.f32.mrf.mxu0
        %v2065 = vadd.f32 %v862, %v2064
        %v2066 = vpop.f32.mrf.mxu0
        %v2067 = vadd.f32 %v866, %v2066
        %2068 = vmatmul.bf16.gmra.mxu0 %v1839
        %v2069 = vpop.f32.mrf.mxu0
        %v2070 = vadd.f32 %v870, %v2069
        %v2071 = vpop.f32.mrf.mxu0
        %v2072 = vadd.f32 %v874, %v2071
        %2073 = vmatmul.bf16.gmra.mxu0 %v1842
        %v2074 = vpop.f32.mrf.mxu0
        %v2075 = vadd.f32 %v878, %v2074
        %v2076 = vpop.f32.mrf.mxu0
        %v2077 = vadd.f32 %v882, %v2076
        %2078 = vmatmul.bf16.gmra.mxu0 %v1845
        %v2079 = vpop.f32.mrf.mxu0
        %v2080 = vadd.f32 %v886, %v2079
        %v2081 = vpop.f32.mrf.mxu0
        %v2082 = vadd.f32 %v890, %v2081
        %2083 = vmatmul.bf16.gmra.mxu0 %v1848
        %v2084 = vpop.f32.mrf.mxu0
        %v2085 = vadd.f32 %v894, %v2084
        %v2086 = vpop.f32.mrf.mxu0
        %v2087 = vadd.f32 %v898, %v2086
        %2088 = vmatmul.bf16.gmra.mxu0 %v1851
        %v2089 = vpop.f32.mrf.mxu0
        %v2090 = vadd.f32 %v902, %v2089
        %v2091 = vpop.f32.mrf.mxu0
        %v2092 = vadd.f32 %v906, %v2091
        %2093 = vmatmul.bf16.gmra.mxu0 %v1854
        %v2094 = vpop.f32.mrf.mxu0
        %v2095 = vadd.f32 %v910, %v2094
        %v2096 = vpop.f32.mrf.mxu0
        %v2097 = vadd.f32 %v914, %v2096
        %2098 = vdwg.mxu0
        %2099 = vmatpush.bf16.xpose.msra.mxu0 %v1950
        %2100 = vmatpush.bf16.xpose.msra.mxu0 %v1947
        %2101 = vmatpush.bf16.xpose.msra.mxu0 %v1944
        %2102 = vmatpush.bf16.xpose.msra.mxu0 %v1941
        %2103 = vmatpush.bf16.xpose.msra.mxu0 %v1938
        %2104 = vmatpush.bf16.xpose.msra.mxu0 %v1935
        %2105 = vmatpush.bf16.xpose.msra.mxu0 %v1932
        %2106 = vmatpush.bf16.xpose.msra.mxu0 %v1929
        %2107 = vmatmul.bf16.gmra.mxu0 %v1833
        %v2108 = vpop.f32.mrf.mxu0
        %v2109 = vadd.f32 %v855, %v2108
        %v2110 = vpop.f32.mrf.mxu0
        %v2111 = vadd.f32 %v859, %v2110
        %2112 = vmatmul.bf16.gmra.mxu0 %v1836
        %v2113 = vpop.f32.mrf.mxu0
        %v2114 = vadd.f32 %v863, %v2113
        %v2115 = vpop.f32.mrf.mxu0
        %v2116 = vadd.f32 %v867, %v2115
        %2117 = vmatmul.bf16.gmra.mxu0 %v1839
        %v2118 = vpop.f32.mrf.mxu0
        %v2119 = vadd.f32 %v871, %v2118
        %v2120 = vpop.f32.mrf.mxu0
        %v2121 = vadd.f32 %v875, %v2120
        %2122 = vmatmul.bf16.gmra.mxu0 %v1842
        %v2123 = vpop.f32.mrf.mxu0
        %v2124 = vadd.f32 %v879, %v2123
        %v2125 = vpop.f32.mrf.mxu0
        %v2126 = vadd.f32 %v883, %v2125
        %2127 = vmatmul.bf16.gmra.mxu0 %v1845
        %v2128 = vpop.f32.mrf.mxu0
        %v2129 = vadd.f32 %v887, %v2128
        %v2130 = vpop.f32.mrf.mxu0
        %v2131 = vadd.f32 %v891, %v2130
        %2132 = vmatmul.bf16.gmra.mxu0 %v1848
        %v2133 = vpop.f32.mrf.mxu0
        %v2134 = vadd.f32 %v895, %v2133
        %v2135 = vpop.f32.mrf.mxu0
        %v2136 = vadd.f32 %v899, %v2135
        %2137 = vmatmul.bf16.gmra.mxu0 %v1851
        %v2138 = vpop.f32.mrf.mxu0
        %v2139 = vadd.f32 %v903, %v2138
        %v2140 = vpop.f32.mrf.mxu0
        %v2141 = vadd.f32 %v907, %v2140
        %2142 = vmatmul.bf16.gmra.mxu0 %v1854
        %v2143 = vpop.f32.mrf.mxu0
        %v2144 = vadd.f32 %v911, %v2143
        %v2145 = vpop.f32.mrf.mxu0
        %v2146 = vadd.f32 %v915, %v2145
        %2147 = vdwg.mxu0
        %v2148 = vmax.f32 %v1962, %v2011
        %v2149 = vmax.f32 %v2148, %v2060
        %v2150 = vmax.f32 %v2149, %v2109
        %2151 = vmax.xlane.f32.xlu0 %v2150
        %v2152 = vpop.xlane.xlu0 %2151
        %v2153 = vmax.f32 %v1964, %v2013
        %v2154 = vmax.f32 %v2153, %v2062
        %v2155 = vmax.f32 %v2154, %v2111
        %2156 = vmax.xlane.f32.xlu0 %v2155
        %v2157 = vpop.xlane.xlu0 %2156
        %v2158 = vmax.f32 %v1967, %v2016
        %v2159 = vmax.f32 %v2158, %v2065
        %v2160 = vmax.f32 %v2159, %v2114
        %2161 = vmax.xlane.f32.xlu0 %v2160
        %v2162 = vpop.xlane.xlu0 %2161
        %v2163 = vmax.f32 %v1969, %v2018
        %v2164 = vmax.f32 %v2163, %v2067
        %v2165 = vmax.f32 %v2164, %v2116
        %2166 = vmax.xlane.f32.xlu0 %v2165
        %v2167 = vpop.xlane.xlu0 %2166
        %v2168 = vmax.f32 %v1972, %v2021
        %v2169 = vmax.f32 %v2168, %v2070
        %v2170 = vmax.f32 %v2169, %v2119
        %2171 = vmax.xlane.f32.xlu0 %v2170
        %v2172 = vpop.xlane.xlu0 %2171
        %v2173 = vmax.f32 %v1974, %v2023
        %v2174 = vmax.f32 %v2173, %v2072
        %v2175 = vmax.f32 %v2174, %v2121
        %2176 = vmax.xlane.f32.xlu0 %v2175
        %v2177 = vpop.xlane.xlu0 %2176
        %v2178 = vmax.f32 %v1977, %v2026
        %v2179 = vmax.f32 %v2178, %v2075
        %v2180 = vmax.f32 %v2179, %v2124
        %2181 = vmax.xlane.f32.xlu0 %v2180
        %v2182 = vpop.xlane.xlu0 %2181
        %v2183 = vmax.f32 %v1979, %v2028
        %v2184 = vmax.f32 %v2183, %v2077
        %v2185 = vmax.f32 %v2184, %v2126
        %2186 = vmax.xlane.f32.xlu0 %v2185
        %v2187 = vpop.xlane.xlu0 %2186
        %v2188 = vmax.f32 %v1982, %v2031
        %v2189 = vmax.f32 %v2188, %v2080
        %v2190 = vmax.f32 %v2189, %v2129
        %2191 = vmax.xlane.f32.xlu0 %v2190
        %v2192 = vpop.xlane.xlu0 %2191
        %v2193 = vmax.f32 %v1984, %v2033
        %v2194 = vmax.f32 %v2193, %v2082
        %v2195 = vmax.f32 %v2194, %v2131
        %2196 = vmax.xlane.f32.xlu0 %v2195
        %v2197 = vpop.xlane.xlu0 %2196
        %v2198 = vmax.f32 %v1987, %v2036
        %v2199 = vmax.f32 %v2198, %v2085
        %v2200 = vmax.f32 %v2199, %v2134
        %2201 = vmax.xlane.f32.xlu0 %v2200
        %v2202 = vpop.xlane.xlu0 %2201
        %v2203 = vmax.f32 %v1989, %v2038
        %v2204 = vmax.f32 %v2203, %v2087
        %v2205 = vmax.f32 %v2204, %v2136
        %2206 = vmax.xlane.f32.xlu0 %v2205
        %v2207 = vpop.xlane.xlu0 %2206
        %v2208 = vmax.f32 %v1992, %v2041
        %v2209 = vmax.f32 %v2208, %v2090
        %v2210 = vmax.f32 %v2209, %v2139
        %2211 = vmax.xlane.f32.xlu0 %v2210
        %v2212 = vpop.xlane.xlu0 %2211
        %v2213 = vmax.f32 %v1994, %v2043
        %v2214 = vmax.f32 %v2213, %v2092
        %v2215 = vmax.f32 %v2214, %v2141
        %2216 = vmax.xlane.f32.xlu0 %v2215
        %v2217 = vpop.xlane.xlu0 %2216
        %v2218 = vmax.f32 %v1997, %v2046
        %v2219 = vmax.f32 %v2218, %v2095
        %v2220 = vmax.f32 %v2219, %v2144
        %2221 = vmax.xlane.f32.xlu0 %v2220
        %v2222 = vpop.xlane.xlu0 %2221
        %v2223 = vmax.f32 %v1999, %v2048
        %v2224 = vmax.f32 %v2223, %v2097
        %v2225 = vmax.f32 %v2224, %v2146
        %2226 = vmax.xlane.f32.xlu0 %v2225
        %v2227 = vpop.xlane.xlu0 %2226
        %v2228 = vsub.f32 %v1962, %v2152
        %v2229 = vsub.f32 %v2011, %v2152
        %v2230 = vsub.f32 %v2060, %v2152
        %v2231 = vsub.f32 %v2109, %v2152
        %v2232 = vsub.f32 %v1964, %v2157
        %v2233 = vsub.f32 %v2013, %v2157
        %v2234 = vsub.f32 %v2062, %v2157
        %v2235 = vsub.f32 %v2111, %v2157
        %v2236 = vsub.f32 %v1967, %v2162
        %v2237 = vsub.f32 %v2016, %v2162
        %v2238 = vsub.f32 %v2065, %v2162
        %v2239 = vsub.f32 %v2114, %v2162
        %v2240 = vsub.f32 %v1969, %v2167
        %v2241 = vsub.f32 %v2018, %v2167
        %v2242 = vsub.f32 %v2067, %v2167
        %v2243 = vsub.f32 %v2116, %v2167
        %v2244 = vsub.f32 %v1972, %v2172
        %v2245 = vsub.f32 %v2021, %v2172
        %v2246 = vsub.f32 %v2070, %v2172
        %v2247 = vsub.f32 %v2119, %v2172
        %v2248 = vsub.f32 %v1974, %v2177
        %v2249 = vsub.f32 %v2023, %v2177
        %v2250 = vsub.f32 %v2072, %v2177
        %v2251 = vsub.f32 %v2121, %v2177
        %v2252 = vsub.f32 %v1977, %v2182
        %v2253 = vsub.f32 %v2026, %v2182
        %v2254 = vsub.f32 %v2075, %v2182
        %v2255 = vsub.f32 %v2124, %v2182
        %v2256 = vsub.f32 %v1979, %v2187
        %v2257 = vsub.f32 %v2028, %v2187
        %v2258 = vsub.f32 %v2077, %v2187
        %v2259 = vsub.f32 %v2126, %v2187
        %v2260 = vsub.f32 %v1982, %v2192
        %v2261 = vsub.f32 %v2031, %v2192
        %v2262 = vsub.f32 %v2080, %v2192
        %v2263 = vsub.f32 %v2129, %v2192
        %v2264 = vsub.f32 %v1984, %v2197
        %v2265 = vsub.f32 %v2033, %v2197
        %v2266 = vsub.f32 %v2082, %v2197
        %v2267 = vsub.f32 %v2131, %v2197
        %v2268 = vsub.f32 %v1987, %v2202
        %v2269 = vsub.f32 %v2036, %v2202
        %v2270 = vsub.f32 %v2085, %v2202
        %v2271 = vsub.f32 %v2134, %v2202
        %v2272 = vsub.f32 %v1989, %v2207
        %v2273 = vsub.f32 %v2038, %v2207
        %v2274 = vsub.f32 %v2087, %v2207
        %v2275 = vsub.f32 %v2136, %v2207
        %v2276 = vsub.f32 %v1992, %v2212
        %v2277 = vsub.f32 %v2041, %v2212
        %v2278 = vsub.f32 %v2090, %v2212
        %v2279 = vsub.f32 %v2139, %v2212
        %v2280 = vsub.f32 %v1994, %v2217
        %v2281 = vsub.f32 %v2043, %v2217
        %v2282 = vsub.f32 %v2092, %v2217
        %v2283 = vsub.f32 %v2141, %v2217
        %v2284 = vsub.f32 %v1997, %v2222
        %v2285 = vsub.f32 %v2046, %v2222
        %v2286 = vsub.f32 %v2095, %v2222
        %v2287 = vsub.f32 %v2144, %v2222
        %v2288 = vsub.f32 %v1999, %v2227
        %v2289 = vsub.f32 %v2048, %v2227
        %v2290 = vsub.f32 %v2097, %v2227
        %v2291 = vsub.f32 %v2146, %v2227
        %v2292 = vmul.f32 %v2228, 1.442695
        %v2293 = vpow.pop %v2292
        %v2294 = vmul.f32 %v2229, 1.442695
        %v2295 = vpow.pop %v2294
        %v2296 = vmul.f32 %v2230, 1.442695
        %v2297 = vpow.pop %v2296
        %v2298 = vmul.f32 %v2231, 1.442695
        %v2299 = vpow.pop %v2298
        %v2300 = vmul.f32 %v2232, 1.442695
        %v2301 = vpow.pop %v2300
        %v2302 = vmul.f32 %v2233, 1.442695
        %v2303 = vpow.pop %v2302
        %v2304 = vmul.f32 %v2234, 1.442695
        %v2305 = vpow.pop %v2304
        %v2306 = vmul.f32 %v2235, 1.442695
        %v2307 = vpow.pop %v2306
        %v2308 = vmul.f32 %v2236, 1.442695
        %v2309 = vpow.pop %v2308
        %v2310 = vmul.f32 %v2237, 1.442695
        %v2311 = vpow.pop %v2310
        %v2312 = vmul.f32 %v2238, 1.442695
        %v2313 = vpow.pop %v2312
        %v2314 = vmul.f32 %v2239, 1.442695
        %v2315 = vpow.pop %v2314
        %v2316 = vmul.f32 %v2240, 1.442695
        %v2317 = vpow.pop %v2316
        %v2318 = vmul.f32 %v2241, 1.442695
        %v2319 = vpow.pop %v2318
        %v2320 = vmul.f32 %v2242, 1.442695
        %v2321 = vpow.pop %v2320
        %v2322 = vmul.f32 %v2243, 1.442695
        %v2323 = vpow.pop %v2322
        %v2324 = vmul.f32 %v2244, 1.442695
        %v2325 = vpow.pop %v2324
        %v2326 = vmul.f32 %v2245, 1.442695
        %v2327 = vpow.pop %v2326
        %v2328 = vmul.f32 %v2246, 1.442695
        %v2329 = vpow.pop %v2328
        %v2330 = vmul.f32 %v2247, 1.442695
        %v2331 = vpow.pop %v2330
        %v2332 = vmul.f32 %v2248, 1.442695
        %v2333 = vpow.pop %v2332
        %v2334 = vmul.f32 %v2249, 1.442695
        %v2335 = vpow.pop %v2334
        %v2336 = vmul.f32 %v2250, 1.442695
        %v2337 = vpow.pop %v2336
        %v2338 = vmul.f32 %v2251, 1.442695
        %v2339 = vpow.pop %v2338
        %v2340 = vmul.f32 %v2252, 1.442695
        %v2341 = vpow.pop %v2340
        %v2342 = vmul.f32 %v2253, 1.442695
        %v2343 = vpow.pop %v2342
        %v2344 = vmul.f32 %v2254, 1.442695
        %v2345 = vpow.pop %v2344
        %v2346 = vmul.f32 %v2255, 1.442695
        %v2347 = vpow.pop %v2346
        %v2348 = vmul.f32 %v2256, 1.442695
        %v2349 = vpow.pop %v2348
        %v2350 = vmul.f32 %v2257, 1.442695
        %v2351 = vpow.pop %v2350
        %v2352 = vmul.f32 %v2258, 1.442695
        %v2353 = vpow.pop %v2352
        %v2354 = vmul.f32 %v2259, 1.442695
        %v2355 = vpow.pop %v2354
        %v2356 = vmul.f32 %v2260, 1.442695
        %v2357 = vpow.pop %v2356
        %v2358 = vmul.f32 %v2261, 1.442695
        %v2359 = vpow.pop %v2358
        %v2360 = vmul.f32 %v2262, 1.442695
        %v2361 = vpow.pop %v2360
        %v2362 = vmul.f32 %v2263, 1.442695
        %v2363 = vpow.pop %v2362
        %v2364 = vmul.f32 %v2264, 1.442695
        %v2365 = vpow.pop %v2364
        %v2366 = vmul.f32 %v2265, 1.442695
        %v2367 = vpow.pop %v2366
        %v2368 = vmul.f32 %v2266, 1.442695
        %v2369 = vpow.pop %v2368
        %v2370 = vmul.f32 %v2267, 1.442695
        %v2371 = vpow.pop %v2370
        %v2372 = vmul.f32 %v2268, 1.442695
        %v2373 = vpow.pop %v2372
        %v2374 = vmul.f32 %v2269, 1.442695
        %v2375 = vpow.pop %v2374
        %v2376 = vmul.f32 %v2270, 1.442695
        %v2377 = vpow.pop %v2376
        %v2378 = vmul.f32 %v2271, 1.442695
        %v2379 = vpow.pop %v2378
        %v2380 = vmul.f32 %v2272, 1.442695
        %v2381 = vpow.pop %v2380
        %v2382 = vmul.f32 %v2273, 1.442695
        %v2383 = vpow.pop %v2382
        %v2384 = vmul.f32 %v2274, 1.442695
        %v2385 = vpow.pop %v2384
        %v2386 = vmul.f32 %v2275, 1.442695
        %v2387 = vpow.pop %v2386
        %v2388 = vmul.f32 %v2276, 1.442695
        %v2389 = vpow.pop %v2388
        %v2390 = vmul.f32 %v2277, 1.442695
        %v2391 = vpow.pop %v2390
        %v2392 = vmul.f32 %v2278, 1.442695
        %v2393 = vpow.pop %v2392
        %v2394 = vmul.f32 %v2279, 1.442695
        %v2395 = vpow.pop %v2394
        %v2396 = vmul.f32 %v2280, 1.442695
        %v2397 = vpow.pop %v2396
        %v2398 = vmul.f32 %v2281, 1.442695
        %v2399 = vpow.pop %v2398
        %v2400 = vmul.f32 %v2282, 1.442695
        %v2401 = vpow.pop %v2400
        %v2402 = vmul.f32 %v2283, 1.442695
        %v2403 = vpow.pop %v2402
        %v2404 = vmul.f32 %v2284, 1.442695
        %v2405 = vpow.pop %v2404
        %v2406 = vmul.f32 %v2285, 1.442695
        %v2407 = vpow.pop %v2406
        %v2408 = vmul.f32 %v2286, 1.442695
        %v2409 = vpow.pop %v2408
        %v2410 = vmul.f32 %v2287, 1.442695
        %v2411 = vpow.pop %v2410
        %v2412 = vmul.f32 %v2288, 1.442695
        %v2413 = vpow.pop %v2412
        %v2414 = vmul.f32 %v2289, 1.442695
        %v2415 = vpow.pop %v2414
        %v2416 = vmul.f32 %v2290, 1.442695
        %v2417 = vpow.pop %v2416
        %v2418 = vmul.f32 %v2291, 1.442695
        %v2419 = vpow.pop %v2418
        %v2420 = vpack.c.bf16 %v2301, %v2293
        %v2421 = vpack.c.bf16 %v2303, %v2295
        %v2422 = vpack.c.bf16 %v2305, %v2297
        %v2423 = vpack.c.bf16 %v2307, %v2299
        %v2424 = vpack.c.bf16 %v2317, %v2309
        %v2425 = vpack.c.bf16 %v2319, %v2311
        %v2426 = vpack.c.bf16 %v2321, %v2313
        %v2427 = vpack.c.bf16 %v2323, %v2315
        %v2428 = vpack.c.bf16 %v2333, %v2325
        %v2429 = vpack.c.bf16 %v2335, %v2327
        %v2430 = vpack.c.bf16 %v2337, %v2329
        %v2431 = vpack.c.bf16 %v2339, %v2331
        %v2432 = vpack.c.bf16 %v2349, %v2341
        %v2433 = vpack.c.bf16 %v2351, %v2343
        %v2434 = vpack.c.bf16 %v2353, %v2345
        %v2435 = vpack.c.bf16 %v2355, %v2347
        %v2436 = vpack.c.bf16 %v2365, %v2357
        %v2437 = vpack.c.bf16 %v2367, %v2359
        %v2438 = vpack.c.bf16 %v2369, %v2361
        %v2439 = vpack.c.bf16 %v2371, %v2363
        %v2440 = vpack.c.bf16 %v2381, %v2373
        %v2441 = vpack.c.bf16 %v2383, %v2375
        %v2442 = vpack.c.bf16 %v2385, %v2377
        %v2443 = vpack.c.bf16 %v2387, %v2379
        %v2444 = vpack.c.bf16 %v2397, %v2389
        %v2445 = vpack.c.bf16 %v2399, %v2391
        %v2446 = vpack.c.bf16 %v2401, %v2393
        %v2447 = vpack.c.bf16 %v2403, %v2395
        %v2448 = vpack.c.bf16 %v2413, %v2405
        %v2449 = vpack.c.bf16 %v2415, %v2407
        %v2450 = vpack.c.bf16 %v2417, %v2409
        %v2451 = vpack.c.bf16 %v2419, %v2411
        %2452 = vmatpush.bf16.msra.mxu0 %v1711
        %2453 = vmatpush.bf16.msra.mxu0 %v1710
        %2454 = vmatpush.bf16.msra.mxu0 %v1709
        %2455 = vmatpush.bf16.msra.mxu0 %v1708
        %2456 = vmatpush.bf16.msra.mxu0 %v1707
        %2457 = vmatpush.bf16.msra.mxu0 %v1706
        %2458 = vmatpush.bf16.msra.mxu0 %v1705
        %2459 = vmatpush.bf16.msra.mxu0 %v1704
        %2460 = vmatmul.bf16.gmra.mxu0 %v2420
        %v2461 = vpop.f32.mrf.mxu0
        %v2462 = vadd.f32 0.0, %v2461
        %v2463 = vpop.f32.mrf.mxu0
        %v2464 = vadd.f32 0.0, %v2463
        %2465 = vmatmul.bf16.gmra.mxu0 %v2424
        %v2466 = vpop.f32.mrf.mxu0
        %v2467 = vadd.f32 0.0, %v2466
        %v2468 = vpop.f32.mrf.mxu0
        %v2469 = vadd.f32 0.0, %v2468
        %2470 = vmatmul.bf16.gmra.mxu0 %v2428
        %v2471 = vpop.f32.mrf.mxu0
        %v2472 = vadd.f32 0.0, %v2471
        %v2473 = vpop.f32.mrf.mxu0
        %v2474 = vadd.f32 0.0, %v2473
        %2475 = vmatmul.bf16.gmra.mxu0 %v2432
        %v2476 = vpop.f32.mrf.mxu0
        %v2477 = vadd.f32 0.0, %v2476
        %v2478 = vpop.f32.mrf.mxu0
        %v2479 = vadd.f32 0.0, %v2478
        %2480 = vmatmul.bf16.gmra.mxu0 %v2436
        %v2481 = vpop.f32.mrf.mxu0
        %v2482 = vadd.f32 0.0, %v2481
        %v2483 = vpop.f32.mrf.mxu0
        %v2484 = vadd.f32 0.0, %v2483
        %2485 = vmatmul.bf16.gmra.mxu0 %v2440
        %v2486 = vpop.f32.mrf.mxu0
        %v2487 = vadd.f32 0.0, %v2486
        %v2488 = vpop.f32.mrf.mxu0
        %v2489 = vadd.f32 0.0, %v2488
        %2490 = vmatmul.bf16.gmra.mxu0 %v2444
        %v2491 = vpop.f32.mrf.mxu0
        %v2492 = vadd.f32 0.0, %v2491
        %v2493 = vpop.f32.mrf.mxu0
        %v2494 = vadd.f32 0.0, %v2493
        %2495 = vmatmul.bf16.gmra.mxu0 %v2448
        %v2496 = vpop.f32.mrf.mxu0
        %v2497 = vadd.f32 0.0, %v2496
        %v2498 = vpop.f32.mrf.mxu0
        %v2499 = vadd.f32 0.0, %v2498
        %2500 = vdwg.mxu0
        %2501 = vmatpush.bf16.msra.mxu0 %v1719
        %2502 = vmatpush.bf16.msra.mxu0 %v1718
        %2503 = vmatpush.bf16.msra.mxu0 %v1717
        %2504 = vmatpush.bf16.msra.mxu0 %v1716
        %2505 = vmatpush.bf16.msra.mxu0 %v1715
        %2506 = vmatpush.bf16.msra.mxu0 %v1714
        %2507 = vmatpush.bf16.msra.mxu0 %v1713
        %2508 = vmatpush.bf16.msra.mxu0 %v1712
        %2509 = vmatmul.bf16.gmra.mxu0 %v2421
        %v2510 = vpop.f32.mrf.mxu0
        %v2511 = vadd.f32 %v2462, %v2510
        %v2512 = vpop.f32.mrf.mxu0
        %v2513 = vadd.f32 %v2464, %v2512
        %2514 = vmatmul.bf16.gmra.mxu0 %v2425
        %v2515 = vpop.f32.mrf.mxu0
        %v2516 = vadd.f32 %v2467, %v2515
        %v2517 = vpop.f32.mrf.mxu0
        %v2518 = vadd.f32 %v2469, %v2517
        %2519 = vmatmul.bf16.gmra.mxu0 %v2429
        %v2520 = vpop.f32.mrf.mxu0
        %v2521 = vadd.f32 %v2472, %v2520
        %v2522 = vpop.f32.mrf.mxu0
        %v2523 = vadd.f32 %v2474, %v2522
        %2524 = vmatmul.bf16.gmra.mxu0 %v2433
        %v2525 = vpop.f32.mrf.mxu0
        %v2526 = vadd.f32 %v2477, %v2525
        %v2527 = vpop.f32.mrf.mxu0
        %v2528 = vadd.f32 %v2479, %v2527
        %2529 = vmatmul.bf16.gmra.mxu0 %v2437
        %v2530 = vpop.f32.mrf.mxu0
        %v2531 = vadd.f32 %v2482, %v2530
        %v2532 = vpop.f32.mrf.mxu0
        %v2533 = vadd.f32 %v2484, %v2532
        %2534 = vmatmul.bf16.gmra.mxu0 %v2441
        %v2535 = vpop.f32.mrf.mxu0
        %v2536 = vadd.f32 %v2487, %v2535
        %v2537 = vpop.f32.mrf.mxu0
        %v2538 = vadd.f32 %v2489, %v2537
        %2539 = vmatmul.bf16.gmra.mxu0 %v2445
        %v2540 = vpop.f32.mrf.mxu0
        %v2541 = vadd.f32 %v2492, %v2540
        %v2542 = vpop.f32.mrf.mxu0
        %v2543 = vadd.f32 %v2494, %v2542
        %2544 = vmatmul.bf16.gmra.mxu0 %v2449
        %v2545 = vpop.f32.mrf.mxu0
        %v2546 = vadd.f32 %v2497, %v2545
        %v2547 = vpop.f32.mrf.mxu0
        %v2548 = vadd.f32 %v2499, %v2547
        %2549 = vdwg.mxu0
        %2550 = vmatpush.bf16.msra.mxu0 %v1727
        %2551 = vmatpush.bf16.msra.mxu0 %v1726
        %2552 = vmatpush.bf16.msra.mxu0 %v1725
        %2553 = vmatpush.bf16.msra.mxu0 %v1724
        %2554 = vmatpush.bf16.msra.mxu0 %v1723
        %2555 = vmatpush.bf16.msra.mxu0 %v1722
        %2556 = vmatpush.bf16.msra.mxu0 %v1721
        %2557 = vmatpush.bf16.msra.mxu0 %v1720
        %2558 = vmatmul.bf16.gmra.mxu0 %v2422
        %v2559 = vpop.f32.mrf.mxu0
        %v2560 = vadd.f32 %v2511, %v2559
        %v2561 = vpop.f32.mrf.mxu0
        %v2562 = vadd.f32 %v2513, %v2561
        %2563 = vmatmul.bf16.gmra.mxu0 %v2426
        %v2564 = vpop.f32.mrf.mxu0
        %v2565 = vadd.f32 %v2516, %v2564
        %v2566 = vpop.f32.mrf.mxu0
        %v2567 = vadd.f32 %v2518, %v2566
        %2568 = vmatmul.bf16.gmra.mxu0 %v2430
        %v2569 = vpop.f32.mrf.mxu0
        %v2570 = vadd.f32 %v2521, %v2569
        %v2571 = vpop.f32.mrf.mxu0
        %v2572 = vadd.f32 %v2523, %v2571
        %2573 = vmatmul.bf16.gmra.mxu0 %v2434
        %v2574 = vpop.f32.mrf.mxu0
        %v2575 = vadd.f32 %v2526, %v2574
        %v2576 = vpop.f32.mrf.mxu0
        %v2577 = vadd.f32 %v2528, %v2576
        %2578 = vmatmul.bf16.gmra.mxu0 %v2438
        %v2579 = vpop.f32.mrf.mxu0
        %v2580 = vadd.f32 %v2531, %v2579
        %v2581 = vpop.f32.mrf.mxu0
        %v2582 = vadd.f32 %v2533, %v2581
        %2583 = vmatmul.bf16.gmra.mxu0 %v2442
        %v2584 = vpop.f32.mrf.mxu0
        %v2585 = vadd.f32 %v2536, %v2584
        %v2586 = vpop.f32.mrf.mxu0
        %v2587 = vadd.f32 %v2538, %v2586
        %2588 = vmatmul.bf16.gmra.mxu0 %v2446
        %v2589 = vpop.f32.mrf.mxu0
        %v2590 = vadd.f32 %v2541, %v2589
        %v2591 = vpop.f32.mrf.mxu0
        %v2592 = vadd.f32 %v2543, %v2591
        %2593 = vmatmul.bf16.gmra.mxu0 %v2450
        %v2594 = vpop.f32.mrf.mxu0
        %v2595 = vadd.f32 %v2546, %v2594
        %v2596 = vpop.f32.mrf.mxu0
        %v2597 = vadd.f32 %v2548, %v2596
        %2598 = vdwg.mxu0
        %2599 = vmatpush.bf16.msra.mxu0 %v1735
        %2600 = vmatpush.bf16.msra.mxu0 %v1734
        %2601 = vmatpush.bf16.msra.mxu0 %v1733
        %2602 = vmatpush.bf16.msra.mxu0 %v1732
        %2603 = vmatpush.bf16.msra.mxu0 %v1731
        %2604 = vmatpush.bf16.msra.mxu0 %v1730
        %2605 = vmatpush.bf16.msra.mxu0 %v1729
        %2606 = vmatpush.bf16.msra.mxu0 %v1728
        %2607 = vmatmul.bf16.gmra.mxu0 %v2423
        %v2608 = vpop.f32.mrf.mxu0
        %v2609 = vadd.f32 %v2560, %v2608
        %v2610 = vpop.f32.mrf.mxu0
        %v2611 = vadd.f32 %v2562, %v2610
        %2612 = vmatmul.bf16.gmra.mxu0 %v2427
        %v2613 = vpop.f32.mrf.mxu0
        %v2614 = vadd.f32 %v2565, %v2613
        %v2615 = vpop.f32.mrf.mxu0
        %v2616 = vadd.f32 %v2567, %v2615
        %2617 = vmatmul.bf16.gmra.mxu0 %v2431
        %v2618 = vpop.f32.mrf.mxu0
        %v2619 = vadd.f32 %v2570, %v2618
        %v2620 = vpop.f32.mrf.mxu0
        %v2621 = vadd.f32 %v2572, %v2620
        %2622 = vmatmul.bf16.gmra.mxu0 %v2435
        %v2623 = vpop.f32.mrf.mxu0
        %v2624 = vadd.f32 %v2575, %v2623
        %v2625 = vpop.f32.mrf.mxu0
        %v2626 = vadd.f32 %v2577, %v2625
        %2627 = vmatmul.bf16.gmra.mxu0 %v2439
        %v2628 = vpop.f32.mrf.mxu0
        %v2629 = vadd.f32 %v2580, %v2628
        %v2630 = vpop.f32.mrf.mxu0
        %v2631 = vadd.f32 %v2582, %v2630
        %2632 = vmatmul.bf16.gmra.mxu0 %v2443
        %v2633 = vpop.f32.mrf.mxu0
        %v2634 = vadd.f32 %v2585, %v2633
        %v2635 = vpop.f32.mrf.mxu0
        %v2636 = vadd.f32 %v2587, %v2635
        %2637 = vmatmul.bf16.gmra.mxu0 %v2447
        %v2638 = vpop.f32.mrf.mxu0
        %v2639 = vadd.f32 %v2590, %v2638
        %v2640 = vpop.f32.mrf.mxu0
        %v2641 = vadd.f32 %v2592, %v2640
        %2642 = vmatmul.bf16.gmra.mxu0 %v2451
        %v2643 = vpop.f32.mrf.mxu0
        %v2644 = vadd.f32 %v2595, %v2643
        %v2645 = vpop.f32.mrf.mxu0
        %v2646 = vadd.f32 %v2597, %v2645
        %2647 = vdwg.mxu0
        %v2648 = vrcp.pop %v2609
        %v2649 = vrcp.pop %v2611
        %v2650 = vrcp.pop %v2614
        %v2651 = vrcp.pop %v2616
        %v2652 = vrcp.pop %v2619
        %v2653 = vrcp.pop %v2621
        %v2654 = vrcp.pop %v2624
        %v2655 = vrcp.pop %v2626
        %v2656 = vrcp.pop %v2629
        %v2657 = vrcp.pop %v2631
        %v2658 = vrcp.pop %v2634
        %v2659 = vrcp.pop %v2636
        %v2660 = vrcp.pop %v2639
        %v2661 = vrcp.pop %v2641
        %v2662 = vrcp.pop %v2644
        %v2663 = vrcp.pop %v2646
        %2680 = vrot.lane.b32.xlu0 %v2648, 96
        %v2681 = vpop.permute.xlu0 %2680
        %2682 = vrot.lane.b32.xlu0 %v2649, 96
        %v2683 = vpop.permute.xlu0 %2682
        %2684 = vrot.lane.b32.xlu0 %v2650, 96
        %v2685 = vpop.permute.xlu0 %2684
        %2686 = vrot.lane.b32.xlu0 %v2651, 96
        %v2687 = vpop.permute.xlu0 %2686
        %2688 = vrot.lane.b32.xlu0 %v2652, 96
        %v2689 = vpop.permute.xlu0 %2688
        %2690 = vrot.lane.b32.xlu0 %v2653, 96
        %v2691 = vpop.permute.xlu0 %2690
        %2692 = vrot.lane.b32.xlu0 %v2654, 96
        %v2693 = vpop.permute.xlu0 %2692
        %2694 = vrot.lane.b32.xlu0 %v2655, 96
        %v2695 = vpop.permute.xlu0 %2694
        %2696 = vrot.lane.b32.xlu0 %v2656, 96
        %v2697 = vpop.permute.xlu0 %2696
        %2698 = vrot.lane.b32.xlu0 %v2657, 96
        %v2699 = vpop.permute.xlu0 %2698
        %2700 = vrot.lane.b32.xlu0 %v2658, 96
        %v2701 = vpop.permute.xlu0 %2700
        %2702 = vrot.lane.b32.xlu0 %v2659, 96
        %v2703 = vpop.permute.xlu0 %2702
        %2704 = vrot.lane.b32.xlu0 %v2660, 96
        %v2705 = vpop.permute.xlu0 %2704
        %2706 = vrot.lane.b32.xlu0 %v2661, 96
        %v2707 = vpop.permute.xlu0 %2706
        %2708 = vrot.lane.b32.xlu0 %v2662, 96
        %v2709 = vpop.permute.xlu0 %2708
        %2710 = vrot.lane.b32.xlu0 %v2663, 96
        %v2711 = vpop.permute.xlu0 %2710
        %v2728 = vmul.f32 %v2609, %v2681
        %v2729 = vmul.f32 %v2611, %v2683
        %v2730 = vmul.f32 %v2614, %v2685
        %v2731 = vmul.f32 %v2616, %v2687
        %v2732 = vmul.f32 %v2619, %v2689
        %v2733 = vmul.f32 %v2621, %v2691
        %v2734 = vmul.f32 %v2624, %v2693
        %v2735 = vmul.f32 %v2626, %v2695
        %v2736 = vmul.f32 %v2629, %v2697
        %v2737 = vmul.f32 %v2631, %v2699
        %v2738 = vmul.f32 %v2634, %v2701
        %v2739 = vmul.f32 %v2636, %v2703
        %v2740 = vmul.f32 %v2639, %v2705
        %v2741 = vmul.f32 %v2641, %v2707
        %v2742 = vmul.f32 %v2644, %v2709
        %v2743 = vmul.f32 %v2646, %v2711
        %v2744 = vpack.c.bf16 %v2729, %v2728
        %v2745 = vpack.c.bf16 %v2731, %v2730
        %v2746 = vpack.c.bf16 %v2733, %v2732
        %v2747 = vpack.c.bf16 %v2735, %v2734
        %v2748 = vpack.c.bf16 %v2737, %v2736
        %v2749 = vpack.c.bf16 %v2739, %v2738
        %v2750 = vpack.c.bf16 %v2741, %v2740
        %v2751 = vpack.c.bf16 %v2743, %v2742
        %v2752 = vld [vmem:[%s8] sm:$0xf]
        %v2753 = vld [vmem:[%s8 + $0x4] sm:$0xf]
        %v2754 = vld [vmem:[%s8 + $0x8] sm:$0xf]
        %v2755 = vld [vmem:[%s8 + $0xc] sm:$0xf]
        %v2756 = vperm.slane %v916, 0
        %v2761 = vunpack.c.l.b16 %v2752
        %v2762 = vunpack.c.l.b16 %v2753
        %v2763 = vunpack.c.l.b16 %v2754
        %v2764 = vunpack.c.l.b16 %v2755
        %v2765 = vpack.c.b16 %v2762, %v2761
        %v2766 = vpack.c.b16 %v2764, %v2763
        %v2770 = vsel %vm949, %v2744, 0
        %v2773 = vsel %vm949, %v2745, 0
        %v2776 = vsel %vm949, %v2746, 0
        %v2779 = vsel %vm949, %v2747, 0
        %v2782 = vsel %vm949, %v2748, 0
        %v2785 = vsel %vm949, %v2749, 0
        %v2788 = vsel %vm949, %v2750, 0
        %v2791 = vsel %vm949, %v2751, 0
        %2793 = vmatpush.bf16.msra.mxu0 0
        %2794 = vmatpush.bf16.msra.mxu0 0
        %2795 = vmatpush.bf16.msra.mxu0 0
        %2796 = vmatpush.bf16.msra.mxu0 0
        %2797 = vmatpush.bf16.msra.mxu0 0
        %2798 = vmatpush.bf16.msra.mxu0 0
        %2799 = vmatpush.bf16.msra.mxu0 %v2766
        %2800 = vmatpush.bf16.msra.mxu0 %v2765
        %2801 = vmatmul.bf16.gmra.mxu0 %v2770
        %v2802 = vpop.f32.mrf.mxu0
        %v2803 = vadd.f32 %v2756, %v2802
        %v2804 = vpop.f32.mrf.mxu0
        %v2805 = vadd.f32 %v2756, %v2804
        %2806 = vmatmul.bf16.gmra.mxu0 %v2773
        %v2807 = vpop.f32.mrf.mxu0
        %v2808 = vadd.f32 %v2756, %v2807
        %v2809 = vpop.f32.mrf.mxu0
        %v2810 = vadd.f32 %v2756, %v2809
        %2811 = vmatmul.bf16.gmra.mxu0 %v2776
        %v2812 = vpop.f32.mrf.mxu0
        %v2813 = vadd.f32 %v2756, %v2812
        %v2814 = vpop.f32.mrf.mxu0
        %v2815 = vadd.f32 %v2756, %v2814
        %2816 = vmatmul.bf16.gmra.mxu0 %v2779
        %v2817 = vpop.f32.mrf.mxu0
        %v2818 = vadd.f32 %v2756, %v2817
        %v2819 = vpop.f32.mrf.mxu0
        %v2820 = vadd.f32 %v2756, %v2819
        %2821 = vmatmul.bf16.gmra.mxu0 %v2782
        %v2822 = vpop.f32.mrf.mxu0
        %v2823 = vadd.f32 %v2756, %v2822
        %v2824 = vpop.f32.mrf.mxu0
        %v2825 = vadd.f32 %v2756, %v2824
        %2826 = vmatmul.bf16.gmra.mxu0 %v2785
        %v2827 = vpop.f32.mrf.mxu0
        %v2828 = vadd.f32 %v2756, %v2827
        %v2829 = vpop.f32.mrf.mxu0
        %v2830 = vadd.f32 %v2756, %v2829
        %2831 = vmatmul.bf16.gmra.mxu0 %v2788
        %v2832 = vpop.f32.mrf.mxu0
        %v2833 = vadd.f32 %v2756, %v2832
        %v2834 = vpop.f32.mrf.mxu0
        %v2835 = vadd.f32 %v2756, %v2834
        %2836 = vmatmul.bf16.gmra.mxu0 %v2791
        %v2837 = vpop.f32.mrf.mxu0
        %v2838 = vadd.f32 %v2756, %v2837
        %v2839 = vpop.f32.mrf.mxu0
        %v2840 = vadd.f32 %v2756, %v2839
        %2841 = vdwg.mxu0
        %v2842 = vadd.f32 %v708, %v2803
        %v2843 = vadd.f32 %v709, %v2805
        %v2844 = vadd.f32 %v710, %v2808
        %v2845 = vadd.f32 %v711, %v2810
        %v2846 = vadd.f32 %v712, %v2813
        %v2847 = vadd.f32 %v713, %v2815
        %v2848 = vadd.f32 %v714, %v2818
        %v2849 = vadd.f32 %v715, %v2820
        %v2850 = vadd.f32 %v716, %v2823
        %v2851 = vadd.f32 %v717, %v2825
        %v2852 = vadd.f32 %v718, %v2828
        %v2853 = vadd.f32 %v719, %v2830
        %v2854 = vadd.f32 %v720, %v2833
        %v2855 = vadd.f32 %v721, %v2835
        %v2856 = vadd.f32 %v722, %v2838
        %v2857 = vadd.f32 %v723, %v2840
        %v2858 = vsel %vm949, %v2842, 0.0
        %2859 = vadd.xlane.f32.xlu0 %v2858
        %v2860 = vpop.xlane.xlu0 %2859
        %v2861 = vsel %vm949, %v2843, 0.0
        %2862 = vadd.xlane.f32.xlu0 %v2861
        %v2863 = vpop.xlane.xlu0 %2862
        %v2864 = vsel %vm949, %v2844, 0.0
        %2865 = vadd.xlane.f32.xlu0 %v2864
        %v2866 = vpop.xlane.xlu0 %2865
        %v2867 = vsel %vm949, %v2845, 0.0
        %2868 = vadd.xlane.f32.xlu0 %v2867
        %v2869 = vpop.xlane.xlu0 %2868
        %v2870 = vsel %vm949, %v2846, 0.0
        %2871 = vadd.xlane.f32.xlu0 %v2870
        %v2872 = vpop.xlane.xlu0 %2871
        %v2873 = vsel %vm949, %v2847, 0.0
        %2874 = vadd.xlane.f32.xlu0 %v2873
        %v2875 = vpop.xlane.xlu0 %2874
        %v2876 = vsel %vm949, %v2848, 0.0
        %2877 = vadd.xlane.f32.xlu0 %v2876
        %v2878 = vpop.xlane.xlu0 %2877
        %v2879 = vsel %vm949, %v2849, 0.0
        %2880 = vadd.xlane.f32.xlu0 %v2879
        %v2881 = vpop.xlane.xlu0 %2880
        %v2882 = vsel %vm949, %v2850, 0.0
        %2883 = vadd.xlane.f32.xlu0 %v2882
        %v2884 = vpop.xlane.xlu0 %2883
        %v2885 = vsel %vm949, %v2851, 0.0
        %2886 = vadd.xlane.f32.xlu0 %v2885
        %v2887 = vpop.xlane.xlu0 %2886
        %v2888 = vsel %vm949, %v2852, 0.0
        %2889 = vadd.xlane.f32.xlu0 %v2888
        %v2890 = vpop.xlane.xlu0 %2889
        %v2891 = vsel %vm949, %v2853, 0.0
        %2892 = vadd.xlane.f32.xlu0 %v2891
        %v2893 = vpop.xlane.xlu0 %2892
        %v2894 = vsel %vm949, %v2854, 0.0
        %2895 = vadd.xlane.f32.xlu0 %v2894
        %v2896 = vpop.xlane.xlu0 %2895
        %v2897 = vsel %vm949, %v2855, 0.0
        %2898 = vadd.xlane.f32.xlu0 %v2897
        %v2899 = vpop.xlane.xlu0 %2898
        %v2900 = vsel %vm949, %v2856, 0.0
        %2901 = vadd.xlane.f32.xlu0 %v2900
        %v2902 = vpop.xlane.xlu0 %2901
        %v2903 = vsel %vm949, %v2857, 0.0
        %2904 = vadd.xlane.f32.xlu0 %v2903
        %v2905 = vpop.xlane.xlu0 %2904
        %v2906 = vrcp.pop 32.0
        %v2907 = vmul.f32 32.0, %v2906
        %v2908 = vsub.f32 1.0, %v2907
        %v2909 = vmul.f32 %v2906, %v2908
        %v2910 = vadd.f32 %v2906, %v2909
        %vm2911 = vweird.f32 %v2906
        %v2912 = vsel %vm2911, %v2906, %v2910
        %v2913 = vmul.f32 %v2860, %v2912
        %v2914 = vmul.f32 %v2863, %v2912
        %v2915 = vmul.f32 %v2866, %v2912
        %v2916 = vmul.f32 %v2869, %v2912
        %v2917 = vmul.f32 %v2872, %v2912
        %v2918 = vmul.f32 %v2875, %v2912
        %v2919 = vmul.f32 %v2878, %v2912
        %v2920 = vmul.f32 %v2881, %v2912
        %v2921 = vmul.f32 %v2884, %v2912
        %v2922 = vmul.f32 %v2887, %v2912
        %v2923 = vmul.f32 %v2890, %v2912
        %v2924 = vmul.f32 %v2893, %v2912
        %v2925 = vmul.f32 %v2896, %v2912
        %v2926 = vmul.f32 %v2899, %v2912
        %v2927 = vmul.f32 %v2902, %v2912
        %v2928 = vmul.f32 %v2905, %v2912
        %v2929 = vsub.f32 %v2842, %v2913
        %v2930 = vsub.f32 %v2843, %v2914
        %v2931 = vsub.f32 %v2844, %v2915
        %v2932 = vsub.f32 %v2845, %v2916
        %v2933 = vsub.f32 %v2846, %v2917
        %v2934 = vsub.f32 %v2847, %v2918
        %v2935 = vsub.f32 %v2848, %v2919
        %v2936 = vsub.f32 %v2849, %v2920
        %v2937 = vsub.f32 %v2850, %v2921
        %v2938 = vsub.f32 %v2851, %v2922
        %v2939 = vsub.f32 %v2852, %v2923
        %v2940 = vsub.f32 %v2853, %v2924
        %v2941 = vsub.f32 %v2854, %v2925
        %v2942 = vsub.f32 %v2855, %v2926
        %v2943 = vsub.f32 %v2856, %v2927
        %v2944 = vsub.f32 %v2857, %v2928
        %v2945 = vmul.f32 %v2929, %v2929
        %v2946 = vmul.f32 %v2930, %v2930
        %v2947 = vmul.f32 %v2931, %v2931
        %v2948 = vmul.f32 %v2932, %v2932
        %v2949 = vmul.f32 %v2933, %v2933
        %v2950 = vmul.f32 %v2934, %v2934
        %v2951 = vmul.f32 %v2935, %v2935
        %v2952 = vmul.f32 %v2936, %v2936
        %v2953 = vmul.f32 %v2937, %v2937
        %v2954 = vmul.f32 %v2938, %v2938
        %v2955 = vmul.f32 %v2939, %v2939
        %v2956 = vmul.f32 %v2940, %v2940
        %v2957 = vmul.f32 %v2941, %v2941
        %v2958 = vmul.f32 %v2942, %v2942
        %v2959 = vmul.f32 %v2943, %v2943
        %v2960 = vmul.f32 %v2944, %v2944
        %v2961 = vsel %vm949, %v2945, 0.0
        %2962 = vadd.xlane.f32.xlu0 %v2961
        %v2963 = vpop.xlane.xlu0 %2962
        %v2964 = vsel %vm949, %v2946, 0.0
        %2965 = vadd.xlane.f32.xlu0 %v2964
        %v2966 = vpop.xlane.xlu0 %2965
        %v2967 = vsel %vm949, %v2947, 0.0
        %2968 = vadd.xlane.f32.xlu0 %v2967
        %v2969 = vpop.xlane.xlu0 %2968
        %v2970 = vsel %vm949, %v2948, 0.0
        %2971 = vadd.xlane.f32.xlu0 %v2970
        %v2972 = vpop.xlane.xlu0 %2971
        %v2973 = vsel %vm949, %v2949, 0.0
        %2974 = vadd.xlane.f32.xlu0 %v2973
        %v2975 = vpop.xlane.xlu0 %2974
        %v2976 = vsel %vm949, %v2950, 0.0
        %2977 = vadd.xlane.f32.xlu0 %v2976
        %v2978 = vpop.xlane.xlu0 %2977
        %v2979 = vsel %vm949, %v2951, 0.0
        %2980 = vadd.xlane.f32.xlu0 %v2979
        %v2981 = vpop.xlane.xlu0 %2980
        %v2982 = vsel %vm949, %v2952, 0.0
        %2983 = vadd.xlane.f32.xlu0 %v2982
        %v2984 = vpop.xlane.xlu0 %2983
        %v2985 = vsel %vm949, %v2953, 0.0
        %2986 = vadd.xlane.f32.xlu0 %v2985
        %v2987 = vpop.xlane.xlu0 %2986
        %v2988 = vsel %vm949, %v2954, 0.0
        %2989 = vadd.xlane.f32.xlu0 %v2988
        %v2990 = vpop.xlane.xlu0 %2989
        %v2991 = vsel %vm949, %v2955, 0.0
        %2992 = vadd.xlane.f32.xlu0 %v2991
        %v2993 = vpop.xlane.xlu0 %2992
        %v2994 = vsel %vm949, %v2956, 0.0
        %2995 = vadd.xlane.f32.xlu0 %v2994
        %v2996 = vpop.xlane.xlu0 %2995
        %v2997 = vsel %vm949, %v2957, 0.0
        %2998 = vadd.xlane.f32.xlu0 %v2997
        %v2999 = vpop.xlane.xlu0 %2998
        %v3000 = vsel %vm949, %v2958, 0.0
        %3001 = vadd.xlane.f32.xlu0 %v3000
        %v3002 = vpop.xlane.xlu0 %3001
        %v3003 = vsel %vm949, %v2959, 0.0
        %3004 = vadd.xlane.f32.xlu0 %v3003
        %v3005 = vpop.xlane.xlu0 %3004
        %v3006 = vsel %vm949, %v2960, 0.0
        %3007 = vadd.xlane.f32.xlu0 %v3006
        %v3008 = vpop.xlane.xlu0 %3007
        %v3009 = vmul.f32 %v2963, %v2912
        %v3010 = vmul.f32 %v2966, %v2912
        %v3011 = vmul.f32 %v2969, %v2912
        %v3012 = vmul.f32 %v2972, %v2912
        %v3013 = vmul.f32 %v2975, %v2912
        %v3014 = vmul.f32 %v2978, %v2912
        %v3015 = vmul.f32 %v2981, %v2912
        %v3016 = vmul.f32 %v2984, %v2912
        %v3017 = vmul.f32 %v2987, %v2912
        %v3018 = vmul.f32 %v2990, %v2912
        %v3019 = vmul.f32 %v2993, %v2912
        %v3020 = vmul.f32 %v2996, %v2912
        %v3021 = vmul.f32 %v2999, %v2912
        %v3022 = vmul.f32 %v3002, %v2912
        %v3023 = vmul.f32 %v3005, %v2912
        %v3024 = vmul.f32 %v3008, %v2912
        %v3025 = vadd.f32 %v3009, 1e-05
        %v3026 = vadd.f32 %v3010, 1e-05
        %v3027 = vadd.f32 %v3011, 1e-05
        %v3028 = vadd.f32 %v3012, 1e-05
        %v3029 = vadd.f32 %v3013, 1e-05
        %v3030 = vadd.f32 %v3014, 1e-05
        %v3031 = vadd.f32 %v3015, 1e-05
        %v3032 = vadd.f32 %v3016, 1e-05
        %v3033 = vadd.f32 %v3017, 1e-05
        %v3034 = vadd.f32 %v3018, 1e-05
        %v3035 = vadd.f32 %v3019, 1e-05
        %v3036 = vadd.f32 %v3020, 1e-05
        %v3037 = vadd.f32 %v3021, 1e-05
        %v3038 = vadd.f32 %v3022, 1e-05
        %v3039 = vadd.f32 %v3023, 1e-05
        %v3040 = vadd.f32 %v3024, 1e-05
        %v3041 = vrsqrt.pop %v3025
        %v3042 = vmul.f32 %v3041, %v3025
        %v3043 = vmul.f32 %v3042, %v3041
        %v3044 = vmul.f32 0.5, %v3043
        %v3045 = vsub.f32 1.5, %v3044
        %v3046 = vmul.f32 %v3041, %v3045
        %vm3047 = vweird.f32 %v3025
        %vm3048 = vweird.f32 %v3041
        %vm3049 = vmor %vm3047, %vm3048
        %v3050 = vsel %vm3049, %v3041, %v3046
        %v3051 = vrsqrt.pop %v3026
        %v3052 = vmul.f32 %v3051, %v3026
        %v3053 = vmul.f32 %v3052, %v3051
        %v3054 = vmul.f32 0.5, %v3053
        %v3055 = vsub.f32 1.5, %v3054
        %v3056 = vmul.f32 %v3051, %v3055
        %vm3057 = vweird.f32 %v3026
        %vm3058 = vweird.f32 %v3051
        %vm3059 = vmor %vm3057, %vm3058
        %v3060 = vsel %vm3059, %v3051, %v3056
        %v3061 = vrsqrt.pop %v3027
        %v3062 = vmul.f32 %v3061, %v3027
        %v3063 = vmul.f32 %v3062, %v3061
        %v3064 = vmul.f32 0.5, %v3063
        %v3065 = vsub.f32 1.5, %v3064
        %v3066 = vmul.f32 %v3061, %v3065
        %vm3067 = vweird.f32 %v3027
        %vm3068 = vweird.f32 %v3061
        %vm3069 = vmor %vm3067, %vm3068
        %v3070 = vsel %vm3069, %v3061, %v3066
        %v3071 = vrsqrt.pop %v3028
        %v3072 = vmul.f32 %v3071, %v3028
        %v3073 = vmul.f32 %v3072, %v3071
        %v3074 = vmul.f32 0.5, %v3073
        %v3075 = vsub.f32 1.5, %v3074
        %v3076 = vmul.f32 %v3071, %v3075
        %vm3077 = vweird.f32 %v3028
        %vm3078 = vweird.f32 %v3071
        %vm3079 = vmor %vm3077, %vm3078
        %v3080 = vsel %vm3079, %v3071, %v3076
        %v3081 = vrsqrt.pop %v3029
        %v3082 = vmul.f32 %v3081, %v3029
        %v3083 = vmul.f32 %v3082, %v3081
        %v3084 = vmul.f32 0.5, %v3083
        %v3085 = vsub.f32 1.5, %v3084
        %v3086 = vmul.f32 %v3081, %v3085
        %vm3087 = vweird.f32 %v3029
        %vm3088 = vweird.f32 %v3081
        %vm3089 = vmor %vm3087, %vm3088
        %v3090 = vsel %vm3089, %v3081, %v3086
        %v3091 = vrsqrt.pop %v3030
        %v3092 = vmul.f32 %v3091, %v3030
        %v3093 = vmul.f32 %v3092, %v3091
        %v3094 = vmul.f32 0.5, %v3093
        %v3095 = vsub.f32 1.5, %v3094
        %v3096 = vmul.f32 %v3091, %v3095
        %vm3097 = vweird.f32 %v3030
        %vm3098 = vweird.f32 %v3091
        %vm3099 = vmor %vm3097, %vm3098
        %v3100 = vsel %vm3099, %v3091, %v3096
        %v3101 = vrsqrt.pop %v3031
        %v3102 = vmul.f32 %v3101, %v3031
        %v3103 = vmul.f32 %v3102, %v3101
        %v3104 = vmul.f32 0.5, %v3103
        %v3105 = vsub.f32 1.5, %v3104
        %v3106 = vmul.f32 %v3101, %v3105
        %vm3107 = vweird.f32 %v3031
        %vm3108 = vweird.f32 %v3101
        %vm3109 = vmor %vm3107, %vm3108
        %v3110 = vsel %vm3109, %v3101, %v3106
        %v3111 = vrsqrt.pop %v3032
        %v3112 = vmul.f32 %v3111, %v3032
        %v3113 = vmul.f32 %v3112, %v3111
        %v3114 = vmul.f32 0.5, %v3113
        %v3115 = vsub.f32 1.5, %v3114
        %v3116 = vmul.f32 %v3111, %v3115
        %vm3117 = vweird.f32 %v3032
        %vm3118 = vweird.f32 %v3111
        %vm3119 = vmor %vm3117, %vm3118
        %v3120 = vsel %vm3119, %v3111, %v3116
        %v3121 = vrsqrt.pop %v3033
        %v3122 = vmul.f32 %v3121, %v3033
        %v3123 = vmul.f32 %v3122, %v3121
        %v3124 = vmul.f32 0.5, %v3123
        %v3125 = vsub.f32 1.5, %v3124
        %v3126 = vmul.f32 %v3121, %v3125
        %vm3127 = vweird.f32 %v3033
        %vm3128 = vweird.f32 %v3121
        %vm3129 = vmor %vm3127, %vm3128
        %v3130 = vsel %vm3129, %v3121, %v3126
        %v3131 = vrsqrt.pop %v3034
        %v3132 = vmul.f32 %v3131, %v3034
        %v3133 = vmul.f32 %v3132, %v3131
        %v3134 = vmul.f32 0.5, %v3133
        %v3135 = vsub.f32 1.5, %v3134
        %v3136 = vmul.f32 %v3131, %v3135
        %vm3137 = vweird.f32 %v3034
        %vm3138 = vweird.f32 %v3131
        %vm3139 = vmor %vm3137, %vm3138
        %v3140 = vsel %vm3139, %v3131, %v3136
        %v3141 = vrsqrt.pop %v3035
        %v3142 = vmul.f32 %v3141, %v3035
        %v3143 = vmul.f32 %v3142, %v3141
        %v3144 = vmul.f32 0.5, %v3143
        %v3145 = vsub.f32 1.5, %v3144
        %v3146 = vmul.f32 %v3141, %v3145
        %vm3147 = vweird.f32 %v3035
        %vm3148 = vweird.f32 %v3141
        %vm3149 = vmor %vm3147, %vm3148
        %v3150 = vsel %vm3149, %v3141, %v3146
        %v3151 = vrsqrt.pop %v3036
        %v3152 = vmul.f32 %v3151, %v3036
        %v3153 = vmul.f32 %v3152, %v3151
        %v3154 = vmul.f32 0.5, %v3153
        %v3155 = vsub.f32 1.5, %v3154
        %v3156 = vmul.f32 %v3151, %v3155
        %vm3157 = vweird.f32 %v3036
        %vm3158 = vweird.f32 %v3151
        %vm3159 = vmor %vm3157, %vm3158
        %v3160 = vsel %vm3159, %v3151, %v3156
        %v3161 = vrsqrt.pop %v3037
        %v3162 = vmul.f32 %v3161, %v3037
        %v3163 = vmul.f32 %v3162, %v3161
        %v3164 = vmul.f32 0.5, %v3163
        %v3165 = vsub.f32 1.5, %v3164
        %v3166 = vmul.f32 %v3161, %v3165
        %vm3167 = vweird.f32 %v3037
        %vm3168 = vweird.f32 %v3161
        %vm3169 = vmor %vm3167, %vm3168
        %v3170 = vsel %vm3169, %v3161, %v3166
        %v3171 = vrsqrt.pop %v3038
        %v3172 = vmul.f32 %v3171, %v3038
        %v3173 = vmul.f32 %v3172, %v3171
        %v3174 = vmul.f32 0.5, %v3173
        %v3175 = vsub.f32 1.5, %v3174
        %v3176 = vmul.f32 %v3171, %v3175
        %vm3177 = vweird.f32 %v3038
        %vm3178 = vweird.f32 %v3171
        %vm3179 = vmor %vm3177, %vm3178
        %v3180 = vsel %vm3179, %v3171, %v3176
        %v3181 = vrsqrt.pop %v3039
        %v3182 = vmul.f32 %v3181, %v3039
        %v3183 = vmul.f32 %v3182, %v3181
        %v3184 = vmul.f32 0.5, %v3183
        %v3185 = vsub.f32 1.5, %v3184
        %v3186 = vmul.f32 %v3181, %v3185
        %vm3187 = vweird.f32 %v3039
        %vm3188 = vweird.f32 %v3181
        %vm3189 = vmor %vm3187, %vm3188
        %v3190 = vsel %vm3189, %v3181, %v3186
        %v3191 = vrsqrt.pop %v3040
        %v3192 = vmul.f32 %v3191, %v3040
        %v3193 = vmul.f32 %v3192, %v3191
        %v3194 = vmul.f32 0.5, %v3193
        %v3195 = vsub.f32 1.5, %v3194
        %v3196 = vmul.f32 %v3191, %v3195
        %vm3197 = vweird.f32 %v3040
        %vm3198 = vweird.f32 %v3191
        %vm3199 = vmor %vm3197, %vm3198
        %v3200 = vsel %vm3199, %v3191, %v3196
        %v3201 = vmul.f32 %v2929, %v3050
        %v3202 = vmul.f32 %v2930, %v3060
        %v3203 = vmul.f32 %v2931, %v3070
        %v3204 = vmul.f32 %v2932, %v3080
        %v3205 = vmul.f32 %v2933, %v3090
        %v3206 = vmul.f32 %v2934, %v3100
        %v3207 = vmul.f32 %v2935, %v3110
        %v3208 = vmul.f32 %v2936, %v3120
        %v3209 = vmul.f32 %v2937, %v3130
        %v3210 = vmul.f32 %v2938, %v3140
        %v3211 = vmul.f32 %v2939, %v3150
        %v3212 = vmul.f32 %v2940, %v3160
        %v3213 = vmul.f32 %v2941, %v3170
        %v3214 = vmul.f32 %v2942, %v3180
        %v3215 = vmul.f32 %v2943, %v3190
        %v3216 = vmul.f32 %v2944, %v3200
        %v3217 = vperm.slane %v917, 0
        %v3218 = vmul.f32 %v3201, %v3217
        %v3219 = vmul.f32 %v3202, %v3217
        %v3220 = vmul.f32 %v3203, %v3217
        %v3221 = vmul.f32 %v3204, %v3217
        %v3222 = vmul.f32 %v3205, %v3217
        %v3223 = vmul.f32 %v3206, %v3217
        %v3224 = vmul.f32 %v3207, %v3217
        %v3225 = vmul.f32 %v3208, %v3217
        %v3226 = vmul.f32 %v3209, %v3217
        %v3227 = vmul.f32 %v3210, %v3217
        %v3228 = vmul.f32 %v3211, %v3217
        %v3229 = vmul.f32 %v3212, %v3217
        %v3230 = vmul.f32 %v3213, %v3217
        %v3231 = vmul.f32 %v3214, %v3217
        %v3232 = vmul.f32 %v3215, %v3217
        %v3233 = vmul.f32 %v3216, %v3217
        %v3234 = vperm.slane %v918, 0
        %v3235 = vadd.f32 %v3218, %v3234
        %v3236 = vadd.f32 %v3219, %v3234
        %v3237 = vadd.f32 %v3220, %v3234
        %v3238 = vadd.f32 %v3221, %v3234
        %v3239 = vadd.f32 %v3222, %v3234
        %v3240 = vadd.f32 %v3223, %v3234
        %v3241 = vadd.f32 %v3224, %v3234
        %v3242 = vadd.f32 %v3225, %v3234
        %v3243 = vadd.f32 %v3226, %v3234
        %v3244 = vadd.f32 %v3227, %v3234
        %v3245 = vadd.f32 %v3228, %v3234
        %v3246 = vadd.f32 %v3229, %v3234
        %v3247 = vadd.f32 %v3230, %v3234
        %v3248 = vadd.f32 %v3231, %v3234
        %v3249 = vadd.f32 %v3232, %v3234
        %v3250 = vadd.f32 %v3233, %v3234
        %v3251 = vpack.c.bf16 %v3236, %v3235
        %v3252 = vpack.c.bf16 %v3238, %v3237
        %v3253 = vpack.c.bf16 %v3240, %v3239
        %v3254 = vpack.c.bf16 %v3242, %v3241
        %v3255 = vpack.c.bf16 %v3244, %v3243
        %v3256 = vpack.c.bf16 %v3246, %v3245
        %v3257 = vpack.c.bf16 %v3248, %v3247
        %v3258 = vpack.c.bf16 %v3250, %v3249
        %s3259 = scalar_lea.vmem %s8, 16
        %v3260 = vld [vmem:[%s3259] sm:$0xf]
        %v3261 = vld [vmem:[%s3259 + $0x4] sm:$0xf]
        %v3262 = vld [vmem:[%s3259 + $0x8] sm:$0xf]
        %v3263 = vld [vmem:[%s3259 + $0xc] sm:$0xf]
        %v3264 = vperm.slane %v919, 0
        %v3269 = vunpack.c.l.b16 %v3260
        %v3270 = vunpack.c.l.b16 %v3261
        %v3271 = vunpack.c.l.b16 %v3262
        %v3272 = vunpack.c.l.b16 %v3263
        %v3273 = vpack.c.b16 %v3270, %v3269
        %v3274 = vpack.c.b16 %v3272, %v3271
        %v3278 = vsel %vm949, %v3251, 0
        %v3281 = vsel %vm949, %v3252, 0
        %v3284 = vsel %vm949, %v3253, 0
        %v3287 = vsel %vm949, %v3254, 0
        %v3290 = vsel %vm949, %v3255, 0
        %v3293 = vsel %vm949, %v3256, 0
        %v3296 = vsel %vm949, %v3257, 0
        %v3299 = vsel %vm949, %v3258, 0
        %3301 = vmatpush.bf16.msra.mxu0 0
        %3302 = vmatpush.bf16.msra.mxu0 0
        %3303 = vmatpush.bf16.msra.mxu0 0
        %3304 = vmatpush.bf16.msra.mxu0 0
        %3305 = vmatpush.bf16.msra.mxu0 0
        %3306 = vmatpush.bf16.msra.mxu0 0
        %3307 = vmatpush.bf16.msra.mxu0 %v3274
        %3308 = vmatpush.bf16.msra.mxu0 %v3273
        %3309 = vmatmul.bf16.gmra.mxu0 %v3278
        %v3310 = vpop.f32.mrf.mxu0
        %v3311 = vadd.f32 %v3264, %v3310
        %v3312 = vpop.f32.mrf.mxu0
        %v3313 = vadd.f32 %v3264, %v3312
        %3314 = vmatmul.bf16.gmra.mxu0 %v3281
        %v3315 = vpop.f32.mrf.mxu0
        %v3316 = vadd.f32 %v3264, %v3315
        %v3317 = vpop.f32.mrf.mxu0
        %v3318 = vadd.f32 %v3264, %v3317
        %3319 = vmatmul.bf16.gmra.mxu0 %v3284
        %v3320 = vpop.f32.mrf.mxu0
        %v3321 = vadd.f32 %v3264, %v3320
        %v3322 = vpop.f32.mrf.mxu0
        %v3323 = vadd.f32 %v3264, %v3322
        %3324 = vmatmul.bf16.gmra.mxu0 %v3287
        %v3325 = vpop.f32.mrf.mxu0
        %v3326 = vadd.f32 %v3264, %v3325
        %v3327 = vpop.f32.mrf.mxu0
        %v3328 = vadd.f32 %v3264, %v3327
        %3329 = vmatmul.bf16.gmra.mxu0 %v3290
        %v3330 = vpop.f32.mrf.mxu0
        %v3331 = vadd.f32 %v3264, %v3330
        %v3332 = vpop.f32.mrf.mxu0
        %v3333 = vadd.f32 %v3264, %v3332
        %3334 = vmatmul.bf16.gmra.mxu0 %v3293
        %v3335 = vpop.f32.mrf.mxu0
        %v3336 = vadd.f32 %v3264, %v3335
        %v3337 = vpop.f32.mrf.mxu0
        %v3338 = vadd.f32 %v3264, %v3337
        %3339 = vmatmul.bf16.gmra.mxu0 %v3296
        %v3340 = vpop.f32.mrf.mxu0
        %v3341 = vadd.f32 %v3264, %v3340
        %v3342 = vpop.f32.mrf.mxu0
        %v3343 = vadd.f32 %v3264, %v3342
        %3344 = vmatmul.bf16.gmra.mxu0 %v3299
        %v3345 = vpop.f32.mrf.mxu0
        %v3346 = vadd.f32 %v3264, %v3345
        %v3347 = vpop.f32.mrf.mxu0
        %v3348 = vadd.f32 %v3264, %v3347
        %3349 = vdwg.mxu0
        %v3350 = vmax.f32 %v3311, 0.0
        %v3351 = vmax.f32 %v3313, 0.0
        %v3352 = vmax.f32 %v3316, 0.0
        %v3353 = vmax.f32 %v3318, 0.0
        %v3354 = vmax.f32 %v3321, 0.0
        %v3355 = vmax.f32 %v3323, 0.0
        %v3356 = vmax.f32 %v3326, 0.0
        %v3357 = vmax.f32 %v3328, 0.0
        %v3358 = vmax.f32 %v3331, 0.0
        %v3359 = vmax.f32 %v3333, 0.0
        %v3360 = vmax.f32 %v3336, 0.0
        %v3361 = vmax.f32 %v3338, 0.0
        %v3362 = vmax.f32 %v3341, 0.0
        %v3363 = vmax.f32 %v3343, 0.0
        %v3364 = vmax.f32 %v3346, 0.0
        %v3365 = vmax.f32 %v3348, 0.0
        %v3366 = vpack.c.bf16 %v3351, %v3350
        %v3367 = vpack.c.bf16 %v3353, %v3352
        %v3368 = vpack.c.bf16 %v3355, %v3354
        %v3369 = vpack.c.bf16 %v3357, %v3356
        %v3370 = vpack.c.bf16 %v3359, %v3358
        %v3371 = vpack.c.bf16 %v3361, %v3360
        %v3372 = vpack.c.bf16 %v3363, %v3362
        %v3373 = vpack.c.bf16 %v3365, %v3364
        %s3374 = scalar_lea.vmem %s8, 32
        %v3375 = vld [vmem:[%s3374] sm:$0xf]
        %v3376 = vld [vmem:[%s3374 + $0x4] sm:$0xf]
        %v3377 = vld [vmem:[%s3374 + $0x8] sm:$0xf]
        %v3378 = vld [vmem:[%s3374 + $0xc] sm:$0xf]
        %v3379 = vperm.slane %v920, 0
        %v3384 = vunpack.c.l.b16 %v3375
        %v3385 = vunpack.c.l.b16 %v3376
        %v3386 = vunpack.c.l.b16 %v3377
        %v3387 = vunpack.c.l.b16 %v3378
        %v3388 = vpack.c.b16 %v3385, %v3384
        %v3389 = vpack.c.b16 %v3387, %v3386
        %v3393 = vsel %vm949, %v3366, 0
        %v3396 = vsel %vm949, %v3367, 0
        %v3399 = vsel %vm949, %v3368, 0
        %v3402 = vsel %vm949, %v3369, 0
        %v3405 = vsel %vm949, %v3370, 0
        %v3408 = vsel %vm949, %v3371, 0
        %v3411 = vsel %vm949, %v3372, 0
        %v3414 = vsel %vm949, %v3373, 0
        %3416 = vmatpush.bf16.msra.mxu0 0
        %3417 = vmatpush.bf16.msra.mxu0 0
        %3418 = vmatpush.bf16.msra.mxu0 0
        %3419 = vmatpush.bf16.msra.mxu0 0
        %3420 = vmatpush.bf16.msra.mxu0 0
        %3421 = vmatpush.bf16.msra.mxu0 0
        %3422 = vmatpush.bf16.msra.mxu0 %v3389
        %3423 = vmatpush.bf16.msra.mxu0 %v3388
        %3424 = vmatmul.bf16.gmra.mxu0 %v3393
        %v3425 = vpop.f32.mrf.mxu0
        %v3426 = vadd.f32 %v3379, %v3425
        %v3427 = vpop.f32.mrf.mxu0
        %v3428 = vadd.f32 %v3379, %v3427
        %3429 = vmatmul.bf16.gmra.mxu0 %v3396
        %v3430 = vpop.f32.mrf.mxu0
        %v3431 = vadd.f32 %v3379, %v3430
        %v3432 = vpop.f32.mrf.mxu0
        %v3433 = vadd.f32 %v3379, %v3432
        %3434 = vmatmul.bf16.gmra.mxu0 %v3399
        %v3435 = vpop.f32.mrf.mxu0
        %v3436 = vadd.f32 %v3379, %v3435
        %v3437 = vpop.f32.mrf.mxu0
        %v3438 = vadd.f32 %v3379, %v3437
        %3439 = vmatmul.bf16.gmra.mxu0 %v3402
        %v3440 = vpop.f32.mrf.mxu0
        %v3441 = vadd.f32 %v3379, %v3440
        %v3442 = vpop.f32.mrf.mxu0
        %v3443 = vadd.f32 %v3379, %v3442
        %3444 = vmatmul.bf16.gmra.mxu0 %v3405
        %v3445 = vpop.f32.mrf.mxu0
        %v3446 = vadd.f32 %v3379, %v3445
        %v3447 = vpop.f32.mrf.mxu0
        %v3448 = vadd.f32 %v3379, %v3447
        %3449 = vmatmul.bf16.gmra.mxu0 %v3408
        %v3450 = vpop.f32.mrf.mxu0
        %v3451 = vadd.f32 %v3379, %v3450
        %v3452 = vpop.f32.mrf.mxu0
        %v3453 = vadd.f32 %v3379, %v3452
        %3454 = vmatmul.bf16.gmra.mxu0 %v3411
        %v3455 = vpop.f32.mrf.mxu0
        %v3456 = vadd.f32 %v3379, %v3455
        %v3457 = vpop.f32.mrf.mxu0
        %v3458 = vadd.f32 %v3379, %v3457
        %3459 = vmatmul.bf16.gmra.mxu0 %v3414
        %v3460 = vpop.f32.mrf.mxu0
        %v3461 = vadd.f32 %v3379, %v3460
        %v3462 = vpop.f32.mrf.mxu0
        %v3463 = vadd.f32 %v3379, %v3462
        %3464 = vdwg.mxu0
        %v3465 = vadd.f32 %v3235, %v3426
        %v3466 = vadd.f32 %v3236, %v3428
        %v3467 = vadd.f32 %v3237, %v3431
        %v3468 = vadd.f32 %v3238, %v3433
        %v3469 = vadd.f32 %v3239, %v3436
        %v3470 = vadd.f32 %v3240, %v3438
        %v3471 = vadd.f32 %v3241, %v3441
        %v3472 = vadd.f32 %v3242, %v3443
        %v3473 = vadd.f32 %v3243, %v3446
        %v3474 = vadd.f32 %v3244, %v3448
        %v3475 = vadd.f32 %v3245, %v3451
        %v3476 = vadd.f32 %v3246, %v3453
        %v3477 = vadd.f32 %v3247, %v3456
        %v3478 = vadd.f32 %v3248, %v3458
        %v3479 = vadd.f32 %v3249, %v3461
        %v3480 = vadd.f32 %v3250, %v3463
        %v3481 = vsel %vm949, %v3465, 0.0
        %3482 = vadd.xlane.f32.xlu0 %v3481
        %v3483 = vpop.xlane.xlu0 %3482
        %v3484 = vsel %vm949, %v3466, 0.0
        %3485 = vadd.xlane.f32.xlu0 %v3484
        %v3486 = vpop.xlane.xlu0 %3485
        %v3487 = vsel %vm949, %v3467, 0.0
        %3488 = vadd.xlane.f32.xlu0 %v3487
        %v3489 = vpop.xlane.xlu0 %3488
        %v3490 = vsel %vm949, %v3468, 0.0
        %3491 = vadd.xlane.f32.xlu0 %v3490
        %v3492 = vpop.xlane.xlu0 %3491
        %v3493 = vsel %vm949, %v3469, 0.0
        %3494 = vadd.xlane.f32.xlu0 %v3493
        %v3495 = vpop.xlane.xlu0 %3494
        %v3496 = vsel %vm949, %v3470, 0.0
        %3497 = vadd.xlane.f32.xlu0 %v3496
        %v3498 = vpop.xlane.xlu0 %3497
        %v3499 = vsel %vm949, %v3471, 0.0
        %3500 = vadd.xlane.f32.xlu0 %v3499
        %v3501 = vpop.xlane.xlu0 %3500
        %v3502 = vsel %vm949, %v3472, 0.0
        %3503 = vadd.xlane.f32.xlu0 %v3502
        %v3504 = vpop.xlane.xlu0 %3503
        %v3505 = vsel %vm949, %v3473, 0.0
        %3506 = vadd.xlane.f32.xlu0 %v3505
        %v3507 = vpop.xlane.xlu0 %3506
        %v3508 = vsel %vm949, %v3474, 0.0
        %3509 = vadd.xlane.f32.xlu0 %v3508
        %v3510 = vpop.xlane.xlu0 %3509
        %v3511 = vsel %vm949, %v3475, 0.0
        %3512 = vadd.xlane.f32.xlu0 %v3511
        %v3513 = vpop.xlane.xlu0 %3512
        %v3514 = vsel %vm949, %v3476, 0.0
        %3515 = vadd.xlane.f32.xlu0 %v3514
        %v3516 = vpop.xlane.xlu0 %3515
        %v3517 = vsel %vm949, %v3477, 0.0
        %3518 = vadd.xlane.f32.xlu0 %v3517
        %v3519 = vpop.xlane.xlu0 %3518
        %v3520 = vsel %vm949, %v3478, 0.0
        %3521 = vadd.xlane.f32.xlu0 %v3520
        %v3522 = vpop.xlane.xlu0 %3521
        %v3523 = vsel %vm949, %v3479, 0.0
        %3524 = vadd.xlane.f32.xlu0 %v3523
        %v3525 = vpop.xlane.xlu0 %3524
        %v3526 = vsel %vm949, %v3480, 0.0
        %3527 = vadd.xlane.f32.xlu0 %v3526
        %v3528 = vpop.xlane.xlu0 %3527
        %v3529 = vmul.f32 %v3483, %v2912
        %v3530 = vmul.f32 %v3486, %v2912
        %v3531 = vmul.f32 %v3489, %v2912
        %v3532 = vmul.f32 %v3492, %v2912
        %v3533 = vmul.f32 %v3495, %v2912
        %v3534 = vmul.f32 %v3498, %v2912
        %v3535 = vmul.f32 %v3501, %v2912
        %v3536 = vmul.f32 %v3504, %v2912
        %v3537 = vmul.f32 %v3507, %v2912
        %v3538 = vmul.f32 %v3510, %v2912
        %v3539 = vmul.f32 %v3513, %v2912
        %v3540 = vmul.f32 %v3516, %v2912
        %v3541 = vmul.f32 %v3519, %v2912
        %v3542 = vmul.f32 %v3522, %v2912
        %v3543 = vmul.f32 %v3525, %v2912
        %v3544 = vmul.f32 %v3528, %v2912
        %v3545 = vsub.f32 %v3465, %v3529
        %v3546 = vsub.f32 %v3466, %v3530
        %v3547 = vsub.f32 %v3467, %v3531
        %v3548 = vsub.f32 %v3468, %v3532
        %v3549 = vsub.f32 %v3469, %v3533
        %v3550 = vsub.f32 %v3470, %v3534
        %v3551 = vsub.f32 %v3471, %v3535
        %v3552 = vsub.f32 %v3472, %v3536
        %v3553 = vsub.f32 %v3473, %v3537
        %v3554 = vsub.f32 %v3474, %v3538
        %v3555 = vsub.f32 %v3475, %v3539
        %v3556 = vsub.f32 %v3476, %v3540
        %v3557 = vsub.f32 %v3477, %v3541
        %v3558 = vsub.f32 %v3478, %v3542
        %v3559 = vsub.f32 %v3479, %v3543
        %v3560 = vsub.f32 %v3480, %v3544
        %v3561 = vmul.f32 %v3545, %v3545
        %v3562 = vmul.f32 %v3546, %v3546
        %v3563 = vmul.f32 %v3547, %v3547
        %v3564 = vmul.f32 %v3548, %v3548
        %v3565 = vmul.f32 %v3549, %v3549
        %v3566 = vmul.f32 %v3550, %v3550
        %v3567 = vmul.f32 %v3551, %v3551
        %v3568 = vmul.f32 %v3552, %v3552
        %v3569 = vmul.f32 %v3553, %v3553
        %v3570 = vmul.f32 %v3554, %v3554
        %v3571 = vmul.f32 %v3555, %v3555
        %v3572 = vmul.f32 %v3556, %v3556
        %v3573 = vmul.f32 %v3557, %v3557
        %v3574 = vmul.f32 %v3558, %v3558
        %v3575 = vmul.f32 %v3559, %v3559
        %v3576 = vmul.f32 %v3560, %v3560
        %v3577 = vsel %vm949, %v3561, 0.0
        %3578 = vadd.xlane.f32.xlu0 %v3577
        %v3579 = vpop.xlane.xlu0 %3578
        %v3580 = vsel %vm949, %v3562, 0.0
        %3581 = vadd.xlane.f32.xlu0 %v3580
        %v3582 = vpop.xlane.xlu0 %3581
        %v3583 = vsel %vm949, %v3563, 0.0
        %3584 = vadd.xlane.f32.xlu0 %v3583
        %v3585 = vpop.xlane.xlu0 %3584
        %v3586 = vsel %vm949, %v3564, 0.0
        %3587 = vadd.xlane.f32.xlu0 %v3586
        %v3588 = vpop.xlane.xlu0 %3587
        %v3589 = vsel %vm949, %v3565, 0.0
        %3590 = vadd.xlane.f32.xlu0 %v3589
        %v3591 = vpop.xlane.xlu0 %3590
        %v3592 = vsel %vm949, %v3566, 0.0
        %3593 = vadd.xlane.f32.xlu0 %v3592
        %v3594 = vpop.xlane.xlu0 %3593
        %v3595 = vsel %vm949, %v3567, 0.0
        %3596 = vadd.xlane.f32.xlu0 %v3595
        %v3597 = vpop.xlane.xlu0 %3596
        %v3598 = vsel %vm949, %v3568, 0.0
        %3599 = vadd.xlane.f32.xlu0 %v3598
        %v3600 = vpop.xlane.xlu0 %3599
        %v3601 = vsel %vm949, %v3569, 0.0
        %3602 = vadd.xlane.f32.xlu0 %v3601
        %v3603 = vpop.xlane.xlu0 %3602
        %v3604 = vsel %vm949, %v3570, 0.0
        %3605 = vadd.xlane.f32.xlu0 %v3604
        %v3606 = vpop.xlane.xlu0 %3605
        %v3607 = vsel %vm949, %v3571, 0.0
        %3608 = vadd.xlane.f32.xlu0 %v3607
        %v3609 = vpop.xlane.xlu0 %3608
        %v3610 = vsel %vm949, %v3572, 0.0
        %3611 = vadd.xlane.f32.xlu0 %v3610
        %v3612 = vpop.xlane.xlu0 %3611
        %v3613 = vsel %vm949, %v3573, 0.0
        %3614 = vadd.xlane.f32.xlu0 %v3613
        %v3615 = vpop.xlane.xlu0 %3614
        %v3616 = vsel %vm949, %v3574, 0.0
        %3617 = vadd.xlane.f32.xlu0 %v3616
        %v3618 = vpop.xlane.xlu0 %3617
        %v3619 = vsel %vm949, %v3575, 0.0
        %3620 = vadd.xlane.f32.xlu0 %v3619
        %v3621 = vpop.xlane.xlu0 %3620
        %v3622 = vsel %vm949, %v3576, 0.0
        %3623 = vadd.xlane.f32.xlu0 %v3622
        %v3624 = vpop.xlane.xlu0 %3623
        %v3625 = vmul.f32 %v3579, %v2912
        %v3626 = vmul.f32 %v3582, %v2912
        %v3627 = vmul.f32 %v3585, %v2912
        %v3628 = vmul.f32 %v3588, %v2912
        %v3629 = vmul.f32 %v3591, %v2912
        %v3630 = vmul.f32 %v3594, %v2912
        %v3631 = vmul.f32 %v3597, %v2912
        %v3632 = vmul.f32 %v3600, %v2912
        %v3633 = vmul.f32 %v3603, %v2912
        %v3634 = vmul.f32 %v3606, %v2912
        %v3635 = vmul.f32 %v3609, %v2912
        %v3636 = vmul.f32 %v3612, %v2912
        %v3637 = vmul.f32 %v3615, %v2912
        %v3638 = vmul.f32 %v3618, %v2912
        %v3639 = vmul.f32 %v3621, %v2912
        %v3640 = vmul.f32 %v3624, %v2912
        %v3641 = vadd.f32 %v3625, 1e-05
        %v3642 = vadd.f32 %v3626, 1e-05
        %v3643 = vadd.f32 %v3627, 1e-05
        %v3644 = vadd.f32 %v3628, 1e-05
        %v3645 = vadd.f32 %v3629, 1e-05
        %v3646 = vadd.f32 %v3630, 1e-05
        %v3647 = vadd.f32 %v3631, 1e-05
        %v3648 = vadd.f32 %v3632, 1e-05
        %v3649 = vadd.f32 %v3633, 1e-05
        %v3650 = vadd.f32 %v3634, 1e-05
        %v3651 = vadd.f32 %v3635, 1e-05
        %v3652 = vadd.f32 %v3636, 1e-05
        %v3653 = vadd.f32 %v3637, 1e-05
        %v3654 = vadd.f32 %v3638, 1e-05
        %v3655 = vadd.f32 %v3639, 1e-05
        %v3656 = vadd.f32 %v3640, 1e-05
        %v3657 = vrsqrt.pop %v3641
        %v3658 = vmul.f32 %v3657, %v3641
        %v3659 = vmul.f32 %v3658, %v3657
        %v3660 = vmul.f32 0.5, %v3659
        %v3661 = vsub.f32 1.5, %v3660
        %v3662 = vmul.f32 %v3657, %v3661
        %vm3663 = vweird.f32 %v3641
        %vm3664 = vweird.f32 %v3657
        %vm3665 = vmor %vm3663, %vm3664
        %v3666 = vsel %vm3665, %v3657, %v3662
        %v3667 = vrsqrt.pop %v3642
        %v3668 = vmul.f32 %v3667, %v3642
        %v3669 = vmul.f32 %v3668, %v3667
        %v3670 = vmul.f32 0.5, %v3669
        %v3671 = vsub.f32 1.5, %v3670
        %v3672 = vmul.f32 %v3667, %v3671
        %vm3673 = vweird.f32 %v3642
        %vm3674 = vweird.f32 %v3667
        %vm3675 = vmor %vm3673, %vm3674
        %v3676 = vsel %vm3675, %v3667, %v3672
        %v3677 = vrsqrt.pop %v3643
        %v3678 = vmul.f32 %v3677, %v3643
        %v3679 = vmul.f32 %v3678, %v3677
        %v3680 = vmul.f32 0.5, %v3679
        %v3681 = vsub.f32 1.5, %v3680
        %v3682 = vmul.f32 %v3677, %v3681
        %vm3683 = vweird.f32 %v3643
        %vm3684 = vweird.f32 %v3677
        %vm3685 = vmor %vm3683, %vm3684
        %v3686 = vsel %vm3685, %v3677, %v3682
        %v3687 = vrsqrt.pop %v3644
        %v3688 = vmul.f32 %v3687, %v3644
        %v3689 = vmul.f32 %v3688, %v3687
        %v3690 = vmul.f32 0.5, %v3689
        %v3691 = vsub.f32 1.5, %v3690
        %v3692 = vmul.f32 %v3687, %v3691
        %vm3693 = vweird.f32 %v3644
        %vm3694 = vweird.f32 %v3687
        %vm3695 = vmor %vm3693, %vm3694
        %v3696 = vsel %vm3695, %v3687, %v3692
        %v3697 = vrsqrt.pop %v3645
        %v3698 = vmul.f32 %v3697, %v3645
        %v3699 = vmul.f32 %v3698, %v3697
        %v3700 = vmul.f32 0.5, %v3699
        %v3701 = vsub.f32 1.5, %v3700
        %v3702 = vmul.f32 %v3697, %v3701
        %vm3703 = vweird.f32 %v3645
        %vm3704 = vweird.f32 %v3697
        %vm3705 = vmor %vm3703, %vm3704
        %v3706 = vsel %vm3705, %v3697, %v3702
        %v3707 = vrsqrt.pop %v3646
        %v3708 = vmul.f32 %v3707, %v3646
        %v3709 = vmul.f32 %v3708, %v3707
        %v3710 = vmul.f32 0.5, %v3709
        %v3711 = vsub.f32 1.5, %v3710
        %v3712 = vmul.f32 %v3707, %v3711
        %vm3713 = vweird.f32 %v3646
        %vm3714 = vweird.f32 %v3707
        %vm3715 = vmor %vm3713, %vm3714
        %v3716 = vsel %vm3715, %v3707, %v3712
        %v3717 = vrsqrt.pop %v3647
        %v3718 = vmul.f32 %v3717, %v3647
        %v3719 = vmul.f32 %v3718, %v3717
        %v3720 = vmul.f32 0.5, %v3719
        %v3721 = vsub.f32 1.5, %v3720
        %v3722 = vmul.f32 %v3717, %v3721
        %vm3723 = vweird.f32 %v3647
        %vm3724 = vweird.f32 %v3717
        %vm3725 = vmor %vm3723, %vm3724
        %v3726 = vsel %vm3725, %v3717, %v3722
        %v3727 = vrsqrt.pop %v3648
        %v3728 = vmul.f32 %v3727, %v3648
        %v3729 = vmul.f32 %v3728, %v3727
        %v3730 = vmul.f32 0.5, %v3729
        %v3731 = vsub.f32 1.5, %v3730
        %v3732 = vmul.f32 %v3727, %v3731
        %vm3733 = vweird.f32 %v3648
        %vm3734 = vweird.f32 %v3727
        %vm3735 = vmor %vm3733, %vm3734
        %v3736 = vsel %vm3735, %v3727, %v3732
        %v3737 = vrsqrt.pop %v3649
        %v3738 = vmul.f32 %v3737, %v3649
        %v3739 = vmul.f32 %v3738, %v3737
        %v3740 = vmul.f32 0.5, %v3739
        %v3741 = vsub.f32 1.5, %v3740
        %v3742 = vmul.f32 %v3737, %v3741
        %vm3743 = vweird.f32 %v3649
        %vm3744 = vweird.f32 %v3737
        %vm3745 = vmor %vm3743, %vm3744
        %v3746 = vsel %vm3745, %v3737, %v3742
        %v3747 = vrsqrt.pop %v3650
        %v3748 = vmul.f32 %v3747, %v3650
        %v3749 = vmul.f32 %v3748, %v3747
        %v3750 = vmul.f32 0.5, %v3749
        %v3751 = vsub.f32 1.5, %v3750
        %v3752 = vmul.f32 %v3747, %v3751
        %vm3753 = vweird.f32 %v3650
        %vm3754 = vweird.f32 %v3747
        %vm3755 = vmor %vm3753, %vm3754
        %v3756 = vsel %vm3755, %v3747, %v3752
        %v3757 = vrsqrt.pop %v3651
        %v3758 = vmul.f32 %v3757, %v3651
        %v3759 = vmul.f32 %v3758, %v3757
        %v3760 = vmul.f32 0.5, %v3759
        %v3761 = vsub.f32 1.5, %v3760
        %v3762 = vmul.f32 %v3757, %v3761
        %vm3763 = vweird.f32 %v3651
        %vm3764 = vweird.f32 %v3757
        %vm3765 = vmor %vm3763, %vm3764
        %v3766 = vsel %vm3765, %v3757, %v3762
        %v3767 = vrsqrt.pop %v3652
        %v3768 = vmul.f32 %v3767, %v3652
        %v3769 = vmul.f32 %v3768, %v3767
        %v3770 = vmul.f32 0.5, %v3769
        %v3771 = vsub.f32 1.5, %v3770
        %v3772 = vmul.f32 %v3767, %v3771
        %vm3773 = vweird.f32 %v3652
        %vm3774 = vweird.f32 %v3767
        %vm3775 = vmor %vm3773, %vm3774
        %v3776 = vsel %vm3775, %v3767, %v3772
        %v3777 = vrsqrt.pop %v3653
        %v3778 = vmul.f32 %v3777, %v3653
        %v3779 = vmul.f32 %v3778, %v3777
        %v3780 = vmul.f32 0.5, %v3779
        %v3781 = vsub.f32 1.5, %v3780
        %v3782 = vmul.f32 %v3777, %v3781
        %vm3783 = vweird.f32 %v3653
        %vm3784 = vweird.f32 %v3777
        %vm3785 = vmor %vm3783, %vm3784
        %v3786 = vsel %vm3785, %v3777, %v3782
        %v3787 = vrsqrt.pop %v3654
        %v3788 = vmul.f32 %v3787, %v3654
        %v3789 = vmul.f32 %v3788, %v3787
        %v3790 = vmul.f32 0.5, %v3789
        %v3791 = vsub.f32 1.5, %v3790
        %v3792 = vmul.f32 %v3787, %v3791
        %vm3793 = vweird.f32 %v3654
        %vm3794 = vweird.f32 %v3787
        %vm3795 = vmor %vm3793, %vm3794
        %v3796 = vsel %vm3795, %v3787, %v3792
        %v3797 = vrsqrt.pop %v3655
        %v3798 = vmul.f32 %v3797, %v3655
        %v3799 = vmul.f32 %v3798, %v3797
        %v3800 = vmul.f32 0.5, %v3799
        %v3801 = vsub.f32 1.5, %v3800
        %v3802 = vmul.f32 %v3797, %v3801
        %vm3803 = vweird.f32 %v3655
        %vm3804 = vweird.f32 %v3797
        %vm3805 = vmor %vm3803, %vm3804
        %v3806 = vsel %vm3805, %v3797, %v3802
        %v3807 = vrsqrt.pop %v3656
        %v3808 = vmul.f32 %v3807, %v3656
        %v3809 = vmul.f32 %v3808, %v3807
        %v3810 = vmul.f32 0.5, %v3809
        %v3811 = vsub.f32 1.5, %v3810
        %v3812 = vmul.f32 %v3807, %v3811
        %vm3813 = vweird.f32 %v3656
        %vm3814 = vweird.f32 %v3807
        %vm3815 = vmor %vm3813, %vm3814
        %v3816 = vsel %vm3815, %v3807, %v3812
        %v3817 = vmul.f32 %v3545, %v3666
        %v3818 = vmul.f32 %v3546, %v3676
        %v3819 = vmul.f32 %v3547, %v3686
        %v3820 = vmul.f32 %v3548, %v3696
        %v3821 = vmul.f32 %v3549, %v3706
        %v3822 = vmul.f32 %v3550, %v3716
        %v3823 = vmul.f32 %v3551, %v3726
        %v3824 = vmul.f32 %v3552, %v3736
        %v3825 = vmul.f32 %v3553, %v3746
        %v3826 = vmul.f32 %v3554, %v3756
        %v3827 = vmul.f32 %v3555, %v3766
        %v3828 = vmul.f32 %v3556, %v3776
        %v3829 = vmul.f32 %v3557, %v3786
        %v3830 = vmul.f32 %v3558, %v3796
        %v3831 = vmul.f32 %v3559, %v3806
        %v3832 = vmul.f32 %v3560, %v3816
        %v3833 = vperm.slane %v921, 0
        %v3834 = vmul.f32 %v3817, %v3833
        %v3835 = vmul.f32 %v3818, %v3833
        %v3836 = vmul.f32 %v3819, %v3833
        %v3837 = vmul.f32 %v3820, %v3833
        %v3838 = vmul.f32 %v3821, %v3833
        %v3839 = vmul.f32 %v3822, %v3833
        %v3840 = vmul.f32 %v3823, %v3833
        %v3841 = vmul.f32 %v3824, %v3833
        %v3842 = vmul.f32 %v3825, %v3833
        %v3843 = vmul.f32 %v3826, %v3833
        %v3844 = vmul.f32 %v3827, %v3833
        %v3845 = vmul.f32 %v3828, %v3833
        %v3846 = vmul.f32 %v3829, %v3833
        %v3847 = vmul.f32 %v3830, %v3833
        %v3848 = vmul.f32 %v3831, %v3833
        %v3849 = vmul.f32 %v3832, %v3833
        %v3850 = vperm.slane %v922, 0
        %v3851 = vadd.f32 %v3834, %v3850
        %v3852 = vadd.f32 %v3835, %v3850
        %v3853 = vadd.f32 %v3836, %v3850
        %v3854 = vadd.f32 %v3837, %v3850
        %v3855 = vadd.f32 %v3838, %v3850
        %v3856 = vadd.f32 %v3839, %v3850
        %v3857 = vadd.f32 %v3840, %v3850
        %v3858 = vadd.f32 %v3841, %v3850
        %v3859 = vadd.f32 %v3842, %v3850
        %v3860 = vadd.f32 %v3843, %v3850
        %v3861 = vadd.f32 %v3844, %v3850
        %v3862 = vadd.f32 %v3845, %v3850
        %v3863 = vadd.f32 %v3846, %v3850
        %v3864 = vadd.f32 %v3847, %v3850
        %v3865 = vadd.f32 %v3848, %v3850
        %v3866 = vadd.f32 %v3849, %v3850
        %v3867 = vld [vmem:[%s10 + $0x7] sm:$0x1]
        %v3868 = vld [vmem:[%s10 + $0x8] sm:$0x1]
        %v3869 = vld [vmem:[%s10 + $0x9] sm:$0x1]
        %v3870 = vld [vmem:[%s10 + $0xa] sm:$0x1]
        %v3871 = vld [vmem:[%s10 + $0xb] sm:$0x1]
        %v3872 = vld [vmem:[%s10 + $0xc] sm:$0x1]
        %v3873 = vld [vmem:[%s10 + $0xd] sm:$0x1]
        %v3874 = vpack.c.bf16 %v3852, %v3851
        %v3875 = vpack.c.bf16 %v3854, %v3853
        %v3876 = vpack.c.bf16 %v3856, %v3855
        %v3877 = vpack.c.bf16 %v3858, %v3857
        %v3878 = vpack.c.bf16 %v3860, %v3859
        %v3879 = vpack.c.bf16 %v3862, %v3861
        %v3880 = vpack.c.bf16 %v3864, %v3863
        %v3881 = vpack.c.bf16 %v3866, %v3865
        %s3882 = scalar_lea.vmem %s7, 16
        %v3883 = vld [vmem:[%s3882] sm:$0xf]
        %v3884 = vld [vmem:[%s3882 + $0x4] sm:$0xf]
        %v3885 = vld [vmem:[%s3882 + $0x8] sm:$0xf]
        %v3886 = vld [vmem:[%s3882 + $0xc] sm:$0xf]
        %v3887 = vld [vmem:[%s9 + $0x1] sm:$0x1]
        %v3888 = vperm.slane %v3887, 0
        %v3893 = vunpack.c.l.b16 %v3883
        %v3894 = vunpack.c.l.b16 %v3884
        %v3895 = vunpack.c.l.b16 %v3885
        %v3896 = vunpack.c.l.b16 %v3886
        %v3897 = vpack.c.b16 %v3894, %v3893
        %v3898 = vpack.c.b16 %v3896, %v3895
        %v3902 = vsel %vm949, %v3874, 0
        %v3905 = vsel %vm949, %v3875, 0
        %v3908 = vsel %vm949, %v3876, 0
        %v3911 = vsel %vm949, %v3877, 0
        %v3914 = vsel %vm949, %v3878, 0
        %v3917 = vsel %vm949, %v3879, 0
        %v3920 = vsel %vm949, %v3880, 0
        %v3923 = vsel %vm949, %v3881, 0
        %3925 = vmatpush.bf16.msra.mxu0 0
        %3926 = vmatpush.bf16.msra.mxu0 0
        %3927 = vmatpush.bf16.msra.mxu0 0
        %3928 = vmatpush.bf16.msra.mxu0 0
        %3929 = vmatpush.bf16.msra.mxu0 0
        %3930 = vmatpush.bf16.msra.mxu0 0
        %3931 = vmatpush.bf16.msra.mxu0 %v3898
        %3932 = vmatpush.bf16.msra.mxu0 %v3897
        %3933 = vmatmul.bf16.gmra.mxu0 %v3902
        %v3934 = vpop.f32.mrf.mxu0
        %v3935 = vadd.f32 %v3888, %v3934
        %v3936 = vpop.f32.mrf.mxu0
        %v3937 = vadd.f32 %v3888, %v3936
        %3938 = vmatmul.bf16.gmra.mxu0 %v3905
        %v3939 = vpop.f32.mrf.mxu0
        %v3940 = vadd.f32 %v3888, %v3939
        %v3941 = vpop.f32.mrf.mxu0
        %v3942 = vadd.f32 %v3888, %v3941
        %3943 = vmatmul.bf16.gmra.mxu0 %v3908
        %v3944 = vpop.f32.mrf.mxu0
        %v3945 = vadd.f32 %v3888, %v3944
        %v3946 = vpop.f32.mrf.mxu0
        %v3947 = vadd.f32 %v3888, %v3946
        %3948 = vmatmul.bf16.gmra.mxu0 %v3911
        %v3949 = vpop.f32.mrf.mxu0
        %v3950 = vadd.f32 %v3888, %v3949
        %v3951 = vpop.f32.mrf.mxu0
        %v3952 = vadd.f32 %v3888, %v3951
        %3953 = vmatmul.bf16.gmra.mxu0 %v3914
        %v3954 = vpop.f32.mrf.mxu0
        %v3955 = vadd.f32 %v3888, %v3954
        %v3956 = vpop.f32.mrf.mxu0
        %v3957 = vadd.f32 %v3888, %v3956
        %3958 = vmatmul.bf16.gmra.mxu0 %v3917
        %v3959 = vpop.f32.mrf.mxu0
        %v3960 = vadd.f32 %v3888, %v3959
        %v3961 = vpop.f32.mrf.mxu0
        %v3962 = vadd.f32 %v3888, %v3961
        %3963 = vmatmul.bf16.gmra.mxu0 %v3920
        %v3964 = vpop.f32.mrf.mxu0
        %v3965 = vadd.f32 %v3888, %v3964
        %v3966 = vpop.f32.mrf.mxu0
        %v3967 = vadd.f32 %v3888, %v3966
        %3968 = vmatmul.bf16.gmra.mxu0 %v3923
        %v3969 = vpop.f32.mrf.mxu0
        %v3970 = vadd.f32 %v3888, %v3969
        %v3971 = vpop.f32.mrf.mxu0
        %v3972 = vadd.f32 %v3888, %v3971
        %3973 = vdwg.mxu0
        %v3974 = vpack.c.bf16 %v3937, %v3935
        %v3975 = vpack.c.bf16 %v3942, %v3940
        %v3976 = vpack.c.bf16 %v3947, %v3945
        %v3977 = vpack.c.bf16 %v3952, %v3950
        %v3978 = vpack.c.bf16 %v3957, %v3955
        %v3979 = vpack.c.bf16 %v3962, %v3960
        %v3980 = vpack.c.bf16 %v3967, %v3965
        %v3981 = vpack.c.bf16 %v3972, %v3970
        %v3982 = vpack.c.bf16 %v3935, %v3935
        %v3983 = vpack.c.bf16 %v3937, %v3937
        %v3984 = vpack.c.bf16 %v3940, %v3940
        %v3985 = vpack.c.bf16 %v3942, %v3942
        %v3986 = vpack.c.bf16 %v3945, %v3945
        %v3987 = vpack.c.bf16 %v3947, %v3947
        %v3988 = vpack.c.bf16 %v3950, %v3950
        %v3989 = vpack.c.bf16 %v3952, %v3952
        %v3990 = vpack.c.bf16 %v3955, %v3955
        %v3991 = vpack.c.bf16 %v3957, %v3957
        %v3992 = vpack.c.bf16 %v3960, %v3960
        %v3993 = vpack.c.bf16 %v3962, %v3962
        %v3994 = vpack.c.bf16 %v3965, %v3965
        %v3995 = vpack.c.bf16 %v3967, %v3967
        %v3996 = vpack.c.bf16 %v3970, %v3970
        %v3997 = vpack.c.bf16 %v3972, %v3972
        %v3998 = vunpack.c.l.bf16 %v3982
        %v3999 = vunpack.c.l.bf16 %v3983
        %v4000 = vunpack.c.l.bf16 %v3984
        %v4001 = vunpack.c.l.bf16 %v3985
        %v4002 = vunpack.c.l.bf16 %v3986
        %v4003 = vunpack.c.l.bf16 %v3987
        %v4004 = vunpack.c.l.bf16 %v3988
        %v4005 = vunpack.c.l.bf16 %v3989
        %v4006 = vunpack.c.l.bf16 %v3990
        %v4007 = vunpack.c.l.bf16 %v3991
        %v4008 = vunpack.c.l.bf16 %v3992
        %v4009 = vunpack.c.l.bf16 %v3993
        %v4010 = vunpack.c.l.bf16 %v3994
        %v4011 = vunpack.c.l.bf16 %v3995
        %v4012 = vunpack.c.l.bf16 %v3996
        %v4013 = vunpack.c.l.bf16 %v3997
        %v4014 = vmul.f32 %v3998, %v1192
        %v4015 = vmul.f32 %v3999, %v1194
        %v4016 = vmul.f32 %v4000, %v1196
        %v4017 = vmul.f32 %v4001, %v1198
        %v4018 = vmul.f32 %v4002, %v1200
        %v4019 = vmul.f32 %v4003, %v1202
        %v4020 = vmul.f32 %v4004, %v1204
        %v4021 = vmul.f32 %v4005, %v1206
        %v4022 = vmul.f32 %v4006, %v1208
        %v4023 = vmul.f32 %v4007, %v1210
        %v4024 = vmul.f32 %v4008, %v1212
        %v4025 = vmul.f32 %v4009, %v1214
        %v4026 = vmul.f32 %v4010, %v1216
        %v4027 = vmul.f32 %v4011, %v1218
        %v4028 = vmul.f32 %v4012, %v1220
        %v4029 = vmul.f32 %v4013, %v1222
        %v4030 = vmul.f32 %v3998, %v1224
        %v4031 = vmul.f32 %v3999, %v1226
        %v4032 = vmul.f32 %v4000, %v1228
        %v4033 = vmul.f32 %v4001, %v1230
        %v4034 = vmul.f32 %v4002, %v1232
        %v4035 = vmul.f32 %v4003, %v1234
        %v4036 = vmul.f32 %v4004, %v1236
        %v4037 = vmul.f32 %v4005, %v1238
        %v4038 = vmul.f32 %v4006, %v1240
        %v4039 = vmul.f32 %v4007, %v1242
        %v4040 = vmul.f32 %v4008, %v1244
        %v4041 = vmul.f32 %v4009, %v1246
        %v4042 = vmul.f32 %v4010, %v1248
        %v4043 = vmul.f32 %v4011, %v1250
        %v4044 = vmul.f32 %v4012, %v1252
        %v4045 = vmul.f32 %v4013, %v1254
        %v4046 = vmul.f32 %v3998, %v1256
        %v4047 = vmul.f32 %v3999, %v1258
        %v4048 = vmul.f32 %v4000, %v1260
        %v4049 = vmul.f32 %v4001, %v1262
        %v4050 = vmul.f32 %v4002, %v1264
        %v4051 = vmul.f32 %v4003, %v1266
        %v4052 = vmul.f32 %v4004, %v1268
        %v4053 = vmul.f32 %v4005, %v1270
        %v4054 = vmul.f32 %v4006, %v1272
        %v4055 = vmul.f32 %v4007, %v1274
        %v4056 = vmul.f32 %v4008, %v1276
        %v4057 = vmul.f32 %v4009, %v1278
        %v4058 = vmul.f32 %v4010, %v1280
        %v4059 = vmul.f32 %v4011, %v1282
        %v4060 = vmul.f32 %v4012, %v1284
        %v4061 = vmul.f32 %v4013, %v1286
        %v4062 = vmul.f32 %v3998, %v1288
        %v4063 = vmul.f32 %v3999, %v1290
        %v4064 = vmul.f32 %v4000, %v1292
        %v4065 = vmul.f32 %v4001, %v1294
        %v4066 = vmul.f32 %v4002, %v1296
        %v4067 = vmul.f32 %v4003, %v1298
        %v4068 = vmul.f32 %v4004, %v1300
        %v4069 = vmul.f32 %v4005, %v1302
        %v4070 = vmul.f32 %v4006, %v1304
        %v4071 = vmul.f32 %v4007, %v1306
        %v4072 = vmul.f32 %v4008, %v1308
        %v4073 = vmul.f32 %v4009, %v1310
        %v4074 = vmul.f32 %v4010, %v1312
        %v4075 = vmul.f32 %v4011, %v1314
        %v4076 = vmul.f32 %v4012, %v1316
        %v4077 = vmul.f32 %v4013, %v1318
        %v4078 = vpack.c.bf16 %v4015, %v4014
        %v4079 = vpack.c.bf16 %v4017, %v4016
        %v4080 = vpack.c.bf16 %v4019, %v4018
        %v4081 = vpack.c.bf16 %v4021, %v4020
        %v4082 = vpack.c.bf16 %v4023, %v4022
        %v4083 = vpack.c.bf16 %v4025, %v4024
        %v4084 = vpack.c.bf16 %v4027, %v4026
        %v4085 = vpack.c.bf16 %v4029, %v4028
        %v4086 = vpack.c.bf16 %v4031, %v4030
        %v4087 = vpack.c.bf16 %v4033, %v4032
        %v4088 = vpack.c.bf16 %v4035, %v4034
        %v4089 = vpack.c.bf16 %v4037, %v4036
        %v4090 = vpack.c.bf16 %v4039, %v4038
        %v4091 = vpack.c.bf16 %v4041, %v4040
        %v4092 = vpack.c.bf16 %v4043, %v4042
        %v4093 = vpack.c.bf16 %v4045, %v4044
        %v4094 = vpack.c.bf16 %v4047, %v4046
        %v4095 = vpack.c.bf16 %v4049, %v4048
        %v4096 = vpack.c.bf16 %v4051, %v4050
        %v4097 = vpack.c.bf16 %v4053, %v4052
        %v4098 = vpack.c.bf16 %v4055, %v4054
        %v4099 = vpack.c.bf16 %v4057, %v4056
        %v4100 = vpack.c.bf16 %v4059, %v4058
        %v4101 = vpack.c.bf16 %v4061, %v4060
        %v4102 = vpack.c.bf16 %v4063, %v4062
        %v4103 = vpack.c.bf16 %v4065, %v4064
        %v4104 = vpack.c.bf16 %v4067, %v4066
        %v4105 = vpack.c.bf16 %v4069, %v4068
        %v4106 = vpack.c.bf16 %v4071, %v4070
        %v4107 = vpack.c.bf16 %v4073, %v4072
        %v4108 = vpack.c.bf16 %v4075, %v4074
        %v4109 = vpack.c.bf16 %v4077, %v4076
        %v4126 = vunpack.c.l.b16 %v3982
        %v4127 = vunpack.c.l.b16 %v3983
        %v4128 = vunpack.c.l.b16 %v3984
        %v4129 = vunpack.c.l.b16 %v3985
        %v4130 = vunpack.c.l.b16 %v3986
        %v4131 = vunpack.c.l.b16 %v3987
        %v4132 = vunpack.c.l.b16 %v3988
        %v4133 = vunpack.c.l.b16 %v3989
        %v4134 = vunpack.c.l.b16 %v3990
        %v4135 = vunpack.c.l.b16 %v3991
        %v4136 = vunpack.c.l.b16 %v3992
        %v4137 = vunpack.c.l.b16 %v3993
        %v4138 = vunpack.c.l.b16 %v3994
        %v4139 = vunpack.c.l.b16 %v3995
        %v4140 = vunpack.c.l.b16 %v3996
        %v4141 = vunpack.c.l.b16 %v3997
        %v4142 = vpack.c.b16 %v4127, %v4126
        %v4143 = vpack.c.b16 %v4129, %v4128
        %v4144 = vpack.c.b16 %v4131, %v4130
        %v4145 = vpack.c.b16 %v4133, %v4132
        %v4146 = vpack.c.b16 %v4135, %v4134
        %v4147 = vpack.c.b16 %v4137, %v4136
        %v4148 = vpack.c.b16 %v4139, %v4138
        %v4149 = vpack.c.b16 %v4141, %v4140
        %4150 = vrot.lane.b32.xlu0 %v4142, 64
        %v4151 = vpop.permute.xlu0 %4150
        %4152 = vrot.lane.b32.xlu0 %v4143, 64
        %v4153 = vpop.permute.xlu0 %4152
        %4154 = vrot.lane.b32.xlu0 %v4144, 64
        %v4155 = vpop.permute.xlu0 %4154
        %4156 = vrot.lane.b32.xlu0 %v4145, 64
        %v4157 = vpop.permute.xlu0 %4156
        %4158 = vrot.lane.b32.xlu0 %v4146, 64
        %v4159 = vpop.permute.xlu0 %4158
        %4160 = vrot.lane.b32.xlu0 %v4147, 64
        %v4161 = vpop.permute.xlu0 %4160
        %4162 = vrot.lane.b32.xlu0 %v4148, 64
        %v4163 = vpop.permute.xlu0 %4162
        %4164 = vrot.lane.b32.xlu0 %v4149, 64
        %v4165 = vpop.permute.xlu0 %4164
        %v4167 = vsel %vm949, %v4151, 1065369472
        %v4170 = vsel %vm949, %v4153, 1065369472
        %v4173 = vsel %vm949, %v4155, 1065369472
        %v4176 = vsel %vm949, %v4157, 1065369472
        %v4179 = vsel %vm949, %v4159, 1065369472
        %v4182 = vsel %vm949, %v4161, 1065369472
        %v4185 = vsel %vm949, %v4163, 1065369472
        %v4188 = vsel %vm949, %v4165, 1065369472
        %v4190 = vunpack.c.l.bf16 %v4167
        %v4191 = vunpack.c.h.bf16 %v4167
        %v4192 = vunpack.c.l.bf16 %v4170
        %v4193 = vunpack.c.h.bf16 %v4170
        %v4194 = vunpack.c.l.bf16 %v4173
        %v4195 = vunpack.c.h.bf16 %v4173
        %v4196 = vunpack.c.l.bf16 %v4176
        %v4197 = vunpack.c.h.bf16 %v4176
        %v4198 = vunpack.c.l.bf16 %v4179
        %v4199 = vunpack.c.h.bf16 %v4179
        %v4200 = vunpack.c.l.bf16 %v4182
        %v4201 = vunpack.c.h.bf16 %v4182
        %v4202 = vunpack.c.l.bf16 %v4185
        %v4203 = vunpack.c.h.bf16 %v4185
        %v4204 = vunpack.c.l.bf16 %v4188
        %v4205 = vunpack.c.h.bf16 %v4188
        %v4206 = vmul.f32 %v4190, %v1576
        %v4207 = vmul.f32 %v4191, %v1577
        %v4208 = vmul.f32 %v4192, %v1578
        %v4209 = vmul.f32 %v4193, %v1579
        %v4210 = vmul.f32 %v4194, %v1580
        %v4211 = vmul.f32 %v4195, %v1581
        %v4212 = vmul.f32 %v4196, %v1582
        %v4213 = vmul.f32 %v4197, %v1583
        %v4214 = vmul.f32 %v4198, %v1584
        %v4215 = vmul.f32 %v4199, %v1585
        %v4216 = vmul.f32 %v4200, %v1586
        %v4217 = vmul.f32 %v4201, %v1587
        %v4218 = vmul.f32 %v4202, %v1588
        %v4219 = vmul.f32 %v4203, %v1589
        %v4220 = vmul.f32 %v4204, %v1590
        %v4221 = vmul.f32 %v4205, %v1591
        %v4222 = vmul.f32 %v4190, %v1592
        %v4223 = vmul.f32 %v4191, %v1593
        %v4224 = vmul.f32 %v4192, %v1594
        %v4225 = vmul.f32 %v4193, %v1595
        %v4226 = vmul.f32 %v4194, %v1596
        %v4227 = vmul.f32 %v4195, %v1597
        %v4228 = vmul.f32 %v4196, %v1598
        %v4229 = vmul.f32 %v4197, %v1599
        %v4230 = vmul.f32 %v4198, %v1600
        %v4231 = vmul.f32 %v4199, %v1601
        %v4232 = vmul.f32 %v4200, %v1602
        %v4233 = vmul.f32 %v4201, %v1603
        %v4234 = vmul.f32 %v4202, %v1604
        %v4235 = vmul.f32 %v4203, %v1605
        %v4236 = vmul.f32 %v4204, %v1606
        %v4237 = vmul.f32 %v4205, %v1607
        %v4238 = vmul.f32 %v4190, %v1608
        %v4239 = vmul.f32 %v4191, %v1609
        %v4240 = vmul.f32 %v4192, %v1610
        %v4241 = vmul.f32 %v4193, %v1611
        %v4242 = vmul.f32 %v4194, %v1612
        %v4243 = vmul.f32 %v4195, %v1613
        %v4244 = vmul.f32 %v4196, %v1614
        %v4245 = vmul.f32 %v4197, %v1615
        %v4246 = vmul.f32 %v4198, %v1616
        %v4247 = vmul.f32 %v4199, %v1617
        %v4248 = vmul.f32 %v4200, %v1618
        %v4249 = vmul.f32 %v4201, %v1619
        %v4250 = vmul.f32 %v4202, %v1620
        %v4251 = vmul.f32 %v4203, %v1621
        %v4252 = vmul.f32 %v4204, %v1622
        %v4253 = vmul.f32 %v4205, %v1623
        %v4254 = vmul.f32 %v4190, %v1624
        %v4255 = vmul.f32 %v4191, %v1625
        %v4256 = vmul.f32 %v4192, %v1626
        %v4257 = vmul.f32 %v4193, %v1627
        %v4258 = vmul.f32 %v4194, %v1628
        %v4259 = vmul.f32 %v4195, %v1629
        %v4260 = vmul.f32 %v4196, %v1630
        %v4261 = vmul.f32 %v4197, %v1631
        %v4262 = vmul.f32 %v4198, %v1632
        %v4263 = vmul.f32 %v4199, %v1633
        %v4264 = vmul.f32 %v4200, %v1634
        %v4265 = vmul.f32 %v4201, %v1635
        %v4266 = vmul.f32 %v4202, %v1636
        %v4267 = vmul.f32 %v4203, %v1637
        %v4268 = vmul.f32 %v4204, %v1638
        %v4269 = vmul.f32 %v4205, %v1639
        %v4270 = vpack.c.bf16 %v4207, %v4206
        %v4271 = vpack.c.bf16 %v4209, %v4208
        %v4272 = vpack.c.bf16 %v4211, %v4210
        %v4273 = vpack.c.bf16 %v4213, %v4212
        %v4274 = vpack.c.bf16 %v4215, %v4214
        %v4275 = vpack.c.bf16 %v4217, %v4216
        %v4276 = vpack.c.bf16 %v4219, %v4218
        %v4277 = vpack.c.bf16 %v4221, %v4220
        %v4278 = vpack.c.bf16 %v4223, %v4222
        %v4279 = vpack.c.bf16 %v4225, %v4224
        %v4280 = vpack.c.bf16 %v4227, %v4226
        %v4281 = vpack.c.bf16 %v4229, %v4228
        %v4282 = vpack.c.bf16 %v4231, %v4230
        %v4283 = vpack.c.bf16 %v4233, %v4232
        %v4284 = vpack.c.bf16 %v4235, %v4234
        %v4285 = vpack.c.bf16 %v4237, %v4236
        %v4286 = vpack.c.bf16 %v4239, %v4238
        %v4287 = vpack.c.bf16 %v4241, %v4240
        %v4288 = vpack.c.bf16 %v4243, %v4242
        %v4289 = vpack.c.bf16 %v4245, %v4244
        %v4290 = vpack.c.bf16 %v4247, %v4246
        %v4291 = vpack.c.bf16 %v4249, %v4248
        %v4292 = vpack.c.bf16 %v4251, %v4250
        %v4293 = vpack.c.bf16 %v4253, %v4252
        %v4294 = vpack.c.bf16 %v4255, %v4254
        %v4295 = vpack.c.bf16 %v4257, %v4256
        %v4296 = vpack.c.bf16 %v4259, %v4258
        %v4297 = vpack.c.bf16 %v4261, %v4260
        %v4298 = vpack.c.bf16 %v4263, %v4262
        %v4299 = vpack.c.bf16 %v4265, %v4264
        %v4300 = vpack.c.bf16 %v4267, %v4266
        %v4301 = vpack.c.bf16 %v4269, %v4268
        %4334 = vrot.lane.b32.xlu0 %v4078, 96
        %v4335 = vpop.permute.xlu0 %4334
        %4336 = vrot.lane.b32.xlu0 %v4079, 96
        %v4337 = vpop.permute.xlu0 %4336
        %4338 = vrot.lane.b32.xlu0 %v4080, 96
        %v4339 = vpop.permute.xlu0 %4338
        %4340 = vrot.lane.b32.xlu0 %v4081, 96
        %v4341 = vpop.permute.xlu0 %4340
        %4342 = vrot.lane.b32.xlu0 %v4082, 96
        %v4343 = vpop.permute.xlu0 %4342
        %4344 = vrot.lane.b32.xlu0 %v4083, 96
        %v4345 = vpop.permute.xlu0 %4344
        %4346 = vrot.lane.b32.xlu0 %v4084, 96
        %v4347 = vpop.permute.xlu0 %4346
        %4348 = vrot.lane.b32.xlu0 %v4085, 96
        %v4349 = vpop.permute.xlu0 %4348
        %4350 = vrot.lane.b32.xlu0 %v4086, 96
        %v4351 = vpop.permute.xlu0 %4350
        %4352 = vrot.lane.b32.xlu0 %v4087, 96
        %v4353 = vpop.permute.xlu0 %4352
        %4354 = vrot.lane.b32.xlu0 %v4088, 96
        %v4355 = vpop.permute.xlu0 %4354
        %4356 = vrot.lane.b32.xlu0 %v4089, 96
        %v4357 = vpop.permute.xlu0 %4356
        %4358 = vrot.lane.b32.xlu0 %v4090, 96
        %v4359 = vpop.permute.xlu0 %4358
        %4360 = vrot.lane.b32.xlu0 %v4091, 96
        %v4361 = vpop.permute.xlu0 %4360
        %4362 = vrot.lane.b32.xlu0 %v4092, 96
        %v4363 = vpop.permute.xlu0 %4362
        %4364 = vrot.lane.b32.xlu0 %v4093, 96
        %v4365 = vpop.permute.xlu0 %4364
        %4366 = vrot.lane.b32.xlu0 %v4094, 96
        %v4367 = vpop.permute.xlu0 %4366
        %4368 = vrot.lane.b32.xlu0 %v4095, 96
        %v4369 = vpop.permute.xlu0 %4368
        %4370 = vrot.lane.b32.xlu0 %v4096, 96
        %v4371 = vpop.permute.xlu0 %4370
        %4372 = vrot.lane.b32.xlu0 %v4097, 96
        %v4373 = vpop.permute.xlu0 %4372
        %4374 = vrot.lane.b32.xlu0 %v4098, 96
        %v4375 = vpop.permute.xlu0 %4374
        %4376 = vrot.lane.b32.xlu0 %v4099, 96
        %v4377 = vpop.permute.xlu0 %4376
        %4378 = vrot.lane.b32.xlu0 %v4100, 96
        %v4379 = vpop.permute.xlu0 %4378
        %4380 = vrot.lane.b32.xlu0 %v4101, 96
        %v4381 = vpop.permute.xlu0 %4380
        %4382 = vrot.lane.b32.xlu0 %v4102, 96
        %v4383 = vpop.permute.xlu0 %4382
        %4384 = vrot.lane.b32.xlu0 %v4103, 96
        %v4385 = vpop.permute.xlu0 %4384
        %4386 = vrot.lane.b32.xlu0 %v4104, 96
        %v4387 = vpop.permute.xlu0 %4386
        %4388 = vrot.lane.b32.xlu0 %v4105, 96
        %v4389 = vpop.permute.xlu0 %4388
        %4390 = vrot.lane.b32.xlu0 %v4106, 96
        %v4391 = vpop.permute.xlu0 %4390
        %4392 = vrot.lane.b32.xlu0 %v4107, 96
        %v4393 = vpop.permute.xlu0 %4392
        %4394 = vrot.lane.b32.xlu0 %v4108, 96
        %v4395 = vpop.permute.xlu0 %4394
        %4396 = vrot.lane.b32.xlu0 %v4109, 96
        %v4397 = vpop.permute.xlu0 %4396
        %v4399 = vsel %vm949, %v3974, 0
        %v4402 = vsel %vm949, %v3975, 0
        %v4405 = vsel %vm949, %v3976, 0
        %v4408 = vsel %vm949, %v3977, 0
        %v4411 = vsel %vm949, %v3978, 0
        %v4414 = vsel %vm949, %v3979, 0
        %v4417 = vsel %vm949, %v3980, 0
        %v4420 = vsel %vm949, %v3981, 0
        %v4423 = vsel %vm949, %v4335, 0
        %v4426 = vsel %vm949, %v4337, 0
        %v4429 = vsel %vm949, %v4339, 0
        %v4432 = vsel %vm949, %v4341, 0
        %v4435 = vsel %vm949, %v4343, 0
        %v4438 = vsel %vm949, %v4345, 0
        %v4441 = vsel %vm949, %v4347, 0
        %v4444 = vsel %vm949, %v4349, 0
        %v4447 = vsel %vm949, %v4351, 0
        %v4450 = vsel %vm949, %v4353, 0
        %v4453 = vsel %vm949, %v4355, 0
        %v4456 = vsel %vm949, %v4357, 0
        %v4459 = vsel %vm949, %v4359, 0
        %v4462 = vsel %vm949, %v4361, 0
        %v4465 = vsel %vm949, %v4363, 0
        %v4468 = vsel %vm949, %v4365, 0
        %v4471 = vsel %vm949, %v4367, 0
        %v4474 = vsel %vm949, %v4369, 0
        %v4477 = vsel %vm949, %v4371, 0
        %v4480 = vsel %vm949, %v4373, 0
        %v4483 = vsel %vm949, %v4375, 0
        %v4486 = vsel %vm949, %v4377, 0
        %v4489 = vsel %vm949, %v4379, 0
        %v4492 = vsel %vm949, %v4381, 0
        %v4495 = vsel %vm949, %v4383, 0
        %v4498 = vsel %vm949, %v4385, 0
        %v4501 = vsel %vm949, %v4387, 0
        %v4504 = vsel %vm949, %v4389, 0
        %v4507 = vsel %vm949, %v4391, 0
        %v4510 = vsel %vm949, %v4393, 0
        %v4513 = vsel %vm949, %v4395, 0
        %v4516 = vsel %vm949, %v4397, 0
        %4518 = vmatpush.bf16.xpose.msra.mxu0 %v4444
        %4519 = vmatpush.bf16.xpose.msra.mxu0 %v4441
        %4520 = vmatpush.bf16.xpose.msra.mxu0 %v4438
        %4521 = vmatpush.bf16.xpose.msra.mxu0 %v4435
        %4522 = vmatpush.bf16.xpose.msra.mxu0 %v4432
        %4523 = vmatpush.bf16.xpose.msra.mxu0 %v4429
        %4524 = vmatpush.bf16.xpose.msra.mxu0 %v4426
        %4525 = vmatpush.bf16.xpose.msra.mxu0 %v4423
        %4526 = vmatmul.bf16.gmra.mxu0 %v4399
        %v4527 = vpop.f32.mrf.mxu0
        %v4528 = vadd.f32 %v852, %v4527
        %v4529 = vpop.f32.mrf.mxu0
        %v4530 = vadd.f32 %v856, %v4529
        %4531 = vmatmul.bf16.gmra.mxu0 %v4402
        %v4532 = vpop.f32.mrf.mxu0
        %v4533 = vadd.f32 %v860, %v4532
        %v4534 = vpop.f32.mrf.mxu0
        %v4535 = vadd.f32 %v864, %v4534
        %4536 = vmatmul.bf16.gmra.mxu0 %v4405
        %v4537 = vpop.f32.mrf.mxu0
        %v4538 = vadd.f32 %v868, %v4537
        %v4539 = vpop.f32.mrf.mxu0
        %v4540 = vadd.f32 %v872, %v4539
        %4541 = vmatmul.bf16.gmra.mxu0 %v4408
        %v4542 = vpop.f32.mrf.mxu0
        %v4543 = vadd.f32 %v876, %v4542
        %v4544 = vpop.f32.mrf.mxu0
        %v4545 = vadd.f32 %v880, %v4544
        %4546 = vmatmul.bf16.gmra.mxu0 %v4411
        %v4547 = vpop.f32.mrf.mxu0
        %v4548 = vadd.f32 %v884, %v4547
        %v4549 = vpop.f32.mrf.mxu0
        %v4550 = vadd.f32 %v888, %v4549
        %4551 = vmatmul.bf16.gmra.mxu0 %v4414
        %v4552 = vpop.f32.mrf.mxu0
        %v4553 = vadd.f32 %v892, %v4552
        %v4554 = vpop.f32.mrf.mxu0
        %v4555 = vadd.f32 %v896, %v4554
        %4556 = vmatmul.bf16.gmra.mxu0 %v4417
        %v4557 = vpop.f32.mrf.mxu0
        %v4558 = vadd.f32 %v900, %v4557
        %v4559 = vpop.f32.mrf.mxu0
        %v4560 = vadd.f32 %v904, %v4559
        %4561 = vmatmul.bf16.gmra.mxu0 %v4420
        %v4562 = vpop.f32.mrf.mxu0
        %v4563 = vadd.f32 %v908, %v4562
        %v4564 = vpop.f32.mrf.mxu0
        %v4565 = vadd.f32 %v912, %v4564
        %4566 = vdwg.mxu0
        %4567 = vmatpush.bf16.xpose.msra.mxu0 %v4468
        %4568 = vmatpush.bf16.xpose.msra.mxu0 %v4465
        %4569 = vmatpush.bf16.xpose.msra.mxu0 %v4462
        %4570 = vmatpush.bf16.xpose.msra.mxu0 %v4459
        %4571 = vmatpush.bf16.xpose.msra.mxu0 %v4456
        %4572 = vmatpush.bf16.xpose.msra.mxu0 %v4453
        %4573 = vmatpush.bf16.xpose.msra.mxu0 %v4450
        %4574 = vmatpush.bf16.xpose.msra.mxu0 %v4447
        %4575 = vmatmul.bf16.gmra.mxu0 %v4399
        %v4576 = vpop.f32.mrf.mxu0
        %v4577 = vadd.f32 %v853, %v4576
        %v4578 = vpop.f32.mrf.mxu0
        %v4579 = vadd.f32 %v857, %v4578
        %4580 = vmatmul.bf16.gmra.mxu0 %v4402
        %v4581 = vpop.f32.mrf.mxu0
        %v4582 = vadd.f32 %v861, %v4581
        %v4583 = vpop.f32.mrf.mxu0
        %v4584 = vadd.f32 %v865, %v4583
        %4585 = vmatmul.bf16.gmra.mxu0 %v4405
        %v4586 = vpop.f32.mrf.mxu0
        %v4587 = vadd.f32 %v869, %v4586
        %v4588 = vpop.f32.mrf.mxu0
        %v4589 = vadd.f32 %v873, %v4588
        %4590 = vmatmul.bf16.gmra.mxu0 %v4408
        %v4591 = vpop.f32.mrf.mxu0
        %v4592 = vadd.f32 %v877, %v4591
        %v4593 = vpop.f32.mrf.mxu0
        %v4594 = vadd.f32 %v881, %v4593
        %4595 = vmatmul.bf16.gmra.mxu0 %v4411
        %v4596 = vpop.f32.mrf.mxu0
        %v4597 = vadd.f32 %v885, %v4596
        %v4598 = vpop.f32.mrf.mxu0
        %v4599 = vadd.f32 %v889, %v4598
        %4600 = vmatmul.bf16.gmra.mxu0 %v4414
        %v4601 = vpop.f32.mrf.mxu0
        %v4602 = vadd.f32 %v893, %v4601
        %v4603 = vpop.f32.mrf.mxu0
        %v4604 = vadd.f32 %v897, %v4603
        %4605 = vmatmul.bf16.gmra.mxu0 %v4417
        %v4606 = vpop.f32.mrf.mxu0
        %v4607 = vadd.f32 %v901, %v4606
        %v4608 = vpop.f32.mrf.mxu0
        %v4609 = vadd.f32 %v905, %v4608
        %4610 = vmatmul.bf16.gmra.mxu0 %v4420
        %v4611 = vpop.f32.mrf.mxu0
        %v4612 = vadd.f32 %v909, %v4611
        %v4613 = vpop.f32.mrf.mxu0
        %v4614 = vadd.f32 %v913, %v4613
        %4615 = vdwg.mxu0
        %4616 = vmatpush.bf16.xpose.msra.mxu0 %v4492
        %4617 = vmatpush.bf16.xpose.msra.mxu0 %v4489
        %4618 = vmatpush.bf16.xpose.msra.mxu0 %v4486
        %4619 = vmatpush.bf16.xpose.msra.mxu0 %v4483
        %4620 = vmatpush.bf16.xpose.msra.mxu0 %v4480
        %4621 = vmatpush.bf16.xpose.msra.mxu0 %v4477
        %4622 = vmatpush.bf16.xpose.msra.mxu0 %v4474
        %4623 = vmatpush.bf16.xpose.msra.mxu0 %v4471
        %4624 = vmatmul.bf16.gmra.mxu0 %v4399
        %v4625 = vpop.f32.mrf.mxu0
        %v4626 = vadd.f32 %v854, %v4625
        %v4627 = vpop.f32.mrf.mxu0
        %v4628 = vadd.f32 %v858, %v4627
        %4629 = vmatmul.bf16.gmra.mxu0 %v4402
        %v4630 = vpop.f32.mrf.mxu0
        %v4631 = vadd.f32 %v862, %v4630
        %v4632 = vpop.f32.mrf.mxu0
        %v4633 = vadd.f32 %v866, %v4632
        %4634 = vmatmul.bf16.gmra.mxu0 %v4405
        %v4635 = vpop.f32.mrf.mxu0
        %v4636 = vadd.f32 %v870, %v4635
        %v4637 = vpop.f32.mrf.mxu0
        %v4638 = vadd.f32 %v874, %v4637
        %4639 = vmatmul.bf16.gmra.mxu0 %v4408
        %v4640 = vpop.f32.mrf.mxu0
        %v4641 = vadd.f32 %v878, %v4640
        %v4642 = vpop.f32.mrf.mxu0
        %v4643 = vadd.f32 %v882, %v4642
        %4644 = vmatmul.bf16.gmra.mxu0 %v4411
        %v4645 = vpop.f32.mrf.mxu0
        %v4646 = vadd.f32 %v886, %v4645
        %v4647 = vpop.f32.mrf.mxu0
        %v4648 = vadd.f32 %v890, %v4647
        %4649 = vmatmul.bf16.gmra.mxu0 %v4414
        %v4650 = vpop.f32.mrf.mxu0
        %v4651 = vadd.f32 %v894, %v4650
        %v4652 = vpop.f32.mrf.mxu0
        %v4653 = vadd.f32 %v898, %v4652
        %4654 = vmatmul.bf16.gmra.mxu0 %v4417
        %v4655 = vpop.f32.mrf.mxu0
        %v4656 = vadd.f32 %v902, %v4655
        %v4657 = vpop.f32.mrf.mxu0
        %v4658 = vadd.f32 %v906, %v4657
        %4659 = vmatmul.bf16.gmra.mxu0 %v4420
        %v4660 = vpop.f32.mrf.mxu0
        %v4661 = vadd.f32 %v910, %v4660
        %v4662 = vpop.f32.mrf.mxu0
        %v4663 = vadd.f32 %v914, %v4662
        %4664 = vdwg.mxu0
        %4665 = vmatpush.bf16.xpose.msra.mxu0 %v4516
        %4666 = vmatpush.bf16.xpose.msra.mxu0 %v4513
        %4667 = vmatpush.bf16.xpose.msra.mxu0 %v4510
        %4668 = vmatpush.bf16.xpose.msra.mxu0 %v4507
        %4669 = vmatpush.bf16.xpose.msra.mxu0 %v4504
        %4670 = vmatpush.bf16.xpose.msra.mxu0 %v4501
        %4671 = vmatpush.bf16.xpose.msra.mxu0 %v4498
        %4672 = vmatpush.bf16.xpose.msra.mxu0 %v4495
        %4673 = vmatmul.bf16.gmra.mxu0 %v4399
        %v4674 = vpop.f32.mrf.mxu0
        %v4675 = vadd.f32 %v855, %v4674
        %v4676 = vpop.f32.mrf.mxu0
        %v4677 = vadd.f32 %v859, %v4676
        %4678 = vmatmul.bf16.gmra.mxu0 %v4402
        %v4679 = vpop.f32.mrf.mxu0
        %v4680 = vadd.f32 %v863, %v4679
        %v4681 = vpop.f32.mrf.mxu0
        %v4682 = vadd.f32 %v867, %v4681
        %4683 = vmatmul.bf16.gmra.mxu0 %v4405
        %v4684 = vpop.f32.mrf.mxu0
        %v4685 = vadd.f32 %v871, %v4684
        %v4686 = vpop.f32.mrf.mxu0
        %v4687 = vadd.f32 %v875, %v4686
        %4688 = vmatmul.bf16.gmra.mxu0 %v4408
        %v4689 = vpop.f32.mrf.mxu0
        %v4690 = vadd.f32 %v879, %v4689
        %v4691 = vpop.f32.mrf.mxu0
        %v4692 = vadd.f32 %v883, %v4691
        %4693 = vmatmul.bf16.gmra.mxu0 %v4411
        %v4694 = vpop.f32.mrf.mxu0
        %v4695 = vadd.f32 %v887, %v4694
        %v4696 = vpop.f32.mrf.mxu0
        %v4697 = vadd.f32 %v891, %v4696
        %4698 = vmatmul.bf16.gmra.mxu0 %v4414
        %v4699 = vpop.f32.mrf.mxu0
        %v4700 = vadd.f32 %v895, %v4699
        %v4701 = vpop.f32.mrf.mxu0
        %v4702 = vadd.f32 %v899, %v4701
        %4703 = vmatmul.bf16.gmra.mxu0 %v4417
        %v4704 = vpop.f32.mrf.mxu0
        %v4705 = vadd.f32 %v903, %v4704
        %v4706 = vpop.f32.mrf.mxu0
        %v4707 = vadd.f32 %v907, %v4706
        %4708 = vmatmul.bf16.gmra.mxu0 %v4420
        %v4709 = vpop.f32.mrf.mxu0
        %v4710 = vadd.f32 %v911, %v4709
        %v4711 = vpop.f32.mrf.mxu0
        %v4712 = vadd.f32 %v915, %v4711
        %4713 = vdwg.mxu0
        %v4714 = vmax.f32 %v4528, %v4577
        %v4715 = vmax.f32 %v4714, %v4626
        %v4716 = vmax.f32 %v4715, %v4675
        %4717 = vmax.xlane.f32.xlu0 %v4716
        %v4718 = vpop.xlane.xlu0 %4717
        %v4719 = vmax.f32 %v4530, %v4579
        %v4720 = vmax.f32 %v4719, %v4628
        %v4721 = vmax.f32 %v4720, %v4677
        %4722 = vmax.xlane.f32.xlu0 %v4721
        %v4723 = vpop.xlane.xlu0 %4722
        %v4724 = vmax.f32 %v4533, %v4582
        %v4725 = vmax.f32 %v4724, %v4631
        %v4726 = vmax.f32 %v4725, %v4680
        %4727 = vmax.xlane.f32.xlu0 %v4726
        %v4728 = vpop.xlane.xlu0 %4727
        %v4729 = vmax.f32 %v4535, %v4584
        %v4730 = vmax.f32 %v4729, %v4633
        %v4731 = vmax.f32 %v4730, %v4682
        %4732 = vmax.xlane.f32.xlu0 %v4731
        %v4733 = vpop.xlane.xlu0 %4732
        %v4734 = vmax.f32 %v4538, %v4587
        %v4735 = vmax.f32 %v4734, %v4636
        %v4736 = vmax.f32 %v4735, %v4685
        %4737 = vmax.xlane.f32.xlu0 %v4736
        %v4738 = vpop.xlane.xlu0 %4737
        %v4739 = vmax.f32 %v4540, %v4589
        %v4740 = vmax.f32 %v4739, %v4638
        %v4741 = vmax.f32 %v4740, %v4687
        %4742 = vmax.xlane.f32.xlu0 %v4741
        %v4743 = vpop.xlane.xlu0 %4742
        %v4744 = vmax.f32 %v4543, %v4592
        %v4745 = vmax.f32 %v4744, %v4641
        %v4746 = vmax.f32 %v4745, %v4690
        %4747 = vmax.xlane.f32.xlu0 %v4746
        %v4748 = vpop.xlane.xlu0 %4747
        %v4749 = vmax.f32 %v4545, %v4594
        %v4750 = vmax.f32 %v4749, %v4643
        %v4751 = vmax.f32 %v4750, %v4692
        %4752 = vmax.xlane.f32.xlu0 %v4751
        %v4753 = vpop.xlane.xlu0 %4752
        %v4754 = vmax.f32 %v4548, %v4597
        %v4755 = vmax.f32 %v4754, %v4646
        %v4756 = vmax.f32 %v4755, %v4695
        %4757 = vmax.xlane.f32.xlu0 %v4756
        %v4758 = vpop.xlane.xlu0 %4757
        %v4759 = vmax.f32 %v4550, %v4599
        %v4760 = vmax.f32 %v4759, %v4648
        %v4761 = vmax.f32 %v4760, %v4697
        %4762 = vmax.xlane.f32.xlu0 %v4761
        %v4763 = vpop.xlane.xlu0 %4762
        %v4764 = vmax.f32 %v4553, %v4602
        %v4765 = vmax.f32 %v4764, %v4651
        %v4766 = vmax.f32 %v4765, %v4700
        %4767 = vmax.xlane.f32.xlu0 %v4766
        %v4768 = vpop.xlane.xlu0 %4767
        %v4769 = vmax.f32 %v4555, %v4604
        %v4770 = vmax.f32 %v4769, %v4653
        %v4771 = vmax.f32 %v4770, %v4702
        %4772 = vmax.xlane.f32.xlu0 %v4771
        %v4773 = vpop.xlane.xlu0 %4772
        %v4774 = vmax.f32 %v4558, %v4607
        %v4775 = vmax.f32 %v4774, %v4656
        %v4776 = vmax.f32 %v4775, %v4705
        %4777 = vmax.xlane.f32.xlu0 %v4776
        %v4778 = vpop.xlane.xlu0 %4777
        %v4779 = vmax.f32 %v4560, %v4609
        %v4780 = vmax.f32 %v4779, %v4658
        %v4781 = vmax.f32 %v4780, %v4707
        %4782 = vmax.xlane.f32.xlu0 %v4781
        %v4783 = vpop.xlane.xlu0 %4782
        %v4784 = vmax.f32 %v4563, %v4612
        %v4785 = vmax.f32 %v4784, %v4661
        %v4786 = vmax.f32 %v4785, %v4710
        %4787 = vmax.xlane.f32.xlu0 %v4786
        %v4788 = vpop.xlane.xlu0 %4787
        %v4789 = vmax.f32 %v4565, %v4614
        %v4790 = vmax.f32 %v4789, %v4663
        %v4791 = vmax.f32 %v4790, %v4712
        %4792 = vmax.xlane.f32.xlu0 %v4791
        %v4793 = vpop.xlane.xlu0 %4792
        %v4794 = vsub.f32 %v4528, %v4718
        %v4795 = vsub.f32 %v4577, %v4718
        %v4796 = vsub.f32 %v4626, %v4718
        %v4797 = vsub.f32 %v4675, %v4718
        %v4798 = vsub.f32 %v4530, %v4723
        %v4799 = vsub.f32 %v4579, %v4723
        %v4800 = vsub.f32 %v4628, %v4723
        %v4801 = vsub.f32 %v4677, %v4723
        %v4802 = vsub.f32 %v4533, %v4728
        %v4803 = vsub.f32 %v4582, %v4728
        %v4804 = vsub.f32 %v4631, %v4728
        %v4805 = vsub.f32 %v4680, %v4728
        %v4806 = vsub.f32 %v4535, %v4733
        %v4807 = vsub.f32 %v4584, %v4733
        %v4808 = vsub.f32 %v4633, %v4733
        %v4809 = vsub.f32 %v4682, %v4733
        %v4810 = vsub.f32 %v4538, %v4738
        %v4811 = vsub.f32 %v4587, %v4738
        %v4812 = vsub.f32 %v4636, %v4738
        %v4813 = vsub.f32 %v4685, %v4738
        %v4814 = vsub.f32 %v4540, %v4743
        %v4815 = vsub.f32 %v4589, %v4743
        %v4816 = vsub.f32 %v4638, %v4743
        %v4817 = vsub.f32 %v4687, %v4743
        %v4818 = vsub.f32 %v4543, %v4748
        %v4819 = vsub.f32 %v4592, %v4748
        %v4820 = vsub.f32 %v4641, %v4748
        %v4821 = vsub.f32 %v4690, %v4748
        %v4822 = vsub.f32 %v4545, %v4753
        %v4823 = vsub.f32 %v4594, %v4753
        %v4824 = vsub.f32 %v4643, %v4753
        %v4825 = vsub.f32 %v4692, %v4753
        %v4826 = vsub.f32 %v4548, %v4758
        %v4827 = vsub.f32 %v4597, %v4758
        %v4828 = vsub.f32 %v4646, %v4758
        %v4829 = vsub.f32 %v4695, %v4758
        %v4830 = vsub.f32 %v4550, %v4763
        %v4831 = vsub.f32 %v4599, %v4763
        %v4832 = vsub.f32 %v4648, %v4763
        %v4833 = vsub.f32 %v4697, %v4763
        %v4834 = vsub.f32 %v4553, %v4768
        %v4835 = vsub.f32 %v4602, %v4768
        %v4836 = vsub.f32 %v4651, %v4768
        %v4837 = vsub.f32 %v4700, %v4768
        %v4838 = vsub.f32 %v4555, %v4773
        %v4839 = vsub.f32 %v4604, %v4773
        %v4840 = vsub.f32 %v4653, %v4773
        %v4841 = vsub.f32 %v4702, %v4773
        %v4842 = vsub.f32 %v4558, %v4778
        %v4843 = vsub.f32 %v4607, %v4778
        %v4844 = vsub.f32 %v4656, %v4778
        %v4845 = vsub.f32 %v4705, %v4778
        %v4846 = vsub.f32 %v4560, %v4783
        %v4847 = vsub.f32 %v4609, %v4783
        %v4848 = vsub.f32 %v4658, %v4783
        %v4849 = vsub.f32 %v4707, %v4783
        %v4850 = vsub.f32 %v4563, %v4788
        %v4851 = vsub.f32 %v4612, %v4788
        %v4852 = vsub.f32 %v4661, %v4788
        %v4853 = vsub.f32 %v4710, %v4788
        %v4854 = vsub.f32 %v4565, %v4793
        %v4855 = vsub.f32 %v4614, %v4793
        %v4856 = vsub.f32 %v4663, %v4793
        %v4857 = vsub.f32 %v4712, %v4793
        %v4858 = vmul.f32 %v4794, 1.442695
        %v4859 = vpow.pop %v4858
        %v4860 = vmul.f32 %v4795, 1.442695
        %v4861 = vpow.pop %v4860
        %v4862 = vmul.f32 %v4796, 1.442695
        %v4863 = vpow.pop %v4862
        %v4864 = vmul.f32 %v4797, 1.442695
        %v4865 = vpow.pop %v4864
        %v4866 = vmul.f32 %v4798, 1.442695
        %v4867 = vpow.pop %v4866
        %v4868 = vmul.f32 %v4799, 1.442695
        %v4869 = vpow.pop %v4868
        %v4870 = vmul.f32 %v4800, 1.442695
        %v4871 = vpow.pop %v4870
        %v4872 = vmul.f32 %v4801, 1.442695
        %v4873 = vpow.pop %v4872
        %v4874 = vmul.f32 %v4802, 1.442695
        %v4875 = vpow.pop %v4874
        %v4876 = vmul.f32 %v4803, 1.442695
        %v4877 = vpow.pop %v4876
        %v4878 = vmul.f32 %v4804, 1.442695
        %v4879 = vpow.pop %v4878
        %v4880 = vmul.f32 %v4805, 1.442695
        %v4881 = vpow.pop %v4880
        %v4882 = vmul.f32 %v4806, 1.442695
        %v4883 = vpow.pop %v4882
        %v4884 = vmul.f32 %v4807, 1.442695
        %v4885 = vpow.pop %v4884
        %v4886 = vmul.f32 %v4808, 1.442695
        %v4887 = vpow.pop %v4886
        %v4888 = vmul.f32 %v4809, 1.442695
        %v4889 = vpow.pop %v4888
        %v4890 = vmul.f32 %v4810, 1.442695
        %v4891 = vpow.pop %v4890
        %v4892 = vmul.f32 %v4811, 1.442695
        %v4893 = vpow.pop %v4892
        %v4894 = vmul.f32 %v4812, 1.442695
        %v4895 = vpow.pop %v4894
        %v4896 = vmul.f32 %v4813, 1.442695
        %v4897 = vpow.pop %v4896
        %v4898 = vmul.f32 %v4814, 1.442695
        %v4899 = vpow.pop %v4898
        %v4900 = vmul.f32 %v4815, 1.442695
        %v4901 = vpow.pop %v4900
        %v4902 = vmul.f32 %v4816, 1.442695
        %v4903 = vpow.pop %v4902
        %v4904 = vmul.f32 %v4817, 1.442695
        %v4905 = vpow.pop %v4904
        %v4906 = vmul.f32 %v4818, 1.442695
        %v4907 = vpow.pop %v4906
        %v4908 = vmul.f32 %v4819, 1.442695
        %v4909 = vpow.pop %v4908
        %v4910 = vmul.f32 %v4820, 1.442695
        %v4911 = vpow.pop %v4910
        %v4912 = vmul.f32 %v4821, 1.442695
        %v4913 = vpow.pop %v4912
        %v4914 = vmul.f32 %v4822, 1.442695
        %v4915 = vpow.pop %v4914
        %v4916 = vmul.f32 %v4823, 1.442695
        %v4917 = vpow.pop %v4916
        %v4918 = vmul.f32 %v4824, 1.442695
        %v4919 = vpow.pop %v4918
        %v4920 = vmul.f32 %v4825, 1.442695
        %v4921 = vpow.pop %v4920
        %v4922 = vmul.f32 %v4826, 1.442695
        %v4923 = vpow.pop %v4922
        %v4924 = vmul.f32 %v4827, 1.442695
        %v4925 = vpow.pop %v4924
        %v4926 = vmul.f32 %v4828, 1.442695
        %v4927 = vpow.pop %v4926
        %v4928 = vmul.f32 %v4829, 1.442695
        %v4929 = vpow.pop %v4928
        %v4930 = vmul.f32 %v4830, 1.442695
        %v4931 = vpow.pop %v4930
        %v4932 = vmul.f32 %v4831, 1.442695
        %v4933 = vpow.pop %v4932
        %v4934 = vmul.f32 %v4832, 1.442695
        %v4935 = vpow.pop %v4934
        %v4936 = vmul.f32 %v4833, 1.442695
        %v4937 = vpow.pop %v4936
        %v4938 = vmul.f32 %v4834, 1.442695
        %v4939 = vpow.pop %v4938
        %v4940 = vmul.f32 %v4835, 1.442695
        %v4941 = vpow.pop %v4940
        %v4942 = vmul.f32 %v4836, 1.442695
        %v4943 = vpow.pop %v4942
        %v4944 = vmul.f32 %v4837, 1.442695
        %v4945 = vpow.pop %v4944
        %v4946 = vmul.f32 %v4838, 1.442695
        %v4947 = vpow.pop %v4946
        %v4948 = vmul.f32 %v4839, 1.442695
        %v4949 = vpow.pop %v4948
        %v4950 = vmul.f32 %v4840, 1.442695
        %v4951 = vpow.pop %v4950
        %v4952 = vmul.f32 %v4841, 1.442695
        %v4953 = vpow.pop %v4952
        %v4954 = vmul.f32 %v4842, 1.442695
        %v4955 = vpow.pop %v4954
        %v4956 = vmul.f32 %v4843, 1.442695
        %v4957 = vpow.pop %v4956
        %v4958 = vmul.f32 %v4844, 1.442695
        %v4959 = vpow.pop %v4958
        %v4960 = vmul.f32 %v4845, 1.442695
        %v4961 = vpow.pop %v4960
        %v4962 = vmul.f32 %v4846, 1.442695
        %v4963 = vpow.pop %v4962
        %v4964 = vmul.f32 %v4847, 1.442695
        %v4965 = vpow.pop %v4964
        %v4966 = vmul.f32 %v4848, 1.442695
        %v4967 = vpow.pop %v4966
        %v4968 = vmul.f32 %v4849, 1.442695
        %v4969 = vpow.pop %v4968
        %v4970 = vmul.f32 %v4850, 1.442695
        %v4971 = vpow.pop %v4970
        %v4972 = vmul.f32 %v4851, 1.442695
        %v4973 = vpow.pop %v4972
        %v4974 = vmul.f32 %v4852, 1.442695
        %v4975 = vpow.pop %v4974
        %v4976 = vmul.f32 %v4853, 1.442695
        %v4977 = vpow.pop %v4976
        %v4978 = vmul.f32 %v4854, 1.442695
        %v4979 = vpow.pop %v4978
        %v4980 = vmul.f32 %v4855, 1.442695
        %v4981 = vpow.pop %v4980
        %v4982 = vmul.f32 %v4856, 1.442695
        %v4983 = vpow.pop %v4982
        %v4984 = vmul.f32 %v4857, 1.442695
        %v4985 = vpow.pop %v4984
        %v4986 = vpack.c.bf16 %v4867, %v4859
        %v4987 = vpack.c.bf16 %v4869, %v4861
        %v4988 = vpack.c.bf16 %v4871, %v4863
        %v4989 = vpack.c.bf16 %v4873, %v4865
        %v4990 = vpack.c.bf16 %v4883, %v4875
        %v4991 = vpack.c.bf16 %v4885, %v4877
        %v4992 = vpack.c.bf16 %v4887, %v4879
        %v4993 = vpack.c.bf16 %v4889, %v4881
        %v4994 = vpack.c.bf16 %v4899, %v4891
        %v4995 = vpack.c.bf16 %v4901, %v4893
        %v4996 = vpack.c.bf16 %v4903, %v4895
        %v4997 = vpack.c.bf16 %v4905, %v4897
        %v4998 = vpack.c.bf16 %v4915, %v4907
        %v4999 = vpack.c.bf16 %v4917, %v4909
        %v5000 = vpack.c.bf16 %v4919, %v4911
        %v5001 = vpack.c.bf16 %v4921, %v4913
        %v5002 = vpack.c.bf16 %v4931, %v4923
        %v5003 = vpack.c.bf16 %v4933, %v4925
        %v5004 = vpack.c.bf16 %v4935, %v4927
        %v5005 = vpack.c.bf16 %v4937, %v4929
        %v5006 = vpack.c.bf16 %v4947, %v4939
        %v5007 = vpack.c.bf16 %v4949, %v4941
        %v5008 = vpack.c.bf16 %v4951, %v4943
        %v5009 = vpack.c.bf16 %v4953, %v4945
        %v5010 = vpack.c.bf16 %v4963, %v4955
        %v5011 = vpack.c.bf16 %v4965, %v4957
        %v5012 = vpack.c.bf16 %v4967, %v4959
        %v5013 = vpack.c.bf16 %v4969, %v4961
        %v5014 = vpack.c.bf16 %v4979, %v4971
        %v5015 = vpack.c.bf16 %v4981, %v4973
        %v5016 = vpack.c.bf16 %v4983, %v4975
        %v5017 = vpack.c.bf16 %v4985, %v4977
        %5018 = vmatpush.bf16.msra.mxu0 %v4277
        %5019 = vmatpush.bf16.msra.mxu0 %v4276
        %5020 = vmatpush.bf16.msra.mxu0 %v4275
        %5021 = vmatpush.bf16.msra.mxu0 %v4274
        %5022 = vmatpush.bf16.msra.mxu0 %v4273
        %5023 = vmatpush.bf16.msra.mxu0 %v4272
        %5024 = vmatpush.bf16.msra.mxu0 %v4271
        %5025 = vmatpush.bf16.msra.mxu0 %v4270
        %5026 = vmatmul.bf16.gmra.mxu0 %v4986
        %v5027 = vpop.f32.mrf.mxu0
        %v5028 = vadd.f32 0.0, %v5027
        %v5029 = vpop.f32.mrf.mxu0
        %v5030 = vadd.f32 0.0, %v5029
        %5031 = vmatmul.bf16.gmra.mxu0 %v4990
        %v5032 = vpop.f32.mrf.mxu0
        %v5033 = vadd.f32 0.0, %v5032
        %v5034 = vpop.f32.mrf.mxu0
        %v5035 = vadd.f32 0.0, %v5034
        %5036 = vmatmul.bf16.gmra.mxu0 %v4994
        %v5037 = vpop.f32.mrf.mxu0
        %v5038 = vadd.f32 0.0, %v5037
        %v5039 = vpop.f32.mrf.mxu0
        %v5040 = vadd.f32 0.0, %v5039
        %5041 = vmatmul.bf16.gmra.mxu0 %v4998
        %v5042 = vpop.f32.mrf.mxu0
        %v5043 = vadd.f32 0.0, %v5042
        %v5044 = vpop.f32.mrf.mxu0
        %v5045 = vadd.f32 0.0, %v5044
        %5046 = vmatmul.bf16.gmra.mxu0 %v5002
        %v5047 = vpop.f32.mrf.mxu0
        %v5048 = vadd.f32 0.0, %v5047
        %v5049 = vpop.f32.mrf.mxu0
        %v5050 = vadd.f32 0.0, %v5049
        %5051 = vmatmul.bf16.gmra.mxu0 %v5006
        %v5052 = vpop.f32.mrf.mxu0
        %v5053 = vadd.f32 0.0, %v5052
        %v5054 = vpop.f32.mrf.mxu0
        %v5055 = vadd.f32 0.0, %v5054
        %5056 = vmatmul.bf16.gmra.mxu0 %v5010
        %v5057 = vpop.f32.mrf.mxu0
        %v5058 = vadd.f32 0.0, %v5057
        %v5059 = vpop.f32.mrf.mxu0
        %v5060 = vadd.f32 0.0, %v5059
        %5061 = vmatmul.bf16.gmra.mxu0 %v5014
        %v5062 = vpop.f32.mrf.mxu0
        %v5063 = vadd.f32 0.0, %v5062
        %v5064 = vpop.f32.mrf.mxu0
        %v5065 = vadd.f32 0.0, %v5064
        %5066 = vdwg.mxu0
        %5067 = vmatpush.bf16.msra.mxu0 %v4285
        %5068 = vmatpush.bf16.msra.mxu0 %v4284
        %5069 = vmatpush.bf16.msra.mxu0 %v4283
        %5070 = vmatpush.bf16.msra.mxu0 %v4282
        %5071 = vmatpush.bf16.msra.mxu0 %v4281
        %5072 = vmatpush.bf16.msra.mxu0 %v4280
        %5073 = vmatpush.bf16.msra.mxu0 %v4279
        %5074 = vmatpush.bf16.msra.mxu0 %v4278
        %5075 = vmatmul.bf16.gmra.mxu0 %v4987
        %v5076 = vpop.f32.mrf.mxu0
        %v5077 = vadd.f32 %v5028, %v5076
        %v5078 = vpop.f32.mrf.mxu0
        %v5079 = vadd.f32 %v5030, %v5078
        %5080 = vmatmul.bf16.gmra.mxu0 %v4991
        %v5081 = vpop.f32.mrf.mxu0
        %v5082 = vadd.f32 %v5033, %v5081
        %v5083 = vpop.f32.mrf.mxu0
        %v5084 = vadd.f32 %v5035, %v5083
        %5085 = vmatmul.bf16.gmra.mxu0 %v4995
        %v5086 = vpop.f32.mrf.mxu0
        %v5087 = vadd.f32 %v5038, %v5086
        %v5088 = vpop.f32.mrf.mxu0
        %v5089 = vadd.f32 %v5040, %v5088
        %5090 = vmatmul.bf16.gmra.mxu0 %v4999
        %v5091 = vpop.f32.mrf.mxu0
        %v5092 = vadd.f32 %v5043, %v5091
        %v5093 = vpop.f32.mrf.mxu0
        %v5094 = vadd.f32 %v5045, %v5093
        %5095 = vmatmul.bf16.gmra.mxu0 %v5003
        %v5096 = vpop.f32.mrf.mxu0
        %v5097 = vadd.f32 %v5048, %v5096
        %v5098 = vpop.f32.mrf.mxu0
        %v5099 = vadd.f32 %v5050, %v5098
        %5100 = vmatmul.bf16.gmra.mxu0 %v5007
        %v5101 = vpop.f32.mrf.mxu0
        %v5102 = vadd.f32 %v5053, %v5101
        %v5103 = vpop.f32.mrf.mxu0
        %v5104 = vadd.f32 %v5055, %v5103
        %5105 = vmatmul.bf16.gmra.mxu0 %v5011
        %v5106 = vpop.f32.mrf.mxu0
        %v5107 = vadd.f32 %v5058, %v5106
        %v5108 = vpop.f32.mrf.mxu0
        %v5109 = vadd.f32 %v5060, %v5108
        %5110 = vmatmul.bf16.gmra.mxu0 %v5015
        %v5111 = vpop.f32.mrf.mxu0
        %v5112 = vadd.f32 %v5063, %v5111
        %v5113 = vpop.f32.mrf.mxu0
        %v5114 = vadd.f32 %v5065, %v5113
        %5115 = vdwg.mxu0
        %5116 = vmatpush.bf16.msra.mxu0 %v4293
        %5117 = vmatpush.bf16.msra.mxu0 %v4292
        %5118 = vmatpush.bf16.msra.mxu0 %v4291
        %5119 = vmatpush.bf16.msra.mxu0 %v4290
        %5120 = vmatpush.bf16.msra.mxu0 %v4289
        %5121 = vmatpush.bf16.msra.mxu0 %v4288
        %5122 = vmatpush.bf16.msra.mxu0 %v4287
        %5123 = vmatpush.bf16.msra.mxu0 %v4286
        %5124 = vmatmul.bf16.gmra.mxu0 %v4988
        %v5125 = vpop.f32.mrf.mxu0
        %v5126 = vadd.f32 %v5077, %v5125
        %v5127 = vpop.f32.mrf.mxu0
        %v5128 = vadd.f32 %v5079, %v5127
        %5129 = vmatmul.bf16.gmra.mxu0 %v4992
        %v5130 = vpop.f32.mrf.mxu0
        %v5131 = vadd.f32 %v5082, %v5130
        %v5132 = vpop.f32.mrf.mxu0
        %v5133 = vadd.f32 %v5084, %v5132
        %5134 = vmatmul.bf16.gmra.mxu0 %v4996
        %v5135 = vpop.f32.mrf.mxu0
        %v5136 = vadd.f32 %v5087, %v5135
        %v5137 = vpop.f32.mrf.mxu0
        %v5138 = vadd.f32 %v5089, %v5137
        %5139 = vmatmul.bf16.gmra.mxu0 %v5000
        %v5140 = vpop.f32.mrf.mxu0
        %v5141 = vadd.f32 %v5092, %v5140
        %v5142 = vpop.f32.mrf.mxu0
        %v5143 = vadd.f32 %v5094, %v5142
        %5144 = vmatmul.bf16.gmra.mxu0 %v5004
        %v5145 = vpop.f32.mrf.mxu0
        %v5146 = vadd.f32 %v5097, %v5145
        %v5147 = vpop.f32.mrf.mxu0
        %v5148 = vadd.f32 %v5099, %v5147
        %5149 = vmatmul.bf16.gmra.mxu0 %v5008
        %v5150 = vpop.f32.mrf.mxu0
        %v5151 = vadd.f32 %v5102, %v5150
        %v5152 = vpop.f32.mrf.mxu0
        %v5153 = vadd.f32 %v5104, %v5152
        %5154 = vmatmul.bf16.gmra.mxu0 %v5012
        %v5155 = vpop.f32.mrf.mxu0
        %v5156 = vadd.f32 %v5107, %v5155
        %v5157 = vpop.f32.mrf.mxu0
        %v5158 = vadd.f32 %v5109, %v5157
        %5159 = vmatmul.bf16.gmra.mxu0 %v5016
        %v5160 = vpop.f32.mrf.mxu0
        %v5161 = vadd.f32 %v5112, %v5160
        %v5162 = vpop.f32.mrf.mxu0
        %v5163 = vadd.f32 %v5114, %v5162
        %5164 = vdwg.mxu0
        %5165 = vmatpush.bf16.msra.mxu0 %v4301
        %5166 = vmatpush.bf16.msra.mxu0 %v4300
        %5167 = vmatpush.bf16.msra.mxu0 %v4299
        %5168 = vmatpush.bf16.msra.mxu0 %v4298
        %5169 = vmatpush.bf16.msra.mxu0 %v4297
        %5170 = vmatpush.bf16.msra.mxu0 %v4296
        %5171 = vmatpush.bf16.msra.mxu0 %v4295
        %5172 = vmatpush.bf16.msra.mxu0 %v4294
        %5173 = vmatmul.bf16.gmra.mxu0 %v4989
        %v5174 = vpop.f32.mrf.mxu0
        %v5175 = vadd.f32 %v5126, %v5174
        %v5176 = vpop.f32.mrf.mxu0
        %v5177 = vadd.f32 %v5128, %v5176
        %5178 = vmatmul.bf16.gmra.mxu0 %v4993
        %v5179 = vpop.f32.mrf.mxu0
        %v5180 = vadd.f32 %v5131, %v5179
        %v5181 = vpop.f32.mrf.mxu0
        %v5182 = vadd.f32 %v5133, %v5181
        %5183 = vmatmul.bf16.gmra.mxu0 %v4997
        %v5184 = vpop.f32.mrf.mxu0
        %v5185 = vadd.f32 %v5136, %v5184
        %v5186 = vpop.f32.mrf.mxu0
        %v5187 = vadd.f32 %v5138, %v5186
        %5188 = vmatmul.bf16.gmra.mxu0 %v5001
        %v5189 = vpop.f32.mrf.mxu0
        %v5190 = vadd.f32 %v5141, %v5189
        %v5191 = vpop.f32.mrf.mxu0
        %v5192 = vadd.f32 %v5143, %v5191
        %5193 = vmatmul.bf16.gmra.mxu0 %v5005
        %v5194 = vpop.f32.mrf.mxu0
        %v5195 = vadd.f32 %v5146, %v5194
        %v5196 = vpop.f32.mrf.mxu0
        %v5197 = vadd.f32 %v5148, %v5196
        %5198 = vmatmul.bf16.gmra.mxu0 %v5009
        %v5199 = vpop.f32.mrf.mxu0
        %v5200 = vadd.f32 %v5151, %v5199
        %v5201 = vpop.f32.mrf.mxu0
        %v5202 = vadd.f32 %v5153, %v5201
        %5203 = vmatmul.bf16.gmra.mxu0 %v5013
        %v5204 = vpop.f32.mrf.mxu0
        %v5205 = vadd.f32 %v5156, %v5204
        %v5206 = vpop.f32.mrf.mxu0
        %v5207 = vadd.f32 %v5158, %v5206
        %5208 = vmatmul.bf16.gmra.mxu0 %v5017
        %v5209 = vpop.f32.mrf.mxu0
        %v5210 = vadd.f32 %v5161, %v5209
        %v5211 = vpop.f32.mrf.mxu0
        %v5212 = vadd.f32 %v5163, %v5211
        %5213 = vdwg.mxu0
        %v5214 = vrcp.pop %v5175
        %v5215 = vrcp.pop %v5177
        %v5216 = vrcp.pop %v5180
        %v5217 = vrcp.pop %v5182
        %v5218 = vrcp.pop %v5185
        %v5219 = vrcp.pop %v5187
        %v5220 = vrcp.pop %v5190
        %v5221 = vrcp.pop %v5192
        %v5222 = vrcp.pop %v5195
        %v5223 = vrcp.pop %v5197
        %v5224 = vrcp.pop %v5200
        %v5225 = vrcp.pop %v5202
        %v5226 = vrcp.pop %v5205
        %v5227 = vrcp.pop %v5207
        %v5228 = vrcp.pop %v5210
        %v5229 = vrcp.pop %v5212
        %5246 = vrot.lane.b32.xlu0 %v5214, 96
        %v5247 = vpop.permute.xlu0 %5246
        %5248 = vrot.lane.b32.xlu0 %v5215, 96
        %v5249 = vpop.permute.xlu0 %5248
        %5250 = vrot.lane.b32.xlu0 %v5216, 96
        %v5251 = vpop.permute.xlu0 %5250
        %5252 = vrot.lane.b32.xlu0 %v5217, 96
        %v5253 = vpop.permute.xlu0 %5252
        %5254 = vrot.lane.b32.xlu0 %v5218, 96
        %v5255 = vpop.permute.xlu0 %5254
        %5256 = vrot.lane.b32.xlu0 %v5219, 96
        %v5257 = vpop.permute.xlu0 %5256
        %5258 = vrot.lane.b32.xlu0 %v5220, 96
        %v5259 = vpop.permute.xlu0 %5258
        %5260 = vrot.lane.b32.xlu0 %v5221, 96
        %v5261 = vpop.permute.xlu0 %5260
        %5262 = vrot.lane.b32.xlu0 %v5222, 96
        %v5263 = vpop.permute.xlu0 %5262
        %5264 = vrot.lane.b32.xlu0 %v5223, 96
        %v5265 = vpop.permute.xlu0 %5264
        %5266 = vrot.lane.b32.xlu0 %v5224, 96
        %v5267 = vpop.permute.xlu0 %5266
        %5268 = vrot.lane.b32.xlu0 %v5225, 96
        %v5269 = vpop.permute.xlu0 %5268
        %5270 = vrot.lane.b32.xlu0 %v5226, 96
        %v5271 = vpop.permute.xlu0 %5270
        %5272 = vrot.lane.b32.xlu0 %v5227, 96
        %v5273 = vpop.permute.xlu0 %5272
        %5274 = vrot.lane.b32.xlu0 %v5228, 96
        %v5275 = vpop.permute.xlu0 %5274
        %5276 = vrot.lane.b32.xlu0 %v5229, 96
        %v5277 = vpop.permute.xlu0 %5276
        %v5294 = vmul.f32 %v5175, %v5247
        %v5295 = vmul.f32 %v5177, %v5249
        %v5296 = vmul.f32 %v5180, %v5251
        %v5297 = vmul.f32 %v5182, %v5253
        %v5298 = vmul.f32 %v5185, %v5255
        %v5299 = vmul.f32 %v5187, %v5257
        %v5300 = vmul.f32 %v5190, %v5259
        %v5301 = vmul.f32 %v5192, %v5261
        %v5302 = vmul.f32 %v5195, %v5263
        %v5303 = vmul.f32 %v5197, %v5265
        %v5304 = vmul.f32 %v5200, %v5267
        %v5305 = vmul.f32 %v5202, %v5269
        %v5306 = vmul.f32 %v5205, %v5271
        %v5307 = vmul.f32 %v5207, %v5273
        %v5308 = vmul.f32 %v5210, %v5275
        %v5309 = vmul.f32 %v5212, %v5277
        %v5310 = vpack.c.bf16 %v5295, %v5294
        %v5311 = vpack.c.bf16 %v5297, %v5296
        %v5312 = vpack.c.bf16 %v5299, %v5298
        %v5313 = vpack.c.bf16 %v5301, %v5300
        %v5314 = vpack.c.bf16 %v5303, %v5302
        %v5315 = vpack.c.bf16 %v5305, %v5304
        %v5316 = vpack.c.bf16 %v5307, %v5306
        %v5317 = vpack.c.bf16 %v5309, %v5308
        %s5318 = scalar_lea.vmem %s8, 48
        %v5319 = vld [vmem:[%s5318] sm:$0xf]
        %v5320 = vld [vmem:[%s5318 + $0x4] sm:$0xf]
        %v5321 = vld [vmem:[%s5318 + $0x8] sm:$0xf]
        %v5322 = vld [vmem:[%s5318 + $0xc] sm:$0xf]
        %v5323 = vperm.slane %v3867, 0
        %v5328 = vunpack.c.l.b16 %v5319
        %v5329 = vunpack.c.l.b16 %v5320
        %v5330 = vunpack.c.l.b16 %v5321
        %v5331 = vunpack.c.l.b16 %v5322
        %v5332 = vpack.c.b16 %v5329, %v5328
        %v5333 = vpack.c.b16 %v5331, %v5330
        %v5337 = vsel %vm949, %v5310, 0
        %v5340 = vsel %vm949, %v5311, 0
        %v5343 = vsel %vm949, %v5312, 0
        %v5346 = vsel %vm949, %v5313, 0
        %v5349 = vsel %vm949, %v5314, 0
        %v5352 = vsel %vm949, %v5315, 0
        %v5355 = vsel %vm949, %v5316, 0
        %v5358 = vsel %vm949, %v5317, 0
        %5360 = vmatpush.bf16.msra.mxu0 0
        %5361 = vmatpush.bf16.msra.mxu0 0
        %5362 = vmatpush.bf16.msra.mxu0 0
        %5363 = vmatpush.bf16.msra.mxu0 0
        %5364 = vmatpush.bf16.msra.mxu0 0
        %5365 = vmatpush.bf16.msra.mxu0 0
        %5366 = vmatpush.bf16.msra.mxu0 %v5333
        %5367 = vmatpush.bf16.msra.mxu0 %v5332
        %5368 = vmatmul.bf16.gmra.mxu0 %v5337
        %v5369 = vpop.f32.mrf.mxu0
        %v5370 = vadd.f32 %v5323, %v5369
        %v5371 = vpop.f32.mrf.mxu0
        %v5372 = vadd.f32 %v5323, %v5371
        %5373 = vmatmul.bf16.gmra.mxu0 %v5340
        %v5374 = vpop.f32.mrf.mxu0
        %v5375 = vadd.f32 %v5323, %v5374
        %v5376 = vpop.f32.mrf.mxu0
        %v5377 = vadd.f32 %v5323, %v5376
        %5378 = vmatmul.bf16.gmra.mxu0 %v5343
        %v5379 = vpop.f32.mrf.mxu0
        %v5380 = vadd.f32 %v5323, %v5379
        %v5381 = vpop.f32.mrf.mxu0
        %v5382 = vadd.f32 %v5323, %v5381
        %5383 = vmatmul.bf16.gmra.mxu0 %v5346
        %v5384 = vpop.f32.mrf.mxu0
        %v5385 = vadd.f32 %v5323, %v5384
        %v5386 = vpop.f32.mrf.mxu0
        %v5387 = vadd.f32 %v5323, %v5386
        %5388 = vmatmul.bf16.gmra.mxu0 %v5349
        %v5389 = vpop.f32.mrf.mxu0
        %v5390 = vadd.f32 %v5323, %v5389
        %v5391 = vpop.f32.mrf.mxu0
        %v5392 = vadd.f32 %v5323, %v5391
        %5393 = vmatmul.bf16.gmra.mxu0 %v5352
        %v5394 = vpop.f32.mrf.mxu0
        %v5395 = vadd.f32 %v5323, %v5394
        %v5396 = vpop.f32.mrf.mxu0
        %v5397 = vadd.f32 %v5323, %v5396
        %5398 = vmatmul.bf16.gmra.mxu0 %v5355
        %v5399 = vpop.f32.mrf.mxu0
        %v5400 = vadd.f32 %v5323, %v5399
        %v5401 = vpop.f32.mrf.mxu0
        %v5402 = vadd.f32 %v5323, %v5401
        %5403 = vmatmul.bf16.gmra.mxu0 %v5358
        %v5404 = vpop.f32.mrf.mxu0
        %v5405 = vadd.f32 %v5323, %v5404
        %v5406 = vpop.f32.mrf.mxu0
        %v5407 = vadd.f32 %v5323, %v5406
        %5408 = vdwg.mxu0
        %v5409 = vadd.f32 %v3851, %v5370
        %v5410 = vadd.f32 %v3852, %v5372
        %v5411 = vadd.f32 %v3853, %v5375
        %v5412 = vadd.f32 %v3854, %v5377
        %v5413 = vadd.f32 %v3855, %v5380
        %v5414 = vadd.f32 %v3856, %v5382
        %v5415 = vadd.f32 %v3857, %v5385
        %v5416 = vadd.f32 %v3858, %v5387
        %v5417 = vadd.f32 %v3859, %v5390
        %v5418 = vadd.f32 %v3860, %v5392
        %v5419 = vadd.f32 %v3861, %v5395
        %v5420 = vadd.f32 %v3862, %v5397
        %v5421 = vadd.f32 %v3863, %v5400
        %v5422 = vadd.f32 %v3864, %v5402
        %v5423 = vadd.f32 %v3865, %v5405
        %v5424 = vadd.f32 %v3866, %v5407
        %v5425 = vsel %vm949, %v5409, 0.0
        %5426 = vadd.xlane.f32.xlu0 %v5425
        %v5427 = vpop.xlane.xlu0 %5426
        %v5428 = vsel %vm949, %v5410, 0.0
        %5429 = vadd.xlane.f32.xlu0 %v5428
        %v5430 = vpop.xlane.xlu0 %5429
        %v5431 = vsel %vm949, %v5411, 0.0
        %5432 = vadd.xlane.f32.xlu0 %v5431
        %v5433 = vpop.xlane.xlu0 %5432
        %v5434 = vsel %vm949, %v5412, 0.0
        %5435 = vadd.xlane.f32.xlu0 %v5434
        %v5436 = vpop.xlane.xlu0 %5435
        %v5437 = vsel %vm949, %v5413, 0.0
        %5438 = vadd.xlane.f32.xlu0 %v5437
        %v5439 = vpop.xlane.xlu0 %5438
        %v5440 = vsel %vm949, %v5414, 0.0
        %5441 = vadd.xlane.f32.xlu0 %v5440
        %v5442 = vpop.xlane.xlu0 %5441
        %v5443 = vsel %vm949, %v5415, 0.0
        %5444 = vadd.xlane.f32.xlu0 %v5443
        %v5445 = vpop.xlane.xlu0 %5444
        %v5446 = vsel %vm949, %v5416, 0.0
        %5447 = vadd.xlane.f32.xlu0 %v5446
        %v5448 = vpop.xlane.xlu0 %5447
        %v5449 = vsel %vm949, %v5417, 0.0
        %5450 = vadd.xlane.f32.xlu0 %v5449
        %v5451 = vpop.xlane.xlu0 %5450
        %v5452 = vsel %vm949, %v5418, 0.0
        %5453 = vadd.xlane.f32.xlu0 %v5452
        %v5454 = vpop.xlane.xlu0 %5453
        %v5455 = vsel %vm949, %v5419, 0.0
        %5456 = vadd.xlane.f32.xlu0 %v5455
        %v5457 = vpop.xlane.xlu0 %5456
        %v5458 = vsel %vm949, %v5420, 0.0
        %5459 = vadd.xlane.f32.xlu0 %v5458
        %v5460 = vpop.xlane.xlu0 %5459
        %v5461 = vsel %vm949, %v5421, 0.0
        %5462 = vadd.xlane.f32.xlu0 %v5461
        %v5463 = vpop.xlane.xlu0 %5462
        %v5464 = vsel %vm949, %v5422, 0.0
        %5465 = vadd.xlane.f32.xlu0 %v5464
        %v5466 = vpop.xlane.xlu0 %5465
        %v5467 = vsel %vm949, %v5423, 0.0
        %5468 = vadd.xlane.f32.xlu0 %v5467
        %v5469 = vpop.xlane.xlu0 %5468
        %v5470 = vsel %vm949, %v5424, 0.0
        %5471 = vadd.xlane.f32.xlu0 %v5470
        %v5472 = vpop.xlane.xlu0 %5471
        %v5473 = vmul.f32 %v5427, %v2912
        %v5474 = vmul.f32 %v5430, %v2912
        %v5475 = vmul.f32 %v5433, %v2912
        %v5476 = vmul.f32 %v5436, %v2912
        %v5477 = vmul.f32 %v5439, %v2912
        %v5478 = vmul.f32 %v5442, %v2912
        %v5479 = vmul.f32 %v5445, %v2912
        %v5480 = vmul.f32 %v5448, %v2912
        %v5481 = vmul.f32 %v5451, %v2912
        %v5482 = vmul.f32 %v5454, %v2912
        %v5483 = vmul.f32 %v5457, %v2912
        %v5484 = vmul.f32 %v5460, %v2912
        %v5485 = vmul.f32 %v5463, %v2912
        %v5486 = vmul.f32 %v5466, %v2912
        %v5487 = vmul.f32 %v5469, %v2912
        %v5488 = vmul.f32 %v5472, %v2912
        %v5489 = vsub.f32 %v5409, %v5473
        %v5490 = vsub.f32 %v5410, %v5474
        %v5491 = vsub.f32 %v5411, %v5475
        %v5492 = vsub.f32 %v5412, %v5476
        %v5493 = vsub.f32 %v5413, %v5477
        %v5494 = vsub.f32 %v5414, %v5478
        %v5495 = vsub.f32 %v5415, %v5479
        %v5496 = vsub.f32 %v5416, %v5480
        %v5497 = vsub.f32 %v5417, %v5481
        %v5498 = vsub.f32 %v5418, %v5482
        %v5499 = vsub.f32 %v5419, %v5483
        %v5500 = vsub.f32 %v5420, %v5484
        %v5501 = vsub.f32 %v5421, %v5485
        %v5502 = vsub.f32 %v5422, %v5486
        %v5503 = vsub.f32 %v5423, %v5487
        %v5504 = vsub.f32 %v5424, %v5488
        %v5505 = vmul.f32 %v5489, %v5489
        %v5506 = vmul.f32 %v5490, %v5490
        %v5507 = vmul.f32 %v5491, %v5491
        %v5508 = vmul.f32 %v5492, %v5492
        %v5509 = vmul.f32 %v5493, %v5493
        %v5510 = vmul.f32 %v5494, %v5494
        %v5511 = vmul.f32 %v5495, %v5495
        %v5512 = vmul.f32 %v5496, %v5496
        %v5513 = vmul.f32 %v5497, %v5497
        %v5514 = vmul.f32 %v5498, %v5498
        %v5515 = vmul.f32 %v5499, %v5499
        %v5516 = vmul.f32 %v5500, %v5500
        %v5517 = vmul.f32 %v5501, %v5501
        %v5518 = vmul.f32 %v5502, %v5502
        %v5519 = vmul.f32 %v5503, %v5503
        %v5520 = vmul.f32 %v5504, %v5504
        %v5521 = vsel %vm949, %v5505, 0.0
        %5522 = vadd.xlane.f32.xlu0 %v5521
        %v5523 = vpop.xlane.xlu0 %5522
        %v5524 = vsel %vm949, %v5506, 0.0
        %5525 = vadd.xlane.f32.xlu0 %v5524
        %v5526 = vpop.xlane.xlu0 %5525
        %v5527 = vsel %vm949, %v5507, 0.0
        %5528 = vadd.xlane.f32.xlu0 %v5527
        %v5529 = vpop.xlane.xlu0 %5528
        %v5530 = vsel %vm949, %v5508, 0.0
        %5531 = vadd.xlane.f32.xlu0 %v5530
        %v5532 = vpop.xlane.xlu0 %5531
        %v5533 = vsel %vm949, %v5509, 0.0
        %5534 = vadd.xlane.f32.xlu0 %v5533
        %v5535 = vpop.xlane.xlu0 %5534
        %v5536 = vsel %vm949, %v5510, 0.0
        %5537 = vadd.xlane.f32.xlu0 %v5536
        %v5538 = vpop.xlane.xlu0 %5537
        %v5539 = vsel %vm949, %v5511, 0.0
        %5540 = vadd.xlane.f32.xlu0 %v5539
        %v5541 = vpop.xlane.xlu0 %5540
        %v5542 = vsel %vm949, %v5512, 0.0
        %5543 = vadd.xlane.f32.xlu0 %v5542
        %v5544 = vpop.xlane.xlu0 %5543
        %v5545 = vsel %vm949, %v5513, 0.0
        %5546 = vadd.xlane.f32.xlu0 %v5545
        %v5547 = vpop.xlane.xlu0 %5546
        %v5548 = vsel %vm949, %v5514, 0.0
        %5549 = vadd.xlane.f32.xlu0 %v5548
        %v5550 = vpop.xlane.xlu0 %5549
        %v5551 = vsel %vm949, %v5515, 0.0
        %5552 = vadd.xlane.f32.xlu0 %v5551
        %v5553 = vpop.xlane.xlu0 %5552
        %v5554 = vsel %vm949, %v5516, 0.0
        %5555 = vadd.xlane.f32.xlu0 %v5554
        %v5556 = vpop.xlane.xlu0 %5555
        %v5557 = vsel %vm949, %v5517, 0.0
        %5558 = vadd.xlane.f32.xlu0 %v5557
        %v5559 = vpop.xlane.xlu0 %5558
        %v5560 = vsel %vm949, %v5518, 0.0
        %5561 = vadd.xlane.f32.xlu0 %v5560
        %v5562 = vpop.xlane.xlu0 %5561
        %v5563 = vsel %vm949, %v5519, 0.0
        %5564 = vadd.xlane.f32.xlu0 %v5563
        %v5565 = vpop.xlane.xlu0 %5564
        %v5566 = vsel %vm949, %v5520, 0.0
        %5567 = vadd.xlane.f32.xlu0 %v5566
        %v5568 = vpop.xlane.xlu0 %5567
        %v5569 = vmul.f32 %v5523, %v2912
        %v5570 = vmul.f32 %v5526, %v2912
        %v5571 = vmul.f32 %v5529, %v2912
        %v5572 = vmul.f32 %v5532, %v2912
        %v5573 = vmul.f32 %v5535, %v2912
        %v5574 = vmul.f32 %v5538, %v2912
        %v5575 = vmul.f32 %v5541, %v2912
        %v5576 = vmul.f32 %v5544, %v2912
        %v5577 = vmul.f32 %v5547, %v2912
        %v5578 = vmul.f32 %v5550, %v2912
        %v5579 = vmul.f32 %v5553, %v2912
        %v5580 = vmul.f32 %v5556, %v2912
        %v5581 = vmul.f32 %v5559, %v2912
        %v5582 = vmul.f32 %v5562, %v2912
        %v5583 = vmul.f32 %v5565, %v2912
        %v5584 = vmul.f32 %v5568, %v2912
        %v5585 = vadd.f32 %v5569, 1e-05
        %v5586 = vadd.f32 %v5570, 1e-05
        %v5587 = vadd.f32 %v5571, 1e-05
        %v5588 = vadd.f32 %v5572, 1e-05
        %v5589 = vadd.f32 %v5573, 1e-05
        %v5590 = vadd.f32 %v5574, 1e-05
        %v5591 = vadd.f32 %v5575, 1e-05
        %v5592 = vadd.f32 %v5576, 1e-05
        %v5593 = vadd.f32 %v5577, 1e-05
        %v5594 = vadd.f32 %v5578, 1e-05
        %v5595 = vadd.f32 %v5579, 1e-05
        %v5596 = vadd.f32 %v5580, 1e-05
        %v5597 = vadd.f32 %v5581, 1e-05
        %v5598 = vadd.f32 %v5582, 1e-05
        %v5599 = vadd.f32 %v5583, 1e-05
        %v5600 = vadd.f32 %v5584, 1e-05
        %v5601 = vrsqrt.pop %v5585
        %v5602 = vmul.f32 %v5601, %v5585
        %v5603 = vmul.f32 %v5602, %v5601
        %v5604 = vmul.f32 0.5, %v5603
        %v5605 = vsub.f32 1.5, %v5604
        %v5606 = vmul.f32 %v5601, %v5605
        %vm5607 = vweird.f32 %v5585
        %vm5608 = vweird.f32 %v5601
        %vm5609 = vmor %vm5607, %vm5608
        %v5610 = vsel %vm5609, %v5601, %v5606
        %v5611 = vrsqrt.pop %v5586
        %v5612 = vmul.f32 %v5611, %v5586
        %v5613 = vmul.f32 %v5612, %v5611
        %v5614 = vmul.f32 0.5, %v5613
        %v5615 = vsub.f32 1.5, %v5614
        %v5616 = vmul.f32 %v5611, %v5615
        %vm5617 = vweird.f32 %v5586
        %vm5618 = vweird.f32 %v5611
        %vm5619 = vmor %vm5617, %vm5618
        %v5620 = vsel %vm5619, %v5611, %v5616
        %v5621 = vrsqrt.pop %v5587
        %v5622 = vmul.f32 %v5621, %v5587
        %v5623 = vmul.f32 %v5622, %v5621
        %v5624 = vmul.f32 0.5, %v5623
        %v5625 = vsub.f32 1.5, %v5624
        %v5626 = vmul.f32 %v5621, %v5625
        %vm5627 = vweird.f32 %v5587
        %vm5628 = vweird.f32 %v5621
        %vm5629 = vmor %vm5627, %vm5628
        %v5630 = vsel %vm5629, %v5621, %v5626
        %v5631 = vrsqrt.pop %v5588
        %v5632 = vmul.f32 %v5631, %v5588
        %v5633 = vmul.f32 %v5632, %v5631
        %v5634 = vmul.f32 0.5, %v5633
        %v5635 = vsub.f32 1.5, %v5634
        %v5636 = vmul.f32 %v5631, %v5635
        %vm5637 = vweird.f32 %v5588
        %vm5638 = vweird.f32 %v5631
        %vm5639 = vmor %vm5637, %vm5638
        %v5640 = vsel %vm5639, %v5631, %v5636
        %v5641 = vrsqrt.pop %v5589
        %v5642 = vmul.f32 %v5641, %v5589
        %v5643 = vmul.f32 %v5642, %v5641
        %v5644 = vmul.f32 0.5, %v5643
        %v5645 = vsub.f32 1.5, %v5644
        %v5646 = vmul.f32 %v5641, %v5645
        %vm5647 = vweird.f32 %v5589
        %vm5648 = vweird.f32 %v5641
        %vm5649 = vmor %vm5647, %vm5648
        %v5650 = vsel %vm5649, %v5641, %v5646
        %v5651 = vrsqrt.pop %v5590
        %v5652 = vmul.f32 %v5651, %v5590
        %v5653 = vmul.f32 %v5652, %v5651
        %v5654 = vmul.f32 0.5, %v5653
        %v5655 = vsub.f32 1.5, %v5654
        %v5656 = vmul.f32 %v5651, %v5655
        %vm5657 = vweird.f32 %v5590
        %vm5658 = vweird.f32 %v5651
        %vm5659 = vmor %vm5657, %vm5658
        %v5660 = vsel %vm5659, %v5651, %v5656
        %v5661 = vrsqrt.pop %v5591
        %v5662 = vmul.f32 %v5661, %v5591
        %v5663 = vmul.f32 %v5662, %v5661
        %v5664 = vmul.f32 0.5, %v5663
        %v5665 = vsub.f32 1.5, %v5664
        %v5666 = vmul.f32 %v5661, %v5665
        %vm5667 = vweird.f32 %v5591
        %vm5668 = vweird.f32 %v5661
        %vm5669 = vmor %vm5667, %vm5668
        %v5670 = vsel %vm5669, %v5661, %v5666
        %v5671 = vrsqrt.pop %v5592
        %v5672 = vmul.f32 %v5671, %v5592
        %v5673 = vmul.f32 %v5672, %v5671
        %v5674 = vmul.f32 0.5, %v5673
        %v5675 = vsub.f32 1.5, %v5674
        %v5676 = vmul.f32 %v5671, %v5675
        %vm5677 = vweird.f32 %v5592
        %vm5678 = vweird.f32 %v5671
        %vm5679 = vmor %vm5677, %vm5678
        %v5680 = vsel %vm5679, %v5671, %v5676
        %v5681 = vrsqrt.pop %v5593
        %v5682 = vmul.f32 %v5681, %v5593
        %v5683 = vmul.f32 %v5682, %v5681
        %v5684 = vmul.f32 0.5, %v5683
        %v5685 = vsub.f32 1.5, %v5684
        %v5686 = vmul.f32 %v5681, %v5685
        %vm5687 = vweird.f32 %v5593
        %vm5688 = vweird.f32 %v5681
        %vm5689 = vmor %vm5687, %vm5688
        %v5690 = vsel %vm5689, %v5681, %v5686
        %v5691 = vrsqrt.pop %v5594
        %v5692 = vmul.f32 %v5691, %v5594
        %v5693 = vmul.f32 %v5692, %v5691
        %v5694 = vmul.f32 0.5, %v5693
        %v5695 = vsub.f32 1.5, %v5694
        %v5696 = vmul.f32 %v5691, %v5695
        %vm5697 = vweird.f32 %v5594
        %vm5698 = vweird.f32 %v5691
        %vm5699 = vmor %vm5697, %vm5698
        %v5700 = vsel %vm5699, %v5691, %v5696
        %v5701 = vrsqrt.pop %v5595
        %v5702 = vmul.f32 %v5701, %v5595
        %v5703 = vmul.f32 %v5702, %v5701
        %v5704 = vmul.f32 0.5, %v5703
        %v5705 = vsub.f32 1.5, %v5704
        %v5706 = vmul.f32 %v5701, %v5705
        %vm5707 = vweird.f32 %v5595
        %vm5708 = vweird.f32 %v5701
        %vm5709 = vmor %vm5707, %vm5708
        %v5710 = vsel %vm5709, %v5701, %v5706
        %v5711 = vrsqrt.pop %v5596
        %v5712 = vmul.f32 %v5711, %v5596
        %v5713 = vmul.f32 %v5712, %v5711
        %v5714 = vmul.f32 0.5, %v5713
        %v5715 = vsub.f32 1.5, %v5714
        %v5716 = vmul.f32 %v5711, %v5715
        %vm5717 = vweird.f32 %v5596
        %vm5718 = vweird.f32 %v5711
        %vm5719 = vmor %vm5717, %vm5718
        %v5720 = vsel %vm5719, %v5711, %v5716
        %v5721 = vrsqrt.pop %v5597
        %v5722 = vmul.f32 %v5721, %v5597
        %v5723 = vmul.f32 %v5722, %v5721
        %v5724 = vmul.f32 0.5, %v5723
        %v5725 = vsub.f32 1.5, %v5724
        %v5726 = vmul.f32 %v5721, %v5725
        %vm5727 = vweird.f32 %v5597
        %vm5728 = vweird.f32 %v5721
        %vm5729 = vmor %vm5727, %vm5728
        %v5730 = vsel %vm5729, %v5721, %v5726
        %v5731 = vrsqrt.pop %v5598
        %v5732 = vmul.f32 %v5731, %v5598
        %v5733 = vmul.f32 %v5732, %v5731
        %v5734 = vmul.f32 0.5, %v5733
        %v5735 = vsub.f32 1.5, %v5734
        %v5736 = vmul.f32 %v5731, %v5735
        %vm5737 = vweird.f32 %v5598
        %vm5738 = vweird.f32 %v5731
        %vm5739 = vmor %vm5737, %vm5738
        %v5740 = vsel %vm5739, %v5731, %v5736
        %v5741 = vrsqrt.pop %v5599
        %v5742 = vmul.f32 %v5741, %v5599
        %v5743 = vmul.f32 %v5742, %v5741
        %v5744 = vmul.f32 0.5, %v5743
        %v5745 = vsub.f32 1.5, %v5744
        %v5746 = vmul.f32 %v5741, %v5745
        %vm5747 = vweird.f32 %v5599
        %vm5748 = vweird.f32 %v5741
        %vm5749 = vmor %vm5747, %vm5748
        %v5750 = vsel %vm5749, %v5741, %v5746
        %v5751 = vrsqrt.pop %v5600
        %v5752 = vmul.f32 %v5751, %v5600
        %v5753 = vmul.f32 %v5752, %v5751
        %v5754 = vmul.f32 0.5, %v5753
        %v5755 = vsub.f32 1.5, %v5754
        %v5756 = vmul.f32 %v5751, %v5755
        %vm5757 = vweird.f32 %v5600
        %vm5758 = vweird.f32 %v5751
        %vm5759 = vmor %vm5757, %vm5758
        %v5760 = vsel %vm5759, %v5751, %v5756
        %v5761 = vmul.f32 %v5489, %v5610
        %v5762 = vmul.f32 %v5490, %v5620
        %v5763 = vmul.f32 %v5491, %v5630
        %v5764 = vmul.f32 %v5492, %v5640
        %v5765 = vmul.f32 %v5493, %v5650
        %v5766 = vmul.f32 %v5494, %v5660
        %v5767 = vmul.f32 %v5495, %v5670
        %v5768 = vmul.f32 %v5496, %v5680
        %v5769 = vmul.f32 %v5497, %v5690
        %v5770 = vmul.f32 %v5498, %v5700
        %v5771 = vmul.f32 %v5499, %v5710
        %v5772 = vmul.f32 %v5500, %v5720
        %v5773 = vmul.f32 %v5501, %v5730
        %v5774 = vmul.f32 %v5502, %v5740
        %v5775 = vmul.f32 %v5503, %v5750
        %v5776 = vmul.f32 %v5504, %v5760
        %v5777 = vperm.slane %v3868, 0
        %v5778 = vmul.f32 %v5761, %v5777
        %v5779 = vmul.f32 %v5762, %v5777
        %v5780 = vmul.f32 %v5763, %v5777
        %v5781 = vmul.f32 %v5764, %v5777
        %v5782 = vmul.f32 %v5765, %v5777
        %v5783 = vmul.f32 %v5766, %v5777
        %v5784 = vmul.f32 %v5767, %v5777
        %v5785 = vmul.f32 %v5768, %v5777
        %v5786 = vmul.f32 %v5769, %v5777
        %v5787 = vmul.f32 %v5770, %v5777
        %v5788 = vmul.f32 %v5771, %v5777
        %v5789 = vmul.f32 %v5772, %v5777
        %v5790 = vmul.f32 %v5773, %v5777
        %v5791 = vmul.f32 %v5774, %v5777
        %v5792 = vmul.f32 %v5775, %v5777
        %v5793 = vmul.f32 %v5776, %v5777
        %v5794 = vperm.slane %v3869, 0
        %v5795 = vadd.f32 %v5778, %v5794
        %v5796 = vadd.f32 %v5779, %v5794
        %v5797 = vadd.f32 %v5780, %v5794
        %v5798 = vadd.f32 %v5781, %v5794
        %v5799 = vadd.f32 %v5782, %v5794
        %v5800 = vadd.f32 %v5783, %v5794
        %v5801 = vadd.f32 %v5784, %v5794
        %v5802 = vadd.f32 %v5785, %v5794
        %v5803 = vadd.f32 %v5786, %v5794
        %v5804 = vadd.f32 %v5787, %v5794
        %v5805 = vadd.f32 %v5788, %v5794
        %v5806 = vadd.f32 %v5789, %v5794
        %v5807 = vadd.f32 %v5790, %v5794
        %v5808 = vadd.f32 %v5791, %v5794
        %v5809 = vadd.f32 %v5792, %v5794
        %v5810 = vadd.f32 %v5793, %v5794
        %v5811 = vpack.c.bf16 %v5796, %v5795
        %v5812 = vpack.c.bf16 %v5798, %v5797
        %v5813 = vpack.c.bf16 %v5800, %v5799
        %v5814 = vpack.c.bf16 %v5802, %v5801
        %v5815 = vpack.c.bf16 %v5804, %v5803
        %v5816 = vpack.c.bf16 %v5806, %v5805
        %v5817 = vpack.c.bf16 %v5808, %v5807
        %v5818 = vpack.c.bf16 %v5810, %v5809
        %s5819 = scalar_lea.vmem %s8, 64
        %v5820 = vld [vmem:[%s5819] sm:$0xf]
        %v5821 = vld [vmem:[%s5819 + $0x4] sm:$0xf]
        %v5822 = vld [vmem:[%s5819 + $0x8] sm:$0xf]
        %v5823 = vld [vmem:[%s5819 + $0xc] sm:$0xf]
        %v5824 = vperm.slane %v3870, 0
        %v5829 = vunpack.c.l.b16 %v5820
        %v5830 = vunpack.c.l.b16 %v5821
        %v5831 = vunpack.c.l.b16 %v5822
        %v5832 = vunpack.c.l.b16 %v5823
        %v5833 = vpack.c.b16 %v5830, %v5829
        %v5834 = vpack.c.b16 %v5832, %v5831
        %v5838 = vsel %vm949, %v5811, 0
        %v5841 = vsel %vm949, %v5812, 0
        %v5844 = vsel %vm949, %v5813, 0
        %v5847 = vsel %vm949, %v5814, 0
        %v5850 = vsel %vm949, %v5815, 0
        %v5853 = vsel %vm949, %v5816, 0
        %v5856 = vsel %vm949, %v5817, 0
        %v5859 = vsel %vm949, %v5818, 0
        %5861 = vmatpush.bf16.msra.mxu0 0
        %5862 = vmatpush.bf16.msra.mxu0 0
        %5863 = vmatpush.bf16.msra.mxu0 0
        %5864 = vmatpush.bf16.msra.mxu0 0
        %5865 = vmatpush.bf16.msra.mxu0 0
        %5866 = vmatpush.bf16.msra.mxu0 0
        %5867 = vmatpush.bf16.msra.mxu0 %v5834
        %5868 = vmatpush.bf16.msra.mxu0 %v5833
        %5869 = vmatmul.bf16.gmra.mxu0 %v5838
        %v5870 = vpop.f32.mrf.mxu0
        %v5871 = vadd.f32 %v5824, %v5870
        %v5872 = vpop.f32.mrf.mxu0
        %v5873 = vadd.f32 %v5824, %v5872
        %5874 = vmatmul.bf16.gmra.mxu0 %v5841
        %v5875 = vpop.f32.mrf.mxu0
        %v5876 = vadd.f32 %v5824, %v5875
        %v5877 = vpop.f32.mrf.mxu0
        %v5878 = vadd.f32 %v5824, %v5877
        %5879 = vmatmul.bf16.gmra.mxu0 %v5844
        %v5880 = vpop.f32.mrf.mxu0
        %v5881 = vadd.f32 %v5824, %v5880
        %v5882 = vpop.f32.mrf.mxu0
        %v5883 = vadd.f32 %v5824, %v5882
        %5884 = vmatmul.bf16.gmra.mxu0 %v5847
        %v5885 = vpop.f32.mrf.mxu0
        %v5886 = vadd.f32 %v5824, %v5885
        %v5887 = vpop.f32.mrf.mxu0
        %v5888 = vadd.f32 %v5824, %v5887
        %5889 = vmatmul.bf16.gmra.mxu0 %v5850
        %v5890 = vpop.f32.mrf.mxu0
        %v5891 = vadd.f32 %v5824, %v5890
        %v5892 = vpop.f32.mrf.mxu0
        %v5893 = vadd.f32 %v5824, %v5892
        %5894 = vmatmul.bf16.gmra.mxu0 %v5853
        %v5895 = vpop.f32.mrf.mxu0
        %v5896 = vadd.f32 %v5824, %v5895
        %v5897 = vpop.f32.mrf.mxu0
        %v5898 = vadd.f32 %v5824, %v5897
        %5899 = vmatmul.bf16.gmra.mxu0 %v5856
        %v5900 = vpop.f32.mrf.mxu0
        %v5901 = vadd.f32 %v5824, %v5900
        %v5902 = vpop.f32.mrf.mxu0
        %v5903 = vadd.f32 %v5824, %v5902
        %5904 = vmatmul.bf16.gmra.mxu0 %v5859
        %v5905 = vpop.f32.mrf.mxu0
        %v5906 = vadd.f32 %v5824, %v5905
        %v5907 = vpop.f32.mrf.mxu0
        %v5908 = vadd.f32 %v5824, %v5907
        %5909 = vdwg.mxu0
        %v5910 = vmax.f32 %v5871, 0.0
        %v5911 = vmax.f32 %v5873, 0.0
        %v5912 = vmax.f32 %v5876, 0.0
        %v5913 = vmax.f32 %v5878, 0.0
        %v5914 = vmax.f32 %v5881, 0.0
        %v5915 = vmax.f32 %v5883, 0.0
        %v5916 = vmax.f32 %v5886, 0.0
        %v5917 = vmax.f32 %v5888, 0.0
        %v5918 = vmax.f32 %v5891, 0.0
        %v5919 = vmax.f32 %v5893, 0.0
        %v5920 = vmax.f32 %v5896, 0.0
        %v5921 = vmax.f32 %v5898, 0.0
        %v5922 = vmax.f32 %v5901, 0.0
        %v5923 = vmax.f32 %v5903, 0.0
        %v5924 = vmax.f32 %v5906, 0.0
        %v5925 = vmax.f32 %v5908, 0.0
        %v5926 = vpack.c.bf16 %v5911, %v5910
        %v5927 = vpack.c.bf16 %v5913, %v5912
        %v5928 = vpack.c.bf16 %v5915, %v5914
        %v5929 = vpack.c.bf16 %v5917, %v5916
        %v5930 = vpack.c.bf16 %v5919, %v5918
        %v5931 = vpack.c.bf16 %v5921, %v5920
        %v5932 = vpack.c.bf16 %v5923, %v5922
        %v5933 = vpack.c.bf16 %v5925, %v5924
        %s5934 = scalar_lea.vmem %s8, 80
        %v5935 = vld [vmem:[%s5934] sm:$0xf]
        %v5936 = vld [vmem:[%s5934 + $0x4] sm:$0xf]
        %v5937 = vld [vmem:[%s5934 + $0x8] sm:$0xf]
        %v5938 = vld [vmem:[%s5934 + $0xc] sm:$0xf]
        %v5939 = vperm.slane %v3871, 0
        %v5944 = vunpack.c.l.b16 %v5935
        %v5945 = vunpack.c.l.b16 %v5936
        %v5946 = vunpack.c.l.b16 %v5937
        %v5947 = vunpack.c.l.b16 %v5938
        %v5948 = vpack.c.b16 %v5945, %v5944
        %v5949 = vpack.c.b16 %v5947, %v5946
        %v5953 = vsel %vm949, %v5926, 0
        %v5956 = vsel %vm949, %v5927, 0
        %v5959 = vsel %vm949, %v5928, 0
        %v5962 = vsel %vm949, %v5929, 0
        %v5965 = vsel %vm949, %v5930, 0
        %v5968 = vsel %vm949, %v5931, 0
        %v5971 = vsel %vm949, %v5932, 0
        %v5974 = vsel %vm949, %v5933, 0
        %5976 = vmatpush.bf16.msra.mxu0 0
        %5977 = vmatpush.bf16.msra.mxu0 0
        %5978 = vmatpush.bf16.msra.mxu0 0
        %5979 = vmatpush.bf16.msra.mxu0 0
        %5980 = vmatpush.bf16.msra.mxu0 0
        %5981 = vmatpush.bf16.msra.mxu0 0
        %5982 = vmatpush.bf16.msra.mxu0 %v5949
        %5983 = vmatpush.bf16.msra.mxu0 %v5948
        %5984 = vmatmul.bf16.gmra.mxu0 %v5953
        %v5985 = vpop.f32.mrf.mxu0
        %v5986 = vadd.f32 %v5939, %v5985
        %v5987 = vpop.f32.mrf.mxu0
        %v5988 = vadd.f32 %v5939, %v5987
        %5989 = vmatmul.bf16.gmra.mxu0 %v5956
        %v5990 = vpop.f32.mrf.mxu0
        %v5991 = vadd.f32 %v5939, %v5990
        %v5992 = vpop.f32.mrf.mxu0
        %v5993 = vadd.f32 %v5939, %v5992
        %5994 = vmatmul.bf16.gmra.mxu0 %v5959
        %v5995 = vpop.f32.mrf.mxu0
        %v5996 = vadd.f32 %v5939, %v5995
        %v5997 = vpop.f32.mrf.mxu0
        %v5998 = vadd.f32 %v5939, %v5997
        %5999 = vmatmul.bf16.gmra.mxu0 %v5962
        %v6000 = vpop.f32.mrf.mxu0
        %v6001 = vadd.f32 %v5939, %v6000
        %v6002 = vpop.f32.mrf.mxu0
        %v6003 = vadd.f32 %v5939, %v6002
        %6004 = vmatmul.bf16.gmra.mxu0 %v5965
        %v6005 = vpop.f32.mrf.mxu0
        %v6006 = vadd.f32 %v5939, %v6005
        %v6007 = vpop.f32.mrf.mxu0
        %v6008 = vadd.f32 %v5939, %v6007
        %6009 = vmatmul.bf16.gmra.mxu0 %v5968
        %v6010 = vpop.f32.mrf.mxu0
        %v6011 = vadd.f32 %v5939, %v6010
        %v6012 = vpop.f32.mrf.mxu0
        %v6013 = vadd.f32 %v5939, %v6012
        %6014 = vmatmul.bf16.gmra.mxu0 %v5971
        %v6015 = vpop.f32.mrf.mxu0
        %v6016 = vadd.f32 %v5939, %v6015
        %v6017 = vpop.f32.mrf.mxu0
        %v6018 = vadd.f32 %v5939, %v6017
        %6019 = vmatmul.bf16.gmra.mxu0 %v5974
        %v6020 = vpop.f32.mrf.mxu0
        %v6021 = vadd.f32 %v5939, %v6020
        %v6022 = vpop.f32.mrf.mxu0
        %v6023 = vadd.f32 %v5939, %v6022
        %6024 = vdwg.mxu0
        %v6025 = vadd.f32 %v5795, %v5986
        %v6026 = vadd.f32 %v5796, %v5988
        %v6027 = vadd.f32 %v5797, %v5991
        %v6028 = vadd.f32 %v5798, %v5993
        %v6029 = vadd.f32 %v5799, %v5996
        %v6030 = vadd.f32 %v5800, %v5998
        %v6031 = vadd.f32 %v5801, %v6001
        %v6032 = vadd.f32 %v5802, %v6003
        %v6033 = vadd.f32 %v5803, %v6006
        %v6034 = vadd.f32 %v5804, %v6008
        %v6035 = vadd.f32 %v5805, %v6011
        %v6036 = vadd.f32 %v5806, %v6013
        %v6037 = vadd.f32 %v5807, %v6016
        %v6038 = vadd.f32 %v5808, %v6018
        %v6039 = vadd.f32 %v5809, %v6021
        %v6040 = vadd.f32 %v5810, %v6023
        %v6041 = vsel %vm949, %v6025, 0.0
        %6042 = vadd.xlane.f32.xlu0 %v6041
        %v6043 = vpop.xlane.xlu0 %6042
        %v6044 = vsel %vm949, %v6026, 0.0
        %6045 = vadd.xlane.f32.xlu0 %v6044
        %v6046 = vpop.xlane.xlu0 %6045
        %v6047 = vsel %vm949, %v6027, 0.0
        %6048 = vadd.xlane.f32.xlu0 %v6047
        %v6049 = vpop.xlane.xlu0 %6048
        %v6050 = vsel %vm949, %v6028, 0.0
        %6051 = vadd.xlane.f32.xlu0 %v6050
        %v6052 = vpop.xlane.xlu0 %6051
        %v6053 = vsel %vm949, %v6029, 0.0
        %6054 = vadd.xlane.f32.xlu0 %v6053
        %v6055 = vpop.xlane.xlu0 %6054
        %v6056 = vsel %vm949, %v6030, 0.0
        %6057 = vadd.xlane.f32.xlu0 %v6056
        %v6058 = vpop.xlane.xlu0 %6057
        %v6059 = vsel %vm949, %v6031, 0.0
        %6060 = vadd.xlane.f32.xlu0 %v6059
        %v6061 = vpop.xlane.xlu0 %6060
        %v6062 = vsel %vm949, %v6032, 0.0
        %6063 = vadd.xlane.f32.xlu0 %v6062
        %v6064 = vpop.xlane.xlu0 %6063
        %v6065 = vsel %vm949, %v6033, 0.0
        %6066 = vadd.xlane.f32.xlu0 %v6065
        %v6067 = vpop.xlane.xlu0 %6066
        %v6068 = vsel %vm949, %v6034, 0.0
        %6069 = vadd.xlane.f32.xlu0 %v6068
        %v6070 = vpop.xlane.xlu0 %6069
        %v6071 = vsel %vm949, %v6035, 0.0
        %6072 = vadd.xlane.f32.xlu0 %v6071
        %v6073 = vpop.xlane.xlu0 %6072
        %v6074 = vsel %vm949, %v6036, 0.0
        %6075 = vadd.xlane.f32.xlu0 %v6074
        %v6076 = vpop.xlane.xlu0 %6075
        %v6077 = vsel %vm949, %v6037, 0.0
        %6078 = vadd.xlane.f32.xlu0 %v6077
        %v6079 = vpop.xlane.xlu0 %6078
        %v6080 = vsel %vm949, %v6038, 0.0
        %6081 = vadd.xlane.f32.xlu0 %v6080
        %v6082 = vpop.xlane.xlu0 %6081
        %v6083 = vsel %vm949, %v6039, 0.0
        %6084 = vadd.xlane.f32.xlu0 %v6083
        %v6085 = vpop.xlane.xlu0 %6084
        %v6086 = vsel %vm949, %v6040, 0.0
        %6087 = vadd.xlane.f32.xlu0 %v6086
        %v6088 = vpop.xlane.xlu0 %6087
        %v6089 = vmul.f32 %v6043, %v2912
        %v6090 = vmul.f32 %v6046, %v2912
        %v6091 = vmul.f32 %v6049, %v2912
        %v6092 = vmul.f32 %v6052, %v2912
        %v6093 = vmul.f32 %v6055, %v2912
        %v6094 = vmul.f32 %v6058, %v2912
        %v6095 = vmul.f32 %v6061, %v2912
        %v6096 = vmul.f32 %v6064, %v2912
        %v6097 = vmul.f32 %v6067, %v2912
        %v6098 = vmul.f32 %v6070, %v2912
        %v6099 = vmul.f32 %v6073, %v2912
        %v6100 = vmul.f32 %v6076, %v2912
        %v6101 = vmul.f32 %v6079, %v2912
        %v6102 = vmul.f32 %v6082, %v2912
        %v6103 = vmul.f32 %v6085, %v2912
        %v6104 = vmul.f32 %v6088, %v2912
        %v6105 = vsub.f32 %v6025, %v6089
        %v6106 = vsub.f32 %v6026, %v6090
        %v6107 = vsub.f32 %v6027, %v6091
        %v6108 = vsub.f32 %v6028, %v6092
        %v6109 = vsub.f32 %v6029, %v6093
        %v6110 = vsub.f32 %v6030, %v6094
        %v6111 = vsub.f32 %v6031, %v6095
        %v6112 = vsub.f32 %v6032, %v6096
        %v6113 = vsub.f32 %v6033, %v6097
        %v6114 = vsub.f32 %v6034, %v6098
        %v6115 = vsub.f32 %v6035, %v6099
        %v6116 = vsub.f32 %v6036, %v6100
        %v6117 = vsub.f32 %v6037, %v6101
        %v6118 = vsub.f32 %v6038, %v6102
        %v6119 = vsub.f32 %v6039, %v6103
        %v6120 = vsub.f32 %v6040, %v6104
        %v6121 = vmul.f32 %v6105, %v6105
        %v6122 = vmul.f32 %v6106, %v6106
        %v6123 = vmul.f32 %v6107, %v6107
        %v6124 = vmul.f32 %v6108, %v6108
        %v6125 = vmul.f32 %v6109, %v6109
        %v6126 = vmul.f32 %v6110, %v6110
        %v6127 = vmul.f32 %v6111, %v6111
        %v6128 = vmul.f32 %v6112, %v6112
        %v6129 = vmul.f32 %v6113, %v6113
        %v6130 = vmul.f32 %v6114, %v6114
        %v6131 = vmul.f32 %v6115, %v6115
        %v6132 = vmul.f32 %v6116, %v6116
        %v6133 = vmul.f32 %v6117, %v6117
        %v6134 = vmul.f32 %v6118, %v6118
        %v6135 = vmul.f32 %v6119, %v6119
        %v6136 = vmul.f32 %v6120, %v6120
        %v6137 = vsel %vm949, %v6121, 0.0
        %6138 = vadd.xlane.f32.xlu0 %v6137
        %v6139 = vpop.xlane.xlu0 %6138
        %v6140 = vsel %vm949, %v6122, 0.0
        %6141 = vadd.xlane.f32.xlu0 %v6140
        %v6142 = vpop.xlane.xlu0 %6141
        %v6143 = vsel %vm949, %v6123, 0.0
        %6144 = vadd.xlane.f32.xlu0 %v6143
        %v6145 = vpop.xlane.xlu0 %6144
        %v6146 = vsel %vm949, %v6124, 0.0
        %6147 = vadd.xlane.f32.xlu0 %v6146
        %v6148 = vpop.xlane.xlu0 %6147
        %v6149 = vsel %vm949, %v6125, 0.0
        %6150 = vadd.xlane.f32.xlu0 %v6149
        %v6151 = vpop.xlane.xlu0 %6150
        %v6152 = vsel %vm949, %v6126, 0.0
        %6153 = vadd.xlane.f32.xlu0 %v6152
        %v6154 = vpop.xlane.xlu0 %6153
        %v6155 = vsel %vm949, %v6127, 0.0
        %6156 = vadd.xlane.f32.xlu0 %v6155
        %v6157 = vpop.xlane.xlu0 %6156
        %v6158 = vsel %vm949, %v6128, 0.0
        %6159 = vadd.xlane.f32.xlu0 %v6158
        %v6160 = vpop.xlane.xlu0 %6159
        %v6161 = vsel %vm949, %v6129, 0.0
        %6162 = vadd.xlane.f32.xlu0 %v6161
        %v6163 = vpop.xlane.xlu0 %6162
        %v6164 = vsel %vm949, %v6130, 0.0
        %6165 = vadd.xlane.f32.xlu0 %v6164
        %v6166 = vpop.xlane.xlu0 %6165
        %v6167 = vsel %vm949, %v6131, 0.0
        %6168 = vadd.xlane.f32.xlu0 %v6167
        %v6169 = vpop.xlane.xlu0 %6168
        %v6170 = vsel %vm949, %v6132, 0.0
        %6171 = vadd.xlane.f32.xlu0 %v6170
        %v6172 = vpop.xlane.xlu0 %6171
        %v6173 = vsel %vm949, %v6133, 0.0
        %6174 = vadd.xlane.f32.xlu0 %v6173
        %v6175 = vpop.xlane.xlu0 %6174
        %v6176 = vsel %vm949, %v6134, 0.0
        %6177 = vadd.xlane.f32.xlu0 %v6176
        %v6178 = vpop.xlane.xlu0 %6177
        %v6179 = vsel %vm949, %v6135, 0.0
        %6180 = vadd.xlane.f32.xlu0 %v6179
        %v6181 = vpop.xlane.xlu0 %6180
        %v6182 = vsel %vm949, %v6136, 0.0
        %6183 = vadd.xlane.f32.xlu0 %v6182
        %v6184 = vpop.xlane.xlu0 %6183
        %v6185 = vmul.f32 %v6139, %v2912
        %v6186 = vmul.f32 %v6142, %v2912
        %v6187 = vmul.f32 %v6145, %v2912
        %v6188 = vmul.f32 %v6148, %v2912
        %v6189 = vmul.f32 %v6151, %v2912
        %v6190 = vmul.f32 %v6154, %v2912
        %v6191 = vmul.f32 %v6157, %v2912
        %v6192 = vmul.f32 %v6160, %v2912
        %v6193 = vmul.f32 %v6163, %v2912
        %v6194 = vmul.f32 %v6166, %v2912
        %v6195 = vmul.f32 %v6169, %v2912
        %v6196 = vmul.f32 %v6172, %v2912
        %v6197 = vmul.f32 %v6175, %v2912
        %v6198 = vmul.f32 %v6178, %v2912
        %v6199 = vmul.f32 %v6181, %v2912
        %v6200 = vmul.f32 %v6184, %v2912
        %v6201 = vadd.f32 %v6185, 1e-05
        %v6202 = vadd.f32 %v6186, 1e-05
        %v6203 = vadd.f32 %v6187, 1e-05
        %v6204 = vadd.f32 %v6188, 1e-05
        %v6205 = vadd.f32 %v6189, 1e-05
        %v6206 = vadd.f32 %v6190, 1e-05
        %v6207 = vadd.f32 %v6191, 1e-05
        %v6208 = vadd.f32 %v6192, 1e-05
        %v6209 = vadd.f32 %v6193, 1e-05
        %v6210 = vadd.f32 %v6194, 1e-05
        %v6211 = vadd.f32 %v6195, 1e-05
        %v6212 = vadd.f32 %v6196, 1e-05
        %v6213 = vadd.f32 %v6197, 1e-05
        %v6214 = vadd.f32 %v6198, 1e-05
        %v6215 = vadd.f32 %v6199, 1e-05
        %v6216 = vadd.f32 %v6200, 1e-05
        %v6217 = vrsqrt.pop %v6201
        %v6218 = vmul.f32 %v6217, %v6201
        %v6219 = vmul.f32 %v6218, %v6217
        %v6220 = vmul.f32 0.5, %v6219
        %v6221 = vsub.f32 1.5, %v6220
        %v6222 = vmul.f32 %v6217, %v6221
        %vm6223 = vweird.f32 %v6201
        %vm6224 = vweird.f32 %v6217
        %vm6225 = vmor %vm6223, %vm6224
        %v6226 = vsel %vm6225, %v6217, %v6222
        %v6227 = vrsqrt.pop %v6202
        %v6228 = vmul.f32 %v6227, %v6202
        %v6229 = vmul.f32 %v6228, %v6227
        %v6230 = vmul.f32 0.5, %v6229
        %v6231 = vsub.f32 1.5, %v6230
        %v6232 = vmul.f32 %v6227, %v6231
        %vm6233 = vweird.f32 %v6202
        %vm6234 = vweird.f32 %v6227
        %vm6235 = vmor %vm6233, %vm6234
        %v6236 = vsel %vm6235, %v6227, %v6232
        %v6237 = vrsqrt.pop %v6203
        %v6238 = vmul.f32 %v6237, %v6203
        %v6239 = vmul.f32 %v6238, %v6237
        %v6240 = vmul.f32 0.5, %v6239
        %v6241 = vsub.f32 1.5, %v6240
        %v6242 = vmul.f32 %v6237, %v6241
        %vm6243 = vweird.f32 %v6203
        %vm6244 = vweird.f32 %v6237
        %vm6245 = vmor %vm6243, %vm6244
        %v6246 = vsel %vm6245, %v6237, %v6242
        %v6247 = vrsqrt.pop %v6204
        %v6248 = vmul.f32 %v6247, %v6204
        %v6249 = vmul.f32 %v6248, %v6247
        %v6250 = vmul.f32 0.5, %v6249
        %v6251 = vsub.f32 1.5, %v6250
        %v6252 = vmul.f32 %v6247, %v6251
        %vm6253 = vweird.f32 %v6204
        %vm6254 = vweird.f32 %v6247
        %vm6255 = vmor %vm6253, %vm6254
        %v6256 = vsel %vm6255, %v6247, %v6252
        %v6257 = vrsqrt.pop %v6205
        %v6258 = vmul.f32 %v6257, %v6205
        %v6259 = vmul.f32 %v6258, %v6257
        %v6260 = vmul.f32 0.5, %v6259
        %v6261 = vsub.f32 1.5, %v6260
        %v6262 = vmul.f32 %v6257, %v6261
        %vm6263 = vweird.f32 %v6205
        %vm6264 = vweird.f32 %v6257
        %vm6265 = vmor %vm6263, %vm6264
        %v6266 = vsel %vm6265, %v6257, %v6262
        %v6267 = vrsqrt.pop %v6206
        %v6268 = vmul.f32 %v6267, %v6206
        %v6269 = vmul.f32 %v6268, %v6267
        %v6270 = vmul.f32 0.5, %v6269
        %v6271 = vsub.f32 1.5, %v6270
        %v6272 = vmul.f32 %v6267, %v6271
        %vm6273 = vweird.f32 %v6206
        %vm6274 = vweird.f32 %v6267
        %vm6275 = vmor %vm6273, %vm6274
        %v6276 = vsel %vm6275, %v6267, %v6272
        %v6277 = vrsqrt.pop %v6207
        %v6278 = vmul.f32 %v6277, %v6207
        %v6279 = vmul.f32 %v6278, %v6277
        %v6280 = vmul.f32 0.5, %v6279
        %v6281 = vsub.f32 1.5, %v6280
        %v6282 = vmul.f32 %v6277, %v6281
        %vm6283 = vweird.f32 %v6207
        %vm6284 = vweird.f32 %v6277
        %vm6285 = vmor %vm6283, %vm6284
        %v6286 = vsel %vm6285, %v6277, %v6282
        %v6287 = vrsqrt.pop %v6208
        %v6288 = vmul.f32 %v6287, %v6208
        %v6289 = vmul.f32 %v6288, %v6287
        %v6290 = vmul.f32 0.5, %v6289
        %v6291 = vsub.f32 1.5, %v6290
        %v6292 = vmul.f32 %v6287, %v6291
        %vm6293 = vweird.f32 %v6208
        %vm6294 = vweird.f32 %v6287
        %vm6295 = vmor %vm6293, %vm6294
        %v6296 = vsel %vm6295, %v6287, %v6292
        %v6297 = vrsqrt.pop %v6209
        %v6298 = vmul.f32 %v6297, %v6209
        %v6299 = vmul.f32 %v6298, %v6297
        %v6300 = vmul.f32 0.5, %v6299
        %v6301 = vsub.f32 1.5, %v6300
        %v6302 = vmul.f32 %v6297, %v6301
        %vm6303 = vweird.f32 %v6209
        %vm6304 = vweird.f32 %v6297
        %vm6305 = vmor %vm6303, %vm6304
        %v6306 = vsel %vm6305, %v6297, %v6302
        %v6307 = vrsqrt.pop %v6210
        %v6308 = vmul.f32 %v6307, %v6210
        %v6309 = vmul.f32 %v6308, %v6307
        %v6310 = vmul.f32 0.5, %v6309
        %v6311 = vsub.f32 1.5, %v6310
        %v6312 = vmul.f32 %v6307, %v6311
        %vm6313 = vweird.f32 %v6210
        %vm6314 = vweird.f32 %v6307
        %vm6315 = vmor %vm6313, %vm6314
        %v6316 = vsel %vm6315, %v6307, %v6312
        %v6317 = vrsqrt.pop %v6211
        %v6318 = vmul.f32 %v6317, %v6211
        %v6319 = vmul.f32 %v6318, %v6317
        %v6320 = vmul.f32 0.5, %v6319
        %v6321 = vsub.f32 1.5, %v6320
        %v6322 = vmul.f32 %v6317, %v6321
        %vm6323 = vweird.f32 %v6211
        %vm6324 = vweird.f32 %v6317
        %vm6325 = vmor %vm6323, %vm6324
        %v6326 = vsel %vm6325, %v6317, %v6322
        %v6327 = vrsqrt.pop %v6212
        %v6328 = vmul.f32 %v6327, %v6212
        %v6329 = vmul.f32 %v6328, %v6327
        %v6330 = vmul.f32 0.5, %v6329
        %v6331 = vsub.f32 1.5, %v6330
        %v6332 = vmul.f32 %v6327, %v6331
        %vm6333 = vweird.f32 %v6212
        %vm6334 = vweird.f32 %v6327
        %vm6335 = vmor %vm6333, %vm6334
        %v6336 = vsel %vm6335, %v6327, %v6332
        %v6337 = vrsqrt.pop %v6213
        %v6338 = vmul.f32 %v6337, %v6213
        %v6339 = vmul.f32 %v6338, %v6337
        %v6340 = vmul.f32 0.5, %v6339
        %v6341 = vsub.f32 1.5, %v6340
        %v6342 = vmul.f32 %v6337, %v6341
        %vm6343 = vweird.f32 %v6213
        %vm6344 = vweird.f32 %v6337
        %vm6345 = vmor %vm6343, %vm6344
        %v6346 = vsel %vm6345, %v6337, %v6342
        %v6347 = vrsqrt.pop %v6214
        %v6348 = vmul.f32 %v6347, %v6214
        %v6349 = vmul.f32 %v6348, %v6347
        %v6350 = vmul.f32 0.5, %v6349
        %v6351 = vsub.f32 1.5, %v6350
        %v6352 = vmul.f32 %v6347, %v6351
        %vm6353 = vweird.f32 %v6214
        %vm6354 = vweird.f32 %v6347
        %vm6355 = vmor %vm6353, %vm6354
        %v6356 = vsel %vm6355, %v6347, %v6352
        %v6357 = vrsqrt.pop %v6215
        %v6358 = vmul.f32 %v6357, %v6215
        %v6359 = vmul.f32 %v6358, %v6357
        %v6360 = vmul.f32 0.5, %v6359
        %v6361 = vsub.f32 1.5, %v6360
        %v6362 = vmul.f32 %v6357, %v6361
        %vm6363 = vweird.f32 %v6215
        %vm6364 = vweird.f32 %v6357
        %vm6365 = vmor %vm6363, %vm6364
        %v6366 = vsel %vm6365, %v6357, %v6362
        %v6367 = vrsqrt.pop %v6216
        %v6368 = vmul.f32 %v6367, %v6216
        %v6369 = vmul.f32 %v6368, %v6367
        %v6370 = vmul.f32 0.5, %v6369
        %v6371 = vsub.f32 1.5, %v6370
        %v6372 = vmul.f32 %v6367, %v6371
        %vm6373 = vweird.f32 %v6216
        %vm6374 = vweird.f32 %v6367
        %vm6375 = vmor %vm6373, %vm6374
        %v6376 = vsel %vm6375, %v6367, %v6372
        %v6377 = vmul.f32 %v6105, %v6226
        %v6378 = vmul.f32 %v6106, %v6236
        %v6379 = vmul.f32 %v6107, %v6246
        %v6380 = vmul.f32 %v6108, %v6256
        %v6381 = vmul.f32 %v6109, %v6266
        %v6382 = vmul.f32 %v6110, %v6276
        %v6383 = vmul.f32 %v6111, %v6286
        %v6384 = vmul.f32 %v6112, %v6296
        %v6385 = vmul.f32 %v6113, %v6306
        %v6386 = vmul.f32 %v6114, %v6316
        %v6387 = vmul.f32 %v6115, %v6326
        %v6388 = vmul.f32 %v6116, %v6336
        %v6389 = vmul.f32 %v6117, %v6346
        %v6390 = vmul.f32 %v6118, %v6356
        %v6391 = vmul.f32 %v6119, %v6366
        %v6392 = vmul.f32 %v6120, %v6376
        %v6393 = vperm.slane %v3872, 0
        %v6394 = vmul.f32 %v6377, %v6393
        %v6395 = vmul.f32 %v6378, %v6393
        %v6396 = vmul.f32 %v6379, %v6393
        %v6397 = vmul.f32 %v6380, %v6393
        %v6398 = vmul.f32 %v6381, %v6393
        %v6399 = vmul.f32 %v6382, %v6393
        %v6400 = vmul.f32 %v6383, %v6393
        %v6401 = vmul.f32 %v6384, %v6393
        %v6402 = vmul.f32 %v6385, %v6393
        %v6403 = vmul.f32 %v6386, %v6393
        %v6404 = vmul.f32 %v6387, %v6393
        %v6405 = vmul.f32 %v6388, %v6393
        %v6406 = vmul.f32 %v6389, %v6393
        %v6407 = vmul.f32 %v6390, %v6393
        %v6408 = vmul.f32 %v6391, %v6393
        %v6409 = vmul.f32 %v6392, %v6393
        %v6410 = vperm.slane %v3873, 0
        %v6411 = vadd.f32 %v6394, %v6410
        %v6412 = vadd.f32 %v6395, %v6410
        %v6413 = vadd.f32 %v6396, %v6410
        %v6414 = vadd.f32 %v6397, %v6410
        %v6415 = vadd.f32 %v6398, %v6410
        %v6416 = vadd.f32 %v6399, %v6410
        %v6417 = vadd.f32 %v6400, %v6410
        %v6418 = vadd.f32 %v6401, %v6410
        %v6419 = vadd.f32 %v6402, %v6410
        %v6420 = vadd.f32 %v6403, %v6410
        %v6421 = vadd.f32 %v6404, %v6410
        %v6422 = vadd.f32 %v6405, %v6410
        %v6423 = vadd.f32 %v6406, %v6410
        %v6424 = vadd.f32 %v6407, %v6410
        %v6425 = vadd.f32 %v6408, %v6410
        %v6426 = vadd.f32 %v6409, %v6410
        %v6427 = vld [vmem:[%s10 + $0xe] sm:$0x1]
        %v6428 = vld [vmem:[%s10 + $0xf] sm:$0x1]
        %6430 = vset.pattern.permute.xlu0 0
        %6431 = vperm.xlu0 %6430, %v6428
        %v6432 = vpop.permute.xlu0 %6431
        %v6435 = vsel %vm949, %v6427, 0
        %v6438 = vsel %vm949, %v6411, 0
        %v6441 = vsel %vm949, %v6412, 0
        %v6444 = vsel %vm949, %v6413, 0
        %v6447 = vsel %vm949, %v6414, 0
        %v6450 = vsel %vm949, %v6415, 0
        %v6453 = vsel %vm949, %v6416, 0
        %v6456 = vsel %vm949, %v6417, 0
        %v6459 = vsel %vm949, %v6418, 0
        %v6462 = vsel %vm949, %v6419, 0
        %v6465 = vsel %vm949, %v6420, 0
        %v6468 = vsel %vm949, %v6421, 0
        %v6471 = vsel %vm949, %v6422, 0
        %v6474 = vsel %vm949, %v6423, 0
        %v6477 = vsel %vm949, %v6424, 0
        %v6480 = vsel %vm949, %v6425, 0
        %v6483 = vsel %vm949, %v6426, 0
        %6485 = vmatpush.xpose.msra.mxu0 %v6483
        %6486 = vmatpush.xpose.msra.mxu0 %v6480
        %6487 = vmatpush.xpose.msra.mxu0 %v6477
        %6488 = vmatpush.xpose.msra.mxu0 %v6474
        %6489 = vmatpush.xpose.msra.mxu0 %v6471
        %6490 = vmatpush.xpose.msra.mxu0 %v6468
        %6491 = vmatpush.xpose.msra.mxu0 %v6465
        %6492 = vmatpush.xpose.msra.mxu0 %v6462
        %6493 = vmatpush.xpose.msra.mxu0 %v6459
        %6494 = vmatpush.xpose.msra.mxu0 %v6456
        %6495 = vmatpush.xpose.msra.mxu0 %v6453
        %6496 = vmatpush.xpose.msra.mxu0 %v6450
        %6497 = vmatpush.xpose.msra.mxu0 %v6447
        %6498 = vmatpush.xpose.msra.mxu0 %v6444
        %6499 = vmatpush.xpose.msra.mxu0 %v6441
        %6500 = vmatpush.xpose.msra.mxu0 %v6438
        %6501 = vmatmul.f32.gmra.mxu0 %v6435
        %v6502 = vpop.f32.mrf.mxu0
        %v6503 = vadd.f32 %v6432, %v6502
        %6504 = vdwg.mxu0
        %v6505 = vxor.u32 %v6503, 2147483648
        %v6506 = vmul.f32 %v6505, 1.442695
        %v6507 = vpow.pop %v6506
        %v6508 = vadd.f32 %v6507, 1.0
        %v6509 = vrcp.pop %v6508
        %v6510 = vmul.f32 %v6508, %v6509
        %v6511 = vsub.f32 1.0, %v6510
        %v6512 = vmul.f32 %v6509, %v6511
        %v6513 = vadd.f32 %v6509, %v6512
        %vm6514 = vweird.f32 %v6508
        %vm6515 = vweird.f32 %v6509
        %vm6516 = vmor %vm6514, %vm6515
        %v6517 = vsel %vm6516, %v6509, %v6513
        %v6518 = vand.u32 2147483647, %v6508
        %vm6519 = vcmp.eq.f32.partialorder %v6518, 8.507059e+37
        %v6520 = vand.u32 %v6508, 2147483648
        %v6521 = vor.u32 1.1754944e-38, %v6520
        %v6522 = vsel %vm6519, %v6521, %v6517
        %v6523 = vmul.f32 1.0, %v6522
        %6524 = vst [vmem:[%s395] sm:$0x1] %v6523
        %s6525 = sand.u32 %s274, 1
        %s6526 = scalar_lea.sflag [#allocation3], %s6525
        %s6527 = sand.u32 %s274, 1
        %s6528 = scalar_lea.vmem [#allocation2], %s6527
        // Predicated region
        $region65: #{tpu_custom_call.1} parent=63 // pred_check
          %p6529 = pneg %p284
        $region66: #{tpu_custom_call.1} parent=63 // pred_check_branch
          %6531 = sbr.rel (%p6529) target = $region68
        $region67: #{tpu_custom_call.1} parent=63 // pred_region
          %6533 = vsyncadd %s6526, 0
          %s6534 = scalar_lea.hbm %s11, %s25
          %s6536 = sshll.u32 %s6528, 4
          %s6537 = int_to_ptr.vmem [resolvable:$true] %s6536
          %s6538 = sshll.u32 %s6534, 4
          %s6539 = int_to_ptr.hbm [resolvable:$true] %s6538
          %6541 = dma.vmem_to_hbm [thread:$0]  %s6537, 16, %s6539, %s6526
        $region68: #{tpu_custom_call.1} parent=63 // pred_fallthru
          _
      $region64: #{tpu_custom_call.1} parent=5 // pred_fallthru
        _
      %p6542 = scmp.le.s32.totalorder 2, %s20
      // Predicated region
      $region69: #{tpu_custom_call.1} parent=5 // pred_check
        %p6543 = pneg %p6542
      $region70: #{tpu_custom_call.1} parent=5 // pred_check_branch
        %6545 = sbr.rel (%p6543) target = $region72
      $region71: #{tpu_custom_call.1} parent=5 // pred_region
        %s6546 = ssub.s32 %s20, 2
        // Predicated region
        $region73: #{tpu_custom_call.1} parent=71 // pred_check
          %p6547 = pneg %p290
        $region74: #{tpu_custom_call.1} parent=71 // pred_check_branch
          %6549 = sbr.rel (%p6547) target = $region76
        $region75: #{tpu_custom_call.1} parent=71 // pred_region
          %s6550 = sand.u32 %s275, 1
          %s6551 = scalar_lea.sflag [#allocation3], %s6550
          %s6552 = sand.u32 %s275, 1
          %s6553 = scalar_lea.vmem [#allocation2], %s6552
          %6555 = dma.done %s6551, 16
        $region76: #{tpu_custom_call.1} parent=71 // pred_fallthru
          _
      $region72: #{tpu_custom_call.1} parent=5 // pred_fallthru
        _
    $region6: #{tpu_custom_call.1} parent=1 // loop_footer
      %s24 = sadd.s32 1, %s20
    $region7: #{tpu_custom_call.1} parent=1 // loop_footer_branch
      %19 = sbr.rel target = $region3
    $region8: #{tpu_custom_call.1} parent=1 // loop_exit
      _
    %6556 = vsyncpa [#allocation3], 1
    %s6557 = scalar_lea.sflag [#allocation3], 1
    %6558 = vsyncpa %s6557, 1

</llo_original>
